<compile_context>
chip_gen: v7x
topology: tpu7x:2x2x1
jax: 0.10.0
libtpu: 0.0.40
codegen_flags: <defaults>
</compile_context>

<pallas_src>
import jax
import jax.numpy as jnp
from jax import lax
from jax.experimental import pallas as pl
from jax.experimental.pallas import tpu as pltpu


CO_BLK = 128                      # lane-dense output-channel block
VMEM_BUDGET = 8 * 1024 * 1024     # per-grid-step working-set target (bytes)


def _round_up(x, m):
    return (x + m - 1) // m * m


def _distinct_shifts(k, p):
    """Group the 3*k*k (plane, tap) pairs by their (dt, dh, dw) input shift.

    For k=3 / p=1 this yields 19 distinct shifts instead of 27 taps."""
    shift_map = {}
    for a in range(k):
        for b in range(k):
            for plane, sh in enumerate(((0, a - p, b - p),     # hw plane
                                        (a - p, 0, b - p),     # tw plane
                                        (a - p, b - p, 0))):   # th plane
                shift_map.setdefault(sh, []).append((plane, a, b))
    return sorted(shift_map), shift_map


def _pick_t_tile(T, H, W, Cin, p, comp_bytes, out_bytes, n_shifts):
    """Largest T-tile whose per-grid-step VMEM working set fits the budget."""
    Hp, Wp = H + 2 * p, W + 2 * p
    candidates = [tt for tt in range(1, T + 1)
                  if T % tt == 0 and (tt == T or (tt * H * W) % 8 == 0)]

    def step_bytes(tt):
        m = tt * H * W
        in_blk = (tt + 2 * p) * Hp * Wp * Cin * comp_bytes * 2   # double-buffered
        w_blk = n_shifts * Cin * CO_BLK * comp_bytes * 2
        out_blk = m * CO_BLK * out_bytes * 2                      # double-buffered
        acc = m * CO_BLK * 4                                      # f32 scratch
        tmp = 2 * m * Cin * comp_bytes                            # slice temporaries
        return in_blk + w_blk + out_blk + acc + tmp

    fitting = [tt for tt in candidates if step_bytes(tt) <= VMEM_BUDGET]
    return max(fitting) if fitting else min(candidates)


def costa_pallas(x_ncdhw, weight_2d, alpha, bias, padding=1,
                 *, compute_dtype=jnp.bfloat16):
    """CoSTa forward (stride=1, dilation=1, groups=1).

    x_ncdhw  : (N, Cin, T, H, W)
    weight_2d: (Cout, Cin, k, k)   (the module's weight with dim 2 squeezed)
    alpha    : (3, Cout)
    bias     : (Cout,)
    """
    N, Cin, T, H, W = x_ncdhw.shape
    Cout, _, k, _ = weight_2d.shape
    p = padding
    assert k == 2 * p + 1, "CoSTa is only shape-preserving for k == 2*padding+1"

    Cout_p = _round_up(Cout, CO_BLK)
    Hp, Wp = H + 2 * p, W + 2 * p
    out_dtype = x_ncdhw.dtype

    shifts, shift_map = _distinct_shifts(k, p)
    S = len(shifts)

    # ---- weights: fold softmax(alpha) + all 3 planes per distinct shift ----
    a_sm = jax.nn.softmax(alpha.astype(jnp.float32), axis=0)          # (3, Cout)
    w2 = jnp.transpose(weight_2d, (2, 3, 1, 0)).astype(jnp.float32)   # (k,k,Cin,Cout)
    w_s = jnp.zeros((S, Cin, Cout), jnp.float32)
    for s, sh in enumerate(shifts):
        for plane, a, b in shift_map[sh]:
            w_s = w_s.at[s].add(w2[a, b] * a_sm[plane][None, :])
    w_s = jnp.pad(w_s, ((0, 0), (0, 0), (0, Cout_p - Cout)))
    w_s = w_s.astype(compute_dtype)                                    # (S, Cin, Cout_p)

    bias_p = jnp.pad(bias.astype(jnp.float32),
                     (0, Cout_p - Cout)).reshape(1, Cout_p)

    # ---- input: NDHWC, cast, zero-pad, halo'd T-tiles --------------------
    comp_bytes = jnp.dtype(compute_dtype).itemsize
    out_bytes = jnp.dtype(out_dtype).itemsize
    Tt = _pick_t_tile(T, H, W, Cin, p, comp_bytes, out_bytes, S)
    nT = T // Tt
    Mt = Tt * H * W

    x = jnp.transpose(x_ncdhw, (0, 2, 3, 4, 1)).astype(compute_dtype)  # NDHWC
    xpad = jnp.pad(x, ((0, 0), (p, p), (p, p), (p, p), (0, 0)))
    if nT == 1:
        xov = xpad                                   # (N, T+2p, Hp, Wp, Cin)
    else:
        # p-overlapped T windows; duplication overhead is only 2p/Tt.
        xov = jnp.stack([xpad[:, i * Tt: i * Tt + Tt + 2 * p]
                         for i in range(nT)], axis=1)
        xov = xov.reshape(N * nT, Tt + 2 * p, Hp, Wp, Cin)

    def kernel(xt_ref, w_ref, bias_ref, out_ref, acc_ref):
        # xt_ref  : (Tt+2p, Hp, Wp, Cin)  halo'd, zero-padded input tile
        # w_ref   : (S, Cin, CO_BLK)      per-shift alpha-folded weights
        # bias_ref: (1, CO_BLK)           f32
        # out_ref : (Mt, CO_BLK)          lane-dense output slab
        # acc_ref : (Mt, CO_BLK)          f32 VMEM scratch accumulator
        acc_ref[...] = jnp.broadcast_to(bias_ref[...], (Mt, CO_BLK))
        # Static loop over the S distinct shifts; each step routes through the
        # VMEM accumulator, so only one shifted slab + one matmul result are
        # live at a time (no concat, no cross-lane packing).
        for s, (dt, dh, dw) in enumerate(shifts):
            xs = xt_ref[p + dt:p + dt + Tt,
                        p + dh:p + dh + H,
                        p + dw:p + dw + W, :].reshape(Mt, Cin)
            acc_ref[...] += jnp.dot(xs, w_ref[s],
                                    preferred_element_type=jnp.float32)
        out_ref[...] = acc_ref[...].astype(out_ref.dtype)

    out_flat = pl.pallas_call(
        kernel,
        out_shape=jax.ShapeDtypeStruct((N * nT, Mt, Cout_p), out_dtype),
        grid_spec=pltpu.PrefetchScalarGridSpec(
            num_scalar_prefetch=0,
            grid=(N * nT, Cout_p // CO_BLK),
            in_specs=[
                pl.BlockSpec((None, Tt + 2 * p, Hp, Wp, Cin),
                             lambda g, j: (g, 0, 0, 0, 0)),
                pl.BlockSpec((S, Cin, CO_BLK), lambda g, j: (0, 0, j)),
                pl.BlockSpec((1, CO_BLK), lambda g, j: (0, j)),
            ],
            out_specs=pl.BlockSpec((None, Mt, CO_BLK),
                                   lambda g, j: (g, 0, j)),
            scratch_shapes=[pltpu.VMEM((Mt, CO_BLK), jnp.float32)],
        ),
        compiler_params=pltpu.CompilerParams(
            dimension_semantics=("parallel", "arbitrary")),
    )(xov, w_s, bias_p)

    out = out_flat.reshape(N, T, H, W, Cout_p)[..., :Cout]
    return jnp.transpose(out, (0, 4, 1, 2, 3))  # back to NCDHW


def costa_reference(x_ncdhw, weight_2d, alpha, bias, padding=1):
    """Plain-JAX reference matching the PyTorch forward (for validation)."""
    p = padding
    w_hw = weight_2d[:, :, None, :, :]   # (O, I, 1, k, k)
    w_tw = weight_2d[:, :, :, None, :]   # (O, I, k, 1, k)
    w_th = weight_2d[:, :, :, :, None]   # (O, I, k, k, 1)
    dn = ('NCDHW', 'OIDHW', 'NCDHW')

    def conv(x, w, pads):
        return lax.conv_general_dilated(
            x, w, window_strides=(1, 1, 1), padding=pads,
            dimension_numbers=dn, precision=lax.Precision.HIGHEST)

    hw = conv(x_ncdhw, w_hw, [(0, 0), (p, p), (p, p)])
    tw = conv(x_ncdhw, w_tw, [(p, p), (0, 0), (p, p)])
    th = conv(x_ncdhw, w_th, [(p, p), (p, p), (0, 0)])
    a = jax.nn.softmax(alpha, axis=0)
    a = a[:, None, :, None, None, None]  # (3, 1, Cout, 1, 1, 1)
    out = hw * a[0] + tw * a[1] + th * a[2]
    out = out + bias[None, :, None, None, None]
    return out


if __name__ == "__main__":
    # Small shapes consistent with the module: 5D NCDHW input.
    N, Cin, T, H, W = 2, 4, 4, 8, 8
    Cout, k, padding = 8, 3, 1

    key = jax.random.PRNGKey(0)
    kx, kw, kb = jax.random.split(key, 3)

    x = jax.random.normal(kx, (N, Cin, T, H, W), dtype=jnp.float32)

    # Parameter init mirroring CoSTa.__init__ / init_weights():
    #   weight: kaiming-normal (fan_in = Cin * 1 * k * k),
    #   alpha[0] = 0.7, alpha[1:] = -0.7; bias given a small nonzero value so
    #   the bias path is genuinely exercised.
    fan_in = Cin * 1 * k * k
    std = (2.0 / fan_in) ** 0.5
    weight_5d = std * jax.random.normal(kw, (Cout, Cin, 1, k, k),
                                        dtype=jnp.float32)
    weight_2d = weight_5d[:, :, 0, :, :]              # squeeze(2) -> (O, I, k, k)
    alpha = jnp.concatenate([jnp.full((1, Cout), 0.7, jnp.float32),
                             jnp.full((2, Cout), -0.7, jnp.float32)], axis=0)
    bias = 0.1 * jax.random.normal(kb, (Cout,), dtype=jnp.float32)

    ref = jax.block_until_ready(
        costa_reference(x, weight_2d, alpha, bias, padding=padding))

    # 1) f32 MXU operands: tight numerical check.
    out_f32 = jax.block_until_ready(
        costa_pallas(x, weight_2d, alpha, bias, padding=padding,
                     compute_dtype=jnp.float32))
    assert out_f32.shape == (N, Cout, T, H, W), out_f32.shape
    assert jnp.allclose(out_f32, ref, atol=1e-3, rtol=1e-3), \
        float(jnp.max(jnp.abs(out_f32 - ref)))

    # 2) bf16 MXU operands (default fast path), f32 accumulation: loose check.
    out_bf16 = jax.block_until_ready(
        costa_pallas(x, weight_2d, alpha, bias, padding=padding))
    assert out_bf16.shape == (N, Cout, T, H, W), out_bf16.shape
    assert jnp.allclose(out_bf16, ref, atol=3e-2, rtol=3e-2), \
        float(jnp.max(jnp.abs(out_bf16 - ref)))

    print("KERNEL_OK")
</pallas_src>

<mosaic_0001>
module attributes {stable_mosaic.version = 11 : i64} {
  func.func @kernel(%arg0: i32, %arg1: i32, %arg2: memref<1x6x10x10x4xf32, #tpu.memory_space<vmem>>, %arg3: memref<19x4x128xf32, #tpu.memory_space<vmem>>, %arg4: memref<1x128xf32, #tpu.memory_space<vmem>>, %arg5: memref<1x256x128xf32, #tpu.memory_space<vmem>>, %arg6: memref<256x128xf32, #tpu.memory_space<vmem>>) attributes {dimension_semantics = [#tpu.dimension_semantics<parallel>, #tpu.dimension_semantics<arbitrary>], iteration_bounds = array<i64: 2, 1>, scalar_prefetch = 0 : i64, scratch_operands = 1 : i64, tpu.core_type = #tpu.core_type<tc>, window_params = [{transform_indices = @transform_0, window_bounds = array<i64: 1, 6, 10, 10, 4>}, {transform_indices = @transform_1, window_bounds = array<i64: 19, 4, 128>}, {transform_indices = @transform_2, window_bounds = array<i64: 1, 128>}, {transform_indices = @transform_3, window_bounds = array<i64: 1, 256, 128>}]} {
    %c0 = arith.constant 0 : index
    %c0_0 = arith.constant 0 : index
    %0 = vector.load %arg4[%c0, %c0_0] : memref<1x128xf32, #tpu.memory_space<vmem>>, vector<1x128xf32>
    %1 = vector.shape_cast %0 : vector<1x128xf32> to vector<1x128xf32>
    %2 = vector.broadcast %1 : vector<1x128xf32> to vector<256x128xf32>
    %c0_1 = arith.constant 0 : index
    %c0_2 = arith.constant 0 : index
    %3 = vector.load %arg6[%c0_1, %c0_2] : memref<256x128xf32, #tpu.memory_space<vmem>>, vector<256x128xf32>
    tpu.vector_store %arg6[%c0_1, %c0_2], %2 {strides = array<i32>} : memref<256x128xf32, #tpu.memory_space<vmem>>, vector<256x128xf32>,
    %c0_3 = arith.constant 0 : index
    %c0_4 = arith.constant 0 : index
    %c0_5 = arith.constant 0 : index
    %c1 = arith.constant 1 : index
    %c0_6 = arith.constant 0 : index
    %4 = vector.load %arg2[%c0_3, %c0_4, %c0_5, %c1, %c0_6] : memref<1x6x10x10x4xf32, #tpu.memory_space<vmem>>, vector<1x4x8x8x4xf32>
    %5 = vector.shape_cast %4 : vector<1x4x8x8x4xf32> to vector<4x8x8x4xf32>
    %6 = vector.shape_cast %5 : vector<4x8x8x4xf32> to vector<256x4xf32>
    %c0_7 = arith.constant 0 : index
    %c0_8 = arith.constant 0 : index
    %7 = vector.load %arg6[%c0_7, %c0_8] : memref<256x128xf32, #tpu.memory_space<vmem>>, vector<256x128xf32>
    %c0_9 = arith.constant 0 : index
    %c0_10 = arith.constant 0 : index
    %c0_11 = arith.constant 0 : index
    %8 = vector.load %arg3[%c0_9, %c0_10, %c0_11] : memref<19x4x128xf32, #tpu.memory_space<vmem>>, vector<1x4x128xf32>
    %9 = vector.shape_cast %8 : vector<1x4x128xf32> to vector<4x128xf32>
    %cst = arith.constant dense<0.000000e+00> : vector<256x128xf32>
    %10 = tpu.matmul %6, %9, %cst {dimension_numbers = #tpu.dot_dimension_numbers<[1], [0], [0], [1], [0, 0, 1, 1], [], []>} : vector<256x4xf32>, vector<4x128xf32>, vector<256x128xf32> -> vector<256x128xf32>
    %11 = arith.addf %7, %10 : vector<256x128xf32>
    %c0_12 = arith.constant 0 : index
    %c0_13 = arith.constant 0 : index
    %12 = vector.load %arg6[%c0_12, %c0_13] : memref<256x128xf32, #tpu.memory_space<vmem>>, vector<256x128xf32>
    tpu.vector_store %arg6[%c0_12, %c0_13], %11 {strides = array<i32>} : memref<256x128xf32, #tpu.memory_space<vmem>>, vector<256x128xf32>,
    %c0_14 = arith.constant 0 : index
    %c0_15 = arith.constant 0 : index
    %c1_16 = arith.constant 1 : index
    %c0_17 = arith.constant 0 : index
    %c0_18 = arith.constant 0 : index
    %13 = vector.load %arg2[%c0_14, %c0_15, %c1_16, %c0_17, %c0_18] : memref<1x6x10x10x4xf32, #tpu.memory_space<vmem>>, vector<1x4x8x8x4xf32>
    %14 = vector.shape_cast %13 : vector<1x4x8x8x4xf32> to vector<4x8x8x4xf32>
    %15 = vector.shape_cast %14 : vector<4x8x8x4xf32> to vector<256x4xf32>
    %c0_19 = arith.constant 0 : index
    %c0_20 = arith.constant 0 : index
    %16 = vector.load %arg6[%c0_19, %c0_20] : memref<256x128xf32, #tpu.memory_space<vmem>>, vector<256x128xf32>
    %c1_21 = arith.constant 1 : index
    %c0_22 = arith.constant 0 : index
    %c0_23 = arith.constant 0 : index
    %17 = vector.load %arg3[%c1_21, %c0_22, %c0_23] : memref<19x4x128xf32, #tpu.memory_space<vmem>>, vector<1x4x128xf32>
    %18 = vector.shape_cast %17 : vector<1x4x128xf32> to vector<4x128xf32>
    %cst_24 = arith.constant dense<0.000000e+00> : vector<256x128xf32>
    %19 = tpu.matmul %15, %18, %cst_24 {dimension_numbers = #tpu.dot_dimension_numbers<[1], [0], [0], [1], [0, 0, 1, 1], [], []>} : vector<256x4xf32>, vector<4x128xf32>, vector<256x128xf32> -> vector<256x128xf32>
    %20 = arith.addf %16, %19 : vector<256x128xf32>
    %c0_25 = arith.constant 0 : index
    %c0_26 = arith.constant 0 : index
    %21 = vector.load %arg6[%c0_25, %c0_26] : memref<256x128xf32, #tpu.memory_space<vmem>>, vector<256x128xf32>
    tpu.vector_store %arg6[%c0_25, %c0_26], %20 {strides = array<i32>} : memref<256x128xf32, #tpu.memory_space<vmem>>, vector<256x128xf32>,
    %c0_27 = arith.constant 0 : index
    %c0_28 = arith.constant 0 : index
    %c1_29 = arith.constant 1 : index
    %c1_30 = arith.constant 1 : index
    %c0_31 = arith.constant 0 : index
    %22 = vector.load %arg2[%c0_27, %c0_28, %c1_29, %c1_30, %c0_31] : memref<1x6x10x10x4xf32, #tpu.memory_space<vmem>>, vector<1x4x8x8x4xf32>
    %23 = vector.shape_cast %22 : vector<1x4x8x8x4xf32> to vector<4x8x8x4xf32>
    %24 = vector.shape_cast %23 : vector<4x8x8x4xf32> to vector<256x4xf32>
    %c0_32 = arith.constant 0 : index
    %c0_33 = arith.constant 0 : index
    %25 = vector.load %arg6[%c0_32, %c0_33] : memref<256x128xf32, #tpu.memory_space<vmem>>, vector<256x128xf32>
    %c2 = arith.constant 2 : index
    %c0_34 = arith.constant 0 : index
    %c0_35 = arith.constant 0 : index
    %26 = vector.load %arg3[%c2, %c0_34, %c0_35] : memref<19x4x128xf32, #tpu.memory_space<vmem>>, vector<1x4x128xf32>
    %27 = vector.shape_cast %26 : vector<1x4x128xf32> to vector<4x128xf32>
    %cst_36 = arith.constant dense<0.000000e+00> : vector<256x128xf32>
    %28 = tpu.matmul %24, %27, %cst_36 {dimension_numbers = #tpu.dot_dimension_numbers<[1], [0], [0], [1], [0, 0, 1, 1], [], []>} : vector<256x4xf32>, vector<4x128xf32>, vector<256x128xf32> -> vector<256x128xf32>
    %29 = arith.addf %25, %28 : vector<256x128xf32>
    %c0_37 = arith.constant 0 : index
    %c0_38 = arith.constant 0 : index
    %30 = vector.load %arg6[%c0_37, %c0_38] : memref<256x128xf32, #tpu.memory_space<vmem>>, vector<256x128xf32>
    tpu.vector_store %arg6[%c0_37, %c0_38], %29 {strides = array<i32>} : memref<256x128xf32, #tpu.memory_space<vmem>>, vector<256x128xf32>,
    %c0_39 = arith.constant 0 : index
    %c0_40 = arith.constant 0 : index
    %c1_41 = arith.constant 1 : index
    %c2_42 = arith.constant 2 : index
    %c0_43 = arith.constant 0 : index
    %31 = vector.load %arg2[%c0_39, %c0_40, %c1_41, %c2_42, %c0_43] : memref<1x6x10x10x4xf32, #tpu.memory_space<vmem>>, vector<1x4x8x8x4xf32>
    %32 = vector.shape_cast %31 : vector<1x4x8x8x4xf32> to vector<4x8x8x4xf32>
    %33 = vector.shape_cast %32 : vector<4x8x8x4xf32> to vector<256x4xf32>
    %c0_44 = arith.constant 0 : index
    %c0_45 = arith.constant 0 : index
    %34 = vector.load %arg6[%c0_44, %c0_45] : memref<256x128xf32, #tpu.memory_space<vmem>>, vector<256x128xf32>
    %c3 = arith.constant 3 : index
    %c0_46 = arith.constant 0 : index
    %c0_47 = arith.constant 0 : index
    %35 = vector.load %arg3[%c3, %c0_46, %c0_47] : memref<19x4x128xf32, #tpu.memory_space<vmem>>, vector<1x4x128xf32>
    %36 = vector.shape_cast %35 : vector<1x4x128xf32> to vector<4x128xf32>
    %cst_48 = arith.constant dense<0.000000e+00> : vector<256x128xf32>
    %37 = tpu.matmul %33, %36, %cst_48 {dimension_numbers = #tpu.dot_dimension_numbers<[1], [0], [0], [1], [0, 0, 1, 1], [], []>} : vector<256x4xf32>, vector<4x128xf32>, vector<256x128xf32> -> vector<256x128xf32>
    %38 = arith.addf %34, %37 : vector<256x128xf32>
    %c0_49 = arith.constant 0 : index
    %c0_50 = arith.constant 0 : index
    %39 = vector.load %arg6[%c0_49, %c0_50] : memref<256x128xf32, #tpu.memory_space<vmem>>, vector<256x128xf32>
    tpu.vector_store %arg6[%c0_49, %c0_50], %38 {strides = array<i32>} : memref<256x128xf32, #tpu.memory_space<vmem>>, vector<256x128xf32>,
    %c0_51 = arith.constant 0 : index
    %c0_52 = arith.constant 0 : index
    %c2_53 = arith.constant 2 : index
    %c1_54 = arith.constant 1 : index
    %c0_55 = arith.constant 0 : index
    %40 = vector.load %arg2[%c0_51, %c0_52, %c2_53, %c1_54, %c0_55] : memref<1x6x10x10x4xf32, #tpu.memory_space<vmem>>, vector<1x4x8x8x4xf32>
    %41 = vector.shape_cast %40 : vector<1x4x8x8x4xf32> to vector<4x8x8x4xf32>
    %42 = vector.shape_cast %41 : vector<4x8x8x4xf32> to vector<256x4xf32>
    %c0_56 = arith.constant 0 : index
    %c0_57 = arith.constant 0 : index
    %43 = vector.load %arg6[%c0_56, %c0_57] : memref<256x128xf32, #tpu.memory_space<vmem>>, vector<256x128xf32>
    %c4 = arith.constant 4 : index
    %c0_58 = arith.constant 0 : index
    %c0_59 = arith.constant 0 : index
    %44 = vector.load %arg3[%c4, %c0_58, %c0_59] : memref<19x4x128xf32, #tpu.memory_space<vmem>>, vector<1x4x128xf32>
    %45 = vector.shape_cast %44 : vector<1x4x128xf32> to vector<4x128xf32>
    %cst_60 = arith.constant dense<0.000000e+00> : vector<256x128xf32>
    %46 = tpu.matmul %42, %45, %cst_60 {dimension_numbers = #tpu.dot_dimension_numbers<[1], [0], [0], [1], [0, 0, 1, 1], [], []>} : vector<256x4xf32>, vector<4x128xf32>, vector<256x128xf32> -> vector<256x128xf32>
    %47 = arith.addf %43, %46 : vector<256x128xf32>
    %c0_61 = arith.constant 0 : index
    %c0_62 = arith.constant 0 : index
    %48 = vector.load %arg6[%c0_61, %c0_62] : memref<256x128xf32, #tpu.memory_space<vmem>>, vector<256x128xf32>
    tpu.vector_store %arg6[%c0_61, %c0_62], %47 {strides = array<i32>} : memref<256x128xf32, #tpu.memory_space<vmem>>, vector<256x128xf32>,
    %c0_63 = arith.constant 0 : index
    %c1_64 = arith.constant 1 : index
    %c0_65 = arith.constant 0 : index
    %c0_66 = arith.constant 0 : index
    %c0_67 = arith.constant 0 : index
    %49 = vector.load %arg2[%c0_63, %c1_64, %c0_65, %c0_66, %c0_67] : memref<1x6x10x10x4xf32, #tpu.memory_space<vmem>>, vector<1x4x8x8x4xf32>
    %50 = vector.shape_cast %49 : vector<1x4x8x8x4xf32> to vector<4x8x8x4xf32>
    %51 = vector.shape_cast %50 : vector<4x8x8x4xf32> to vector<256x4xf32>
    %c0_68 = arith.constant 0 : index
    %c0_69 = arith.constant 0 : index
    %52 = vector.load %arg6[%c0_68, %c0_69] : memref<256x128xf32, #tpu.memory_space<vmem>>, vector<256x128xf32>
    %c5 = arith.constant 5 : index
    %c0_70 = arith.constant 0 : index
    %c0_71 = arith.constant 0 : index
    %53 = vector.load %arg3[%c5, %c0_70, %c0_71] : memref<19x4x128xf32, #tpu.memory_space<vmem>>, vector<1x4x128xf32>
    %54 = vector.shape_cast %53 : vector<1x4x128xf32> to vector<4x128xf32>
    %cst_72 = arith.constant dense<0.000000e+00> : vector<256x128xf32>
    %55 = tpu.matmul %51, %54, %cst_72 {dimension_numbers = #tpu.dot_dimension_numbers<[1], [0], [0], [1], [0, 0, 1, 1], [], []>} : vector<256x4xf32>, vector<4x128xf32>, vector<256x128xf32> -> vector<256x128xf32>
    %56 = arith.addf %52, %55 : vector<256x128xf32>
    %c0_73 = arith.constant 0 : index
    %c0_74 = arith.constant 0 : index
    %57 = vector.load %arg6[%c0_73, %c0_74] : memref<256x128xf32, #tpu.memory_space<vmem>>, vector<256x128xf32>
    tpu.vector_store %arg6[%c0_73, %c0_74], %56 {strides = array<i32>} : memref<256x128xf32, #tpu.memory_space<vmem>>, vector<256x128xf32>,
    %c0_75 = arith.constant 0 : index
    %c1_76 = arith.constant 1 : index
    %c0_77 = arith.constant 0 : index
    %c1_78 = arith.constant 1 : index
    %c0_79 = arith.constant 0 : index
    %58 = vector.load %arg2[%c0_75, %c1_76, %c0_77, %c1_78, %c0_79] : memref<1x6x10x10x4xf32, #tpu.memory_space<vmem>>, vector<1x4x8x8x4xf32>
    %59 = vector.shape_cast %58 : vector<1x4x8x8x4xf32> to vector<4x8x8x4xf32>
    %60 = vector.shape_cast %59 : vector<4x8x8x4xf32> to vector<256x4xf32>
    %c0_80 = arith.constant 0 : index
    %c0_81 = arith.constant 0 : index
    %61 = vector.load %arg6[%c0_80, %c0_81] : memref<256x128xf32, #tpu.memory_space<vmem>>, vector<256x128xf32>
    %c6 = arith.constant 6 : index
    %c0_82 = arith.constant 0 : index
    %c0_83 = arith.constant 0 : index
    %62 = vector.load %arg3[%c6, %c0_82, %c0_83] : memref<19x4x128xf32, #tpu.memory_space<vmem>>, vector<1x4x128xf32>
    %63 = vector.shape_cast %62 : vector<1x4x128xf32> to vector<4x128xf32>
    %cst_84 = arith.constant dense<0.000000e+00> : vector<256x128xf32>
    %64 = tpu.matmul %60, %63, %cst_84 {dimension_numbers = #tpu.dot_dimension_numbers<[1], [0], [0], [1], [0, 0, 1, 1], [], []>} : vector<256x4xf32>, vector<4x128xf32>, vector<256x128xf32> -> vector<256x128xf32>
    %65 = arith.addf %61, %64 : vector<256x128xf32>
    %c0_85 = arith.constant 0 : index
    %c0_86 = arith.constant 0 : index
    %66 = vector.load %arg6[%c0_85, %c0_86] : memref<256x128xf32, #tpu.memory_space<vmem>>, vector<256x128xf32>
    tpu.vector_store %arg6[%c0_85, %c0_86], %65 {strides = array<i32>} : memref<256x128xf32, #tpu.memory_space<vmem>>, vector<256x128xf32>,
    %c0_87 = arith.constant 0 : index
    %c1_88 = arith.constant 1 : index
    %c0_89 = arith.constant 0 : index
    %c2_90 = arith.constant 2 : index
    %c0_91 = arith.constant 0 : index
    %67 = vector.load %arg2[%c0_87, %c1_88, %c0_89, %c2_90, %c0_91] : memref<1x6x10x10x4xf32, #tpu.memory_space<vmem>>, vector<1x4x8x8x4xf32>
    %68 = vector.shape_cast %67 : vector<1x4x8x8x4xf32> to vector<4x8x8x4xf32>
    %69 = vector.shape_cast %68 : vector<4x8x8x4xf32> to vector<256x4xf32>
    %c0_92 = arith.constant 0 : index
    %c0_93 = arith.constant 0 : index
    %70 = vector.load %arg6[%c0_92, %c0_93] : memref<256x128xf32, #tpu.memory_space<vmem>>, vector<256x128xf32>
    %c7 = arith.constant 7 : index
    %c0_94 = arith.constant 0 : index
    %c0_95 = arith.constant 0 : index
    %71 = vector.load %arg3[%c7, %c0_94, %c0_95] : memref<19x4x128xf32, #tpu.memory_space<vmem>>, vector<1x4x128xf32>
    %72 = vector.shape_cast %71 : vector<1x4x128xf32> to vector<4x128xf32>
    %cst_96 = arith.constant dense<0.000000e+00> : vector<256x128xf32>
    %73 = tpu.matmul %69, %72, %cst_96 {dimension_numbers = #tpu.dot_dimension_numbers<[1], [0], [0], [1], [0, 0, 1, 1], [], []>} : vector<256x4xf32>, vector<4x128xf32>, vector<256x128xf32> -> vector<256x128xf32>
    %74 = arith.addf %70, %73 : vector<256x128xf32>
    %c0_97 = arith.constant 0 : index
    %c0_98 = arith.constant 0 : index
    %75 = vector.load %arg6[%c0_97, %c0_98] : memref<256x128xf32, #tpu.memory_space<vmem>>, vector<256x128xf32>
    tpu.vector_store %arg6[%c0_97, %c0_98], %74 {strides = array<i32>} : memref<256x128xf32, #tpu.memory_space<vmem>>, vector<256x128xf32>,
    %c0_99 = arith.constant 0 : index
    %c1_100 = arith.constant 1 : index
    %c1_101 = arith.constant 1 : index
    %c0_102 = arith.constant 0 : index
    %c0_103 = arith.constant 0 : index
    %76 = vector.load %arg2[%c0_99, %c1_100, %c1_101, %c0_102, %c0_103] : memref<1x6x10x10x4xf32, #tpu.memory_space<vmem>>, vector<1x4x8x8x4xf32>
    %77 = vector.shape_cast %76 : vector<1x4x8x8x4xf32> to vector<4x8x8x4xf32>
    %78 = vector.shape_cast %77 : vector<4x8x8x4xf32> to vector<256x4xf32>
    %c0_104 = arith.constant 0 : index
    %c0_105 = arith.constant 0 : index
    %79 = vector.load %arg6[%c0_104, %c0_105] : memref<256x128xf32, #tpu.memory_space<vmem>>, vector<256x128xf32>
    %c8 = arith.constant 8 : index
    %c0_106 = arith.constant 0 : index
    %c0_107 = arith.constant 0 : index
    %80 = vector.load %arg3[%c8, %c0_106, %c0_107] : memref<19x4x128xf32, #tpu.memory_space<vmem>>, vector<1x4x128xf32>
    %81 = vector.shape_cast %80 : vector<1x4x128xf32> to vector<4x128xf32>
    %cst_108 = arith.constant dense<0.000000e+00> : vector<256x128xf32>
    %82 = tpu.matmul %78, %81, %cst_108 {dimension_numbers = #tpu.dot_dimension_numbers<[1], [0], [0], [1], [0, 0, 1, 1], [], []>} : vector<256x4xf32>, vector<4x128xf32>, vector<256x128xf32> -> vector<256x128xf32>
    %83 = arith.addf %79, %82 : vector<256x128xf32>
    %c0_109 = arith.constant 0 : index
    %c0_110 = arith.constant 0 : index
    %84 = vector.load %arg6[%c0_109, %c0_110] : memref<256x128xf32, #tpu.memory_space<vmem>>, vector<256x128xf32>
    tpu.vector_store %arg6[%c0_109, %c0_110], %83 {strides = array<i32>} : memref<256x128xf32, #tpu.memory_space<vmem>>, vector<256x128xf32>,
    %c0_111 = arith.constant 0 : index
    %c1_112 = arith.constant 1 : index
    %c1_113 = arith.constant 1 : index
    %c1_114 = arith.constant 1 : index
    %c0_115 = arith.constant 0 : index
    %85 = vector.load %arg2[%c0_111, %c1_112, %c1_113, %c1_114, %c0_115] : memref<1x6x10x10x4xf32, #tpu.memory_space<vmem>>, vector<1x4x8x8x4xf32>
    %86 = vector.shape_cast %85 : vector<1x4x8x8x4xf32> to vector<4x8x8x4xf32>
    %87 = vector.shape_cast %86 : vector<4x8x8x4xf32> to vector<256x4xf32>
    %c0_116 = arith.constant 0 : index
    %c0_117 = arith.constant 0 : index
    %88 = vector.load %arg6[%c0_116, %c0_117] : memref<256x128xf32, #tpu.memory_space<vmem>>, vector<256x128xf32>
    %c9 = arith.constant 9 : index
    %c0_118 = arith.constant 0 : index
    %c0_119 = arith.constant 0 : index
    %89 = vector.load %arg3[%c9, %c0_118, %c0_119] : memref<19x4x128xf32, #tpu.memory_space<vmem>>, vector<1x4x128xf32>
    %90 = vector.shape_cast %89 : vector<1x4x128xf32> to vector<4x128xf32>
    %cst_120 = arith.constant dense<0.000000e+00> : vector<256x128xf32>
    %91 = tpu.matmul %87, %90, %cst_120 {dimension_numbers = #tpu.dot_dimension_numbers<[1], [0], [0], [1], [0, 0, 1, 1], [], []>} : vector<256x4xf32>, vector<4x128xf32>, vector<256x128xf32> -> vector<256x128xf32>
    %92 = arith.addf %88, %91 : vector<256x128xf32>
    %c0_121 = arith.constant 0 : index
    %c0_122 = arith.constant 0 : index
    %93 = vector.load %arg6[%c0_121, %c0_122] : memref<256x128xf32, #tpu.memory_space<vmem>>, vector<256x128xf32>
    tpu.vector_store %arg6[%c0_121, %c0_122], %92 {strides = array<i32>} : memref<256x128xf32, #tpu.memory_space<vmem>>, vector<256x128xf32>,
    %c0_123 = arith.constant 0 : index
    %c1_124 = arith.constant 1 : index
    %c1_125 = arith.constant 1 : index
    %c2_126 = arith.constant 2 : index
    %c0_127 = arith.constant 0 : index
    %94 = vector.load %arg2[%c0_123, %c1_124, %c1_125, %c2_126, %c0_127] : memref<1x6x10x10x4xf32, #tpu.memory_space<vmem>>, vector<1x4x8x8x4xf32>
    %95 = vector.shape_cast %94 : vector<1x4x8x8x4xf32> to vector<4x8x8x4xf32>
    %96 = vector.shape_cast %95 : vector<4x8x8x4xf32> to vector<256x4xf32>
    %c0_128 = arith.constant 0 : index
    %c0_129 = arith.constant 0 : index
    %97 = vector.load %arg6[%c0_128, %c0_129] : memref<256x128xf32, #tpu.memory_space<vmem>>, vector<256x128xf32>
    %c10 = arith.constant 10 : index
    %c0_130 = arith.constant 0 : index
    %c0_131 = arith.constant 0 : index
    %98 = vector.load %arg3[%c10, %c0_130, %c0_131] : memref<19x4x128xf32, #tpu.memory_space<vmem>>, vector<1x4x128xf32>
    %99 = vector.shape_cast %98 : vector<1x4x128xf32> to vector<4x128xf32>
    %cst_132 = arith.constant dense<0.000000e+00> : vector<256x128xf32>
    %100 = tpu.matmul %96, %99, %cst_132 {dimension_numbers = #tpu.dot_dimension_numbers<[1], [0], [0], [1], [0, 0, 1, 1], [], []>} : vector<256x4xf32>, vector<4x128xf32>, vector<256x128xf32> -> vector<256x128xf32>
    %101 = arith.addf %97, %100 : vector<256x128xf32>
    %c0_133 = arith.constant 0 : index
    %c0_134 = arith.constant 0 : index
    %102 = vector.load %arg6[%c0_133, %c0_134] : memref<256x128xf32, #tpu.memory_space<vmem>>, vector<256x128xf32>
    tpu.vector_store %arg6[%c0_133, %c0_134], %101 {strides = array<i32>} : memref<256x128xf32, #tpu.memory_space<vmem>>, vector<256x128xf32>,
    %c0_135 = arith.constant 0 : index
    %c1_136 = arith.constant 1 : index
    %c2_137 = arith.constant 2 : index
    %c0_138 = arith.constant 0 : index
    %c0_139 = arith.constant 0 : index
    %103 = vector.load %arg2[%c0_135, %c1_136, %c2_137, %c0_138, %c0_139] : memref<1x6x10x10x4xf32, #tpu.memory_space<vmem>>, vector<1x4x8x8x4xf32>
    %104 = vector.shape_cast %103 : vector<1x4x8x8x4xf32> to vector<4x8x8x4xf32>
    %105 = vector.shape_cast %104 : vector<4x8x8x4xf32> to vector<256x4xf32>
    %c0_140 = arith.constant 0 : index
    %c0_141 = arith.constant 0 : index
    %106 = vector.load %arg6[%c0_140, %c0_141] : memref<256x128xf32, #tpu.memory_space<vmem>>, vector<256x128xf32>
    %c11 = arith.constant 11 : index
    %c0_142 = arith.constant 0 : index
    %c0_143 = arith.constant 0 : index
    %107 = vector.load %arg3[%c11, %c0_142, %c0_143] : memref<19x4x128xf32, #tpu.memory_space<vmem>>, vector<1x4x128xf32>
    %108 = vector.shape_cast %107 : vector<1x4x128xf32> to vector<4x128xf32>
    %cst_144 = arith.constant dense<0.000000e+00> : vector<256x128xf32>
    %109 = tpu.matmul %105, %108, %cst_144 {dimension_numbers = #tpu.dot_dimension_numbers<[1], [0], [0], [1], [0, 0, 1, 1], [], []>} : vector<256x4xf32>, vector<4x128xf32>, vector<256x128xf32> -> vector<256x128xf32>
    %110 = arith.addf %106, %109 : vector<256x128xf32>
    %c0_145 = arith.constant 0 : index
    %c0_146 = arith.constant 0 : index
    %111 = vector.load %arg6[%c0_145, %c0_146] : memref<256x128xf32, #tpu.memory_space<vmem>>, vector<256x128xf32>
    tpu.vector_store %arg6[%c0_145, %c0_146], %110 {strides = array<i32>} : memref<256x128xf32, #tpu.memory_space<vmem>>, vector<256x128xf32>,
    %c0_147 = arith.constant 0 : index
    %c1_148 = arith.constant 1 : index
    %c2_149 = arith.constant 2 : index
    %c1_150 = arith.constant 1 : index
    %c0_151 = arith.constant 0 : index
    %112 = vector.load %arg2[%c0_147, %c1_148, %c2_149, %c1_150, %c0_151] : memref<1x6x10x10x4xf32, #tpu.memory_space<vmem>>, vector<1x4x8x8x4xf32>
    %113 = vector.shape_cast %112 : vector<1x4x8x8x4xf32> to vector<4x8x8x4xf32>
    %114 = vector.shape_cast %113 : vector<4x8x8x4xf32> to vector<256x4xf32>
    %c0_152 = arith.constant 0 : index
    %c0_153 = arith.constant 0 : index
    %115 = vector.load %arg6[%c0_152, %c0_153] : memref<256x128xf32, #tpu.memory_space<vmem>>, vector<256x128xf32>
    %c12 = arith.constant 12 : index
    %c0_154 = arith.constant 0 : index
    %c0_155 = arith.constant 0 : index
    %116 = vector.load %arg3[%c12, %c0_154, %c0_155] : memref<19x4x128xf32, #tpu.memory_space<vmem>>, vector<1x4x128xf32>
    %117 = vector.shape_cast %116 : vector<1x4x128xf32> to vector<4x128xf32>
    %cst_156 = arith.constant dense<0.000000e+00> : vector<256x128xf32>
    %118 = tpu.matmul %114, %117, %cst_156 {dimension_numbers = #tpu.dot_dimension_numbers<[1], [0], [0], [1], [0, 0, 1, 1], [], []>} : vector<256x4xf32>, vector<4x128xf32>, vector<256x128xf32> -> vector<256x128xf32>
    %119 = arith.addf %115, %118 : vector<256x128xf32>
    %c0_157 = arith.constant 0 : index
    %c0_158 = arith.constant 0 : index
    %120 = vector.load %arg6[%c0_157, %c0_158] : memref<256x128xf32, #tpu.memory_space<vmem>>, vector<256x128xf32>
    tpu.vector_store %arg6[%c0_157, %c0_158], %119 {strides = array<i32>} : memref<256x128xf32, #tpu.memory_space<vmem>>, vector<256x128xf32>,
    %c0_159 = arith.constant 0 : index
    %c1_160 = arith.constant 1 : index
    %c2_161 = arith.constant 2 : index
    %c2_162 = arith.constant 2 : index
    %c0_163 = arith.constant 0 : index
    %121 = vector.load %arg2[%c0_159, %c1_160, %c2_161, %c2_162, %c0_163] : memref<1x6x10x10x4xf32, #tpu.memory_space<vmem>>, vector<1x4x8x8x4xf32>
    %122 = vector.shape_cast %121 : vector<1x4x8x8x4xf32> to vector<4x8x8x4xf32>
    %123 = vector.shape_cast %122 : vector<4x8x8x4xf32> to vector<256x4xf32>
    %c0_164 = arith.constant 0 : index
    %c0_165 = arith.constant 0 : index
    %124 = vector.load %arg6[%c0_164, %c0_165] : memref<256x128xf32, #tpu.memory_space<vmem>>, vector<256x128xf32>
    %c13 = arith.constant 13 : index
    %c0_166 = arith.constant 0 : index
    %c0_167 = arith.constant 0 : index
    %125 = vector.load %arg3[%c13, %c0_166, %c0_167] : memref<19x4x128xf32, #tpu.memory_space<vmem>>, vector<1x4x128xf32>
    %126 = vector.shape_cast %125 : vector<1x4x128xf32> to vector<4x128xf32>
    %cst_168 = arith.constant dense<0.000000e+00> : vector<256x128xf32>
    %127 = tpu.matmul %123, %126, %cst_168 {dimension_numbers = #tpu.dot_dimension_numbers<[1], [0], [0], [1], [0, 0, 1, 1], [], []>} : vector<256x4xf32>, vector<4x128xf32>, vector<256x128xf32> -> vector<256x128xf32>
    %128 = arith.addf %124, %127 : vector<256x128xf32>
    %c0_169 = arith.constant 0 : index
    %c0_170 = arith.constant 0 : index
    %129 = vector.load %arg6[%c0_169, %c0_170] : memref<256x128xf32, #tpu.memory_space<vmem>>, vector<256x128xf32>
    tpu.vector_store %arg6[%c0_169, %c0_170], %128 {strides = array<i32>} : memref<256x128xf32, #tpu.memory_space<vmem>>, vector<256x128xf32>,
    %c0_171 = arith.constant 0 : index
    %c2_172 = arith.constant 2 : index
    %c0_173 = arith.constant 0 : index
    %c1_174 = arith.constant 1 : index
    %c0_175 = arith.constant 0 : index
    %130 = vector.load %arg2[%c0_171, %c2_172, %c0_173, %c1_174, %c0_175] : memref<1x6x10x10x4xf32, #tpu.memory_space<vmem>>, vector<1x4x8x8x4xf32>
    %131 = vector.shape_cast %130 : vector<1x4x8x8x4xf32> to vector<4x8x8x4xf32>
    %132 = vector.shape_cast %131 : vector<4x8x8x4xf32> to vector<256x4xf32>
    %c0_176 = arith.constant 0 : index
    %c0_177 = arith.constant 0 : index
    %133 = vector.load %arg6[%c0_176, %c0_177] : memref<256x128xf32, #tpu.memory_space<vmem>>, vector<256x128xf32>
    %c14 = arith.constant 14 : index
    %c0_178 = arith.constant 0 : index
    %c0_179 = arith.constant 0 : index
    %134 = vector.load %arg3[%c14, %c0_178, %c0_179] : memref<19x4x128xf32, #tpu.memory_space<vmem>>, vector<1x4x128xf32>
    %135 = vector.shape_cast %134 : vector<1x4x128xf32> to vector<4x128xf32>
    %cst_180 = arith.constant dense<0.000000e+00> : vector<256x128xf32>
    %136 = tpu.matmul %132, %135, %cst_180 {dimension_numbers = #tpu.dot_dimension_numbers<[1], [0], [0], [1], [0, 0, 1, 1], [], []>} : vector<256x4xf32>, vector<4x128xf32>, vector<256x128xf32> -> vector<256x128xf32>
    %137 = arith.addf %133, %136 : vector<256x128xf32>
    %c0_181 = arith.constant 0 : index
    %c0_182 = arith.constant 0 : index
    %138 = vector.load %arg6[%c0_181, %c0_182] : memref<256x128xf32, #tpu.memory_space<vmem>>, vector<256x128xf32>
    tpu.vector_store %arg6[%c0_181, %c0_182], %137 {strides = array<i32>} : memref<256x128xf32, #tpu.memory_space<vmem>>, vector<256x128xf32>,
    %c0_183 = arith.constant 0 : index
    %c2_184 = arith.constant 2 : index
    %c1_185 = arith.constant 1 : index
    %c0_186 = arith.constant 0 : index
    %c0_187 = arith.constant 0 : index
    %139 = vector.load %arg2[%c0_183, %c2_184, %c1_185, %c0_186, %c0_187] : memref<1x6x10x10x4xf32, #tpu.memory_space<vmem>>, vector<1x4x8x8x4xf32>
    %140 = vector.shape_cast %139 : vector<1x4x8x8x4xf32> to vector<4x8x8x4xf32>
    %141 = vector.shape_cast %140 : vector<4x8x8x4xf32> to vector<256x4xf32>
    %c0_188 = arith.constant 0 : index
    %c0_189 = arith.constant 0 : index
    %142 = vector.load %arg6[%c0_188, %c0_189] : memref<256x128xf32, #tpu.memory_space<vmem>>, vector<256x128xf32>
    %c15 = arith.constant 15 : index
    %c0_190 = arith.constant 0 : index
    %c0_191 = arith.constant 0 : index
    %143 = vector.load %arg3[%c15, %c0_190, %c0_191] : memref<19x4x128xf32, #tpu.memory_space<vmem>>, vector<1x4x128xf32>
    %144 = vector.shape_cast %143 : vector<1x4x128xf32> to vector<4x128xf32>
    %cst_192 = arith.constant dense<0.000000e+00> : vector<256x128xf32>
    %145 = tpu.matmul %141, %144, %cst_192 {dimension_numbers = #tpu.dot_dimension_numbers<[1], [0], [0], [1], [0, 0, 1, 1], [], []>} : vector<256x4xf32>, vector<4x128xf32>, vector<256x128xf32> -> vector<256x128xf32>
    %146 = arith.addf %142, %145 : vector<256x128xf32>
    %c0_193 = arith.constant 0 : index
    %c0_194 = arith.constant 0 : index
    %147 = vector.load %arg6[%c0_193, %c0_194] : memref<256x128xf32, #tpu.memory_space<vmem>>, vector<256x128xf32>
    tpu.vector_store %arg6[%c0_193, %c0_194], %146 {strides = array<i32>} : memref<256x128xf32, #tpu.memory_space<vmem>>, vector<256x128xf32>,
    %c0_195 = arith.constant 0 : index
    %c2_196 = arith.constant 2 : index
    %c1_197 = arith.constant 1 : index
    %c1_198 = arith.constant 1 : index
    %c0_199 = arith.constant 0 : index
    %148 = vector.load %arg2[%c0_195, %c2_196, %c1_197, %c1_198, %c0_199] : memref<1x6x10x10x4xf32, #tpu.memory_space<vmem>>, vector<1x4x8x8x4xf32>
    %149 = vector.shape_cast %148 : vector<1x4x8x8x4xf32> to vector<4x8x8x4xf32>
    %150 = vector.shape_cast %149 : vector<4x8x8x4xf32> to vector<256x4xf32>
    %c0_200 = arith.constant 0 : index
    %c0_201 = arith.constant 0 : index
    %151 = vector.load %arg6[%c0_200, %c0_201] : memref<256x128xf32, #tpu.memory_space<vmem>>, vector<256x128xf32>
    %c16 = arith.constant 16 : index
    %c0_202 = arith.constant 0 : index
    %c0_203 = arith.constant 0 : index
    %152 = vector.load %arg3[%c16, %c0_202, %c0_203] : memref<19x4x128xf32, #tpu.memory_space<vmem>>, vector<1x4x128xf32>
    %153 = vector.shape_cast %152 : vector<1x4x128xf32> to vector<4x128xf32>
    %cst_204 = arith.constant dense<0.000000e+00> : vector<256x128xf32>
    %154 = tpu.matmul %150, %153, %cst_204 {dimension_numbers = #tpu.dot_dimension_numbers<[1], [0], [0], [1], [0, 0, 1, 1], [], []>} : vector<256x4xf32>, vector<4x128xf32>, vector<256x128xf32> -> vector<256x128xf32>
    %155 = arith.addf %151, %154 : vector<256x128xf32>
    %c0_205 = arith.constant 0 : index
    %c0_206 = arith.constant 0 : index
    %156 = vector.load %arg6[%c0_205, %c0_206] : memref<256x128xf32, #tpu.memory_space<vmem>>, vector<256x128xf32>
    tpu.vector_store %arg6[%c0_205, %c0_206], %155 {strides = array<i32>} : memref<256x128xf32, #tpu.memory_space<vmem>>, vector<256x128xf32>,
    %c0_207 = arith.constant 0 : index
    %c2_208 = arith.constant 2 : index
    %c1_209 = arith.constant 1 : index
    %c2_210 = arith.constant 2 : index
    %c0_211 = arith.constant 0 : index
    %157 = vector.load %arg2[%c0_207, %c2_208, %c1_209, %c2_210, %c0_211] : memref<1x6x10x10x4xf32, #tpu.memory_space<vmem>>, vector<1x4x8x8x4xf32>
    %158 = vector.shape_cast %157 : vector<1x4x8x8x4xf32> to vector<4x8x8x4xf32>
    %159 = vector.shape_cast %158 : vector<4x8x8x4xf32> to vector<256x4xf32>
    %c0_212 = arith.constant 0 : index
    %c0_213 = arith.constant 0 : index
    %160 = vector.load %arg6[%c0_212, %c0_213] : memref<256x128xf32, #tpu.memory_space<vmem>>, vector<256x128xf32>
    %c17 = arith.constant 17 : index
    %c0_214 = arith.constant 0 : index
    %c0_215 = arith.constant 0 : index
    %161 = vector.load %arg3[%c17, %c0_214, %c0_215] : memref<19x4x128xf32, #tpu.memory_space<vmem>>, vector<1x4x128xf32>
    %162 = vector.shape_cast %161 : vector<1x4x128xf32> to vector<4x128xf32>
    %cst_216 = arith.constant dense<0.000000e+00> : vector<256x128xf32>
    %163 = tpu.matmul %159, %162, %cst_216 {dimension_numbers = #tpu.dot_dimension_numbers<[1], [0], [0], [1], [0, 0, 1, 1], [], []>} : vector<256x4xf32>, vector<4x128xf32>, vector<256x128xf32> -> vector<256x128xf32>
    %164 = arith.addf %160, %163 : vector<256x128xf32>
    %c0_217 = arith.constant 0 : index
    %c0_218 = arith.constant 0 : index
    %165 = vector.load %arg6[%c0_217, %c0_218] : memref<256x128xf32, #tpu.memory_space<vmem>>, vector<256x128xf32>
    tpu.vector_store %arg6[%c0_217, %c0_218], %164 {strides = array<i32>} : memref<256x128xf32, #tpu.memory_space<vmem>>, vector<256x128xf32>,
    %c0_219 = arith.constant 0 : index
    %c2_220 = arith.constant 2 : index
    %c2_221 = arith.constant 2 : index
    %c1_222 = arith.constant 1 : index
    %c0_223 = arith.constant 0 : index
    %166 = vector.load %arg2[%c0_219, %c2_220, %c2_221, %c1_222, %c0_223] : memref<1x6x10x10x4xf32, #tpu.memory_space<vmem>>, vector<1x4x8x8x4xf32>
    %167 = vector.shape_cast %166 : vector<1x4x8x8x4xf32> to vector<4x8x8x4xf32>
    %168 = vector.shape_cast %167 : vector<4x8x8x4xf32> to vector<256x4xf32>
    %c0_224 = arith.constant 0 : index
    %c0_225 = arith.constant 0 : index
    %169 = vector.load %arg6[%c0_224, %c0_225] : memref<256x128xf32, #tpu.memory_space<vmem>>, vector<256x128xf32>
    %c18 = arith.constant 18 : index
    %c0_226 = arith.constant 0 : index
    %c0_227 = arith.constant 0 : index
    %170 = vector.load %arg3[%c18, %c0_226, %c0_227] : memref<19x4x128xf32, #tpu.memory_space<vmem>>, vector<1x4x128xf32>
    %171 = vector.shape_cast %170 : vector<1x4x128xf32> to vector<4x128xf32>
    %cst_228 = arith.constant dense<0.000000e+00> : vector<256x128xf32>
    %172 = tpu.matmul %168, %171, %cst_228 {dimension_numbers = #tpu.dot_dimension_numbers<[1], [0], [0], [1], [0, 0, 1, 1], [], []>} : vector<256x4xf32>, vector<4x128xf32>, vector<256x128xf32> -> vector<256x128xf32>
    %173 = arith.addf %169, %172 : vector<256x128xf32>
    %c0_229 = arith.constant 0 : index
    %c0_230 = arith.constant 0 : index
    %174 = vector.load %arg6[%c0_229, %c0_230] : memref<256x128xf32, #tpu.memory_space<vmem>>, vector<256x128xf32>
    tpu.vector_store %arg6[%c0_229, %c0_230], %173 {strides = array<i32>} : memref<256x128xf32, #tpu.memory_space<vmem>>, vector<256x128xf32>,
    %c0_231 = arith.constant 0 : index
    %c0_232 = arith.constant 0 : index
    %175 = vector.load %arg6[%c0_231, %c0_232] : memref<256x128xf32, #tpu.memory_space<vmem>>, vector<256x128xf32>
    %c0_233 = arith.constant 0 : index
    %c0_234 = arith.constant 0 : index
    %c0_235 = arith.constant 0 : index
    %176 = vector.load %arg5[%c0_233, %c0_234, %c0_235] : memref<1x256x128xf32, #tpu.memory_space<vmem>>, vector<1x256x128xf32>
    %177 = vector.shape_cast %176 : vector<1x256x128xf32> to vector<256x128xf32>
    %178 = vector.shape_cast %175 : vector<256x128xf32> to vector<1x256x128xf32>
    tpu.vector_store %arg5[%c0_233, %c0_234, %c0_235], %178 {strides = array<i32>} : memref<1x256x128xf32, #tpu.memory_space<vmem>>, vector<1x256x128xf32>,
    return
  }
  func.func @transform_0(%arg0: i32, %arg1: i32) -> (i32, i32, i32, i32, i32) {
    %c0_i32 = arith.constant 0 : i32
    %c0_i32_0 = arith.constant 0 : i32
    %c0_i32_1 = arith.constant 0 : i32
    %c0_i32_2 = arith.constant 0 : i32
    %c0_i32_3 = arith.constant 0 : i32
    return %arg0, %c0_i32, %c0_i32_0, %c0_i32_1, %c0_i32_2 : i32, i32, i32, i32, i32
  }
  func.func @transform_1(%arg0: i32, %arg1: i32) -> (i32, i32, i32) {
    %c0_i32 = arith.constant 0 : i32
    %c0_i32_0 = arith.constant 0 : i32
    %c0_i32_1 = arith.constant 0 : i32
    return %c0_i32, %c0_i32_0, %arg1 : i32, i32, i32
  }
  func.func @transform_2(%arg0: i32, %arg1: i32) -> (i32, i32) {
    %c0_i32 = arith.constant 0 : i32
    %c0_i32_0 = arith.constant 0 : i32
    return %c0_i32, %arg1 : i32, i32
  }
  func.func @transform_3(%arg0: i32, %arg1: i32) -> (i32, i32, i32) {
    %c0_i32 = arith.constant 0 : i32
    %c0_i32_0 = arith.constant 0 : i32
    return %arg0, %c0_i32, %arg1 : i32, i32, i32
  }
}

</mosaic_0001>

<llo_original>
// kernel: tpu_custom_call.1
$region0: #{tpu_custom_call.1}
  #allocation0 [shape = 'u32[]', space=smem, size = 0x4, offset = 0x4, fixed_abs, tag = 'smem constant byte address 0x4 - core index']
  #allocation1 [shape = 'u32[144,128]{1,0:T(1,128)}', space=vmem, size = 0x12000, scoped, tag = 'internal scratch']
  #allocation2 [shape = 'f32[256,128]{1,0:T(8,128)}', space=vmem, size = 0x20000, scoped, tag = 'scratch operand']
  %s0 = inlined_call_operand.vmem [shape: f32[2,6,10,10,4], index: 0, kind: input, shape index: {}]
  %s1 = inlined_call_operand.vmem [shape: f32[19,4,128], index: 1, kind: input, shape index: {}]
  %s2 = inlined_call_operand.vmem [shape: f32[1,128], index: 2, kind: input, shape index: {}]
  %s3 = inlined_call_operand.hbm [shape: f32[2,256,128], index: 3, kind: output, shape index: {}]
  %s4 = sld [smem:[#allocation0]]
  $region45: #{tpu_custom_call.1} parent=0
    _
  %s6 = ssub.s32 1, %s4
  %s7 = scalar_select 0, %s6, %s4
  $region1: #{tpu_custom_call.1} parent=0
    #allocation3 [shape = 'u8[262144]{0}', space=vmem, size = 0x40000, scoped, tag = 'output window, operand 0']
    #allocation4 [shape = 's32[2]{0}', space=sflag, size = 0x8, scoped, tag = 'scoped memory for tpu_custom_call.1']
    %8 = vsyncpa [#allocation4], 0
    %s9 = scalar_lea.sflag [#allocation4], 1
    %10 = vsyncpa %s9, 0
    loop: start=0, step=1, limit=4
    $region2: #{tpu_custom_call.1} parent=1 // loop_pre_header
      _
    $region3: #{tpu_custom_call.1} parent=1 // loop_header
      %s12 = sphi 0, %s16
      %p13 = scmp.ge.s32.totalorder %s12, 4
      %s19 = sphi 0, %s31
      %s20 = sphi 0, %s27
      %s21 = sphi 0, %s19
      %s22 = sphi 0, %s20
      %s23 = sphi 0, %s21
      %s24 = sphi 0, %s22
      %s34 = sphi 0, %s36
      %s37 = sphi 0, %s34
      %s38 = sphi 0, %s37
      %s54 = sphi 0, %s38
      %s60 = sphi 0, %s62
      %s63 = sphi 0, %s60
      %s64 = sphi 0, %s63
      %s80 = sphi 0, %s64
      %s86 = sphi 0, %s88
      %s89 = sphi 0, %s86
      %s90 = sphi 0, %s89
      %s106 = sphi 0, %s90
      %s114 = sphi 0, %s116
      %s117 = sphi 0, %s114
      %s118 = sphi 0, %s117
      %s134 = sphi 0, %s118
    $region4: #{tpu_custom_call.1} parent=1 // loop_header_branch
      %15 = sbr.rel (%p13) target = $region8
    $region5: #{tpu_custom_call.1} parent=1 // loop_body
      %s17 = ssub.s32 %s12, 1
      %s18 = ssub.s32 %s12, 2
      %s25 = sadd.s32 1, %s20
      %p26 = scmp.ge.s32.totalorder %s25, 1
      %s27 = scalar_select %p26, 0, %s25
      %s28 = sadd.s32 1, %s19
      %s29 = scalar_select %p26, %s28, %s19
      %p30 = scmp.ge.s32.totalorder %s29, 2
      %s31 = scalar_select %p30, 0, %s29
      %s32 = ssub.s32 %s19, %s31
      %p33 = scmp.eq.s32.totalorder %s32, 0
      %s35 = sadd.s32 %s34, 1
      %s36 = scalar_select %p33, %s34, %s35
      %p39 = pneg %p33
      %p40 = scmp.eq.s32.totalorder %s12, 1
      %p41 = por %p39, %p40
      %p42 = scmp.ne.s32.totalorder %s34, %s37
      %p43 = scmp.eq.s32.totalorder %s12, 0
      %p44 = por %p42, %p43
      %p45 = scmp.ne.s32.totalorder %s34, %s37
      %p46 = scmp.eq.s32.totalorder %s17, 1
      %p47 = por %p45, %p46
      %p48 = scmp.ne.s32.totalorder %s37, %s38
      %p49 = scmp.eq.s32.totalorder %s17, 0
      %p50 = por %p48, %p49
      %p51 = scmp.ne.s32.totalorder %s37, %s38
      %p52 = scmp.eq.s32.totalorder %s18, 1
      %p53 = por %p51, %p52
      %p55 = scmp.ne.s32.totalorder %s38, %s54
      %p56 = scmp.eq.s32.totalorder %s18, 0
      %p57 = por %p55, %p56
      %s58 = ssub.s32 %s20, %s27
      %p59 = scmp.eq.s32.totalorder %s58, 0
      %s61 = sadd.s32 %s60, 1
      %s62 = scalar_select %p59, %s60, %s61
      %p65 = pneg %p59
      %p66 = scmp.eq.s32.totalorder %s12, 1
      %p67 = por %p65, %p66
      %p68 = scmp.ne.s32.totalorder %s60, %s63
      %p69 = scmp.eq.s32.totalorder %s12, 0
      %p70 = por %p68, %p69
      %p71 = scmp.ne.s32.totalorder %s60, %s63
      %p72 = scmp.eq.s32.totalorder %s17, 1
      %p73 = por %p71, %p72
      %p74 = scmp.ne.s32.totalorder %s63, %s64
      %p75 = scmp.eq.s32.totalorder %s17, 0
      %p76 = por %p74, %p75
      %p77 = scmp.ne.s32.totalorder %s63, %s64
      %p78 = scmp.eq.s32.totalorder %s18, 1
      %p79 = por %p77, %p78
      %p81 = scmp.ne.s32.totalorder %s64, %s80
      %p82 = scmp.eq.s32.totalorder %s18, 0
      %p83 = por %p81, %p82
      %s84 = ssub.s32 %s20, %s27
      %p85 = scmp.eq.s32.totalorder %s84, 0
      %s87 = sadd.s32 %s86, 1
      %s88 = scalar_select %p85, %s86, %s87
      %p91 = pneg %p85
      %p92 = scmp.eq.s32.totalorder %s12, 1
      %p93 = por %p91, %p92
      %p94 = scmp.ne.s32.totalorder %s86, %s89
      %p95 = scmp.eq.s32.totalorder %s12, 0
      %p96 = por %p94, %p95
      %p97 = scmp.ne.s32.totalorder %s86, %s89
      %p98 = scmp.eq.s32.totalorder %s17, 1
      %p99 = por %p97, %p98
      %p100 = scmp.ne.s32.totalorder %s89, %s90
      %p101 = scmp.eq.s32.totalorder %s17, 0
      %p102 = por %p100, %p101
      %p103 = scmp.ne.s32.totalorder %s89, %s90
      %p104 = scmp.eq.s32.totalorder %s18, 1
      %p105 = por %p103, %p104
      %p107 = scmp.ne.s32.totalorder %s90, %s106
      %p108 = scmp.eq.s32.totalorder %s18, 0
      %p109 = por %p107, %p108
      %s110 = ssub.s32 %s19, %s31
      %s111 = ssub.s32 %s20, %s27
      %s112 = sor.u32 %s110, %s111
      %p113 = scmp.eq.s32.totalorder %s112, 0
      %s115 = sadd.s32 %s114, 1
      %s116 = scalar_select %p113, %s114, %s115
      %p119 = pneg %p113
      %p120 = scmp.eq.s32.totalorder %s12, 1
      %p121 = por %p119, %p120
      %p122 = scmp.ne.s32.totalorder %s114, %s117
      %p123 = scmp.eq.s32.totalorder %s12, 0
      %p124 = por %p122, %p123
      %p125 = scmp.ne.s32.totalorder %s114, %s117
      %p126 = scmp.eq.s32.totalorder %s17, 1
      %p127 = por %p125, %p126
      %p128 = scmp.ne.s32.totalorder %s117, %s118
      %p129 = scmp.eq.s32.totalorder %s17, 0
      %p130 = por %p128, %p129
      %p131 = scmp.ne.s32.totalorder %s117, %s118
      %p132 = scmp.eq.s32.totalorder %s18, 1
      %p133 = por %p131, %p132
      %p135 = scmp.ne.s32.totalorder %s118, %s134
      %p136 = scmp.eq.s32.totalorder %s18, 0
      %p137 = por %p135, %p136
      %p138 = scmp.le.s32.totalorder 1, %s12
      %p139 = scmp.lt.s32.totalorder %s12, 3
      %p140 = pnand %p138, %p139
      %p141 = pneg %p140
      // Predicated region
      $region9: #{tpu_custom_call.1} parent=5 // pred_check
        _
      $region10: #{tpu_custom_call.1} parent=5 // pred_check_branch
        %143 = sbr.rel (%p140) target = $region12
      $region11: #{tpu_custom_call.1} parent=5 // pred_region
        %s144 = ssub.s32 %s12, 1
        // Predicated region
        $region13: #{tpu_custom_call.1} parent=11 // pred_check
          %p145 = pneg %p76
        $region14: #{tpu_custom_call.1} parent=11 // pred_check_branch
          %147 = sbr.rel (%p145) target = $region16
        $region15: #{tpu_custom_call.1} parent=11 // pred_region
          %p148 = scmp.lt.s32.totalorder %s22, 0
          %s149 = scalar_select %p148, %s22, 0
          %s150 = smul.addr %s149, 4
          %s151 = scalar_lea.vmem %s1, %s150
        $region16: #{tpu_custom_call.1} parent=11 // pred_fallthru
          _
        // Predicated region
        $region17: #{tpu_custom_call.1} parent=11 // pred_check
          %p152 = pneg %p102
        $region18: #{tpu_custom_call.1} parent=11 // pred_check_branch
          %154 = sbr.rel (%p152) target = $region20
        $region19: #{tpu_custom_call.1} parent=11 // pred_region
          %p155 = scmp.lt.s32.totalorder %s22, 0
          %s156 = scalar_select %p155, %s22, 0
          %s157 = scalar_lea.vmem %s2, %s156
        $region20: #{tpu_custom_call.1} parent=11 // pred_fallthru
          _
      $region12: #{tpu_custom_call.1} parent=5 // pred_fallthru
        _
      %p158 = scmp.lt.s32.totalorder %s12, 2
      // Predicated region
      $region21: #{tpu_custom_call.1} parent=5 // pred_check
        %p159 = pneg %p158
      $region22: #{tpu_custom_call.1} parent=5 // pred_check_branch
        %161 = sbr.rel (%p159) target = $region24
      $region23: #{tpu_custom_call.1} parent=5 // pred_region
        // Predicated region
        $region25: #{tpu_custom_call.1} parent=23 // pred_check
          %p162 = pneg %p44
        $region26: #{tpu_custom_call.1} parent=23 // pred_check_branch
          %164 = sbr.rel (%p162) target = $region28
        $region27: #{tpu_custom_call.1} parent=23 // pred_region
          %p165 = scmp.lt.s32.totalorder %s19, 1
          %s166 = scalar_select %p165, %s19, 1
          %s167 = smul.addr %s166, 120
          %s168 = smul.addr %s167, 8
          %s169 = scalar_lea.vmem %s0, %s168
        $region28: #{tpu_custom_call.1} parent=23 // pred_fallthru
          _
      $region24: #{tpu_custom_call.1} parent=5 // pred_fallthru
        _
      %p170 = scmp.le.s32.totalorder 1, %s12
      %p171 = scmp.lt.s32.totalorder %s12, 3
      %p172 = pnand %p170, %p171
      %p173 = pneg %p172
      // Predicated region
      $region29: #{tpu_custom_call.1} parent=5 // pred_check
        _
      $region30: #{tpu_custom_call.1} parent=5 // pred_check_branch
        %175 = sbr.rel (%p172) target = $region32
      $region31: #{tpu_custom_call.1} parent=5 // pred_region
        %s176 = ssub.s32 %s12, 1
        %p177 = scmp.lt.s32.totalorder %s21, 1
        %s178 = scalar_select %p177, %s21, 1
        %s179 = smul.addr %s178, 120
        %s180 = smul.addr %s179, 8
        %s181 = scalar_lea.vmem %s0, %s180
        %p182 = pneg %p50
        %p183 = pneg %p47
        %p184 = scmp.lt.s32.totalorder %s22, 0
        %s185 = scalar_select %p184, %s22, 0
        %s186 = smul.addr %s185, 4
        %s187 = scalar_lea.vmem %s1, %s186
        %p188 = pneg %p76
        %p189 = pneg %p73
        %p190 = scmp.lt.s32.totalorder %s22, 0
        %s191 = scalar_select %p190, %s22, 0
        %s192 = scalar_lea.vmem %s2, %s191
        %p193 = pneg %p102
        %p194 = pneg %p99
        %p195 = pneg %p130
        %p196 = pneg %p127
        %s197 = sand.u32 %s117, 1
        %s198 = scalar_lea.sflag [#allocation4], %s197
        %s199 = sand.u32 %s117, 1
        %s200 = smul.addr %s199, 256
        %s201 = scalar_lea.vmem [#allocation3], %s200
        %p202 = scmp.lt.s32.totalorder %s21, 1
        %s203 = scalar_select %p202, %s21, 1
        %s204 = smul.addr %s203, 120
        %s205 = smul.addr %s204, 8
        %s206 = scalar_lea.vmem %s0, %s205
        %p207 = scmp.lt.s32.totalorder %s22, 0
        %s208 = scalar_select %p207, %s22, 0
        %s209 = smul.addr %s208, 4
        %s210 = scalar_lea.vmem %s1, %s209
        %p211 = scmp.lt.s32.totalorder %s22, 0
        %s212 = scalar_select %p211, %s22, 0
        %s213 = scalar_lea.vmem %s2, %s212
        %v214 = vld [vmem:[%s213] sm:$0x1]
        %v216 = vlaneseq
        %v217 = vshrl.u32 %v216, 7
        %v218 = vsub.s32 0, %v217
        %v219 = vrot.slane %v214, %v218
        %221 = vst [vmem:[#allocation2] sm:$0xff] %v219
        %222 = vst [vmem:[#allocation2 + $0x8] sm:$0xff] %v219
        %223 = vst [vmem:[#allocation2 + $0x10] sm:$0xff] %v219
        %224 = vst [vmem:[#allocation2 + $0x18] sm:$0xff] %v219
        %225 = vst [vmem:[#allocation2 + $0x20] sm:$0xff] %v219
        %226 = vst [vmem:[#allocation2 + $0x28] sm:$0xff] %v219
        %227 = vst [vmem:[#allocation2 + $0x30] sm:$0xff] %v219
        %228 = vst [vmem:[#allocation2 + $0x38] sm:$0xff] %v219
        %229 = vst [vmem:[#allocation2 + $0x40] sm:$0xff] %v219
        %230 = vst [vmem:[#allocation2 + $0x48] sm:$0xff] %v219
        %231 = vst [vmem:[#allocation2 + $0x50] sm:$0xff] %v219
        %232 = vst [vmem:[#allocation2 + $0x58] sm:$0xff] %v219
        %233 = vst [vmem:[#allocation2 + $0x60] sm:$0xff] %v219
        %234 = vst [vmem:[#allocation2 + $0x68] sm:$0xff] %v219
        %235 = vst [vmem:[#allocation2 + $0x70] sm:$0xff] %v219
        %236 = vst [vmem:[#allocation2 + $0x78] sm:$0xff] %v219
        %237 = vst [vmem:[#allocation2 + $0x80] sm:$0xff] %v219
        %238 = vst [vmem:[#allocation2 + $0x88] sm:$0xff] %v219
        %239 = vst [vmem:[#allocation2 + $0x90] sm:$0xff] %v219
        %240 = vst [vmem:[#allocation2 + $0x98] sm:$0xff] %v219
        %241 = vst [vmem:[#allocation2 + $0xa0] sm:$0xff] %v219
        %242 = vst [vmem:[#allocation2 + $0xa8] sm:$0xff] %v219
        %243 = vst [vmem:[#allocation2 + $0xb0] sm:$0xff] %v219
        %244 = vst [vmem:[#allocation2 + $0xb8] sm:$0xff] %v219
        %245 = vst [vmem:[#allocation2 + $0xc0] sm:$0xff] %v219
        %246 = vst [vmem:[#allocation2 + $0xc8] sm:$0xff] %v219
        %247 = vst [vmem:[#allocation2 + $0xd0] sm:$0xff] %v219
        %248 = vst [vmem:[#allocation2 + $0xd8] sm:$0xff] %v219
        %249 = vst [vmem:[#allocation2 + $0xe0] sm:$0xff] %v219
        %250 = vst [vmem:[#allocation2 + $0xe8] sm:$0xff] %v219
        %251 = vst [vmem:[#allocation2 + $0xf0] sm:$0xff] %v219
        %252 = vst [vmem:[#allocation2 + $0xf8] sm:$0xff] %v219
        %v253 = vld [vmem:[%s206 + $0x1] sm:$0xff]
        %v254 = vld [vmem:[%s206 + $0x11] sm:$0xff]
        %v255 = vld [vmem:[%s206 + $0x21] sm:$0xff]
        %v256 = vld [vmem:[%s206 + $0x31] sm:$0xff]
        %v257 = vld [vmem:[%s206 + $0x41] sm:$0xff]
        %v258 = vld [vmem:[%s206 + $0x51] sm:$0xff]
        %v259 = vld [vmem:[%s206 + $0x61] sm:$0xff]
        %v260 = vld [vmem:[%s206 + $0x71] sm:$0xff]
        %v261 = vld [vmem:[%s206 + $0xa1] sm:$0xff]
        %v262 = vld [vmem:[%s206 + $0xb1] sm:$0xff]
        %v263 = vld [vmem:[%s206 + $0xc1] sm:$0xff]
        %v264 = vld [vmem:[%s206 + $0xd1] sm:$0xff]
        %v265 = vld [vmem:[%s206 + $0xe1] sm:$0xff]
        %v266 = vld [vmem:[%s206 + $0xf1] sm:$0xff]
        %v267 = vld [vmem:[%s206 + $0x101] sm:$0xff]
        %v268 = vld [vmem:[%s206 + $0x111] sm:$0xff]
        %v269 = vld [vmem:[%s206 + $0x141] sm:$0xff]
        %v270 = vld [vmem:[%s206 + $0x151] sm:$0xff]
        %v271 = vld [vmem:[%s206 + $0x161] sm:$0xff]
        %v272 = vld [vmem:[%s206 + $0x171] sm:$0xff]
        %v273 = vld [vmem:[%s206 + $0x181] sm:$0xff]
        %v274 = vld [vmem:[%s206 + $0x191] sm:$0xff]
        %v275 = vld [vmem:[%s206 + $0x1a1] sm:$0xff]
        %v276 = vld [vmem:[%s206 + $0x1b1] sm:$0xff]
        %v277 = vld [vmem:[%s206 + $0x1e1] sm:$0xff]
        %v278 = vld [vmem:[%s206 + $0x1f1] sm:$0xff]
        %v279 = vld [vmem:[%s206 + $0x201] sm:$0xff]
        %v280 = vld [vmem:[%s206 + $0x211] sm:$0xff]
        %v281 = vld [vmem:[%s206 + $0x221] sm:$0xff]
        %v282 = vld [vmem:[%s206 + $0x231] sm:$0xff]
        %v283 = vld [vmem:[%s206 + $0x241] sm:$0xff]
        %v284 = vld [vmem:[%s206 + $0x251] sm:$0xff]
        %v285 = vld [vmem:[#allocation2] sm:$0xff]
        %v286 = vld [vmem:[#allocation2 + $0x8] sm:$0xff]
        %v287 = vld [vmem:[#allocation2 + $0x10] sm:$0xff]
        %v288 = vld [vmem:[#allocation2 + $0x18] sm:$0xff]
        %v289 = vld [vmem:[#allocation2 + $0x20] sm:$0xff]
        %v290 = vld [vmem:[#allocation2 + $0x28] sm:$0xff]
        %v291 = vld [vmem:[#allocation2 + $0x30] sm:$0xff]
        %v292 = vld [vmem:[#allocation2 + $0x38] sm:$0xff]
        %v293 = vld [vmem:[#allocation2 + $0x40] sm:$0xff]
        %v294 = vld [vmem:[#allocation2 + $0x48] sm:$0xff]
        %v295 = vld [vmem:[#allocation2 + $0x50] sm:$0xff]
        %v296 = vld [vmem:[#allocation2 + $0x58] sm:$0xff]
        %v297 = vld [vmem:[#allocation2 + $0x60] sm:$0xff]
        %v298 = vld [vmem:[#allocation2 + $0x68] sm:$0xff]
        %v299 = vld [vmem:[#allocation2 + $0x70] sm:$0xff]
        %v300 = vld [vmem:[#allocation2 + $0x78] sm:$0xff]
        %v301 = vld [vmem:[#allocation2 + $0x80] sm:$0xff]
        %v302 = vld [vmem:[#allocation2 + $0x88] sm:$0xff]
        %v303 = vld [vmem:[#allocation2 + $0x90] sm:$0xff]
        %v304 = vld [vmem:[#allocation2 + $0x98] sm:$0xff]
        %v305 = vld [vmem:[#allocation2 + $0xa0] sm:$0xff]
        %v306 = vld [vmem:[#allocation2 + $0xa8] sm:$0xff]
        %v307 = vld [vmem:[#allocation2 + $0xb0] sm:$0xff]
        %v308 = vld [vmem:[#allocation2 + $0xb8] sm:$0xff]
        %v309 = vld [vmem:[#allocation2 + $0xc0] sm:$0xff]
        %v310 = vld [vmem:[#allocation2 + $0xc8] sm:$0xff]
        %v311 = vld [vmem:[#allocation2 + $0xd0] sm:$0xff]
        %v312 = vld [vmem:[#allocation2 + $0xd8] sm:$0xff]
        %v313 = vld [vmem:[#allocation2 + $0xe0] sm:$0xff]
        %v314 = vld [vmem:[#allocation2 + $0xe8] sm:$0xff]
        %v315 = vld [vmem:[#allocation2 + $0xf0] sm:$0xff]
        %v316 = vld [vmem:[#allocation2 + $0xf8] sm:$0xff]
        %v317 = vld [vmem:[%s210] sm:$0xf]
        %vm318 = vcmask 31744
        %v320 = vsel %vm318, %v253, 0
        %v323 = vsel %vm318, %v254, 0
        %v326 = vsel %vm318, %v255, 0
        %v329 = vsel %vm318, %v256, 0
        %v332 = vsel %vm318, %v257, 0
        %v335 = vsel %vm318, %v258, 0
        %v338 = vsel %vm318, %v259, 0
        %v341 = vsel %vm318, %v260, 0
        %v344 = vsel %vm318, %v261, 0
        %v347 = vsel %vm318, %v262, 0
        %v350 = vsel %vm318, %v263, 0
        %v353 = vsel %vm318, %v264, 0
        %v356 = vsel %vm318, %v265, 0
        %v359 = vsel %vm318, %v266, 0
        %v362 = vsel %vm318, %v267, 0
        %v365 = vsel %vm318, %v268, 0
        %v368 = vsel %vm318, %v269, 0
        %v371 = vsel %vm318, %v270, 0
        %v374 = vsel %vm318, %v271, 0
        %v377 = vsel %vm318, %v272, 0
        %v380 = vsel %vm318, %v273, 0
        %v383 = vsel %vm318, %v274, 0
        %v386 = vsel %vm318, %v275, 0
        %v389 = vsel %vm318, %v276, 0
        %v392 = vsel %vm318, %v277, 0
        %v395 = vsel %vm318, %v278, 0
        %v398 = vsel %vm318, %v279, 0
        %v401 = vsel %vm318, %v280, 0
        %v404 = vsel %vm318, %v281, 0
        %v407 = vsel %vm318, %v282, 0
        %v410 = vsel %vm318, %v283, 0
        %v413 = vsel %vm318, %v284, 0
        %vm415 = vcmask 1043456
        %v417 = vsel %vm415, %v317, 0
        %419 = vmatprep.subr.mxu0 0.0
        %420 = vmatpush1.msra.mxu0 %v417
        %421 = vmatprep.subr.mxu0 0.0
        %422 = vmatpush1.msra.mxu0 0.0
        %423 = vmatprep.subr.mxu0 0.0
        %424 = vmatpush1.msra.mxu0 0.0
        %425 = vmatprep.subr.mxu0 0.0
        %426 = vmatpush1.msra.mxu0 0.0
        %427 = vmatprep.subr.mxu0 0.0
        %428 = vmatpush1.msra.mxu0 0.0
        %429 = vmatprep.subr.mxu0 0.0
        %430 = vmatpush1.msra.mxu0 0.0
        %431 = vmatprep.subr.mxu0 0.0
        %432 = vmatpush1.msra.mxu0 0.0
        %433 = vmatprep.subr.mxu0 0.0
        %434 = vmatpush1.msra.mxu0 0.0
        %435 = vmatprep.subr.mxu0 0.0
        %436 = vmatpush1.msra.mxu0 0.0
        %437 = vmatprep.subr.mxu0 0.0
        %438 = vmatpush1.msra.mxu0 0.0
        %439 = vmatprep.subr.mxu0 0.0
        %440 = vmatpush1.msra.mxu0 0.0
        %441 = vmatprep.subr.mxu0 0.0
        %442 = vmatpush1.msra.mxu0 0.0
        %443 = vmatprep.subr.mxu0 0.0
        %444 = vmatpush1.msra.mxu0 0.0
        %445 = vmatprep.subr.mxu0 0.0
        %446 = vmatpush1.msra.mxu0 0.0
        %447 = vmatprep.subr.mxu0 0.0
        %448 = vmatpush1.msra.mxu0 0.0
        %449 = vmatprep.subr.mxu0 0.0
        %450 = vmatpush1.msra.mxu0 0.0
        %451 = vmatprep.subr.mxu0 0.0
        %452 = vmatpush1.msra.mxu0 0.0
        %453 = vmatprep.subr.mxu0 0.0
        %454 = vmatpush1.msra.mxu0 0.0
        %455 = vmatprep.subr.mxu0 0.0
        %456 = vmatpush1.msra.mxu0 0.0
        %457 = vmatprep.subr.mxu0 0.0
        %458 = vmatpush1.msra.mxu0 0.0
        %459 = vmatprep.subr.mxu0 0.0
        %460 = vmatpush1.msra.mxu0 0.0
        %461 = vmatprep.subr.mxu0 0.0
        %462 = vmatpush1.msra.mxu0 0.0
        %463 = vmatprep.subr.mxu0 0.0
        %464 = vmatpush1.msra.mxu0 0.0
        %465 = vmatprep.subr.mxu0 0.0
        %466 = vmatpush1.msra.mxu0 0.0
        %467 = vmatprep.subr.mxu0 0.0
        %468 = vmatpush1.msra.mxu0 0.0
        %469 = vmatprep.subr.mxu0 0.0
        %470 = vmatpush1.msra.mxu0 0.0
        %471 = vmatprep.subr.mxu0 0.0
        %472 = vmatpush1.msra.mxu0 0.0
        %473 = vmatprep.subr.mxu0 0.0
        %474 = vmatpush1.msra.mxu0 0.0
        %475 = vmatprep.subr.mxu0 0.0
        %476 = vmatpush1.msra.mxu0 0.0
        %477 = vmatprep.subr.mxu0 0.0
        %478 = vmatpush1.msra.mxu0 0.0
        %479 = vmatprep.subr.mxu0 0.0
        %480 = vmatpush1.msra.mxu0 0.0
        %481 = vmatprep.subr.mxu0 0.0
        %482 = vmatpush1.msra.mxu0 0.0
        %483 = vmatprep.mubr.f32.mxu0 0.0
        %484 = vmatmul.mubr.f32.gmra.mrb[0].mxu0 %v320
        %v485 = vpop.f32.mrb[0].mxu0
        %v486 = vadd.f32 0.0, %v485
        %v487 = vpop.f32.mrb[0].mxu0
        %488 = vmatprep.mubr.f32.mxu0 0.0
        %489 = vmatmul.mubr.f32.gmra.mrb[0].mxu0 %v323
        %v490 = vpop.f32.mrb[0].mxu0
        %v491 = vadd.f32 0.0, %v490
        %v492 = vpop.f32.mrb[0].mxu0
        %493 = vmatprep.mubr.f32.mxu0 0.0
        %494 = vmatmul.mubr.f32.gmra.mrb[0].mxu0 %v326
        %v495 = vpop.f32.mrb[0].mxu0
        %v496 = vadd.f32 0.0, %v495
        %v497 = vpop.f32.mrb[0].mxu0
        %498 = vmatprep.mubr.f32.mxu0 0.0
        %499 = vmatmul.mubr.f32.gmra.mrb[0].mxu0 %v329
        %v500 = vpop.f32.mrb[0].mxu0
        %v501 = vadd.f32 0.0, %v500
        %v502 = vpop.f32.mrb[0].mxu0
        %503 = vmatprep.mubr.f32.mxu0 0.0
        %504 = vmatmul.mubr.f32.gmra.mrb[0].mxu0 %v332
        %v505 = vpop.f32.mrb[0].mxu0
        %v506 = vadd.f32 0.0, %v505
        %v507 = vpop.f32.mrb[0].mxu0
        %508 = vmatprep.mubr.f32.mxu0 0.0
        %509 = vmatmul.mubr.f32.gmra.mrb[0].mxu0 %v335
        %v510 = vpop.f32.mrb[0].mxu0
        %v511 = vadd.f32 0.0, %v510
        %v512 = vpop.f32.mrb[0].mxu0
        %513 = vmatprep.mubr.f32.mxu0 0.0
        %514 = vmatmul.mubr.f32.gmra.mrb[0].mxu0 %v338
        %v515 = vpop.f32.mrb[0].mxu0
        %v516 = vadd.f32 0.0, %v515
        %v517 = vpop.f32.mrb[0].mxu0
        %518 = vmatprep.mubr.f32.mxu0 0.0
        %519 = vmatmul.mubr.f32.gmra.mrb[0].mxu0 %v341
        %v520 = vpop.f32.mrb[0].mxu0
        %v521 = vadd.f32 0.0, %v520
        %v522 = vpop.f32.mrb[0].mxu0
        %523 = vmatprep.mubr.f32.mxu0 0.0
        %524 = vmatmul.mubr.f32.gmra.mrb[0].mxu0 %v344
        %v525 = vpop.f32.mrb[0].mxu0
        %v526 = vadd.f32 0.0, %v525
        %v527 = vpop.f32.mrb[0].mxu0
        %528 = vmatprep.mubr.f32.mxu0 0.0
        %529 = vmatmul.mubr.f32.gmra.mrb[0].mxu0 %v347
        %v530 = vpop.f32.mrb[0].mxu0
        %v531 = vadd.f32 0.0, %v530
        %v532 = vpop.f32.mrb[0].mxu0
        %533 = vmatprep.mubr.f32.mxu0 0.0
        %534 = vmatmul.mubr.f32.gmra.mrb[0].mxu0 %v350
        %v535 = vpop.f32.mrb[0].mxu0
        %v536 = vadd.f32 0.0, %v535
        %v537 = vpop.f32.mrb[0].mxu0
        %538 = vmatprep.mubr.f32.mxu0 0.0
        %539 = vmatmul.mubr.f32.gmra.mrb[0].mxu0 %v353
        %v540 = vpop.f32.mrb[0].mxu0
        %v541 = vadd.f32 0.0, %v540
        %v542 = vpop.f32.mrb[0].mxu0
        %543 = vmatprep.mubr.f32.mxu0 0.0
        %544 = vmatmul.mubr.f32.gmra.mrb[0].mxu0 %v356
        %v545 = vpop.f32.mrb[0].mxu0
        %v546 = vadd.f32 0.0, %v545
        %v547 = vpop.f32.mrb[0].mxu0
        %548 = vmatprep.mubr.f32.mxu0 0.0
        %549 = vmatmul.mubr.f32.gmra.mrb[0].mxu0 %v359
        %v550 = vpop.f32.mrb[0].mxu0
        %v551 = vadd.f32 0.0, %v550
        %v552 = vpop.f32.mrb[0].mxu0
        %553 = vmatprep.mubr.f32.mxu0 0.0
        %554 = vmatmul.mubr.f32.gmra.mrb[0].mxu0 %v362
        %v555 = vpop.f32.mrb[0].mxu0
        %v556 = vadd.f32 0.0, %v555
        %v557 = vpop.f32.mrb[0].mxu0
        %558 = vmatprep.mubr.f32.mxu0 0.0
        %559 = vmatmul.mubr.f32.gmra.mrb[0].mxu0 %v365
        %v560 = vpop.f32.mrb[0].mxu0
        %v561 = vadd.f32 0.0, %v560
        %v562 = vpop.f32.mrb[0].mxu0
        %563 = vmatprep.mubr.f32.mxu0 0.0
        %564 = vmatmul.mubr.f32.gmra.mrb[0].mxu0 %v368
        %v565 = vpop.f32.mrb[0].mxu0
        %v566 = vadd.f32 0.0, %v565
        %v567 = vpop.f32.mrb[0].mxu0
        %568 = vmatprep.mubr.f32.mxu0 0.0
        %569 = vmatmul.mubr.f32.gmra.mrb[0].mxu0 %v371
        %v570 = vpop.f32.mrb[0].mxu0
        %v571 = vadd.f32 0.0, %v570
        %v572 = vpop.f32.mrb[0].mxu0
        %573 = vmatprep.mubr.f32.mxu0 0.0
        %574 = vmatmul.mubr.f32.gmra.mrb[0].mxu0 %v374
        %v575 = vpop.f32.mrb[0].mxu0
        %v576 = vadd.f32 0.0, %v575
        %v577 = vpop.f32.mrb[0].mxu0
        %578 = vmatprep.mubr.f32.mxu0 0.0
        %579 = vmatmul.mubr.f32.gmra.mrb[0].mxu0 %v377
        %v580 = vpop.f32.mrb[0].mxu0
        %v581 = vadd.f32 0.0, %v580
        %v582 = vpop.f32.mrb[0].mxu0
        %583 = vmatprep.mubr.f32.mxu0 0.0
        %584 = vmatmul.mubr.f32.gmra.mrb[0].mxu0 %v380
        %v585 = vpop.f32.mrb[0].mxu0
        %v586 = vadd.f32 0.0, %v585
        %v587 = vpop.f32.mrb[0].mxu0
        %588 = vmatprep.mubr.f32.mxu0 0.0
        %589 = vmatmul.mubr.f32.gmra.mrb[0].mxu0 %v383
        %v590 = vpop.f32.mrb[0].mxu0
        %v591 = vadd.f32 0.0, %v590
        %v592 = vpop.f32.mrb[0].mxu0
        %593 = vmatprep.mubr.f32.mxu0 0.0
        %594 = vmatmul.mubr.f32.gmra.mrb[0].mxu0 %v386
        %v595 = vpop.f32.mrb[0].mxu0
        %v596 = vadd.f32 0.0, %v595
        %v597 = vpop.f32.mrb[0].mxu0
        %598 = vmatprep.mubr.f32.mxu0 0.0
        %599 = vmatmul.mubr.f32.gmra.mrb[0].mxu0 %v389
        %v600 = vpop.f32.mrb[0].mxu0
        %v601 = vadd.f32 0.0, %v600
        %v602 = vpop.f32.mrb[0].mxu0
        %603 = vmatprep.mubr.f32.mxu0 0.0
        %604 = vmatmul.mubr.f32.gmra.mrb[0].mxu0 %v392
        %v605 = vpop.f32.mrb[0].mxu0
        %v606 = vadd.f32 0.0, %v605
        %v607 = vpop.f32.mrb[0].mxu0
        %608 = vmatprep.mubr.f32.mxu0 0.0
        %609 = vmatmul.mubr.f32.gmra.mrb[0].mxu0 %v395
        %v610 = vpop.f32.mrb[0].mxu0
        %v611 = vadd.f32 0.0, %v610
        %v612 = vpop.f32.mrb[0].mxu0
        %613 = vmatprep.mubr.f32.mxu0 0.0
        %614 = vmatmul.mubr.f32.gmra.mrb[0].mxu0 %v398
        %v615 = vpop.f32.mrb[0].mxu0
        %v616 = vadd.f32 0.0, %v615
        %v617 = vpop.f32.mrb[0].mxu0
        %618 = vmatprep.mubr.f32.mxu0 0.0
        %619 = vmatmul.mubr.f32.gmra.mrb[0].mxu0 %v401
        %v620 = vpop.f32.mrb[0].mxu0
        %v621 = vadd.f32 0.0, %v620
        %v622 = vpop.f32.mrb[0].mxu0
        %623 = vmatprep.mubr.f32.mxu0 0.0
        %624 = vmatmul.mubr.f32.gmra.mrb[0].mxu0 %v404
        %v625 = vpop.f32.mrb[0].mxu0
        %v626 = vadd.f32 0.0, %v625
        %v627 = vpop.f32.mrb[0].mxu0
        %628 = vmatprep.mubr.f32.mxu0 0.0
        %629 = vmatmul.mubr.f32.gmra.mrb[0].mxu0 %v407
        %v630 = vpop.f32.mrb[0].mxu0
        %v631 = vadd.f32 0.0, %v630
        %v632 = vpop.f32.mrb[0].mxu0
        %633 = vmatprep.mubr.f32.mxu0 0.0
        %634 = vmatmul.mubr.f32.gmra.mrb[0].mxu0 %v410
        %v635 = vpop.f32.mrb[0].mxu0
        %v636 = vadd.f32 0.0, %v635
        %v637 = vpop.f32.mrb[0].mxu0
        %638 = vmatprep.mubr.f32.mxu0 0.0
        %639 = vmatmul.mubr.f32.gmra.mrb[0].mxu0 %v413
        %v640 = vpop.f32.mrb[0].mxu0
        %v641 = vadd.f32 0.0, %v640
        %v642 = vpop.f32.mrb[0].mxu0
        %643 = vdwg.mxu0
        %v644 = vadd.f32 %v285, %v486
        %v645 = vadd.f32 %v286, %v491
        %v646 = vadd.f32 %v287, %v496
        %v647 = vadd.f32 %v288, %v501
        %v648 = vadd.f32 %v289, %v506
        %v649 = vadd.f32 %v290, %v511
        %v650 = vadd.f32 %v291, %v516
        %v651 = vadd.f32 %v292, %v521
        %v652 = vadd.f32 %v293, %v526
        %v653 = vadd.f32 %v294, %v531
        %v654 = vadd.f32 %v295, %v536
        %v655 = vadd.f32 %v296, %v541
        %v656 = vadd.f32 %v297, %v546
        %v657 = vadd.f32 %v298, %v551
        %v658 = vadd.f32 %v299, %v556
        %v659 = vadd.f32 %v300, %v561
        %v660 = vadd.f32 %v301, %v566
        %v661 = vadd.f32 %v302, %v571
        %v662 = vadd.f32 %v303, %v576
        %v663 = vadd.f32 %v304, %v581
        %v664 = vadd.f32 %v305, %v586
        %v665 = vadd.f32 %v306, %v591
        %v666 = vadd.f32 %v307, %v596
        %v667 = vadd.f32 %v308, %v601
        %v668 = vadd.f32 %v309, %v606
        %v669 = vadd.f32 %v310, %v611
        %v670 = vadd.f32 %v311, %v616
        %v671 = vadd.f32 %v312, %v621
        %v672 = vadd.f32 %v313, %v626
        %v673 = vadd.f32 %v314, %v631
        %v674 = vadd.f32 %v315, %v636
        %v675 = vadd.f32 %v316, %v641
        %676 = vst [vmem:[#allocation2] sm:$0xff] %v644
        %677 = vst [vmem:[#allocation2 + $0x8] sm:$0xff] %v645
        %678 = vst [vmem:[#allocation2 + $0x10] sm:$0xff] %v646
        %679 = vst [vmem:[#allocation2 + $0x18] sm:$0xff] %v647
        %680 = vst [vmem:[#allocation2 + $0x20] sm:$0xff] %v648
        %681 = vst [vmem:[#allocation2 + $0x28] sm:$0xff] %v649
        %682 = vst [vmem:[#allocation2 + $0x30] sm:$0xff] %v650
        %683 = vst [vmem:[#allocation2 + $0x38] sm:$0xff] %v651
        %684 = vst [vmem:[#allocation2 + $0x40] sm:$0xff] %v652
        %685 = vst [vmem:[#allocation2 + $0x48] sm:$0xff] %v653
        %686 = vst [vmem:[#allocation2 + $0x50] sm:$0xff] %v654
        %687 = vst [vmem:[#allocation2 + $0x58] sm:$0xff] %v655
        %688 = vst [vmem:[#allocation2 + $0x60] sm:$0xff] %v656
        %689 = vst [vmem:[#allocation2 + $0x68] sm:$0xff] %v657
        %690 = vst [vmem:[#allocation2 + $0x70] sm:$0xff] %v658
        %691 = vst [vmem:[#allocation2 + $0x78] sm:$0xff] %v659
        %692 = vst [vmem:[#allocation2 + $0x80] sm:$0xff] %v660
        %693 = vst [vmem:[#allocation2 + $0x88] sm:$0xff] %v661
        %694 = vst [vmem:[#allocation2 + $0x90] sm:$0xff] %v662
        %695 = vst [vmem:[#allocation2 + $0x98] sm:$0xff] %v663
        %696 = vst [vmem:[#allocation2 + $0xa0] sm:$0xff] %v664
        %697 = vst [vmem:[#allocation2 + $0xa8] sm:$0xff] %v665
        %698 = vst [vmem:[#allocation2 + $0xb0] sm:$0xff] %v666
        %699 = vst [vmem:[#allocation2 + $0xb8] sm:$0xff] %v667
        %700 = vst [vmem:[#allocation2 + $0xc0] sm:$0xff] %v668
        %701 = vst [vmem:[#allocation2 + $0xc8] sm:$0xff] %v669
        %702 = vst [vmem:[#allocation2 + $0xd0] sm:$0xff] %v670
        %703 = vst [vmem:[#allocation2 + $0xd8] sm:$0xff] %v671
        %704 = vst [vmem:[#allocation2 + $0xe0] sm:$0xff] %v672
        %705 = vst [vmem:[#allocation2 + $0xe8] sm:$0xff] %v673
        %706 = vst [vmem:[#allocation2 + $0xf0] sm:$0xff] %v674
        %707 = vst [vmem:[#allocation2 + $0xf8] sm:$0xff] %v675
        %s708 = scalar_lea.vmem %s206, 16
        %v709 = vld [vmem:[%s708] sm:$0xff]
        %v710 = vld [vmem:[%s708 + $0x10] sm:$0xff]
        %v711 = vld [vmem:[%s708 + $0x20] sm:$0xff]
        %v712 = vld [vmem:[%s708 + $0x30] sm:$0xff]
        %v713 = vld [vmem:[%s708 + $0x40] sm:$0xff]
        %v714 = vld [vmem:[%s708 + $0x50] sm:$0xff]
        %v715 = vld [vmem:[%s708 + $0x60] sm:$0xff]
        %v716 = vld [vmem:[%s708 + $0x70] sm:$0xff]
        %v717 = vld [vmem:[%s708 + $0xa0] sm:$0xff]
        %v718 = vld [vmem:[%s708 + $0xb0] sm:$0xff]
        %v719 = vld [vmem:[%s708 + $0xc0] sm:$0xff]
        %v720 = vld [vmem:[%s708 + $0xd0] sm:$0xff]
        %v721 = vld [vmem:[%s708 + $0xe0] sm:$0xff]
        %v722 = vld [vmem:[%s708 + $0xf0] sm:$0xff]
        %v723 = vld [vmem:[%s708 + $0x100] sm:$0xff]
        %v724 = vld [vmem:[%s708 + $0x110] sm:$0xff]
        %v725 = vld [vmem:[%s708 + $0x140] sm:$0xff]
        %v726 = vld [vmem:[%s708 + $0x150] sm:$0xff]
        %v727 = vld [vmem:[%s708 + $0x160] sm:$0xff]
        %v728 = vld [vmem:[%s708 + $0x170] sm:$0xff]
        %v729 = vld [vmem:[%s708 + $0x180] sm:$0xff]
        %v730 = vld [vmem:[%s708 + $0x190] sm:$0xff]
        %v731 = vld [vmem:[%s708 + $0x1a0] sm:$0xff]
        %v732 = vld [vmem:[%s708 + $0x1b0] sm:$0xff]
        %v733 = vld [vmem:[%s708 + $0x1e0] sm:$0xff]
        %v734 = vld [vmem:[%s708 + $0x1f0] sm:$0xff]
        %v735 = vld [vmem:[%s708 + $0x200] sm:$0xff]
        %v736 = vld [vmem:[%s708 + $0x210] sm:$0xff]
        %v737 = vld [vmem:[%s708 + $0x220] sm:$0xff]
        %v738 = vld [vmem:[%s708 + $0x230] sm:$0xff]
        %v739 = vld [vmem:[%s708 + $0x240] sm:$0xff]
        %v740 = vld [vmem:[%s708 + $0x250] sm:$0xff]
        %v741 = vld [vmem:[#allocation2] sm:$0xff]
        %v742 = vld [vmem:[#allocation2 + $0x8] sm:$0xff]
        %v743 = vld [vmem:[#allocation2 + $0x10] sm:$0xff]
        %v744 = vld [vmem:[#allocation2 + $0x18] sm:$0xff]
        %v745 = vld [vmem:[#allocation2 + $0x20] sm:$0xff]
        %v746 = vld [vmem:[#allocation2 + $0x28] sm:$0xff]
        %v747 = vld [vmem:[#allocation2 + $0x30] sm:$0xff]
        %v748 = vld [vmem:[#allocation2 + $0x38] sm:$0xff]
        %v749 = vld [vmem:[#allocation2 + $0x40] sm:$0xff]
        %v750 = vld [vmem:[#allocation2 + $0x48] sm:$0xff]
        %v751 = vld [vmem:[#allocation2 + $0x50] sm:$0xff]
        %v752 = vld [vmem:[#allocation2 + $0x58] sm:$0xff]
        %v753 = vld [vmem:[#allocation2 + $0x60] sm:$0xff]
        %v754 = vld [vmem:[#allocation2 + $0x68] sm:$0xff]
        %v755 = vld [vmem:[#allocation2 + $0x70] sm:$0xff]
        %v756 = vld [vmem:[#allocation2 + $0x78] sm:$0xff]
        %v757 = vld [vmem:[#allocation2 + $0x80] sm:$0xff]
        %v758 = vld [vmem:[#allocation2 + $0x88] sm:$0xff]
        %v759 = vld [vmem:[#allocation2 + $0x90] sm:$0xff]
        %v760 = vld [vmem:[#allocation2 + $0x98] sm:$0xff]
        %v761 = vld [vmem:[#allocation2 + $0xa0] sm:$0xff]
        %v762 = vld [vmem:[#allocation2 + $0xa8] sm:$0xff]
        %v763 = vld [vmem:[#allocation2 + $0xb0] sm:$0xff]
        %v764 = vld [vmem:[#allocation2 + $0xb8] sm:$0xff]
        %v765 = vld [vmem:[#allocation2 + $0xc0] sm:$0xff]
        %v766 = vld [vmem:[#allocation2 + $0xc8] sm:$0xff]
        %v767 = vld [vmem:[#allocation2 + $0xd0] sm:$0xff]
        %v768 = vld [vmem:[#allocation2 + $0xd8] sm:$0xff]
        %v769 = vld [vmem:[#allocation2 + $0xe0] sm:$0xff]
        %v770 = vld [vmem:[#allocation2 + $0xe8] sm:$0xff]
        %v771 = vld [vmem:[#allocation2 + $0xf0] sm:$0xff]
        %v772 = vld [vmem:[#allocation2 + $0xf8] sm:$0xff]
        %s773 = scalar_lea.vmem %s210, 4
        %v774 = vld [vmem:[%s773] sm:$0xf]
        %v776 = vsel %vm318, %v709, 0
        %v779 = vsel %vm318, %v710, 0
        %v782 = vsel %vm318, %v711, 0
        %v785 = vsel %vm318, %v712, 0
        %v788 = vsel %vm318, %v713, 0
        %v791 = vsel %vm318, %v714, 0
        %v794 = vsel %vm318, %v715, 0
        %v797 = vsel %vm318, %v716, 0
        %v800 = vsel %vm318, %v717, 0
        %v803 = vsel %vm318, %v718, 0
        %v806 = vsel %vm318, %v719, 0
        %v809 = vsel %vm318, %v720, 0
        %v812 = vsel %vm318, %v721, 0
        %v815 = vsel %vm318, %v722, 0
        %v818 = vsel %vm318, %v723, 0
        %v821 = vsel %vm318, %v724, 0
        %v824 = vsel %vm318, %v725, 0
        %v827 = vsel %vm318, %v726, 0
        %v830 = vsel %vm318, %v727, 0
        %v833 = vsel %vm318, %v728, 0
        %v836 = vsel %vm318, %v729, 0
        %v839 = vsel %vm318, %v730, 0
        %v842 = vsel %vm318, %v731, 0
        %v845 = vsel %vm318, %v732, 0
        %v848 = vsel %vm318, %v733, 0
        %v851 = vsel %vm318, %v734, 0
        %v854 = vsel %vm318, %v735, 0
        %v857 = vsel %vm318, %v736, 0
        %v860 = vsel %vm318, %v737, 0
        %v863 = vsel %vm318, %v738, 0
        %v866 = vsel %vm318, %v739, 0
        %v869 = vsel %vm318, %v740, 0
        %v872 = vsel %vm415, %v774, 0
        %874 = vmatprep.subr.mxu0 0.0
        %875 = vmatpush1.msra.mxu0 %v872
        %876 = vmatprep.subr.mxu0 0.0
        %877 = vmatpush1.msra.mxu0 0.0
        %878 = vmatprep.subr.mxu0 0.0
        %879 = vmatpush1.msra.mxu0 0.0
        %880 = vmatprep.subr.mxu0 0.0
        %881 = vmatpush1.msra.mxu0 0.0
        %882 = vmatprep.subr.mxu0 0.0
        %883 = vmatpush1.msra.mxu0 0.0
        %884 = vmatprep.subr.mxu0 0.0
        %885 = vmatpush1.msra.mxu0 0.0
        %886 = vmatprep.subr.mxu0 0.0
        %887 = vmatpush1.msra.mxu0 0.0
        %888 = vmatprep.subr.mxu0 0.0
        %889 = vmatpush1.msra.mxu0 0.0
        %890 = vmatprep.subr.mxu0 0.0
        %891 = vmatpush1.msra.mxu0 0.0
        %892 = vmatprep.subr.mxu0 0.0
        %893 = vmatpush1.msra.mxu0 0.0
        %894 = vmatprep.subr.mxu0 0.0
        %895 = vmatpush1.msra.mxu0 0.0
        %896 = vmatprep.subr.mxu0 0.0
        %897 = vmatpush1.msra.mxu0 0.0
        %898 = vmatprep.subr.mxu0 0.0
        %899 = vmatpush1.msra.mxu0 0.0
        %900 = vmatprep.subr.mxu0 0.0
        %901 = vmatpush1.msra.mxu0 0.0
        %902 = vmatprep.subr.mxu0 0.0
        %903 = vmatpush1.msra.mxu0 0.0
        %904 = vmatprep.subr.mxu0 0.0
        %905 = vmatpush1.msra.mxu0 0.0
        %906 = vmatprep.subr.mxu0 0.0
        %907 = vmatpush1.msra.mxu0 0.0
        %908 = vmatprep.subr.mxu0 0.0
        %909 = vmatpush1.msra.mxu0 0.0
        %910 = vmatprep.subr.mxu0 0.0
        %911 = vmatpush1.msra.mxu0 0.0
        %912 = vmatprep.subr.mxu0 0.0
        %913 = vmatpush1.msra.mxu0 0.0
        %914 = vmatprep.subr.mxu0 0.0
        %915 = vmatpush1.msra.mxu0 0.0
        %916 = vmatprep.subr.mxu0 0.0
        %917 = vmatpush1.msra.mxu0 0.0
        %918 = vmatprep.subr.mxu0 0.0
        %919 = vmatpush1.msra.mxu0 0.0
        %920 = vmatprep.subr.mxu0 0.0
        %921 = vmatpush1.msra.mxu0 0.0
        %922 = vmatprep.subr.mxu0 0.0
        %923 = vmatpush1.msra.mxu0 0.0
        %924 = vmatprep.subr.mxu0 0.0
        %925 = vmatpush1.msra.mxu0 0.0
        %926 = vmatprep.subr.mxu0 0.0
        %927 = vmatpush1.msra.mxu0 0.0
        %928 = vmatprep.subr.mxu0 0.0
        %929 = vmatpush1.msra.mxu0 0.0
        %930 = vmatprep.subr.mxu0 0.0
        %931 = vmatpush1.msra.mxu0 0.0
        %932 = vmatprep.subr.mxu0 0.0
        %933 = vmatpush1.msra.mxu0 0.0
        %934 = vmatprep.subr.mxu0 0.0
        %935 = vmatpush1.msra.mxu0 0.0
        %936 = vmatprep.subr.mxu0 0.0
        %937 = vmatpush1.msra.mxu0 0.0
        %938 = vmatprep.mubr.f32.mxu0 0.0
        %939 = vmatmul.mubr.f32.gmra.mrb[0].mxu0 %v776
        %v940 = vpop.f32.mrb[0].mxu0
        %v941 = vadd.f32 0.0, %v940
        %v942 = vpop.f32.mrb[0].mxu0
        %943 = vmatprep.mubr.f32.mxu0 0.0
        %944 = vmatmul.mubr.f32.gmra.mrb[0].mxu0 %v779
        %v945 = vpop.f32.mrb[0].mxu0
        %v946 = vadd.f32 0.0, %v945
        %v947 = vpop.f32.mrb[0].mxu0
        %948 = vmatprep.mubr.f32.mxu0 0.0
        %949 = vmatmul.mubr.f32.gmra.mrb[0].mxu0 %v782
        %v950 = vpop.f32.mrb[0].mxu0
        %v951 = vadd.f32 0.0, %v950
        %v952 = vpop.f32.mrb[0].mxu0
        %953 = vmatprep.mubr.f32.mxu0 0.0
        %954 = vmatmul.mubr.f32.gmra.mrb[0].mxu0 %v785
        %v955 = vpop.f32.mrb[0].mxu0
        %v956 = vadd.f32 0.0, %v955
        %v957 = vpop.f32.mrb[0].mxu0
        %958 = vmatprep.mubr.f32.mxu0 0.0
        %959 = vmatmul.mubr.f32.gmra.mrb[0].mxu0 %v788
        %v960 = vpop.f32.mrb[0].mxu0
        %v961 = vadd.f32 0.0, %v960
        %v962 = vpop.f32.mrb[0].mxu0
        %963 = vmatprep.mubr.f32.mxu0 0.0
        %964 = vmatmul.mubr.f32.gmra.mrb[0].mxu0 %v791
        %v965 = vpop.f32.mrb[0].mxu0
        %v966 = vadd.f32 0.0, %v965
        %v967 = vpop.f32.mrb[0].mxu0
        %968 = vmatprep.mubr.f32.mxu0 0.0
        %969 = vmatmul.mubr.f32.gmra.mrb[0].mxu0 %v794
        %v970 = vpop.f32.mrb[0].mxu0
        %v971 = vadd.f32 0.0, %v970
        %v972 = vpop.f32.mrb[0].mxu0
        %973 = vmatprep.mubr.f32.mxu0 0.0
        %974 = vmatmul.mubr.f32.gmra.mrb[0].mxu0 %v797
        %v975 = vpop.f32.mrb[0].mxu0
        %v976 = vadd.f32 0.0, %v975
        %v977 = vpop.f32.mrb[0].mxu0
        %978 = vmatprep.mubr.f32.mxu0 0.0
        %979 = vmatmul.mubr.f32.gmra.mrb[0].mxu0 %v800
        %v980 = vpop.f32.mrb[0].mxu0
        %v981 = vadd.f32 0.0, %v980
        %v982 = vpop.f32.mrb[0].mxu0
        %983 = vmatprep.mubr.f32.mxu0 0.0
        %984 = vmatmul.mubr.f32.gmra.mrb[0].mxu0 %v803
        %v985 = vpop.f32.mrb[0].mxu0
        %v986 = vadd.f32 0.0, %v985
        %v987 = vpop.f32.mrb[0].mxu0
        %988 = vmatprep.mubr.f32.mxu0 0.0
        %989 = vmatmul.mubr.f32.gmra.mrb[0].mxu0 %v806
        %v990 = vpop.f32.mrb[0].mxu0
        %v991 = vadd.f32 0.0, %v990
        %v992 = vpop.f32.mrb[0].mxu0
        %993 = vmatprep.mubr.f32.mxu0 0.0
        %994 = vmatmul.mubr.f32.gmra.mrb[0].mxu0 %v809
        %v995 = vpop.f32.mrb[0].mxu0
        %v996 = vadd.f32 0.0, %v995
        %v997 = vpop.f32.mrb[0].mxu0
        %998 = vmatprep.mubr.f32.mxu0 0.0
        %999 = vmatmul.mubr.f32.gmra.mrb[0].mxu0 %v812
        %v1000 = vpop.f32.mrb[0].mxu0
        %v1001 = vadd.f32 0.0, %v1000
        %v1002 = vpop.f32.mrb[0].mxu0
        %1003 = vmatprep.mubr.f32.mxu0 0.0
        %1004 = vmatmul.mubr.f32.gmra.mrb[0].mxu0 %v815
        %v1005 = vpop.f32.mrb[0].mxu0
        %v1006 = vadd.f32 0.0, %v1005
        %v1007 = vpop.f32.mrb[0].mxu0
        %1008 = vmatprep.mubr.f32.mxu0 0.0
        %1009 = vmatmul.mubr.f32.gmra.mrb[0].mxu0 %v818
        %v1010 = vpop.f32.mrb[0].mxu0
        %v1011 = vadd.f32 0.0, %v1010
        %v1012 = vpop.f32.mrb[0].mxu0
        %1013 = vmatprep.mubr.f32.mxu0 0.0
        %1014 = vmatmul.mubr.f32.gmra.mrb[0].mxu0 %v821
        %v1015 = vpop.f32.mrb[0].mxu0
        %v1016 = vadd.f32 0.0, %v1015
        %v1017 = vpop.f32.mrb[0].mxu0
        %1018 = vmatprep.mubr.f32.mxu0 0.0
        %1019 = vmatmul.mubr.f32.gmra.mrb[0].mxu0 %v824
        %v1020 = vpop.f32.mrb[0].mxu0
        %v1021 = vadd.f32 0.0, %v1020
        %v1022 = vpop.f32.mrb[0].mxu0
        %1023 = vmatprep.mubr.f32.mxu0 0.0
        %1024 = vmatmul.mubr.f32.gmra.mrb[0].mxu0 %v827
        %v1025 = vpop.f32.mrb[0].mxu0
        %v1026 = vadd.f32 0.0, %v1025
        %v1027 = vpop.f32.mrb[0].mxu0
        %1028 = vmatprep.mubr.f32.mxu0 0.0
        %1029 = vmatmul.mubr.f32.gmra.mrb[0].mxu0 %v830
        %v1030 = vpop.f32.mrb[0].mxu0
        %v1031 = vadd.f32 0.0, %v1030
        %v1032 = vpop.f32.mrb[0].mxu0
        %1033 = vmatprep.mubr.f32.mxu0 0.0
        %1034 = vmatmul.mubr.f32.gmra.mrb[0].mxu0 %v833
        %v1035 = vpop.f32.mrb[0].mxu0
        %v1036 = vadd.f32 0.0, %v1035
        %v1037 = vpop.f32.mrb[0].mxu0
        %1038 = vmatprep.mubr.f32.mxu0 0.0
        %1039 = vmatmul.mubr.f32.gmra.mrb[0].mxu0 %v836
        %v1040 = vpop.f32.mrb[0].mxu0
        %v1041 = vadd.f32 0.0, %v1040
        %v1042 = vpop.f32.mrb[0].mxu0
        %1043 = vmatprep.mubr.f32.mxu0 0.0
        %1044 = vmatmul.mubr.f32.gmra.mrb[0].mxu0 %v839
        %v1045 = vpop.f32.mrb[0].mxu0
        %v1046 = vadd.f32 0.0, %v1045
        %v1047 = vpop.f32.mrb[0].mxu0
        %1048 = vmatprep.mubr.f32.mxu0 0.0
        %1049 = vmatmul.mubr.f32.gmra.mrb[0].mxu0 %v842
        %v1050 = vpop.f32.mrb[0].mxu0
        %v1051 = vadd.f32 0.0, %v1050
        %v1052 = vpop.f32.mrb[0].mxu0
        %1053 = vmatprep.mubr.f32.mxu0 0.0
        %1054 = vmatmul.mubr.f32.gmra.mrb[0].mxu0 %v845
        %v1055 = vpop.f32.mrb[0].mxu0
        %v1056 = vadd.f32 0.0, %v1055
        %v1057 = vpop.f32.mrb[0].mxu0
        %1058 = vmatprep.mubr.f32.mxu0 0.0
        %1059 = vmatmul.mubr.f32.gmra.mrb[0].mxu0 %v848
        %v1060 = vpop.f32.mrb[0].mxu0
        %v1061 = vadd.f32 0.0, %v1060
        %v1062 = vpop.f32.mrb[0].mxu0
        %1063 = vmatprep.mubr.f32.mxu0 0.0
        %1064 = vmatmul.mubr.f32.gmra.mrb[0].mxu0 %v851
        %v1065 = vpop.f32.mrb[0].mxu0
        %v1066 = vadd.f32 0.0, %v1065
        %v1067 = vpop.f32.mrb[0].mxu0
        %1068 = vmatprep.mubr.f32.mxu0 0.0
        %1069 = vmatmul.mubr.f32.gmra.mrb[0].mxu0 %v854
        %v1070 = vpop.f32.mrb[0].mxu0
        %v1071 = vadd.f32 0.0, %v1070
        %v1072 = vpop.f32.mrb[0].mxu0
        %1073 = vmatprep.mubr.f32.mxu0 0.0
        %1074 = vmatmul.mubr.f32.gmra.mrb[0].mxu0 %v857
        %v1075 = vpop.f32.mrb[0].mxu0
        %v1076 = vadd.f32 0.0, %v1075
        %v1077 = vpop.f32.mrb[0].mxu0
        %1078 = vmatprep.mubr.f32.mxu0 0.0
        %1079 = vmatmul.mubr.f32.gmra.mrb[0].mxu0 %v860
        %v1080 = vpop.f32.mrb[0].mxu0
        %v1081 = vadd.f32 0.0, %v1080
        %v1082 = vpop.f32.mrb[0].mxu0
        %1083 = vmatprep.mubr.f32.mxu0 0.0
        %1084 = vmatmul.mubr.f32.gmra.mrb[0].mxu0 %v863
        %v1085 = vpop.f32.mrb[0].mxu0
        %v1086 = vadd.f32 0.0, %v1085
        %v1087 = vpop.f32.mrb[0].mxu0
        %1088 = vmatprep.mubr.f32.mxu0 0.0
        %1089 = vmatmul.mubr.f32.gmra.mrb[0].mxu0 %v866
        %v1090 = vpop.f32.mrb[0].mxu0
        %v1091 = vadd.f32 0.0, %v1090
        %v1092 = vpop.f32.mrb[0].mxu0
        %1093 = vmatprep.mubr.f32.mxu0 0.0
        %1094 = vmatmul.mubr.f32.gmra.mrb[0].mxu0 %v869
        %v1095 = vpop.f32.mrb[0].mxu0
        %v1096 = vadd.f32 0.0, %v1095
        %v1097 = vpop.f32.mrb[0].mxu0
        %1098 = vdwg.mxu0
        %v1099 = vadd.f32 %v741, %v941
        %v1100 = vadd.f32 %v742, %v946
        %v1101 = vadd.f32 %v743, %v951
        %v1102 = vadd.f32 %v744, %v956
        %v1103 = vadd.f32 %v745, %v961
        %v1104 = vadd.f32 %v746, %v966
        %v1105 = vadd.f32 %v747, %v971
        %v1106 = vadd.f32 %v748, %v976
        %v1107 = vadd.f32 %v749, %v981
        %v1108 = vadd.f32 %v750, %v986
        %v1109 = vadd.f32 %v751, %v991
        %v1110 = vadd.f32 %v752, %v996
        %v1111 = vadd.f32 %v753, %v1001
        %v1112 = vadd.f32 %v754, %v1006
        %v1113 = vadd.f32 %v755, %v1011
        %v1114 = vadd.f32 %v756, %v1016
        %v1115 = vadd.f32 %v757, %v1021
        %v1116 = vadd.f32 %v758, %v1026
        %v1117 = vadd.f32 %v759, %v1031
        %v1118 = vadd.f32 %v760, %v1036
        %v1119 = vadd.f32 %v761, %v1041
        %v1120 = vadd.f32 %v762, %v1046
        %v1121 = vadd.f32 %v763, %v1051
        %v1122 = vadd.f32 %v764, %v1056
        %v1123 = vadd.f32 %v765, %v1061
        %v1124 = vadd.f32 %v766, %v1066
        %v1125 = vadd.f32 %v767, %v1071
        %v1126 = vadd.f32 %v768, %v1076
        %v1127 = vadd.f32 %v769, %v1081
        %v1128 = vadd.f32 %v770, %v1086
        %v1129 = vadd.f32 %v771, %v1091
        %v1130 = vadd.f32 %v772, %v1096
        %1131 = vst [vmem:[#allocation2] sm:$0xff] %v1099
        %1132 = vst [vmem:[#allocation2 + $0x8] sm:$0xff] %v1100
        %1133 = vst [vmem:[#allocation2 + $0x10] sm:$0xff] %v1101
        %1134 = vst [vmem:[#allocation2 + $0x18] sm:$0xff] %v1102
        %1135 = vst [vmem:[#allocation2 + $0x20] sm:$0xff] %v1103
        %1136 = vst [vmem:[#allocation2 + $0x28] sm:$0xff] %v1104
        %1137 = vst [vmem:[#allocation2 + $0x30] sm:$0xff] %v1105
        %1138 = vst [vmem:[#allocation2 + $0x38] sm:$0xff] %v1106
        %1139 = vst [vmem:[#allocation2 + $0x40] sm:$0xff] %v1107
        %1140 = vst [vmem:[#allocation2 + $0x48] sm:$0xff] %v1108
        %1141 = vst [vmem:[#allocation2 + $0x50] sm:$0xff] %v1109
        %1142 = vst [vmem:[#allocation2 + $0x58] sm:$0xff] %v1110
        %1143 = vst [vmem:[#allocation2 + $0x60] sm:$0xff] %v1111
        %1144 = vst [vmem:[#allocation2 + $0x68] sm:$0xff] %v1112
        %1145 = vst [vmem:[#allocation2 + $0x70] sm:$0xff] %v1113
        %1146 = vst [vmem:[#allocation2 + $0x78] sm:$0xff] %v1114
        %1147 = vst [vmem:[#allocation2 + $0x80] sm:$0xff] %v1115
        %1148 = vst [vmem:[#allocation2 + $0x88] sm:$0xff] %v1116
        %1149 = vst [vmem:[#allocation2 + $0x90] sm:$0xff] %v1117
        %1150 = vst [vmem:[#allocation2 + $0x98] sm:$0xff] %v1118
        %1151 = vst [vmem:[#allocation2 + $0xa0] sm:$0xff] %v1119
        %1152 = vst [vmem:[#allocation2 + $0xa8] sm:$0xff] %v1120
        %1153 = vst [vmem:[#allocation2 + $0xb0] sm:$0xff] %v1121
        %1154 = vst [vmem:[#allocation2 + $0xb8] sm:$0xff] %v1122
        %1155 = vst [vmem:[#allocation2 + $0xc0] sm:$0xff] %v1123
        %1156 = vst [vmem:[#allocation2 + $0xc8] sm:$0xff] %v1124
        %1157 = vst [vmem:[#allocation2 + $0xd0] sm:$0xff] %v1125
        %1158 = vst [vmem:[#allocation2 + $0xd8] sm:$0xff] %v1126
        %1159 = vst [vmem:[#allocation2 + $0xe0] sm:$0xff] %v1127
        %1160 = vst [vmem:[#allocation2 + $0xe8] sm:$0xff] %v1128
        %1161 = vst [vmem:[#allocation2 + $0xf0] sm:$0xff] %v1129
        %1162 = vst [vmem:[#allocation2 + $0xf8] sm:$0xff] %v1130
        %v1163 = vld [vmem:[%s708 + $0x1] sm:$0xff]
        %v1164 = vld [vmem:[%s708 + $0x11] sm:$0xff]
        %v1165 = vld [vmem:[%s708 + $0x21] sm:$0xff]
        %v1166 = vld [vmem:[%s708 + $0x31] sm:$0xff]
        %v1167 = vld [vmem:[%s708 + $0x41] sm:$0xff]
        %v1168 = vld [vmem:[%s708 + $0x51] sm:$0xff]
        %v1169 = vld [vmem:[%s708 + $0x61] sm:$0xff]
        %v1170 = vld [vmem:[%s708 + $0x71] sm:$0xff]
        %v1171 = vld [vmem:[%s708 + $0xa1] sm:$0xff]
        %v1172 = vld [vmem:[%s708 + $0xb1] sm:$0xff]
        %v1173 = vld [vmem:[%s708 + $0xc1] sm:$0xff]
        %v1174 = vld [vmem:[%s708 + $0xd1] sm:$0xff]
        %v1175 = vld [vmem:[%s708 + $0xe1] sm:$0xff]
        %v1176 = vld [vmem:[%s708 + $0xf1] sm:$0xff]
        %v1177 = vld [vmem:[%s708 + $0x101] sm:$0xff]
        %v1178 = vld [vmem:[%s708 + $0x111] sm:$0xff]
        %v1179 = vld [vmem:[%s708 + $0x141] sm:$0xff]
        %v1180 = vld [vmem:[%s708 + $0x151] sm:$0xff]
        %v1181 = vld [vmem:[%s708 + $0x161] sm:$0xff]
        %v1182 = vld [vmem:[%s708 + $0x171] sm:$0xff]
        %v1183 = vld [vmem:[%s708 + $0x181] sm:$0xff]
        %v1184 = vld [vmem:[%s708 + $0x191] sm:$0xff]
        %v1185 = vld [vmem:[%s708 + $0x1a1] sm:$0xff]
        %v1186 = vld [vmem:[%s708 + $0x1b1] sm:$0xff]
        %v1187 = vld [vmem:[%s708 + $0x1e1] sm:$0xff]
        %v1188 = vld [vmem:[%s708 + $0x1f1] sm:$0xff]
        %v1189 = vld [vmem:[%s708 + $0x201] sm:$0xff]
        %v1190 = vld [vmem:[%s708 + $0x211] sm:$0xff]
        %v1191 = vld [vmem:[%s708 + $0x221] sm:$0xff]
        %v1192 = vld [vmem:[%s708 + $0x231] sm:$0xff]
        %v1193 = vld [vmem:[%s708 + $0x241] sm:$0xff]
        %v1194 = vld [vmem:[%s708 + $0x251] sm:$0xff]
        %v1195 = vld [vmem:[#allocation2] sm:$0xff]
        %v1196 = vld [vmem:[#allocation2 + $0x8] sm:$0xff]
        %v1197 = vld [vmem:[#allocation2 + $0x10] sm:$0xff]
        %v1198 = vld [vmem:[#allocation2 + $0x18] sm:$0xff]
        %v1199 = vld [vmem:[#allocation2 + $0x20] sm:$0xff]
        %v1200 = vld [vmem:[#allocation2 + $0x28] sm:$0xff]
        %v1201 = vld [vmem:[#allocation2 + $0x30] sm:$0xff]
        %v1202 = vld [vmem:[#allocation2 + $0x38] sm:$0xff]
        %v1203 = vld [vmem:[#allocation2 + $0x40] sm:$0xff]
        %v1204 = vld [vmem:[#allocation2 + $0x48] sm:$0xff]
        %v1205 = vld [vmem:[#allocation2 + $0x50] sm:$0xff]
        %v1206 = vld [vmem:[#allocation2 + $0x58] sm:$0xff]
        %v1207 = vld [vmem:[#allocation2 + $0x60] sm:$0xff]
        %v1208 = vld [vmem:[#allocation2 + $0x68] sm:$0xff]
        %v1209 = vld [vmem:[#allocation2 + $0x70] sm:$0xff]
        %v1210 = vld [vmem:[#allocation2 + $0x78] sm:$0xff]
        %v1211 = vld [vmem:[#allocation2 + $0x80] sm:$0xff]
        %v1212 = vld [vmem:[#allocation2 + $0x88] sm:$0xff]
        %v1213 = vld [vmem:[#allocation2 + $0x90] sm:$0xff]
        %v1214 = vld [vmem:[#allocation2 + $0x98] sm:$0xff]
        %v1215 = vld [vmem:[#allocation2 + $0xa0] sm:$0xff]
        %v1216 = vld [vmem:[#allocation2 + $0xa8] sm:$0xff]
        %v1217 = vld [vmem:[#allocation2 + $0xb0] sm:$0xff]
        %v1218 = vld [vmem:[#allocation2 + $0xb8] sm:$0xff]
        %v1219 = vld [vmem:[#allocation2 + $0xc0] sm:$0xff]
        %v1220 = vld [vmem:[#allocation2 + $0xc8] sm:$0xff]
        %v1221 = vld [vmem:[#allocation2 + $0xd0] sm:$0xff]
        %v1222 = vld [vmem:[#allocation2 + $0xd8] sm:$0xff]
        %v1223 = vld [vmem:[#allocation2 + $0xe0] sm:$0xff]
        %v1224 = vld [vmem:[#allocation2 + $0xe8] sm:$0xff]
        %v1225 = vld [vmem:[#allocation2 + $0xf0] sm:$0xff]
        %v1226 = vld [vmem:[#allocation2 + $0xf8] sm:$0xff]
        %s1227 = scalar_lea.vmem %s210, 8
        %v1228 = vld [vmem:[%s1227] sm:$0xf]
        %v1230 = vsel %vm318, %v1163, 0
        %v1233 = vsel %vm318, %v1164, 0
        %v1236 = vsel %vm318, %v1165, 0
        %v1239 = vsel %vm318, %v1166, 0
        %v1242 = vsel %vm318, %v1167, 0
        %v1245 = vsel %vm318, %v1168, 0
        %v1248 = vsel %vm318, %v1169, 0
        %v1251 = vsel %vm318, %v1170, 0
        %v1254 = vsel %vm318, %v1171, 0
        %v1257 = vsel %vm318, %v1172, 0
        %v1260 = vsel %vm318, %v1173, 0
        %v1263 = vsel %vm318, %v1174, 0
        %v1266 = vsel %vm318, %v1175, 0
        %v1269 = vsel %vm318, %v1176, 0
        %v1272 = vsel %vm318, %v1177, 0
        %v1275 = vsel %vm318, %v1178, 0
        %v1278 = vsel %vm318, %v1179, 0
        %v1281 = vsel %vm318, %v1180, 0
        %v1284 = vsel %vm318, %v1181, 0
        %v1287 = vsel %vm318, %v1182, 0
        %v1290 = vsel %vm318, %v1183, 0
        %v1293 = vsel %vm318, %v1184, 0
        %v1296 = vsel %vm318, %v1185, 0
        %v1299 = vsel %vm318, %v1186, 0
        %v1302 = vsel %vm318, %v1187, 0
        %v1305 = vsel %vm318, %v1188, 0
        %v1308 = vsel %vm318, %v1189, 0
        %v1311 = vsel %vm318, %v1190, 0
        %v1314 = vsel %vm318, %v1191, 0
        %v1317 = vsel %vm318, %v1192, 0
        %v1320 = vsel %vm318, %v1193, 0
        %v1323 = vsel %vm318, %v1194, 0
        %v1326 = vsel %vm415, %v1228, 0
        %1328 = vmatprep.subr.mxu0 0.0
        %1329 = vmatpush1.msra.mxu0 %v1326
        %1330 = vmatprep.subr.mxu0 0.0
        %1331 = vmatpush1.msra.mxu0 0.0
        %1332 = vmatprep.subr.mxu0 0.0
        %1333 = vmatpush1.msra.mxu0 0.0
        %1334 = vmatprep.subr.mxu0 0.0
        %1335 = vmatpush1.msra.mxu0 0.0
        %1336 = vmatprep.subr.mxu0 0.0
        %1337 = vmatpush1.msra.mxu0 0.0
        %1338 = vmatprep.subr.mxu0 0.0
        %1339 = vmatpush1.msra.mxu0 0.0
        %1340 = vmatprep.subr.mxu0 0.0
        %1341 = vmatpush1.msra.mxu0 0.0
        %1342 = vmatprep.subr.mxu0 0.0
        %1343 = vmatpush1.msra.mxu0 0.0
        %1344 = vmatprep.subr.mxu0 0.0
        %1345 = vmatpush1.msra.mxu0 0.0
        %1346 = vmatprep.subr.mxu0 0.0
        %1347 = vmatpush1.msra.mxu0 0.0
        %1348 = vmatprep.subr.mxu0 0.0
        %1349 = vmatpush1.msra.mxu0 0.0
        %1350 = vmatprep.subr.mxu0 0.0
        %1351 = vmatpush1.msra.mxu0 0.0
        %1352 = vmatprep.subr.mxu0 0.0
        %1353 = vmatpush1.msra.mxu0 0.0
        %1354 = vmatprep.subr.mxu0 0.0
        %1355 = vmatpush1.msra.mxu0 0.0
        %1356 = vmatprep.subr.mxu0 0.0
        %1357 = vmatpush1.msra.mxu0 0.0
        %1358 = vmatprep.subr.mxu0 0.0
        %1359 = vmatpush1.msra.mxu0 0.0
        %1360 = vmatprep.subr.mxu0 0.0
        %1361 = vmatpush1.msra.mxu0 0.0
        %1362 = vmatprep.subr.mxu0 0.0
        %1363 = vmatpush1.msra.mxu0 0.0
        %1364 = vmatprep.subr.mxu0 0.0
        %1365 = vmatpush1.msra.mxu0 0.0
        %1366 = vmatprep.subr.mxu0 0.0
        %1367 = vmatpush1.msra.mxu0 0.0
        %1368 = vmatprep.subr.mxu0 0.0
        %1369 = vmatpush1.msra.mxu0 0.0
        %1370 = vmatprep.subr.mxu0 0.0
        %1371 = vmatpush1.msra.mxu0 0.0
        %1372 = vmatprep.subr.mxu0 0.0
        %1373 = vmatpush1.msra.mxu0 0.0
        %1374 = vmatprep.subr.mxu0 0.0
        %1375 = vmatpush1.msra.mxu0 0.0
        %1376 = vmatprep.subr.mxu0 0.0
        %1377 = vmatpush1.msra.mxu0 0.0
        %1378 = vmatprep.subr.mxu0 0.0
        %1379 = vmatpush1.msra.mxu0 0.0
        %1380 = vmatprep.subr.mxu0 0.0
        %1381 = vmatpush1.msra.mxu0 0.0
        %1382 = vmatprep.subr.mxu0 0.0
        %1383 = vmatpush1.msra.mxu0 0.0
        %1384 = vmatprep.subr.mxu0 0.0
        %1385 = vmatpush1.msra.mxu0 0.0
        %1386 = vmatprep.subr.mxu0 0.0
        %1387 = vmatpush1.msra.mxu0 0.0
        %1388 = vmatprep.subr.mxu0 0.0
        %1389 = vmatpush1.msra.mxu0 0.0
        %1390 = vmatprep.subr.mxu0 0.0
        %1391 = vmatpush1.msra.mxu0 0.0
        %1392 = vmatprep.mubr.f32.mxu0 0.0
        %1393 = vmatmul.mubr.f32.gmra.mrb[0].mxu0 %v1230
        %v1394 = vpop.f32.mrb[0].mxu0
        %v1395 = vadd.f32 0.0, %v1394
        %v1396 = vpop.f32.mrb[0].mxu0
        %1397 = vmatprep.mubr.f32.mxu0 0.0
        %1398 = vmatmul.mubr.f32.gmra.mrb[0].mxu0 %v1233
        %v1399 = vpop.f32.mrb[0].mxu0
        %v1400 = vadd.f32 0.0, %v1399
        %v1401 = vpop.f32.mrb[0].mxu0
        %1402 = vmatprep.mubr.f32.mxu0 0.0
        %1403 = vmatmul.mubr.f32.gmra.mrb[0].mxu0 %v1236
        %v1404 = vpop.f32.mrb[0].mxu0
        %v1405 = vadd.f32 0.0, %v1404
        %v1406 = vpop.f32.mrb[0].mxu0
        %1407 = vmatprep.mubr.f32.mxu0 0.0
        %1408 = vmatmul.mubr.f32.gmra.mrb[0].mxu0 %v1239
        %v1409 = vpop.f32.mrb[0].mxu0
        %v1410 = vadd.f32 0.0, %v1409
        %v1411 = vpop.f32.mrb[0].mxu0
        %1412 = vmatprep.mubr.f32.mxu0 0.0
        %1413 = vmatmul.mubr.f32.gmra.mrb[0].mxu0 %v1242
        %v1414 = vpop.f32.mrb[0].mxu0
        %v1415 = vadd.f32 0.0, %v1414
        %v1416 = vpop.f32.mrb[0].mxu0
        %1417 = vmatprep.mubr.f32.mxu0 0.0
        %1418 = vmatmul.mubr.f32.gmra.mrb[0].mxu0 %v1245
        %v1419 = vpop.f32.mrb[0].mxu0
        %v1420 = vadd.f32 0.0, %v1419
        %v1421 = vpop.f32.mrb[0].mxu0
        %1422 = vmatprep.mubr.f32.mxu0 0.0
        %1423 = vmatmul.mubr.f32.gmra.mrb[0].mxu0 %v1248
        %v1424 = vpop.f32.mrb[0].mxu0
        %v1425 = vadd.f32 0.0, %v1424
        %v1426 = vpop.f32.mrb[0].mxu0
        %1427 = vmatprep.mubr.f32.mxu0 0.0
        %1428 = vmatmul.mubr.f32.gmra.mrb[0].mxu0 %v1251
        %v1429 = vpop.f32.mrb[0].mxu0
        %v1430 = vadd.f32 0.0, %v1429
        %v1431 = vpop.f32.mrb[0].mxu0
        %1432 = vmatprep.mubr.f32.mxu0 0.0
        %1433 = vmatmul.mubr.f32.gmra.mrb[0].mxu0 %v1254
        %v1434 = vpop.f32.mrb[0].mxu0
        %v1435 = vadd.f32 0.0, %v1434
        %v1436 = vpop.f32.mrb[0].mxu0
        %1437 = vmatprep.mubr.f32.mxu0 0.0
        %1438 = vmatmul.mubr.f32.gmra.mrb[0].mxu0 %v1257
        %v1439 = vpop.f32.mrb[0].mxu0
        %v1440 = vadd.f32 0.0, %v1439
        %v1441 = vpop.f32.mrb[0].mxu0
        %1442 = vmatprep.mubr.f32.mxu0 0.0
        %1443 = vmatmul.mubr.f32.gmra.mrb[0].mxu0 %v1260
        %v1444 = vpop.f32.mrb[0].mxu0
        %v1445 = vadd.f32 0.0, %v1444
        %v1446 = vpop.f32.mrb[0].mxu0
        %1447 = vmatprep.mubr.f32.mxu0 0.0
        %1448 = vmatmul.mubr.f32.gmra.mrb[0].mxu0 %v1263
        %v1449 = vpop.f32.mrb[0].mxu0
        %v1450 = vadd.f32 0.0, %v1449
        %v1451 = vpop.f32.mrb[0].mxu0
        %1452 = vmatprep.mubr.f32.mxu0 0.0
        %1453 = vmatmul.mubr.f32.gmra.mrb[0].mxu0 %v1266
        %v1454 = vpop.f32.mrb[0].mxu0
        %v1455 = vadd.f32 0.0, %v1454
        %v1456 = vpop.f32.mrb[0].mxu0
        %1457 = vmatprep.mubr.f32.mxu0 0.0
        %1458 = vmatmul.mubr.f32.gmra.mrb[0].mxu0 %v1269
        %v1459 = vpop.f32.mrb[0].mxu0
        %v1460 = vadd.f32 0.0, %v1459
        %v1461 = vpop.f32.mrb[0].mxu0
        %1462 = vmatprep.mubr.f32.mxu0 0.0
        %1463 = vmatmul.mubr.f32.gmra.mrb[0].mxu0 %v1272
        %v1464 = vpop.f32.mrb[0].mxu0
        %v1465 = vadd.f32 0.0, %v1464
        %v1466 = vpop.f32.mrb[0].mxu0
        %1467 = vmatprep.mubr.f32.mxu0 0.0
        %1468 = vmatmul.mubr.f32.gmra.mrb[0].mxu0 %v1275
        %v1469 = vpop.f32.mrb[0].mxu0
        %v1470 = vadd.f32 0.0, %v1469
        %v1471 = vpop.f32.mrb[0].mxu0
        %1472 = vmatprep.mubr.f32.mxu0 0.0
        %1473 = vmatmul.mubr.f32.gmra.mrb[0].mxu0 %v1278
        %v1474 = vpop.f32.mrb[0].mxu0
        %v1475 = vadd.f32 0.0, %v1474
        %v1476 = vpop.f32.mrb[0].mxu0
        %1477 = vmatprep.mubr.f32.mxu0 0.0
        %1478 = vmatmul.mubr.f32.gmra.mrb[0].mxu0 %v1281
        %v1479 = vpop.f32.mrb[0].mxu0
        %v1480 = vadd.f32 0.0, %v1479
        %v1481 = vpop.f32.mrb[0].mxu0
        %1482 = vmatprep.mubr.f32.mxu0 0.0
        %1483 = vmatmul.mubr.f32.gmra.mrb[0].mxu0 %v1284
        %v1484 = vpop.f32.mrb[0].mxu0
        %v1485 = vadd.f32 0.0, %v1484
        %v1486 = vpop.f32.mrb[0].mxu0
        %1487 = vmatprep.mubr.f32.mxu0 0.0
        %1488 = vmatmul.mubr.f32.gmra.mrb[0].mxu0 %v1287
        %v1489 = vpop.f32.mrb[0].mxu0
        %v1490 = vadd.f32 0.0, %v1489
        %v1491 = vpop.f32.mrb[0].mxu0
        %1492 = vmatprep.mubr.f32.mxu0 0.0
        %1493 = vmatmul.mubr.f32.gmra.mrb[0].mxu0 %v1290
        %v1494 = vpop.f32.mrb[0].mxu0
        %v1495 = vadd.f32 0.0, %v1494
        %v1496 = vpop.f32.mrb[0].mxu0
        %1497 = vmatprep.mubr.f32.mxu0 0.0
        %1498 = vmatmul.mubr.f32.gmra.mrb[0].mxu0 %v1293
        %v1499 = vpop.f32.mrb[0].mxu0
        %v1500 = vadd.f32 0.0, %v1499
        %v1501 = vpop.f32.mrb[0].mxu0
        %1502 = vmatprep.mubr.f32.mxu0 0.0
        %1503 = vmatmul.mubr.f32.gmra.mrb[0].mxu0 %v1296
        %v1504 = vpop.f32.mrb[0].mxu0
        %v1505 = vadd.f32 0.0, %v1504
        %v1506 = vpop.f32.mrb[0].mxu0
        %1507 = vmatprep.mubr.f32.mxu0 0.0
        %1508 = vmatmul.mubr.f32.gmra.mrb[0].mxu0 %v1299
        %v1509 = vpop.f32.mrb[0].mxu0
        %v1510 = vadd.f32 0.0, %v1509
        %v1511 = vpop.f32.mrb[0].mxu0
        %1512 = vmatprep.mubr.f32.mxu0 0.0
        %1513 = vmatmul.mubr.f32.gmra.mrb[0].mxu0 %v1302
        %v1514 = vpop.f32.mrb[0].mxu0
        %v1515 = vadd.f32 0.0, %v1514
        %v1516 = vpop.f32.mrb[0].mxu0
        %1517 = vmatprep.mubr.f32.mxu0 0.0
        %1518 = vmatmul.mubr.f32.gmra.mrb[0].mxu0 %v1305
        %v1519 = vpop.f32.mrb[0].mxu0
        %v1520 = vadd.f32 0.0, %v1519
        %v1521 = vpop.f32.mrb[0].mxu0
        %1522 = vmatprep.mubr.f32.mxu0 0.0
        %1523 = vmatmul.mubr.f32.gmra.mrb[0].mxu0 %v1308
        %v1524 = vpop.f32.mrb[0].mxu0
        %v1525 = vadd.f32 0.0, %v1524
        %v1526 = vpop.f32.mrb[0].mxu0
        %1527 = vmatprep.mubr.f32.mxu0 0.0
        %1528 = vmatmul.mubr.f32.gmra.mrb[0].mxu0 %v1311
        %v1529 = vpop.f32.mrb[0].mxu0
        %v1530 = vadd.f32 0.0, %v1529
        %v1531 = vpop.f32.mrb[0].mxu0
        %1532 = vmatprep.mubr.f32.mxu0 0.0
        %1533 = vmatmul.mubr.f32.gmra.mrb[0].mxu0 %v1314
        %v1534 = vpop.f32.mrb[0].mxu0
        %v1535 = vadd.f32 0.0, %v1534
        %v1536 = vpop.f32.mrb[0].mxu0
        %1537 = vmatprep.mubr.f32.mxu0 0.0
        %1538 = vmatmul.mubr.f32.gmra.mrb[0].mxu0 %v1317
        %v1539 = vpop.f32.mrb[0].mxu0
        %v1540 = vadd.f32 0.0, %v1539
        %v1541 = vpop.f32.mrb[0].mxu0
        %1542 = vmatprep.mubr.f32.mxu0 0.0
        %1543 = vmatmul.mubr.f32.gmra.mrb[0].mxu0 %v1320
        %v1544 = vpop.f32.mrb[0].mxu0
        %v1545 = vadd.f32 0.0, %v1544
        %v1546 = vpop.f32.mrb[0].mxu0
        %1547 = vmatprep.mubr.f32.mxu0 0.0
        %1548 = vmatmul.mubr.f32.gmra.mrb[0].mxu0 %v1323
        %v1549 = vpop.f32.mrb[0].mxu0
        %v1550 = vadd.f32 0.0, %v1549
        %v1551 = vpop.f32.mrb[0].mxu0
        %1552 = vdwg.mxu0
        %v1553 = vadd.f32 %v1195, %v1395
        %v1554 = vadd.f32 %v1196, %v1400
        %v1555 = vadd.f32 %v1197, %v1405
        %v1556 = vadd.f32 %v1198, %v1410
        %v1557 = vadd.f32 %v1199, %v1415
        %v1558 = vadd.f32 %v1200, %v1420
        %v1559 = vadd.f32 %v1201, %v1425
        %v1560 = vadd.f32 %v1202, %v1430
        %v1561 = vadd.f32 %v1203, %v1435
        %v1562 = vadd.f32 %v1204, %v1440
        %v1563 = vadd.f32 %v1205, %v1445
        %v1564 = vadd.f32 %v1206, %v1450
        %v1565 = vadd.f32 %v1207, %v1455
        %v1566 = vadd.f32 %v1208, %v1460
        %v1567 = vadd.f32 %v1209, %v1465
        %v1568 = vadd.f32 %v1210, %v1470
        %v1569 = vadd.f32 %v1211, %v1475
        %v1570 = vadd.f32 %v1212, %v1480
        %v1571 = vadd.f32 %v1213, %v1485
        %v1572 = vadd.f32 %v1214, %v1490
        %v1573 = vadd.f32 %v1215, %v1495
        %v1574 = vadd.f32 %v1216, %v1500
        %v1575 = vadd.f32 %v1217, %v1505
        %v1576 = vadd.f32 %v1218, %v1510
        %v1577 = vadd.f32 %v1219, %v1515
        %v1578 = vadd.f32 %v1220, %v1520
        %v1579 = vadd.f32 %v1221, %v1525
        %v1580 = vadd.f32 %v1222, %v1530
        %v1581 = vadd.f32 %v1223, %v1535
        %v1582 = vadd.f32 %v1224, %v1540
        %v1583 = vadd.f32 %v1225, %v1545
        %v1584 = vadd.f32 %v1226, %v1550
        %1585 = vst [vmem:[#allocation2] sm:$0xff] %v1553
        %1586 = vst [vmem:[#allocation2 + $0x8] sm:$0xff] %v1554
        %1587 = vst [vmem:[#allocation2 + $0x10] sm:$0xff] %v1555
        %1588 = vst [vmem:[#allocation2 + $0x18] sm:$0xff] %v1556
        %1589 = vst [vmem:[#allocation2 + $0x20] sm:$0xff] %v1557
        %1590 = vst [vmem:[#allocation2 + $0x28] sm:$0xff] %v1558
        %1591 = vst [vmem:[#allocation2 + $0x30] sm:$0xff] %v1559
        %1592 = vst [vmem:[#allocation2 + $0x38] sm:$0xff] %v1560
        %1593 = vst [vmem:[#allocation2 + $0x40] sm:$0xff] %v1561
        %1594 = vst [vmem:[#allocation2 + $0x48] sm:$0xff] %v1562
        %1595 = vst [vmem:[#allocation2 + $0x50] sm:$0xff] %v1563
        %1596 = vst [vmem:[#allocation2 + $0x58] sm:$0xff] %v1564
        %1597 = vst [vmem:[#allocation2 + $0x60] sm:$0xff] %v1565
        %1598 = vst [vmem:[#allocation2 + $0x68] sm:$0xff] %v1566
        %1599 = vst [vmem:[#allocation2 + $0x70] sm:$0xff] %v1567
        %1600 = vst [vmem:[#allocation2 + $0x78] sm:$0xff] %v1568
        %1601 = vst [vmem:[#allocation2 + $0x80] sm:$0xff] %v1569
        %1602 = vst [vmem:[#allocation2 + $0x88] sm:$0xff] %v1570
        %1603 = vst [vmem:[#allocation2 + $0x90] sm:$0xff] %v1571
        %1604 = vst [vmem:[#allocation2 + $0x98] sm:$0xff] %v1572
        %1605 = vst [vmem:[#allocation2 + $0xa0] sm:$0xff] %v1573
        %1606 = vst [vmem:[#allocation2 + $0xa8] sm:$0xff] %v1574
        %1607 = vst [vmem:[#allocation2 + $0xb0] sm:$0xff] %v1575
        %1608 = vst [vmem:[#allocation2 + $0xb8] sm:$0xff] %v1576
        %1609 = vst [vmem:[#allocation2 + $0xc0] sm:$0xff] %v1577
        %1610 = vst [vmem:[#allocation2 + $0xc8] sm:$0xff] %v1578
        %1611 = vst [vmem:[#allocation2 + $0xd0] sm:$0xff] %v1579
        %1612 = vst [vmem:[#allocation2 + $0xd8] sm:$0xff] %v1580
        %1613 = vst [vmem:[#allocation2 + $0xe0] sm:$0xff] %v1581
        %1614 = vst [vmem:[#allocation2 + $0xe8] sm:$0xff] %v1582
        %1615 = vst [vmem:[#allocation2 + $0xf0] sm:$0xff] %v1583
        %1616 = vst [vmem:[#allocation2 + $0xf8] sm:$0xff] %v1584
        %v1617 = vld [vmem:[%s708 + $0x2] sm:$0xff]
        %v1618 = vld [vmem:[%s708 + $0x12] sm:$0xff]
        %v1619 = vld [vmem:[%s708 + $0x22] sm:$0xff]
        %v1620 = vld [vmem:[%s708 + $0x32] sm:$0xff]
        %v1621 = vld [vmem:[%s708 + $0x42] sm:$0xff]
        %v1622 = vld [vmem:[%s708 + $0x52] sm:$0xff]
        %v1623 = vld [vmem:[%s708 + $0x62] sm:$0xff]
        %v1624 = vld [vmem:[%s708 + $0x72] sm:$0xff]
        %v1625 = vld [vmem:[%s708 + $0xa2] sm:$0xff]
        %v1626 = vld [vmem:[%s708 + $0xb2] sm:$0xff]
        %v1627 = vld [vmem:[%s708 + $0xc2] sm:$0xff]
        %v1628 = vld [vmem:[%s708 + $0xd2] sm:$0xff]
        %v1629 = vld [vmem:[%s708 + $0xe2] sm:$0xff]
        %v1630 = vld [vmem:[%s708 + $0xf2] sm:$0xff]
        %v1631 = vld [vmem:[%s708 + $0x102] sm:$0xff]
        %v1632 = vld [vmem:[%s708 + $0x112] sm:$0xff]
        %v1633 = vld [vmem:[%s708 + $0x142] sm:$0xff]
        %v1634 = vld [vmem:[%s708 + $0x152] sm:$0xff]
        %v1635 = vld [vmem:[%s708 + $0x162] sm:$0xff]
        %v1636 = vld [vmem:[%s708 + $0x172] sm:$0xff]
        %v1637 = vld [vmem:[%s708 + $0x182] sm:$0xff]
        %v1638 = vld [vmem:[%s708 + $0x192] sm:$0xff]
        %v1639 = vld [vmem:[%s708 + $0x1a2] sm:$0xff]
        %v1640 = vld [vmem:[%s708 + $0x1b2] sm:$0xff]
        %v1641 = vld [vmem:[%s708 + $0x1e2] sm:$0xff]
        %v1642 = vld [vmem:[%s708 + $0x1f2] sm:$0xff]
        %v1643 = vld [vmem:[%s708 + $0x202] sm:$0xff]
        %v1644 = vld [vmem:[%s708 + $0x212] sm:$0xff]
        %v1645 = vld [vmem:[%s708 + $0x222] sm:$0xff]
        %v1646 = vld [vmem:[%s708 + $0x232] sm:$0xff]
        %v1647 = vld [vmem:[%s708 + $0x242] sm:$0xff]
        %v1648 = vld [vmem:[%s708 + $0x252] sm:$0xff]
        %v1649 = vld [vmem:[#allocation2] sm:$0xff]
        %v1650 = vld [vmem:[#allocation2 + $0x8] sm:$0xff]
        %v1651 = vld [vmem:[#allocation2 + $0x10] sm:$0xff]
        %v1652 = vld [vmem:[#allocation2 + $0x18] sm:$0xff]
        %v1653 = vld [vmem:[#allocation2 + $0x20] sm:$0xff]
        %v1654 = vld [vmem:[#allocation2 + $0x28] sm:$0xff]
        %v1655 = vld [vmem:[#allocation2 + $0x30] sm:$0xff]
        %v1656 = vld [vmem:[#allocation2 + $0x38] sm:$0xff]
        %v1657 = vld [vmem:[#allocation2 + $0x40] sm:$0xff]
        %v1658 = vld [vmem:[#allocation2 + $0x48] sm:$0xff]
        %v1659 = vld [vmem:[#allocation2 + $0x50] sm:$0xff]
        %v1660 = vld [vmem:[#allocation2 + $0x58] sm:$0xff]
        %v1661 = vld [vmem:[#allocation2 + $0x60] sm:$0xff]
        %v1662 = vld [vmem:[#allocation2 + $0x68] sm:$0xff]
        %v1663 = vld [vmem:[#allocation2 + $0x70] sm:$0xff]
        %v1664 = vld [vmem:[#allocation2 + $0x78] sm:$0xff]
        %v1665 = vld [vmem:[#allocation2 + $0x80] sm:$0xff]
        %v1666 = vld [vmem:[#allocation2 + $0x88] sm:$0xff]
        %v1667 = vld [vmem:[#allocation2 + $0x90] sm:$0xff]
        %v1668 = vld [vmem:[#allocation2 + $0x98] sm:$0xff]
        %v1669 = vld [vmem:[#allocation2 + $0xa0] sm:$0xff]
        %v1670 = vld [vmem:[#allocation2 + $0xa8] sm:$0xff]
        %v1671 = vld [vmem:[#allocation2 + $0xb0] sm:$0xff]
        %v1672 = vld [vmem:[#allocation2 + $0xb8] sm:$0xff]
        %v1673 = vld [vmem:[#allocation2 + $0xc0] sm:$0xff]
        %v1674 = vld [vmem:[#allocation2 + $0xc8] sm:$0xff]
        %v1675 = vld [vmem:[#allocation2 + $0xd0] sm:$0xff]
        %v1676 = vld [vmem:[#allocation2 + $0xd8] sm:$0xff]
        %v1677 = vld [vmem:[#allocation2 + $0xe0] sm:$0xff]
        %v1678 = vld [vmem:[#allocation2 + $0xe8] sm:$0xff]
        %v1679 = vld [vmem:[#allocation2 + $0xf0] sm:$0xff]
        %v1680 = vld [vmem:[#allocation2 + $0xf8] sm:$0xff]
        %s1681 = scalar_lea.vmem %s210, 12
        %v1682 = vld [vmem:[%s1681] sm:$0xf]
        %v1684 = vsel %vm318, %v1617, 0
        %v1687 = vsel %vm318, %v1618, 0
        %v1690 = vsel %vm318, %v1619, 0
        %v1693 = vsel %vm318, %v1620, 0
        %v1696 = vsel %vm318, %v1621, 0
        %v1699 = vsel %vm318, %v1622, 0
        %v1702 = vsel %vm318, %v1623, 0
        %v1705 = vsel %vm318, %v1624, 0
        %v1708 = vsel %vm318, %v1625, 0
        %v1711 = vsel %vm318, %v1626, 0
        %v1714 = vsel %vm318, %v1627, 0
        %v1717 = vsel %vm318, %v1628, 0
        %v1720 = vsel %vm318, %v1629, 0
        %v1723 = vsel %vm318, %v1630, 0
        %v1726 = vsel %vm318, %v1631, 0
        %v1729 = vsel %vm318, %v1632, 0
        %v1732 = vsel %vm318, %v1633, 0
        %v1735 = vsel %vm318, %v1634, 0
        %v1738 = vsel %vm318, %v1635, 0
        %v1741 = vsel %vm318, %v1636, 0
        %v1744 = vsel %vm318, %v1637, 0
        %v1747 = vsel %vm318, %v1638, 0
        %v1750 = vsel %vm318, %v1639, 0
        %v1753 = vsel %vm318, %v1640, 0
        %v1756 = vsel %vm318, %v1641, 0
        %v1759 = vsel %vm318, %v1642, 0
        %v1762 = vsel %vm318, %v1643, 0
        %v1765 = vsel %vm318, %v1644, 0
        %v1768 = vsel %vm318, %v1645, 0
        %v1771 = vsel %vm318, %v1646, 0
        %v1774 = vsel %vm318, %v1647, 0
        %v1777 = vsel %vm318, %v1648, 0
        %v1780 = vsel %vm415, %v1682, 0
        %1782 = vmatprep.subr.mxu0 0.0
        %1783 = vmatpush1.msra.mxu0 %v1780
        %1784 = vmatprep.subr.mxu0 0.0
        %1785 = vmatpush1.msra.mxu0 0.0
        %1786 = vmatprep.subr.mxu0 0.0
        %1787 = vmatpush1.msra.mxu0 0.0
        %1788 = vmatprep.subr.mxu0 0.0
        %1789 = vmatpush1.msra.mxu0 0.0
        %1790 = vmatprep.subr.mxu0 0.0
        %1791 = vmatpush1.msra.mxu0 0.0
        %1792 = vmatprep.subr.mxu0 0.0
        %1793 = vmatpush1.msra.mxu0 0.0
        %1794 = vmatprep.subr.mxu0 0.0
        %1795 = vmatpush1.msra.mxu0 0.0
        %1796 = vmatprep.subr.mxu0 0.0
        %1797 = vmatpush1.msra.mxu0 0.0
        %1798 = vmatprep.subr.mxu0 0.0
        %1799 = vmatpush1.msra.mxu0 0.0
        %1800 = vmatprep.subr.mxu0 0.0
        %1801 = vmatpush1.msra.mxu0 0.0
        %1802 = vmatprep.subr.mxu0 0.0
        %1803 = vmatpush1.msra.mxu0 0.0
        %1804 = vmatprep.subr.mxu0 0.0
        %1805 = vmatpush1.msra.mxu0 0.0
        %1806 = vmatprep.subr.mxu0 0.0
        %1807 = vmatpush1.msra.mxu0 0.0
        %1808 = vmatprep.subr.mxu0 0.0
        %1809 = vmatpush1.msra.mxu0 0.0
        %1810 = vmatprep.subr.mxu0 0.0
        %1811 = vmatpush1.msra.mxu0 0.0
        %1812 = vmatprep.subr.mxu0 0.0
        %1813 = vmatpush1.msra.mxu0 0.0
        %1814 = vmatprep.subr.mxu0 0.0
        %1815 = vmatpush1.msra.mxu0 0.0
        %1816 = vmatprep.subr.mxu0 0.0
        %1817 = vmatpush1.msra.mxu0 0.0
        %1818 = vmatprep.subr.mxu0 0.0
        %1819 = vmatpush1.msra.mxu0 0.0
        %1820 = vmatprep.subr.mxu0 0.0
        %1821 = vmatpush1.msra.mxu0 0.0
        %1822 = vmatprep.subr.mxu0 0.0
        %1823 = vmatpush1.msra.mxu0 0.0
        %1824 = vmatprep.subr.mxu0 0.0
        %1825 = vmatpush1.msra.mxu0 0.0
        %1826 = vmatprep.subr.mxu0 0.0
        %1827 = vmatpush1.msra.mxu0 0.0
        %1828 = vmatprep.subr.mxu0 0.0
        %1829 = vmatpush1.msra.mxu0 0.0
        %1830 = vmatprep.subr.mxu0 0.0
        %1831 = vmatpush1.msra.mxu0 0.0
        %1832 = vmatprep.subr.mxu0 0.0
        %1833 = vmatpush1.msra.mxu0 0.0
        %1834 = vmatprep.subr.mxu0 0.0
        %1835 = vmatpush1.msra.mxu0 0.0
        %1836 = vmatprep.subr.mxu0 0.0
        %1837 = vmatpush1.msra.mxu0 0.0
        %1838 = vmatprep.subr.mxu0 0.0
        %1839 = vmatpush1.msra.mxu0 0.0
        %1840 = vmatprep.subr.mxu0 0.0
        %1841 = vmatpush1.msra.mxu0 0.0
        %1842 = vmatprep.subr.mxu0 0.0
        %1843 = vmatpush1.msra.mxu0 0.0
        %1844 = vmatprep.subr.mxu0 0.0
        %1845 = vmatpush1.msra.mxu0 0.0
        %1846 = vmatprep.mubr.f32.mxu0 0.0
        %1847 = vmatmul.mubr.f32.gmra.mrb[0].mxu0 %v1684
        %v1848 = vpop.f32.mrb[0].mxu0
        %v1849 = vadd.f32 0.0, %v1848
        %v1850 = vpop.f32.mrb[0].mxu0
        %1851 = vmatprep.mubr.f32.mxu0 0.0
        %1852 = vmatmul.mubr.f32.gmra.mrb[0].mxu0 %v1687
        %v1853 = vpop.f32.mrb[0].mxu0
        %v1854 = vadd.f32 0.0, %v1853
        %v1855 = vpop.f32.mrb[0].mxu0
        %1856 = vmatprep.mubr.f32.mxu0 0.0
        %1857 = vmatmul.mubr.f32.gmra.mrb[0].mxu0 %v1690
        %v1858 = vpop.f32.mrb[0].mxu0
        %v1859 = vadd.f32 0.0, %v1858
        %v1860 = vpop.f32.mrb[0].mxu0
        %1861 = vmatprep.mubr.f32.mxu0 0.0
        %1862 = vmatmul.mubr.f32.gmra.mrb[0].mxu0 %v1693
        %v1863 = vpop.f32.mrb[0].mxu0
        %v1864 = vadd.f32 0.0, %v1863
        %v1865 = vpop.f32.mrb[0].mxu0
        %1866 = vmatprep.mubr.f32.mxu0 0.0
        %1867 = vmatmul.mubr.f32.gmra.mrb[0].mxu0 %v1696
        %v1868 = vpop.f32.mrb[0].mxu0
        %v1869 = vadd.f32 0.0, %v1868
        %v1870 = vpop.f32.mrb[0].mxu0
        %1871 = vmatprep.mubr.f32.mxu0 0.0
        %1872 = vmatmul.mubr.f32.gmra.mrb[0].mxu0 %v1699
        %v1873 = vpop.f32.mrb[0].mxu0
        %v1874 = vadd.f32 0.0, %v1873
        %v1875 = vpop.f32.mrb[0].mxu0
        %1876 = vmatprep.mubr.f32.mxu0 0.0
        %1877 = vmatmul.mubr.f32.gmra.mrb[0].mxu0 %v1702
        %v1878 = vpop.f32.mrb[0].mxu0
        %v1879 = vadd.f32 0.0, %v1878
        %v1880 = vpop.f32.mrb[0].mxu0
        %1881 = vmatprep.mubr.f32.mxu0 0.0
        %1882 = vmatmul.mubr.f32.gmra.mrb[0].mxu0 %v1705
        %v1883 = vpop.f32.mrb[0].mxu0
        %v1884 = vadd.f32 0.0, %v1883
        %v1885 = vpop.f32.mrb[0].mxu0
        %1886 = vmatprep.mubr.f32.mxu0 0.0
        %1887 = vmatmul.mubr.f32.gmra.mrb[0].mxu0 %v1708
        %v1888 = vpop.f32.mrb[0].mxu0
        %v1889 = vadd.f32 0.0, %v1888
        %v1890 = vpop.f32.mrb[0].mxu0
        %1891 = vmatprep.mubr.f32.mxu0 0.0
        %1892 = vmatmul.mubr.f32.gmra.mrb[0].mxu0 %v1711
        %v1893 = vpop.f32.mrb[0].mxu0
        %v1894 = vadd.f32 0.0, %v1893
        %v1895 = vpop.f32.mrb[0].mxu0
        %1896 = vmatprep.mubr.f32.mxu0 0.0
        %1897 = vmatmul.mubr.f32.gmra.mrb[0].mxu0 %v1714
        %v1898 = vpop.f32.mrb[0].mxu0
        %v1899 = vadd.f32 0.0, %v1898
        %v1900 = vpop.f32.mrb[0].mxu0
        %1901 = vmatprep.mubr.f32.mxu0 0.0
        %1902 = vmatmul.mubr.f32.gmra.mrb[0].mxu0 %v1717
        %v1903 = vpop.f32.mrb[0].mxu0
        %v1904 = vadd.f32 0.0, %v1903
        %v1905 = vpop.f32.mrb[0].mxu0
        %1906 = vmatprep.mubr.f32.mxu0 0.0
        %1907 = vmatmul.mubr.f32.gmra.mrb[0].mxu0 %v1720
        %v1908 = vpop.f32.mrb[0].mxu0
        %v1909 = vadd.f32 0.0, %v1908
        %v1910 = vpop.f32.mrb[0].mxu0
        %1911 = vmatprep.mubr.f32.mxu0 0.0
        %1912 = vmatmul.mubr.f32.gmra.mrb[0].mxu0 %v1723
        %v1913 = vpop.f32.mrb[0].mxu0
        %v1914 = vadd.f32 0.0, %v1913
        %v1915 = vpop.f32.mrb[0].mxu0
        %1916 = vmatprep.mubr.f32.mxu0 0.0
        %1917 = vmatmul.mubr.f32.gmra.mrb[0].mxu0 %v1726
        %v1918 = vpop.f32.mrb[0].mxu0
        %v1919 = vadd.f32 0.0, %v1918
        %v1920 = vpop.f32.mrb[0].mxu0
        %1921 = vmatprep.mubr.f32.mxu0 0.0
        %1922 = vmatmul.mubr.f32.gmra.mrb[0].mxu0 %v1729
        %v1923 = vpop.f32.mrb[0].mxu0
        %v1924 = vadd.f32 0.0, %v1923
        %v1925 = vpop.f32.mrb[0].mxu0
        %1926 = vmatprep.mubr.f32.mxu0 0.0
        %1927 = vmatmul.mubr.f32.gmra.mrb[0].mxu0 %v1732
        %v1928 = vpop.f32.mrb[0].mxu0
        %v1929 = vadd.f32 0.0, %v1928
        %v1930 = vpop.f32.mrb[0].mxu0
        %1931 = vmatprep.mubr.f32.mxu0 0.0
        %1932 = vmatmul.mubr.f32.gmra.mrb[0].mxu0 %v1735
        %v1933 = vpop.f32.mrb[0].mxu0
        %v1934 = vadd.f32 0.0, %v1933
        %v1935 = vpop.f32.mrb[0].mxu0
        %1936 = vmatprep.mubr.f32.mxu0 0.0
        %1937 = vmatmul.mubr.f32.gmra.mrb[0].mxu0 %v1738
        %v1938 = vpop.f32.mrb[0].mxu0
        %v1939 = vadd.f32 0.0, %v1938
        %v1940 = vpop.f32.mrb[0].mxu0
        %1941 = vmatprep.mubr.f32.mxu0 0.0
        %1942 = vmatmul.mubr.f32.gmra.mrb[0].mxu0 %v1741
        %v1943 = vpop.f32.mrb[0].mxu0
        %v1944 = vadd.f32 0.0, %v1943
        %v1945 = vpop.f32.mrb[0].mxu0
        %1946 = vmatprep.mubr.f32.mxu0 0.0
        %1947 = vmatmul.mubr.f32.gmra.mrb[0].mxu0 %v1744
        %v1948 = vpop.f32.mrb[0].mxu0
        %v1949 = vadd.f32 0.0, %v1948
        %v1950 = vpop.f32.mrb[0].mxu0
        %1951 = vmatprep.mubr.f32.mxu0 0.0
        %1952 = vmatmul.mubr.f32.gmra.mrb[0].mxu0 %v1747
        %v1953 = vpop.f32.mrb[0].mxu0
        %v1954 = vadd.f32 0.0, %v1953
        %v1955 = vpop.f32.mrb[0].mxu0
        %1956 = vmatprep.mubr.f32.mxu0 0.0
        %1957 = vmatmul.mubr.f32.gmra.mrb[0].mxu0 %v1750
        %v1958 = vpop.f32.mrb[0].mxu0
        %v1959 = vadd.f32 0.0, %v1958
        %v1960 = vpop.f32.mrb[0].mxu0
        %1961 = vmatprep.mubr.f32.mxu0 0.0
        %1962 = vmatmul.mubr.f32.gmra.mrb[0].mxu0 %v1753
        %v1963 = vpop.f32.mrb[0].mxu0
        %v1964 = vadd.f32 0.0, %v1963
        %v1965 = vpop.f32.mrb[0].mxu0
        %1966 = vmatprep.mubr.f32.mxu0 0.0
        %1967 = vmatmul.mubr.f32.gmra.mrb[0].mxu0 %v1756
        %v1968 = vpop.f32.mrb[0].mxu0
        %v1969 = vadd.f32 0.0, %v1968
        %v1970 = vpop.f32.mrb[0].mxu0
        %1971 = vmatprep.mubr.f32.mxu0 0.0
        %1972 = vmatmul.mubr.f32.gmra.mrb[0].mxu0 %v1759
        %v1973 = vpop.f32.mrb[0].mxu0
        %v1974 = vadd.f32 0.0, %v1973
        %v1975 = vpop.f32.mrb[0].mxu0
        %1976 = vmatprep.mubr.f32.mxu0 0.0
        %1977 = vmatmul.mubr.f32.gmra.mrb[0].mxu0 %v1762
        %v1978 = vpop.f32.mrb[0].mxu0
        %v1979 = vadd.f32 0.0, %v1978
        %v1980 = vpop.f32.mrb[0].mxu0
        %1981 = vmatprep.mubr.f32.mxu0 0.0
        %1982 = vmatmul.mubr.f32.gmra.mrb[0].mxu0 %v1765
        %v1983 = vpop.f32.mrb[0].mxu0
        %v1984 = vadd.f32 0.0, %v1983
        %v1985 = vpop.f32.mrb[0].mxu0
        %1986 = vmatprep.mubr.f32.mxu0 0.0
        %1987 = vmatmul.mubr.f32.gmra.mrb[0].mxu0 %v1768
        %v1988 = vpop.f32.mrb[0].mxu0
        %v1989 = vadd.f32 0.0, %v1988
        %v1990 = vpop.f32.mrb[0].mxu0
        %1991 = vmatprep.mubr.f32.mxu0 0.0
        %1992 = vmatmul.mubr.f32.gmra.mrb[0].mxu0 %v1771
        %v1993 = vpop.f32.mrb[0].mxu0
        %v1994 = vadd.f32 0.0, %v1993
        %v1995 = vpop.f32.mrb[0].mxu0
        %1996 = vmatprep.mubr.f32.mxu0 0.0
        %1997 = vmatmul.mubr.f32.gmra.mrb[0].mxu0 %v1774
        %v1998 = vpop.f32.mrb[0].mxu0
        %v1999 = vadd.f32 0.0, %v1998
        %v2000 = vpop.f32.mrb[0].mxu0
        %2001 = vmatprep.mubr.f32.mxu0 0.0
        %2002 = vmatmul.mubr.f32.gmra.mrb[0].mxu0 %v1777
        %v2003 = vpop.f32.mrb[0].mxu0
        %v2004 = vadd.f32 0.0, %v2003
        %v2005 = vpop.f32.mrb[0].mxu0
        %2006 = vdwg.mxu0
        %v2007 = vadd.f32 %v1649, %v1849
        %v2008 = vadd.f32 %v1650, %v1854
        %v2009 = vadd.f32 %v1651, %v1859
        %v2010 = vadd.f32 %v1652, %v1864
        %v2011 = vadd.f32 %v1653, %v1869
        %v2012 = vadd.f32 %v1654, %v1874
        %v2013 = vadd.f32 %v1655, %v1879
        %v2014 = vadd.f32 %v1656, %v1884
        %v2015 = vadd.f32 %v1657, %v1889
        %v2016 = vadd.f32 %v1658, %v1894
        %v2017 = vadd.f32 %v1659, %v1899
        %v2018 = vadd.f32 %v1660, %v1904
        %v2019 = vadd.f32 %v1661, %v1909
        %v2020 = vadd.f32 %v1662, %v1914
        %v2021 = vadd.f32 %v1663, %v1919
        %v2022 = vadd.f32 %v1664, %v1924
        %v2023 = vadd.f32 %v1665, %v1929
        %v2024 = vadd.f32 %v1666, %v1934
        %v2025 = vadd.f32 %v1667, %v1939
        %v2026 = vadd.f32 %v1668, %v1944
        %v2027 = vadd.f32 %v1669, %v1949
        %v2028 = vadd.f32 %v1670, %v1954
        %v2029 = vadd.f32 %v1671, %v1959
        %v2030 = vadd.f32 %v1672, %v1964
        %v2031 = vadd.f32 %v1673, %v1969
        %v2032 = vadd.f32 %v1674, %v1974
        %v2033 = vadd.f32 %v1675, %v1979
        %v2034 = vadd.f32 %v1676, %v1984
        %v2035 = vadd.f32 %v1677, %v1989
        %v2036 = vadd.f32 %v1678, %v1994
        %v2037 = vadd.f32 %v1679, %v1999
        %v2038 = vadd.f32 %v1680, %v2004
        %2039 = vst [vmem:[#allocation2] sm:$0xff] %v2007
        %2040 = vst [vmem:[#allocation2 + $0x8] sm:$0xff] %v2008
        %2041 = vst [vmem:[#allocation2 + $0x10] sm:$0xff] %v2009
        %2042 = vst [vmem:[#allocation2 + $0x18] sm:$0xff] %v2010
        %2043 = vst [vmem:[#allocation2 + $0x20] sm:$0xff] %v2011
        %2044 = vst [vmem:[#allocation2 + $0x28] sm:$0xff] %v2012
        %2045 = vst [vmem:[#allocation2 + $0x30] sm:$0xff] %v2013
        %2046 = vst [vmem:[#allocation2 + $0x38] sm:$0xff] %v2014
        %2047 = vst [vmem:[#allocation2 + $0x40] sm:$0xff] %v2015
        %2048 = vst [vmem:[#allocation2 + $0x48] sm:$0xff] %v2016
        %2049 = vst [vmem:[#allocation2 + $0x50] sm:$0xff] %v2017
        %2050 = vst [vmem:[#allocation2 + $0x58] sm:$0xff] %v2018
        %2051 = vst [vmem:[#allocation2 + $0x60] sm:$0xff] %v2019
        %2052 = vst [vmem:[#allocation2 + $0x68] sm:$0xff] %v2020
        %2053 = vst [vmem:[#allocation2 + $0x70] sm:$0xff] %v2021
        %2054 = vst [vmem:[#allocation2 + $0x78] sm:$0xff] %v2022
        %2055 = vst [vmem:[#allocation2 + $0x80] sm:$0xff] %v2023
        %2056 = vst [vmem:[#allocation2 + $0x88] sm:$0xff] %v2024
        %2057 = vst [vmem:[#allocation2 + $0x90] sm:$0xff] %v2025
        %2058 = vst [vmem:[#allocation2 + $0x98] sm:$0xff] %v2026
        %2059 = vst [vmem:[#allocation2 + $0xa0] sm:$0xff] %v2027
        %2060 = vst [vmem:[#allocation2 + $0xa8] sm:$0xff] %v2028
        %2061 = vst [vmem:[#allocation2 + $0xb0] sm:$0xff] %v2029
        %2062 = vst [vmem:[#allocation2 + $0xb8] sm:$0xff] %v2030
        %2063 = vst [vmem:[#allocation2 + $0xc0] sm:$0xff] %v2031
        %2064 = vst [vmem:[#allocation2 + $0xc8] sm:$0xff] %v2032
        %2065 = vst [vmem:[#allocation2 + $0xd0] sm:$0xff] %v2033
        %2066 = vst [vmem:[#allocation2 + $0xd8] sm:$0xff] %v2034
        %2067 = vst [vmem:[#allocation2 + $0xe0] sm:$0xff] %v2035
        %2068 = vst [vmem:[#allocation2 + $0xe8] sm:$0xff] %v2036
        %2069 = vst [vmem:[#allocation2 + $0xf0] sm:$0xff] %v2037
        %2070 = vst [vmem:[#allocation2 + $0xf8] sm:$0xff] %v2038
        %s2071 = scalar_lea.vmem %s206, 32
        %v2072 = vld [vmem:[%s2071 + $0x1] sm:$0xff]
        %v2073 = vld [vmem:[%s2071 + $0x11] sm:$0xff]
        %v2074 = vld [vmem:[%s2071 + $0x21] sm:$0xff]
        %v2075 = vld [vmem:[%s2071 + $0x31] sm:$0xff]
        %v2076 = vld [vmem:[%s2071 + $0x41] sm:$0xff]
        %v2077 = vld [vmem:[%s2071 + $0x51] sm:$0xff]
        %v2078 = vld [vmem:[%s2071 + $0x61] sm:$0xff]
        %v2079 = vld [vmem:[%s2071 + $0x71] sm:$0xff]
        %v2080 = vld [vmem:[%s2071 + $0xa1] sm:$0xff]
        %v2081 = vld [vmem:[%s2071 + $0xb1] sm:$0xff]
        %v2082 = vld [vmem:[%s2071 + $0xc1] sm:$0xff]
        %v2083 = vld [vmem:[%s2071 + $0xd1] sm:$0xff]
        %v2084 = vld [vmem:[%s2071 + $0xe1] sm:$0xff]
        %v2085 = vld [vmem:[%s2071 + $0xf1] sm:$0xff]
        %v2086 = vld [vmem:[%s2071 + $0x101] sm:$0xff]
        %v2087 = vld [vmem:[%s2071 + $0x111] sm:$0xff]
        %v2088 = vld [vmem:[%s2071 + $0x141] sm:$0xff]
        %v2089 = vld [vmem:[%s2071 + $0x151] sm:$0xff]
        %v2090 = vld [vmem:[%s2071 + $0x161] sm:$0xff]
        %v2091 = vld [vmem:[%s2071 + $0x171] sm:$0xff]
        %v2092 = vld [vmem:[%s2071 + $0x181] sm:$0xff]
        %v2093 = vld [vmem:[%s2071 + $0x191] sm:$0xff]
        %v2094 = vld [vmem:[%s2071 + $0x1a1] sm:$0xff]
        %v2095 = vld [vmem:[%s2071 + $0x1b1] sm:$0xff]
        %v2096 = vld [vmem:[%s2071 + $0x1e1] sm:$0xff]
        %v2097 = vld [vmem:[%s2071 + $0x1f1] sm:$0xff]
        %v2098 = vld [vmem:[%s2071 + $0x201] sm:$0xff]
        %v2099 = vld [vmem:[%s2071 + $0x211] sm:$0xff]
        %v2100 = vld [vmem:[%s2071 + $0x221] sm:$0xff]
        %v2101 = vld [vmem:[%s2071 + $0x231] sm:$0xff]
        %v2102 = vld [vmem:[%s2071 + $0x241] sm:$0xff]
        %v2103 = vld [vmem:[%s2071 + $0x251] sm:$0xff]
        %v2104 = vld [vmem:[#allocation2] sm:$0xff]
        %v2105 = vld [vmem:[#allocation2 + $0x8] sm:$0xff]
        %v2106 = vld [vmem:[#allocation2 + $0x10] sm:$0xff]
        %v2107 = vld [vmem:[#allocation2 + $0x18] sm:$0xff]
        %v2108 = vld [vmem:[#allocation2 + $0x20] sm:$0xff]
        %v2109 = vld [vmem:[#allocation2 + $0x28] sm:$0xff]
        %v2110 = vld [vmem:[#allocation2 + $0x30] sm:$0xff]
        %v2111 = vld [vmem:[#allocation2 + $0x38] sm:$0xff]
        %v2112 = vld [vmem:[#allocation2 + $0x40] sm:$0xff]
        %v2113 = vld [vmem:[#allocation2 + $0x48] sm:$0xff]
        %v2114 = vld [vmem:[#allocation2 + $0x50] sm:$0xff]
        %v2115 = vld [vmem:[#allocation2 + $0x58] sm:$0xff]
        %v2116 = vld [vmem:[#allocation2 + $0x60] sm:$0xff]
        %v2117 = vld [vmem:[#allocation2 + $0x68] sm:$0xff]
        %v2118 = vld [vmem:[#allocation2 + $0x70] sm:$0xff]
        %v2119 = vld [vmem:[#allocation2 + $0x78] sm:$0xff]
        %v2120 = vld [vmem:[#allocation2 + $0x80] sm:$0xff]
        %v2121 = vld [vmem:[#allocation2 + $0x88] sm:$0xff]
        %v2122 = vld [vmem:[#allocation2 + $0x90] sm:$0xff]
        %v2123 = vld [vmem:[#allocation2 + $0x98] sm:$0xff]
        %v2124 = vld [vmem:[#allocation2 + $0xa0] sm:$0xff]
        %v2125 = vld [vmem:[#allocation2 + $0xa8] sm:$0xff]
        %v2126 = vld [vmem:[#allocation2 + $0xb0] sm:$0xff]
        %v2127 = vld [vmem:[#allocation2 + $0xb8] sm:$0xff]
        %v2128 = vld [vmem:[#allocation2 + $0xc0] sm:$0xff]
        %v2129 = vld [vmem:[#allocation2 + $0xc8] sm:$0xff]
        %v2130 = vld [vmem:[#allocation2 + $0xd0] sm:$0xff]
        %v2131 = vld [vmem:[#allocation2 + $0xd8] sm:$0xff]
        %v2132 = vld [vmem:[#allocation2 + $0xe0] sm:$0xff]
        %v2133 = vld [vmem:[#allocation2 + $0xe8] sm:$0xff]
        %v2134 = vld [vmem:[#allocation2 + $0xf0] sm:$0xff]
        %v2135 = vld [vmem:[#allocation2 + $0xf8] sm:$0xff]
        %s2136 = scalar_lea.vmem %s210, 16
        %v2137 = vld [vmem:[%s2136] sm:$0xf]
        %v2139 = vsel %vm318, %v2072, 0
        %v2142 = vsel %vm318, %v2073, 0
        %v2145 = vsel %vm318, %v2074, 0
        %v2148 = vsel %vm318, %v2075, 0
        %v2151 = vsel %vm318, %v2076, 0
        %v2154 = vsel %vm318, %v2077, 0
        %v2157 = vsel %vm318, %v2078, 0
        %v2160 = vsel %vm318, %v2079, 0
        %v2163 = vsel %vm318, %v2080, 0
        %v2166 = vsel %vm318, %v2081, 0
        %v2169 = vsel %vm318, %v2082, 0
        %v2172 = vsel %vm318, %v2083, 0
        %v2175 = vsel %vm318, %v2084, 0
        %v2178 = vsel %vm318, %v2085, 0
        %v2181 = vsel %vm318, %v2086, 0
        %v2184 = vsel %vm318, %v2087, 0
        %v2187 = vsel %vm318, %v2088, 0
        %v2190 = vsel %vm318, %v2089, 0
        %v2193 = vsel %vm318, %v2090, 0
        %v2196 = vsel %vm318, %v2091, 0
        %v2199 = vsel %vm318, %v2092, 0
        %v2202 = vsel %vm318, %v2093, 0
        %v2205 = vsel %vm318, %v2094, 0
        %v2208 = vsel %vm318, %v2095, 0
        %v2211 = vsel %vm318, %v2096, 0
        %v2214 = vsel %vm318, %v2097, 0
        %v2217 = vsel %vm318, %v2098, 0
        %v2220 = vsel %vm318, %v2099, 0
        %v2223 = vsel %vm318, %v2100, 0
        %v2226 = vsel %vm318, %v2101, 0
        %v2229 = vsel %vm318, %v2102, 0
        %v2232 = vsel %vm318, %v2103, 0
        %v2235 = vsel %vm415, %v2137, 0
        %2237 = vmatprep.subr.mxu0 0.0
        %2238 = vmatpush1.msra.mxu0 %v2235
        %2239 = vmatprep.subr.mxu0 0.0
        %2240 = vmatpush1.msra.mxu0 0.0
        %2241 = vmatprep.subr.mxu0 0.0
        %2242 = vmatpush1.msra.mxu0 0.0
        %2243 = vmatprep.subr.mxu0 0.0
        %2244 = vmatpush1.msra.mxu0 0.0
        %2245 = vmatprep.subr.mxu0 0.0
        %2246 = vmatpush1.msra.mxu0 0.0
        %2247 = vmatprep.subr.mxu0 0.0
        %2248 = vmatpush1.msra.mxu0 0.0
        %2249 = vmatprep.subr.mxu0 0.0
        %2250 = vmatpush1.msra.mxu0 0.0
        %2251 = vmatprep.subr.mxu0 0.0
        %2252 = vmatpush1.msra.mxu0 0.0
        %2253 = vmatprep.subr.mxu0 0.0
        %2254 = vmatpush1.msra.mxu0 0.0
        %2255 = vmatprep.subr.mxu0 0.0
        %2256 = vmatpush1.msra.mxu0 0.0
        %2257 = vmatprep.subr.mxu0 0.0
        %2258 = vmatpush1.msra.mxu0 0.0
        %2259 = vmatprep.subr.mxu0 0.0
        %2260 = vmatpush1.msra.mxu0 0.0
        %2261 = vmatprep.subr.mxu0 0.0
        %2262 = vmatpush1.msra.mxu0 0.0
        %2263 = vmatprep.subr.mxu0 0.0
        %2264 = vmatpush1.msra.mxu0 0.0
        %2265 = vmatprep.subr.mxu0 0.0
        %2266 = vmatpush1.msra.mxu0 0.0
        %2267 = vmatprep.subr.mxu0 0.0
        %2268 = vmatpush1.msra.mxu0 0.0
        %2269 = vmatprep.subr.mxu0 0.0
        %2270 = vmatpush1.msra.mxu0 0.0
        %2271 = vmatprep.subr.mxu0 0.0
        %2272 = vmatpush1.msra.mxu0 0.0
        %2273 = vmatprep.subr.mxu0 0.0
        %2274 = vmatpush1.msra.mxu0 0.0
        %2275 = vmatprep.subr.mxu0 0.0
        %2276 = vmatpush1.msra.mxu0 0.0
        %2277 = vmatprep.subr.mxu0 0.0
        %2278 = vmatpush1.msra.mxu0 0.0
        %2279 = vmatprep.subr.mxu0 0.0
        %2280 = vmatpush1.msra.mxu0 0.0
        %2281 = vmatprep.subr.mxu0 0.0
        %2282 = vmatpush1.msra.mxu0 0.0
        %2283 = vmatprep.subr.mxu0 0.0
        %2284 = vmatpush1.msra.mxu0 0.0
        %2285 = vmatprep.subr.mxu0 0.0
        %2286 = vmatpush1.msra.mxu0 0.0
        %2287 = vmatprep.subr.mxu0 0.0
        %2288 = vmatpush1.msra.mxu0 0.0
        %2289 = vmatprep.subr.mxu0 0.0
        %2290 = vmatpush1.msra.mxu0 0.0
        %2291 = vmatprep.subr.mxu0 0.0
        %2292 = vmatpush1.msra.mxu0 0.0
        %2293 = vmatprep.subr.mxu0 0.0
        %2294 = vmatpush1.msra.mxu0 0.0
        %2295 = vmatprep.subr.mxu0 0.0
        %2296 = vmatpush1.msra.mxu0 0.0
        %2297 = vmatprep.subr.mxu0 0.0
        %2298 = vmatpush1.msra.mxu0 0.0
        %2299 = vmatprep.subr.mxu0 0.0
        %2300 = vmatpush1.msra.mxu0 0.0
        %2301 = vmatprep.mubr.f32.mxu0 0.0
        %2302 = vmatmul.mubr.f32.gmra.mrb[0].mxu0 %v2139
        %v2303 = vpop.f32.mrb[0].mxu0
        %v2304 = vadd.f32 0.0, %v2303
        %v2305 = vpop.f32.mrb[0].mxu0
        %2306 = vmatprep.mubr.f32.mxu0 0.0
        %2307 = vmatmul.mubr.f32.gmra.mrb[0].mxu0 %v2142
        %v2308 = vpop.f32.mrb[0].mxu0
        %v2309 = vadd.f32 0.0, %v2308
        %v2310 = vpop.f32.mrb[0].mxu0
        %2311 = vmatprep.mubr.f32.mxu0 0.0
        %2312 = vmatmul.mubr.f32.gmra.mrb[0].mxu0 %v2145
        %v2313 = vpop.f32.mrb[0].mxu0
        %v2314 = vadd.f32 0.0, %v2313
        %v2315 = vpop.f32.mrb[0].mxu0
        %2316 = vmatprep.mubr.f32.mxu0 0.0
        %2317 = vmatmul.mubr.f32.gmra.mrb[0].mxu0 %v2148
        %v2318 = vpop.f32.mrb[0].mxu0
        %v2319 = vadd.f32 0.0, %v2318
        %v2320 = vpop.f32.mrb[0].mxu0
        %2321 = vmatprep.mubr.f32.mxu0 0.0
        %2322 = vmatmul.mubr.f32.gmra.mrb[0].mxu0 %v2151
        %v2323 = vpop.f32.mrb[0].mxu0
        %v2324 = vadd.f32 0.0, %v2323
        %v2325 = vpop.f32.mrb[0].mxu0
        %2326 = vmatprep.mubr.f32.mxu0 0.0
        %2327 = vmatmul.mubr.f32.gmra.mrb[0].mxu0 %v2154
        %v2328 = vpop.f32.mrb[0].mxu0
        %v2329 = vadd.f32 0.0, %v2328
        %v2330 = vpop.f32.mrb[0].mxu0
        %2331 = vmatprep.mubr.f32.mxu0 0.0
        %2332 = vmatmul.mubr.f32.gmra.mrb[0].mxu0 %v2157
        %v2333 = vpop.f32.mrb[0].mxu0
        %v2334 = vadd.f32 0.0, %v2333
        %v2335 = vpop.f32.mrb[0].mxu0
        %2336 = vmatprep.mubr.f32.mxu0 0.0
        %2337 = vmatmul.mubr.f32.gmra.mrb[0].mxu0 %v2160
        %v2338 = vpop.f32.mrb[0].mxu0
        %v2339 = vadd.f32 0.0, %v2338
        %v2340 = vpop.f32.mrb[0].mxu0
        %2341 = vmatprep.mubr.f32.mxu0 0.0
        %2342 = vmatmul.mubr.f32.gmra.mrb[0].mxu0 %v2163
        %v2343 = vpop.f32.mrb[0].mxu0
        %v2344 = vadd.f32 0.0, %v2343
        %v2345 = vpop.f32.mrb[0].mxu0
        %2346 = vmatprep.mubr.f32.mxu0 0.0
        %2347 = vmatmul.mubr.f32.gmra.mrb[0].mxu0 %v2166
        %v2348 = vpop.f32.mrb[0].mxu0
        %v2349 = vadd.f32 0.0, %v2348
        %v2350 = vpop.f32.mrb[0].mxu0
        %2351 = vmatprep.mubr.f32.mxu0 0.0
        %2352 = vmatmul.mubr.f32.gmra.mrb[0].mxu0 %v2169
        %v2353 = vpop.f32.mrb[0].mxu0
        %v2354 = vadd.f32 0.0, %v2353
        %v2355 = vpop.f32.mrb[0].mxu0
        %2356 = vmatprep.mubr.f32.mxu0 0.0
        %2357 = vmatmul.mubr.f32.gmra.mrb[0].mxu0 %v2172
        %v2358 = vpop.f32.mrb[0].mxu0
        %v2359 = vadd.f32 0.0, %v2358
        %v2360 = vpop.f32.mrb[0].mxu0
        %2361 = vmatprep.mubr.f32.mxu0 0.0
        %2362 = vmatmul.mubr.f32.gmra.mrb[0].mxu0 %v2175
        %v2363 = vpop.f32.mrb[0].mxu0
        %v2364 = vadd.f32 0.0, %v2363
        %v2365 = vpop.f32.mrb[0].mxu0
        %2366 = vmatprep.mubr.f32.mxu0 0.0
        %2367 = vmatmul.mubr.f32.gmra.mrb[0].mxu0 %v2178
        %v2368 = vpop.f32.mrb[0].mxu0
        %v2369 = vadd.f32 0.0, %v2368
        %v2370 = vpop.f32.mrb[0].mxu0
        %2371 = vmatprep.mubr.f32.mxu0 0.0
        %2372 = vmatmul.mubr.f32.gmra.mrb[0].mxu0 %v2181
        %v2373 = vpop.f32.mrb[0].mxu0
        %v2374 = vadd.f32 0.0, %v2373
        %v2375 = vpop.f32.mrb[0].mxu0
        %2376 = vmatprep.mubr.f32.mxu0 0.0
        %2377 = vmatmul.mubr.f32.gmra.mrb[0].mxu0 %v2184
        %v2378 = vpop.f32.mrb[0].mxu0
        %v2379 = vadd.f32 0.0, %v2378
        %v2380 = vpop.f32.mrb[0].mxu0
        %2381 = vmatprep.mubr.f32.mxu0 0.0
        %2382 = vmatmul.mubr.f32.gmra.mrb[0].mxu0 %v2187
        %v2383 = vpop.f32.mrb[0].mxu0
        %v2384 = vadd.f32 0.0, %v2383
        %v2385 = vpop.f32.mrb[0].mxu0
        %2386 = vmatprep.mubr.f32.mxu0 0.0
        %2387 = vmatmul.mubr.f32.gmra.mrb[0].mxu0 %v2190
        %v2388 = vpop.f32.mrb[0].mxu0
        %v2389 = vadd.f32 0.0, %v2388
        %v2390 = vpop.f32.mrb[0].mxu0
        %2391 = vmatprep.mubr.f32.mxu0 0.0
        %2392 = vmatmul.mubr.f32.gmra.mrb[0].mxu0 %v2193
        %v2393 = vpop.f32.mrb[0].mxu0
        %v2394 = vadd.f32 0.0, %v2393
        %v2395 = vpop.f32.mrb[0].mxu0
        %2396 = vmatprep.mubr.f32.mxu0 0.0
        %2397 = vmatmul.mubr.f32.gmra.mrb[0].mxu0 %v2196
        %v2398 = vpop.f32.mrb[0].mxu0
        %v2399 = vadd.f32 0.0, %v2398
        %v2400 = vpop.f32.mrb[0].mxu0
        %2401 = vmatprep.mubr.f32.mxu0 0.0
        %2402 = vmatmul.mubr.f32.gmra.mrb[0].mxu0 %v2199
        %v2403 = vpop.f32.mrb[0].mxu0
        %v2404 = vadd.f32 0.0, %v2403
        %v2405 = vpop.f32.mrb[0].mxu0
        %2406 = vmatprep.mubr.f32.mxu0 0.0
        %2407 = vmatmul.mubr.f32.gmra.mrb[0].mxu0 %v2202
        %v2408 = vpop.f32.mrb[0].mxu0
        %v2409 = vadd.f32 0.0, %v2408
        %v2410 = vpop.f32.mrb[0].mxu0
        %2411 = vmatprep.mubr.f32.mxu0 0.0
        %2412 = vmatmul.mubr.f32.gmra.mrb[0].mxu0 %v2205
        %v2413 = vpop.f32.mrb[0].mxu0
        %v2414 = vadd.f32 0.0, %v2413
        %v2415 = vpop.f32.mrb[0].mxu0
        %2416 = vmatprep.mubr.f32.mxu0 0.0
        %2417 = vmatmul.mubr.f32.gmra.mrb[0].mxu0 %v2208
        %v2418 = vpop.f32.mrb[0].mxu0
        %v2419 = vadd.f32 0.0, %v2418
        %v2420 = vpop.f32.mrb[0].mxu0
        %2421 = vmatprep.mubr.f32.mxu0 0.0
        %2422 = vmatmul.mubr.f32.gmra.mrb[0].mxu0 %v2211
        %v2423 = vpop.f32.mrb[0].mxu0
        %v2424 = vadd.f32 0.0, %v2423
        %v2425 = vpop.f32.mrb[0].mxu0
        %2426 = vmatprep.mubr.f32.mxu0 0.0
        %2427 = vmatmul.mubr.f32.gmra.mrb[0].mxu0 %v2214
        %v2428 = vpop.f32.mrb[0].mxu0
        %v2429 = vadd.f32 0.0, %v2428
        %v2430 = vpop.f32.mrb[0].mxu0
        %2431 = vmatprep.mubr.f32.mxu0 0.0
        %2432 = vmatmul.mubr.f32.gmra.mrb[0].mxu0 %v2217
        %v2433 = vpop.f32.mrb[0].mxu0
        %v2434 = vadd.f32 0.0, %v2433
        %v2435 = vpop.f32.mrb[0].mxu0
        %2436 = vmatprep.mubr.f32.mxu0 0.0
        %2437 = vmatmul.mubr.f32.gmra.mrb[0].mxu0 %v2220
        %v2438 = vpop.f32.mrb[0].mxu0
        %v2439 = vadd.f32 0.0, %v2438
        %v2440 = vpop.f32.mrb[0].mxu0
        %2441 = vmatprep.mubr.f32.mxu0 0.0
        %2442 = vmatmul.mubr.f32.gmra.mrb[0].mxu0 %v2223
        %v2443 = vpop.f32.mrb[0].mxu0
        %v2444 = vadd.f32 0.0, %v2443
        %v2445 = vpop.f32.mrb[0].mxu0
        %2446 = vmatprep.mubr.f32.mxu0 0.0
        %2447 = vmatmul.mubr.f32.gmra.mrb[0].mxu0 %v2226
        %v2448 = vpop.f32.mrb[0].mxu0
        %v2449 = vadd.f32 0.0, %v2448
        %v2450 = vpop.f32.mrb[0].mxu0
        %2451 = vmatprep.mubr.f32.mxu0 0.0
        %2452 = vmatmul.mubr.f32.gmra.mrb[0].mxu0 %v2229
        %v2453 = vpop.f32.mrb[0].mxu0
        %v2454 = vadd.f32 0.0, %v2453
        %v2455 = vpop.f32.mrb[0].mxu0
        %2456 = vmatprep.mubr.f32.mxu0 0.0
        %2457 = vmatmul.mubr.f32.gmra.mrb[0].mxu0 %v2232
        %v2458 = vpop.f32.mrb[0].mxu0
        %v2459 = vadd.f32 0.0, %v2458
        %v2460 = vpop.f32.mrb[0].mxu0
        %2461 = vdwg.mxu0
        %v2462 = vadd.f32 %v2104, %v2304
        %v2463 = vadd.f32 %v2105, %v2309
        %v2464 = vadd.f32 %v2106, %v2314
        %v2465 = vadd.f32 %v2107, %v2319
        %v2466 = vadd.f32 %v2108, %v2324
        %v2467 = vadd.f32 %v2109, %v2329
        %v2468 = vadd.f32 %v2110, %v2334
        %v2469 = vadd.f32 %v2111, %v2339
        %v2470 = vadd.f32 %v2112, %v2344
        %v2471 = vadd.f32 %v2113, %v2349
        %v2472 = vadd.f32 %v2114, %v2354
        %v2473 = vadd.f32 %v2115, %v2359
        %v2474 = vadd.f32 %v2116, %v2364
        %v2475 = vadd.f32 %v2117, %v2369
        %v2476 = vadd.f32 %v2118, %v2374
        %v2477 = vadd.f32 %v2119, %v2379
        %v2478 = vadd.f32 %v2120, %v2384
        %v2479 = vadd.f32 %v2121, %v2389
        %v2480 = vadd.f32 %v2122, %v2394
        %v2481 = vadd.f32 %v2123, %v2399
        %v2482 = vadd.f32 %v2124, %v2404
        %v2483 = vadd.f32 %v2125, %v2409
        %v2484 = vadd.f32 %v2126, %v2414
        %v2485 = vadd.f32 %v2127, %v2419
        %v2486 = vadd.f32 %v2128, %v2424
        %v2487 = vadd.f32 %v2129, %v2429
        %v2488 = vadd.f32 %v2130, %v2434
        %v2489 = vadd.f32 %v2131, %v2439
        %v2490 = vadd.f32 %v2132, %v2444
        %v2491 = vadd.f32 %v2133, %v2449
        %v2492 = vadd.f32 %v2134, %v2454
        %v2493 = vadd.f32 %v2135, %v2459
        %2494 = vst [vmem:[#allocation2] sm:$0xff] %v2462
        %2495 = vst [vmem:[#allocation2 + $0x8] sm:$0xff] %v2463
        %2496 = vst [vmem:[#allocation2 + $0x10] sm:$0xff] %v2464
        %2497 = vst [vmem:[#allocation2 + $0x18] sm:$0xff] %v2465
        %2498 = vst [vmem:[#allocation2 + $0x20] sm:$0xff] %v2466
        %2499 = vst [vmem:[#allocation2 + $0x28] sm:$0xff] %v2467
        %2500 = vst [vmem:[#allocation2 + $0x30] sm:$0xff] %v2468
        %2501 = vst [vmem:[#allocation2 + $0x38] sm:$0xff] %v2469
        %2502 = vst [vmem:[#allocation2 + $0x40] sm:$0xff] %v2470
        %2503 = vst [vmem:[#allocation2 + $0x48] sm:$0xff] %v2471
        %2504 = vst [vmem:[#allocation2 + $0x50] sm:$0xff] %v2472
        %2505 = vst [vmem:[#allocation2 + $0x58] sm:$0xff] %v2473
        %2506 = vst [vmem:[#allocation2 + $0x60] sm:$0xff] %v2474
        %2507 = vst [vmem:[#allocation2 + $0x68] sm:$0xff] %v2475
        %2508 = vst [vmem:[#allocation2 + $0x70] sm:$0xff] %v2476
        %2509 = vst [vmem:[#allocation2 + $0x78] sm:$0xff] %v2477
        %2510 = vst [vmem:[#allocation2 + $0x80] sm:$0xff] %v2478
        %2511 = vst [vmem:[#allocation2 + $0x88] sm:$0xff] %v2479
        %2512 = vst [vmem:[#allocation2 + $0x90] sm:$0xff] %v2480
        %2513 = vst [vmem:[#allocation2 + $0x98] sm:$0xff] %v2481
        %2514 = vst [vmem:[#allocation2 + $0xa0] sm:$0xff] %v2482
        %2515 = vst [vmem:[#allocation2 + $0xa8] sm:$0xff] %v2483
        %2516 = vst [vmem:[#allocation2 + $0xb0] sm:$0xff] %v2484
        %2517 = vst [vmem:[#allocation2 + $0xb8] sm:$0xff] %v2485
        %2518 = vst [vmem:[#allocation2 + $0xc0] sm:$0xff] %v2486
        %2519 = vst [vmem:[#allocation2 + $0xc8] sm:$0xff] %v2487
        %2520 = vst [vmem:[#allocation2 + $0xd0] sm:$0xff] %v2488
        %2521 = vst [vmem:[#allocation2 + $0xd8] sm:$0xff] %v2489
        %2522 = vst [vmem:[#allocation2 + $0xe0] sm:$0xff] %v2490
        %2523 = vst [vmem:[#allocation2 + $0xe8] sm:$0xff] %v2491
        %2524 = vst [vmem:[#allocation2 + $0xf0] sm:$0xff] %v2492
        %2525 = vst [vmem:[#allocation2 + $0xf8] sm:$0xff] %v2493
        %s2526 = scalar_lea.vmem %s206, 160
        %v2527 = vld [vmem:[%s2526] sm:$0xff]
        %v2528 = vld [vmem:[%s2526 + $0x10] sm:$0xff]
        %v2529 = vld [vmem:[%s2526 + $0x20] sm:$0xff]
        %v2530 = vld [vmem:[%s2526 + $0x30] sm:$0xff]
        %v2531 = vld [vmem:[%s2526 + $0x40] sm:$0xff]
        %v2532 = vld [vmem:[%s2526 + $0x50] sm:$0xff]
        %v2533 = vld [vmem:[%s2526 + $0x60] sm:$0xff]
        %v2534 = vld [vmem:[%s2526 + $0x70] sm:$0xff]
        %v2535 = vld [vmem:[%s2526 + $0xa0] sm:$0xff]
        %v2536 = vld [vmem:[%s2526 + $0xb0] sm:$0xff]
        %v2537 = vld [vmem:[%s2526 + $0xc0] sm:$0xff]
        %v2538 = vld [vmem:[%s2526 + $0xd0] sm:$0xff]
        %v2539 = vld [vmem:[%s2526 + $0xe0] sm:$0xff]
        %v2540 = vld [vmem:[%s2526 + $0xf0] sm:$0xff]
        %v2541 = vld [vmem:[%s2526 + $0x100] sm:$0xff]
        %v2542 = vld [vmem:[%s2526 + $0x110] sm:$0xff]
        %v2543 = vld [vmem:[%s2526 + $0x140] sm:$0xff]
        %v2544 = vld [vmem:[%s2526 + $0x150] sm:$0xff]
        %v2545 = vld [vmem:[%s2526 + $0x160] sm:$0xff]
        %v2546 = vld [vmem:[%s2526 + $0x170] sm:$0xff]
        %v2547 = vld [vmem:[%s2526 + $0x180] sm:$0xff]
        %v2548 = vld [vmem:[%s2526 + $0x190] sm:$0xff]
        %v2549 = vld [vmem:[%s2526 + $0x1a0] sm:$0xff]
        %v2550 = vld [vmem:[%s2526 + $0x1b0] sm:$0xff]
        %v2551 = vld [vmem:[%s2526 + $0x1e0] sm:$0xff]
        %v2552 = vld [vmem:[%s2526 + $0x1f0] sm:$0xff]
        %v2553 = vld [vmem:[%s2526 + $0x200] sm:$0xff]
        %v2554 = vld [vmem:[%s2526 + $0x210] sm:$0xff]
        %v2555 = vld [vmem:[%s2526 + $0x220] sm:$0xff]
        %v2556 = vld [vmem:[%s2526 + $0x230] sm:$0xff]
        %v2557 = vld [vmem:[%s2526 + $0x240] sm:$0xff]
        %v2558 = vld [vmem:[%s2526 + $0x250] sm:$0xff]
        %v2559 = vld [vmem:[#allocation2] sm:$0xff]
        %v2560 = vld [vmem:[#allocation2 + $0x8] sm:$0xff]
        %v2561 = vld [vmem:[#allocation2 + $0x10] sm:$0xff]
        %v2562 = vld [vmem:[#allocation2 + $0x18] sm:$0xff]
        %v2563 = vld [vmem:[#allocation2 + $0x20] sm:$0xff]
        %v2564 = vld [vmem:[#allocation2 + $0x28] sm:$0xff]
        %v2565 = vld [vmem:[#allocation2 + $0x30] sm:$0xff]
        %v2566 = vld [vmem:[#allocation2 + $0x38] sm:$0xff]
        %v2567 = vld [vmem:[#allocation2 + $0x40] sm:$0xff]
        %v2568 = vld [vmem:[#allocation2 + $0x48] sm:$0xff]
        %v2569 = vld [vmem:[#allocation2 + $0x50] sm:$0xff]
        %v2570 = vld [vmem:[#allocation2 + $0x58] sm:$0xff]
        %v2571 = vld [vmem:[#allocation2 + $0x60] sm:$0xff]
        %v2572 = vld [vmem:[#allocation2 + $0x68] sm:$0xff]
        %v2573 = vld [vmem:[#allocation2 + $0x70] sm:$0xff]
        %v2574 = vld [vmem:[#allocation2 + $0x78] sm:$0xff]
        %v2575 = vld [vmem:[#allocation2 + $0x80] sm:$0xff]
        %v2576 = vld [vmem:[#allocation2 + $0x88] sm:$0xff]
        %v2577 = vld [vmem:[#allocation2 + $0x90] sm:$0xff]
        %v2578 = vld [vmem:[#allocation2 + $0x98] sm:$0xff]
        %v2579 = vld [vmem:[#allocation2 + $0xa0] sm:$0xff]
        %v2580 = vld [vmem:[#allocation2 + $0xa8] sm:$0xff]
        %v2581 = vld [vmem:[#allocation2 + $0xb0] sm:$0xff]
        %v2582 = vld [vmem:[#allocation2 + $0xb8] sm:$0xff]
        %v2583 = vld [vmem:[#allocation2 + $0xc0] sm:$0xff]
        %v2584 = vld [vmem:[#allocation2 + $0xc8] sm:$0xff]
        %v2585 = vld [vmem:[#allocation2 + $0xd0] sm:$0xff]
        %v2586 = vld [vmem:[#allocation2 + $0xd8] sm:$0xff]
        %v2587 = vld [vmem:[#allocation2 + $0xe0] sm:$0xff]
        %v2588 = vld [vmem:[#allocation2 + $0xe8] sm:$0xff]
        %v2589 = vld [vmem:[#allocation2 + $0xf0] sm:$0xff]
        %v2590 = vld [vmem:[#allocation2 + $0xf8] sm:$0xff]
        %s2591 = scalar_lea.vmem %s210, 20
        %v2592 = vld [vmem:[%s2591] sm:$0xf]
        %v2594 = vsel %vm318, %v2527, 0
        %v2597 = vsel %vm318, %v2528, 0
        %v2600 = vsel %vm318, %v2529, 0
        %v2603 = vsel %vm318, %v2530, 0
        %v2606 = vsel %vm318, %v2531, 0
        %v2609 = vsel %vm318, %v2532, 0
        %v2612 = vsel %vm318, %v2533, 0
        %v2615 = vsel %vm318, %v2534, 0
        %v2618 = vsel %vm318, %v2535, 0
        %v2621 = vsel %vm318, %v2536, 0
        %v2624 = vsel %vm318, %v2537, 0
        %v2627 = vsel %vm318, %v2538, 0
        %v2630 = vsel %vm318, %v2539, 0
        %v2633 = vsel %vm318, %v2540, 0
        %v2636 = vsel %vm318, %v2541, 0
        %v2639 = vsel %vm318, %v2542, 0
        %v2642 = vsel %vm318, %v2543, 0
        %v2645 = vsel %vm318, %v2544, 0
        %v2648 = vsel %vm318, %v2545, 0
        %v2651 = vsel %vm318, %v2546, 0
        %v2654 = vsel %vm318, %v2547, 0
        %v2657 = vsel %vm318, %v2548, 0
        %v2660 = vsel %vm318, %v2549, 0
        %v2663 = vsel %vm318, %v2550, 0
        %v2666 = vsel %vm318, %v2551, 0
        %v2669 = vsel %vm318, %v2552, 0
        %v2672 = vsel %vm318, %v2553, 0
        %v2675 = vsel %vm318, %v2554, 0
        %v2678 = vsel %vm318, %v2555, 0
        %v2681 = vsel %vm318, %v2556, 0
        %v2684 = vsel %vm318, %v2557, 0
        %v2687 = vsel %vm318, %v2558, 0
        %v2690 = vsel %vm415, %v2592, 0
        %2692 = vmatprep.subr.mxu0 0.0
        %2693 = vmatpush1.msra.mxu0 %v2690
        %2694 = vmatprep.subr.mxu0 0.0
        %2695 = vmatpush1.msra.mxu0 0.0
        %2696 = vmatprep.subr.mxu0 0.0
        %2697 = vmatpush1.msra.mxu0 0.0
        %2698 = vmatprep.subr.mxu0 0.0
        %2699 = vmatpush1.msra.mxu0 0.0
        %2700 = vmatprep.subr.mxu0 0.0
        %2701 = vmatpush1.msra.mxu0 0.0
        %2702 = vmatprep.subr.mxu0 0.0
        %2703 = vmatpush1.msra.mxu0 0.0
        %2704 = vmatprep.subr.mxu0 0.0
        %2705 = vmatpush1.msra.mxu0 0.0
        %2706 = vmatprep.subr.mxu0 0.0
        %2707 = vmatpush1.msra.mxu0 0.0
        %2708 = vmatprep.subr.mxu0 0.0
        %2709 = vmatpush1.msra.mxu0 0.0
        %2710 = vmatprep.subr.mxu0 0.0
        %2711 = vmatpush1.msra.mxu0 0.0
        %2712 = vmatprep.subr.mxu0 0.0
        %2713 = vmatpush1.msra.mxu0 0.0
        %2714 = vmatprep.subr.mxu0 0.0
        %2715 = vmatpush1.msra.mxu0 0.0
        %2716 = vmatprep.subr.mxu0 0.0
        %2717 = vmatpush1.msra.mxu0 0.0
        %2718 = vmatprep.subr.mxu0 0.0
        %2719 = vmatpush1.msra.mxu0 0.0
        %2720 = vmatprep.subr.mxu0 0.0
        %2721 = vmatpush1.msra.mxu0 0.0
        %2722 = vmatprep.subr.mxu0 0.0
        %2723 = vmatpush1.msra.mxu0 0.0
        %2724 = vmatprep.subr.mxu0 0.0
        %2725 = vmatpush1.msra.mxu0 0.0
        %2726 = vmatprep.subr.mxu0 0.0
        %2727 = vmatpush1.msra.mxu0 0.0
        %2728 = vmatprep.subr.mxu0 0.0
        %2729 = vmatpush1.msra.mxu0 0.0
        %2730 = vmatprep.subr.mxu0 0.0
        %2731 = vmatpush1.msra.mxu0 0.0
        %2732 = vmatprep.subr.mxu0 0.0
        %2733 = vmatpush1.msra.mxu0 0.0
        %2734 = vmatprep.subr.mxu0 0.0
        %2735 = vmatpush1.msra.mxu0 0.0
        %2736 = vmatprep.subr.mxu0 0.0
        %2737 = vmatpush1.msra.mxu0 0.0
        %2738 = vmatprep.subr.mxu0 0.0
        %2739 = vmatpush1.msra.mxu0 0.0
        %2740 = vmatprep.subr.mxu0 0.0
        %2741 = vmatpush1.msra.mxu0 0.0
        %2742 = vmatprep.subr.mxu0 0.0
        %2743 = vmatpush1.msra.mxu0 0.0
        %2744 = vmatprep.subr.mxu0 0.0
        %2745 = vmatpush1.msra.mxu0 0.0
        %2746 = vmatprep.subr.mxu0 0.0
        %2747 = vmatpush1.msra.mxu0 0.0
        %2748 = vmatprep.subr.mxu0 0.0
        %2749 = vmatpush1.msra.mxu0 0.0
        %2750 = vmatprep.subr.mxu0 0.0
        %2751 = vmatpush1.msra.mxu0 0.0
        %2752 = vmatprep.subr.mxu0 0.0
        %2753 = vmatpush1.msra.mxu0 0.0
        %2754 = vmatprep.subr.mxu0 0.0
        %2755 = vmatpush1.msra.mxu0 0.0
        %2756 = vmatprep.mubr.f32.mxu0 0.0
        %2757 = vmatmul.mubr.f32.gmra.mrb[0].mxu0 %v2594
        %v2758 = vpop.f32.mrb[0].mxu0
        %v2759 = vadd.f32 0.0, %v2758
        %v2760 = vpop.f32.mrb[0].mxu0
        %2761 = vmatprep.mubr.f32.mxu0 0.0
        %2762 = vmatmul.mubr.f32.gmra.mrb[0].mxu0 %v2597
        %v2763 = vpop.f32.mrb[0].mxu0
        %v2764 = vadd.f32 0.0, %v2763
        %v2765 = vpop.f32.mrb[0].mxu0
        %2766 = vmatprep.mubr.f32.mxu0 0.0
        %2767 = vmatmul.mubr.f32.gmra.mrb[0].mxu0 %v2600
        %v2768 = vpop.f32.mrb[0].mxu0
        %v2769 = vadd.f32 0.0, %v2768
        %v2770 = vpop.f32.mrb[0].mxu0
        %2771 = vmatprep.mubr.f32.mxu0 0.0
        %2772 = vmatmul.mubr.f32.gmra.mrb[0].mxu0 %v2603
        %v2773 = vpop.f32.mrb[0].mxu0
        %v2774 = vadd.f32 0.0, %v2773
        %v2775 = vpop.f32.mrb[0].mxu0
        %2776 = vmatprep.mubr.f32.mxu0 0.0
        %2777 = vmatmul.mubr.f32.gmra.mrb[0].mxu0 %v2606
        %v2778 = vpop.f32.mrb[0].mxu0
        %v2779 = vadd.f32 0.0, %v2778
        %v2780 = vpop.f32.mrb[0].mxu0
        %2781 = vmatprep.mubr.f32.mxu0 0.0
        %2782 = vmatmul.mubr.f32.gmra.mrb[0].mxu0 %v2609
        %v2783 = vpop.f32.mrb[0].mxu0
        %v2784 = vadd.f32 0.0, %v2783
        %v2785 = vpop.f32.mrb[0].mxu0
        %2786 = vmatprep.mubr.f32.mxu0 0.0
        %2787 = vmatmul.mubr.f32.gmra.mrb[0].mxu0 %v2612
        %v2788 = vpop.f32.mrb[0].mxu0
        %v2789 = vadd.f32 0.0, %v2788
        %v2790 = vpop.f32.mrb[0].mxu0
        %2791 = vmatprep.mubr.f32.mxu0 0.0
        %2792 = vmatmul.mubr.f32.gmra.mrb[0].mxu0 %v2615
        %v2793 = vpop.f32.mrb[0].mxu0
        %v2794 = vadd.f32 0.0, %v2793
        %v2795 = vpop.f32.mrb[0].mxu0
        %2796 = vmatprep.mubr.f32.mxu0 0.0
        %2797 = vmatmul.mubr.f32.gmra.mrb[0].mxu0 %v2618
        %v2798 = vpop.f32.mrb[0].mxu0
        %v2799 = vadd.f32 0.0, %v2798
        %v2800 = vpop.f32.mrb[0].mxu0
        %2801 = vmatprep.mubr.f32.mxu0 0.0
        %2802 = vmatmul.mubr.f32.gmra.mrb[0].mxu0 %v2621
        %v2803 = vpop.f32.mrb[0].mxu0
        %v2804 = vadd.f32 0.0, %v2803
        %v2805 = vpop.f32.mrb[0].mxu0
        %2806 = vmatprep.mubr.f32.mxu0 0.0
        %2807 = vmatmul.mubr.f32.gmra.mrb[0].mxu0 %v2624
        %v2808 = vpop.f32.mrb[0].mxu0
        %v2809 = vadd.f32 0.0, %v2808
        %v2810 = vpop.f32.mrb[0].mxu0
        %2811 = vmatprep.mubr.f32.mxu0 0.0
        %2812 = vmatmul.mubr.f32.gmra.mrb[0].mxu0 %v2627
        %v2813 = vpop.f32.mrb[0].mxu0
        %v2814 = vadd.f32 0.0, %v2813
        %v2815 = vpop.f32.mrb[0].mxu0
        %2816 = vmatprep.mubr.f32.mxu0 0.0
        %2817 = vmatmul.mubr.f32.gmra.mrb[0].mxu0 %v2630
        %v2818 = vpop.f32.mrb[0].mxu0
        %v2819 = vadd.f32 0.0, %v2818
        %v2820 = vpop.f32.mrb[0].mxu0
        %2821 = vmatprep.mubr.f32.mxu0 0.0
        %2822 = vmatmul.mubr.f32.gmra.mrb[0].mxu0 %v2633
        %v2823 = vpop.f32.mrb[0].mxu0
        %v2824 = vadd.f32 0.0, %v2823
        %v2825 = vpop.f32.mrb[0].mxu0
        %2826 = vmatprep.mubr.f32.mxu0 0.0
        %2827 = vmatmul.mubr.f32.gmra.mrb[0].mxu0 %v2636
        %v2828 = vpop.f32.mrb[0].mxu0
        %v2829 = vadd.f32 0.0, %v2828
        %v2830 = vpop.f32.mrb[0].mxu0
        %2831 = vmatprep.mubr.f32.mxu0 0.0
        %2832 = vmatmul.mubr.f32.gmra.mrb[0].mxu0 %v2639
        %v2833 = vpop.f32.mrb[0].mxu0
        %v2834 = vadd.f32 0.0, %v2833
        %v2835 = vpop.f32.mrb[0].mxu0
        %2836 = vmatprep.mubr.f32.mxu0 0.0
        %2837 = vmatmul.mubr.f32.gmra.mrb[0].mxu0 %v2642
        %v2838 = vpop.f32.mrb[0].mxu0
        %v2839 = vadd.f32 0.0, %v2838
        %v2840 = vpop.f32.mrb[0].mxu0
        %2841 = vmatprep.mubr.f32.mxu0 0.0
        %2842 = vmatmul.mubr.f32.gmra.mrb[0].mxu0 %v2645
        %v2843 = vpop.f32.mrb[0].mxu0
        %v2844 = vadd.f32 0.0, %v2843
        %v2845 = vpop.f32.mrb[0].mxu0
        %2846 = vmatprep.mubr.f32.mxu0 0.0
        %2847 = vmatmul.mubr.f32.gmra.mrb[0].mxu0 %v2648
        %v2848 = vpop.f32.mrb[0].mxu0
        %v2849 = vadd.f32 0.0, %v2848
        %v2850 = vpop.f32.mrb[0].mxu0
        %2851 = vmatprep.mubr.f32.mxu0 0.0
        %2852 = vmatmul.mubr.f32.gmra.mrb[0].mxu0 %v2651
        %v2853 = vpop.f32.mrb[0].mxu0
        %v2854 = vadd.f32 0.0, %v2853
        %v2855 = vpop.f32.mrb[0].mxu0
        %2856 = vmatprep.mubr.f32.mxu0 0.0
        %2857 = vmatmul.mubr.f32.gmra.mrb[0].mxu0 %v2654
        %v2858 = vpop.f32.mrb[0].mxu0
        %v2859 = vadd.f32 0.0, %v2858
        %v2860 = vpop.f32.mrb[0].mxu0
        %2861 = vmatprep.mubr.f32.mxu0 0.0
        %2862 = vmatmul.mubr.f32.gmra.mrb[0].mxu0 %v2657
        %v2863 = vpop.f32.mrb[0].mxu0
        %v2864 = vadd.f32 0.0, %v2863
        %v2865 = vpop.f32.mrb[0].mxu0
        %2866 = vmatprep.mubr.f32.mxu0 0.0
        %2867 = vmatmul.mubr.f32.gmra.mrb[0].mxu0 %v2660
        %v2868 = vpop.f32.mrb[0].mxu0
        %v2869 = vadd.f32 0.0, %v2868
        %v2870 = vpop.f32.mrb[0].mxu0
        %2871 = vmatprep.mubr.f32.mxu0 0.0
        %2872 = vmatmul.mubr.f32.gmra.mrb[0].mxu0 %v2663
        %v2873 = vpop.f32.mrb[0].mxu0
        %v2874 = vadd.f32 0.0, %v2873
        %v2875 = vpop.f32.mrb[0].mxu0
        %2876 = vmatprep.mubr.f32.mxu0 0.0
        %2877 = vmatmul.mubr.f32.gmra.mrb[0].mxu0 %v2666
        %v2878 = vpop.f32.mrb[0].mxu0
        %v2879 = vadd.f32 0.0, %v2878
        %v2880 = vpop.f32.mrb[0].mxu0
        %2881 = vmatprep.mubr.f32.mxu0 0.0
        %2882 = vmatmul.mubr.f32.gmra.mrb[0].mxu0 %v2669
        %v2883 = vpop.f32.mrb[0].mxu0
        %v2884 = vadd.f32 0.0, %v2883
        %v2885 = vpop.f32.mrb[0].mxu0
        %2886 = vmatprep.mubr.f32.mxu0 0.0
        %2887 = vmatmul.mubr.f32.gmra.mrb[0].mxu0 %v2672
        %v2888 = vpop.f32.mrb[0].mxu0
        %v2889 = vadd.f32 0.0, %v2888
        %v2890 = vpop.f32.mrb[0].mxu0
        %2891 = vmatprep.mubr.f32.mxu0 0.0
        %2892 = vmatmul.mubr.f32.gmra.mrb[0].mxu0 %v2675
        %v2893 = vpop.f32.mrb[0].mxu0
        %v2894 = vadd.f32 0.0, %v2893
        %v2895 = vpop.f32.mrb[0].mxu0
        %2896 = vmatprep.mubr.f32.mxu0 0.0
        %2897 = vmatmul.mubr.f32.gmra.mrb[0].mxu0 %v2678
        %v2898 = vpop.f32.mrb[0].mxu0
        %v2899 = vadd.f32 0.0, %v2898
        %v2900 = vpop.f32.mrb[0].mxu0
        %2901 = vmatprep.mubr.f32.mxu0 0.0
        %2902 = vmatmul.mubr.f32.gmra.mrb[0].mxu0 %v2681
        %v2903 = vpop.f32.mrb[0].mxu0
        %v2904 = vadd.f32 0.0, %v2903
        %v2905 = vpop.f32.mrb[0].mxu0
        %2906 = vmatprep.mubr.f32.mxu0 0.0
        %2907 = vmatmul.mubr.f32.gmra.mrb[0].mxu0 %v2684
        %v2908 = vpop.f32.mrb[0].mxu0
        %v2909 = vadd.f32 0.0, %v2908
        %v2910 = vpop.f32.mrb[0].mxu0
        %2911 = vmatprep.mubr.f32.mxu0 0.0
        %2912 = vmatmul.mubr.f32.gmra.mrb[0].mxu0 %v2687
        %v2913 = vpop.f32.mrb[0].mxu0
        %v2914 = vadd.f32 0.0, %v2913
        %v2915 = vpop.f32.mrb[0].mxu0
        %2916 = vdwg.mxu0
        %v2917 = vadd.f32 %v2559, %v2759
        %v2918 = vadd.f32 %v2560, %v2764
        %v2919 = vadd.f32 %v2561, %v2769
        %v2920 = vadd.f32 %v2562, %v2774
        %v2921 = vadd.f32 %v2563, %v2779
        %v2922 = vadd.f32 %v2564, %v2784
        %v2923 = vadd.f32 %v2565, %v2789
        %v2924 = vadd.f32 %v2566, %v2794
        %v2925 = vadd.f32 %v2567, %v2799
        %v2926 = vadd.f32 %v2568, %v2804
        %v2927 = vadd.f32 %v2569, %v2809
        %v2928 = vadd.f32 %v2570, %v2814
        %v2929 = vadd.f32 %v2571, %v2819
        %v2930 = vadd.f32 %v2572, %v2824
        %v2931 = vadd.f32 %v2573, %v2829
        %v2932 = vadd.f32 %v2574, %v2834
        %v2933 = vadd.f32 %v2575, %v2839
        %v2934 = vadd.f32 %v2576, %v2844
        %v2935 = vadd.f32 %v2577, %v2849
        %v2936 = vadd.f32 %v2578, %v2854
        %v2937 = vadd.f32 %v2579, %v2859
        %v2938 = vadd.f32 %v2580, %v2864
        %v2939 = vadd.f32 %v2581, %v2869
        %v2940 = vadd.f32 %v2582, %v2874
        %v2941 = vadd.f32 %v2583, %v2879
        %v2942 = vadd.f32 %v2584, %v2884
        %v2943 = vadd.f32 %v2585, %v2889
        %v2944 = vadd.f32 %v2586, %v2894
        %v2945 = vadd.f32 %v2587, %v2899
        %v2946 = vadd.f32 %v2588, %v2904
        %v2947 = vadd.f32 %v2589, %v2909
        %v2948 = vadd.f32 %v2590, %v2914
        %2949 = vst [vmem:[#allocation2] sm:$0xff] %v2917
        %2950 = vst [vmem:[#allocation2 + $0x8] sm:$0xff] %v2918
        %2951 = vst [vmem:[#allocation2 + $0x10] sm:$0xff] %v2919
        %2952 = vst [vmem:[#allocation2 + $0x18] sm:$0xff] %v2920
        %2953 = vst [vmem:[#allocation2 + $0x20] sm:$0xff] %v2921
        %2954 = vst [vmem:[#allocation2 + $0x28] sm:$0xff] %v2922
        %2955 = vst [vmem:[#allocation2 + $0x30] sm:$0xff] %v2923
        %2956 = vst [vmem:[#allocation2 + $0x38] sm:$0xff] %v2924
        %2957 = vst [vmem:[#allocation2 + $0x40] sm:$0xff] %v2925
        %2958 = vst [vmem:[#allocation2 + $0x48] sm:$0xff] %v2926
        %2959 = vst [vmem:[#allocation2 + $0x50] sm:$0xff] %v2927
        %2960 = vst [vmem:[#allocation2 + $0x58] sm:$0xff] %v2928
        %2961 = vst [vmem:[#allocation2 + $0x60] sm:$0xff] %v2929
        %2962 = vst [vmem:[#allocation2 + $0x68] sm:$0xff] %v2930
        %2963 = vst [vmem:[#allocation2 + $0x70] sm:$0xff] %v2931
        %2964 = vst [vmem:[#allocation2 + $0x78] sm:$0xff] %v2932
        %2965 = vst [vmem:[#allocation2 + $0x80] sm:$0xff] %v2933
        %2966 = vst [vmem:[#allocation2 + $0x88] sm:$0xff] %v2934
        %2967 = vst [vmem:[#allocation2 + $0x90] sm:$0xff] %v2935
        %2968 = vst [vmem:[#allocation2 + $0x98] sm:$0xff] %v2936
        %2969 = vst [vmem:[#allocation2 + $0xa0] sm:$0xff] %v2937
        %2970 = vst [vmem:[#allocation2 + $0xa8] sm:$0xff] %v2938
        %2971 = vst [vmem:[#allocation2 + $0xb0] sm:$0xff] %v2939
        %2972 = vst [vmem:[#allocation2 + $0xb8] sm:$0xff] %v2940
        %2973 = vst [vmem:[#allocation2 + $0xc0] sm:$0xff] %v2941
        %2974 = vst [vmem:[#allocation2 + $0xc8] sm:$0xff] %v2942
        %2975 = vst [vmem:[#allocation2 + $0xd0] sm:$0xff] %v2943
        %2976 = vst [vmem:[#allocation2 + $0xd8] sm:$0xff] %v2944
        %2977 = vst [vmem:[#allocation2 + $0xe0] sm:$0xff] %v2945
        %2978 = vst [vmem:[#allocation2 + $0xe8] sm:$0xff] %v2946
        %2979 = vst [vmem:[#allocation2 + $0xf0] sm:$0xff] %v2947
        %2980 = vst [vmem:[#allocation2 + $0xf8] sm:$0xff] %v2948
        %v2981 = vld [vmem:[%s2526 + $0x1] sm:$0xff]
        %v2982 = vld [vmem:[%s2526 + $0x11] sm:$0xff]
        %v2983 = vld [vmem:[%s2526 + $0x21] sm:$0xff]
        %v2984 = vld [vmem:[%s2526 + $0x31] sm:$0xff]
        %v2985 = vld [vmem:[%s2526 + $0x41] sm:$0xff]
        %v2986 = vld [vmem:[%s2526 + $0x51] sm:$0xff]
        %v2987 = vld [vmem:[%s2526 + $0x61] sm:$0xff]
        %v2988 = vld [vmem:[%s2526 + $0x71] sm:$0xff]
        %v2989 = vld [vmem:[%s2526 + $0xa1] sm:$0xff]
        %v2990 = vld [vmem:[%s2526 + $0xb1] sm:$0xff]
        %v2991 = vld [vmem:[%s2526 + $0xc1] sm:$0xff]
        %v2992 = vld [vmem:[%s2526 + $0xd1] sm:$0xff]
        %v2993 = vld [vmem:[%s2526 + $0xe1] sm:$0xff]
        %v2994 = vld [vmem:[%s2526 + $0xf1] sm:$0xff]
        %v2995 = vld [vmem:[%s2526 + $0x101] sm:$0xff]
        %v2996 = vld [vmem:[%s2526 + $0x111] sm:$0xff]
        %v2997 = vld [vmem:[%s2526 + $0x141] sm:$0xff]
        %v2998 = vld [vmem:[%s2526 + $0x151] sm:$0xff]
        %v2999 = vld [vmem:[%s2526 + $0x161] sm:$0xff]
        %v3000 = vld [vmem:[%s2526 + $0x171] sm:$0xff]
        %v3001 = vld [vmem:[%s2526 + $0x181] sm:$0xff]
        %v3002 = vld [vmem:[%s2526 + $0x191] sm:$0xff]
        %v3003 = vld [vmem:[%s2526 + $0x1a1] sm:$0xff]
        %v3004 = vld [vmem:[%s2526 + $0x1b1] sm:$0xff]
        %v3005 = vld [vmem:[%s2526 + $0x1e1] sm:$0xff]
        %v3006 = vld [vmem:[%s2526 + $0x1f1] sm:$0xff]
        %v3007 = vld [vmem:[%s2526 + $0x201] sm:$0xff]
        %v3008 = vld [vmem:[%s2526 + $0x211] sm:$0xff]
        %v3009 = vld [vmem:[%s2526 + $0x221] sm:$0xff]
        %v3010 = vld [vmem:[%s2526 + $0x231] sm:$0xff]
        %v3011 = vld [vmem:[%s2526 + $0x241] sm:$0xff]
        %v3012 = vld [vmem:[%s2526 + $0x251] sm:$0xff]
        %v3013 = vld [vmem:[#allocation2] sm:$0xff]
        %v3014 = vld [vmem:[#allocation2 + $0x8] sm:$0xff]
        %v3015 = vld [vmem:[#allocation2 + $0x10] sm:$0xff]
        %v3016 = vld [vmem:[#allocation2 + $0x18] sm:$0xff]
        %v3017 = vld [vmem:[#allocation2 + $0x20] sm:$0xff]
        %v3018 = vld [vmem:[#allocation2 + $0x28] sm:$0xff]
        %v3019 = vld [vmem:[#allocation2 + $0x30] sm:$0xff]
        %v3020 = vld [vmem:[#allocation2 + $0x38] sm:$0xff]
        %v3021 = vld [vmem:[#allocation2 + $0x40] sm:$0xff]
        %v3022 = vld [vmem:[#allocation2 + $0x48] sm:$0xff]
        %v3023 = vld [vmem:[#allocation2 + $0x50] sm:$0xff]
        %v3024 = vld [vmem:[#allocation2 + $0x58] sm:$0xff]
        %v3025 = vld [vmem:[#allocation2 + $0x60] sm:$0xff]
        %v3026 = vld [vmem:[#allocation2 + $0x68] sm:$0xff]
        %v3027 = vld [vmem:[#allocation2 + $0x70] sm:$0xff]
        %v3028 = vld [vmem:[#allocation2 + $0x78] sm:$0xff]
        %v3029 = vld [vmem:[#allocation2 + $0x80] sm:$0xff]
        %v3030 = vld [vmem:[#allocation2 + $0x88] sm:$0xff]
        %v3031 = vld [vmem:[#allocation2 + $0x90] sm:$0xff]
        %v3032 = vld [vmem:[#allocation2 + $0x98] sm:$0xff]
        %v3033 = vld [vmem:[#allocation2 + $0xa0] sm:$0xff]
        %v3034 = vld [vmem:[#allocation2 + $0xa8] sm:$0xff]
        %v3035 = vld [vmem:[#allocation2 + $0xb0] sm:$0xff]
        %v3036 = vld [vmem:[#allocation2 + $0xb8] sm:$0xff]
        %v3037 = vld [vmem:[#allocation2 + $0xc0] sm:$0xff]
        %v3038 = vld [vmem:[#allocation2 + $0xc8] sm:$0xff]
        %v3039 = vld [vmem:[#allocation2 + $0xd0] sm:$0xff]
        %v3040 = vld [vmem:[#allocation2 + $0xd8] sm:$0xff]
        %v3041 = vld [vmem:[#allocation2 + $0xe0] sm:$0xff]
        %v3042 = vld [vmem:[#allocation2 + $0xe8] sm:$0xff]
        %v3043 = vld [vmem:[#allocation2 + $0xf0] sm:$0xff]
        %v3044 = vld [vmem:[#allocation2 + $0xf8] sm:$0xff]
        %s3045 = scalar_lea.vmem %s210, 24
        %v3046 = vld [vmem:[%s3045] sm:$0xf]
        %v3048 = vsel %vm318, %v2981, 0
        %v3051 = vsel %vm318, %v2982, 0
        %v3054 = vsel %vm318, %v2983, 0
        %v3057 = vsel %vm318, %v2984, 0
        %v3060 = vsel %vm318, %v2985, 0
        %v3063 = vsel %vm318, %v2986, 0
        %v3066 = vsel %vm318, %v2987, 0
        %v3069 = vsel %vm318, %v2988, 0
        %v3072 = vsel %vm318, %v2989, 0
        %v3075 = vsel %vm318, %v2990, 0
        %v3078 = vsel %vm318, %v2991, 0
        %v3081 = vsel %vm318, %v2992, 0
        %v3084 = vsel %vm318, %v2993, 0
        %v3087 = vsel %vm318, %v2994, 0
        %v3090 = vsel %vm318, %v2995, 0
        %v3093 = vsel %vm318, %v2996, 0
        %v3096 = vsel %vm318, %v2997, 0
        %v3099 = vsel %vm318, %v2998, 0
        %v3102 = vsel %vm318, %v2999, 0
        %v3105 = vsel %vm318, %v3000, 0
        %v3108 = vsel %vm318, %v3001, 0
        %v3111 = vsel %vm318, %v3002, 0
        %v3114 = vsel %vm318, %v3003, 0
        %v3117 = vsel %vm318, %v3004, 0
        %v3120 = vsel %vm318, %v3005, 0
        %v3123 = vsel %vm318, %v3006, 0
        %v3126 = vsel %vm318, %v3007, 0
        %v3129 = vsel %vm318, %v3008, 0
        %v3132 = vsel %vm318, %v3009, 0
        %v3135 = vsel %vm318, %v3010, 0
        %v3138 = vsel %vm318, %v3011, 0
        %v3141 = vsel %vm318, %v3012, 0
        %v3144 = vsel %vm415, %v3046, 0
        %3146 = vmatprep.subr.mxu0 0.0
        %3147 = vmatpush1.msra.mxu0 %v3144
        %3148 = vmatprep.subr.mxu0 0.0
        %3149 = vmatpush1.msra.mxu0 0.0
        %3150 = vmatprep.subr.mxu0 0.0
        %3151 = vmatpush1.msra.mxu0 0.0
        %3152 = vmatprep.subr.mxu0 0.0
        %3153 = vmatpush1.msra.mxu0 0.0
        %3154 = vmatprep.subr.mxu0 0.0
        %3155 = vmatpush1.msra.mxu0 0.0
        %3156 = vmatprep.subr.mxu0 0.0
        %3157 = vmatpush1.msra.mxu0 0.0
        %3158 = vmatprep.subr.mxu0 0.0
        %3159 = vmatpush1.msra.mxu0 0.0
        %3160 = vmatprep.subr.mxu0 0.0
        %3161 = vmatpush1.msra.mxu0 0.0
        %3162 = vmatprep.subr.mxu0 0.0
        %3163 = vmatpush1.msra.mxu0 0.0
        %3164 = vmatprep.subr.mxu0 0.0
        %3165 = vmatpush1.msra.mxu0 0.0
        %3166 = vmatprep.subr.mxu0 0.0
        %3167 = vmatpush1.msra.mxu0 0.0
        %3168 = vmatprep.subr.mxu0 0.0
        %3169 = vmatpush1.msra.mxu0 0.0
        %3170 = vmatprep.subr.mxu0 0.0
        %3171 = vmatpush1.msra.mxu0 0.0
        %3172 = vmatprep.subr.mxu0 0.0
        %3173 = vmatpush1.msra.mxu0 0.0
        %3174 = vmatprep.subr.mxu0 0.0
        %3175 = vmatpush1.msra.mxu0 0.0
        %3176 = vmatprep.subr.mxu0 0.0
        %3177 = vmatpush1.msra.mxu0 0.0
        %3178 = vmatprep.subr.mxu0 0.0
        %3179 = vmatpush1.msra.mxu0 0.0
        %3180 = vmatprep.subr.mxu0 0.0
        %3181 = vmatpush1.msra.mxu0 0.0
        %3182 = vmatprep.subr.mxu0 0.0
        %3183 = vmatpush1.msra.mxu0 0.0
        %3184 = vmatprep.subr.mxu0 0.0
        %3185 = vmatpush1.msra.mxu0 0.0
        %3186 = vmatprep.subr.mxu0 0.0
        %3187 = vmatpush1.msra.mxu0 0.0
        %3188 = vmatprep.subr.mxu0 0.0
        %3189 = vmatpush1.msra.mxu0 0.0
        %3190 = vmatprep.subr.mxu0 0.0
        %3191 = vmatpush1.msra.mxu0 0.0
        %3192 = vmatprep.subr.mxu0 0.0
        %3193 = vmatpush1.msra.mxu0 0.0
        %3194 = vmatprep.subr.mxu0 0.0
        %3195 = vmatpush1.msra.mxu0 0.0
        %3196 = vmatprep.subr.mxu0 0.0
        %3197 = vmatpush1.msra.mxu0 0.0
        %3198 = vmatprep.subr.mxu0 0.0
        %3199 = vmatpush1.msra.mxu0 0.0
        %3200 = vmatprep.subr.mxu0 0.0
        %3201 = vmatpush1.msra.mxu0 0.0
        %3202 = vmatprep.subr.mxu0 0.0
        %3203 = vmatpush1.msra.mxu0 0.0
        %3204 = vmatprep.subr.mxu0 0.0
        %3205 = vmatpush1.msra.mxu0 0.0
        %3206 = vmatprep.subr.mxu0 0.0
        %3207 = vmatpush1.msra.mxu0 0.0
        %3208 = vmatprep.subr.mxu0 0.0
        %3209 = vmatpush1.msra.mxu0 0.0
        %3210 = vmatprep.mubr.f32.mxu0 0.0
        %3211 = vmatmul.mubr.f32.gmra.mrb[0].mxu0 %v3048
        %v3212 = vpop.f32.mrb[0].mxu0
        %v3213 = vadd.f32 0.0, %v3212
        %v3214 = vpop.f32.mrb[0].mxu0
        %3215 = vmatprep.mubr.f32.mxu0 0.0
        %3216 = vmatmul.mubr.f32.gmra.mrb[0].mxu0 %v3051
        %v3217 = vpop.f32.mrb[0].mxu0
        %v3218 = vadd.f32 0.0, %v3217
        %v3219 = vpop.f32.mrb[0].mxu0
        %3220 = vmatprep.mubr.f32.mxu0 0.0
        %3221 = vmatmul.mubr.f32.gmra.mrb[0].mxu0 %v3054
        %v3222 = vpop.f32.mrb[0].mxu0
        %v3223 = vadd.f32 0.0, %v3222
        %v3224 = vpop.f32.mrb[0].mxu0
        %3225 = vmatprep.mubr.f32.mxu0 0.0
        %3226 = vmatmul.mubr.f32.gmra.mrb[0].mxu0 %v3057
        %v3227 = vpop.f32.mrb[0].mxu0
        %v3228 = vadd.f32 0.0, %v3227
        %v3229 = vpop.f32.mrb[0].mxu0
        %3230 = vmatprep.mubr.f32.mxu0 0.0
        %3231 = vmatmul.mubr.f32.gmra.mrb[0].mxu0 %v3060
        %v3232 = vpop.f32.mrb[0].mxu0
        %v3233 = vadd.f32 0.0, %v3232
        %v3234 = vpop.f32.mrb[0].mxu0
        %3235 = vmatprep.mubr.f32.mxu0 0.0
        %3236 = vmatmul.mubr.f32.gmra.mrb[0].mxu0 %v3063
        %v3237 = vpop.f32.mrb[0].mxu0
        %v3238 = vadd.f32 0.0, %v3237
        %v3239 = vpop.f32.mrb[0].mxu0
        %3240 = vmatprep.mubr.f32.mxu0 0.0
        %3241 = vmatmul.mubr.f32.gmra.mrb[0].mxu0 %v3066
        %v3242 = vpop.f32.mrb[0].mxu0
        %v3243 = vadd.f32 0.0, %v3242
        %v3244 = vpop.f32.mrb[0].mxu0
        %3245 = vmatprep.mubr.f32.mxu0 0.0
        %3246 = vmatmul.mubr.f32.gmra.mrb[0].mxu0 %v3069
        %v3247 = vpop.f32.mrb[0].mxu0
        %v3248 = vadd.f32 0.0, %v3247
        %v3249 = vpop.f32.mrb[0].mxu0
        %3250 = vmatprep.mubr.f32.mxu0 0.0
        %3251 = vmatmul.mubr.f32.gmra.mrb[0].mxu0 %v3072
        %v3252 = vpop.f32.mrb[0].mxu0
        %v3253 = vadd.f32 0.0, %v3252
        %v3254 = vpop.f32.mrb[0].mxu0
        %3255 = vmatprep.mubr.f32.mxu0 0.0
        %3256 = vmatmul.mubr.f32.gmra.mrb[0].mxu0 %v3075
        %v3257 = vpop.f32.mrb[0].mxu0
        %v3258 = vadd.f32 0.0, %v3257
        %v3259 = vpop.f32.mrb[0].mxu0
        %3260 = vmatprep.mubr.f32.mxu0 0.0
        %3261 = vmatmul.mubr.f32.gmra.mrb[0].mxu0 %v3078
        %v3262 = vpop.f32.mrb[0].mxu0
        %v3263 = vadd.f32 0.0, %v3262
        %v3264 = vpop.f32.mrb[0].mxu0
        %3265 = vmatprep.mubr.f32.mxu0 0.0
        %3266 = vmatmul.mubr.f32.gmra.mrb[0].mxu0 %v3081
        %v3267 = vpop.f32.mrb[0].mxu0
        %v3268 = vadd.f32 0.0, %v3267
        %v3269 = vpop.f32.mrb[0].mxu0
        %3270 = vmatprep.mubr.f32.mxu0 0.0
        %3271 = vmatmul.mubr.f32.gmra.mrb[0].mxu0 %v3084
        %v3272 = vpop.f32.mrb[0].mxu0
        %v3273 = vadd.f32 0.0, %v3272
        %v3274 = vpop.f32.mrb[0].mxu0
        %3275 = vmatprep.mubr.f32.mxu0 0.0
        %3276 = vmatmul.mubr.f32.gmra.mrb[0].mxu0 %v3087
        %v3277 = vpop.f32.mrb[0].mxu0
        %v3278 = vadd.f32 0.0, %v3277
        %v3279 = vpop.f32.mrb[0].mxu0
        %3280 = vmatprep.mubr.f32.mxu0 0.0
        %3281 = vmatmul.mubr.f32.gmra.mrb[0].mxu0 %v3090
        %v3282 = vpop.f32.mrb[0].mxu0
        %v3283 = vadd.f32 0.0, %v3282
        %v3284 = vpop.f32.mrb[0].mxu0
        %3285 = vmatprep.mubr.f32.mxu0 0.0
        %3286 = vmatmul.mubr.f32.gmra.mrb[0].mxu0 %v3093
        %v3287 = vpop.f32.mrb[0].mxu0
        %v3288 = vadd.f32 0.0, %v3287
        %v3289 = vpop.f32.mrb[0].mxu0
        %3290 = vmatprep.mubr.f32.mxu0 0.0
        %3291 = vmatmul.mubr.f32.gmra.mrb[0].mxu0 %v3096
        %v3292 = vpop.f32.mrb[0].mxu0
        %v3293 = vadd.f32 0.0, %v3292
        %v3294 = vpop.f32.mrb[0].mxu0
        %3295 = vmatprep.mubr.f32.mxu0 0.0
        %3296 = vmatmul.mubr.f32.gmra.mrb[0].mxu0 %v3099
        %v3297 = vpop.f32.mrb[0].mxu0
        %v3298 = vadd.f32 0.0, %v3297
        %v3299 = vpop.f32.mrb[0].mxu0
        %3300 = vmatprep.mubr.f32.mxu0 0.0
        %3301 = vmatmul.mubr.f32.gmra.mrb[0].mxu0 %v3102
        %v3302 = vpop.f32.mrb[0].mxu0
        %v3303 = vadd.f32 0.0, %v3302
        %v3304 = vpop.f32.mrb[0].mxu0
        %3305 = vmatprep.mubr.f32.mxu0 0.0
        %3306 = vmatmul.mubr.f32.gmra.mrb[0].mxu0 %v3105
        %v3307 = vpop.f32.mrb[0].mxu0
        %v3308 = vadd.f32 0.0, %v3307
        %v3309 = vpop.f32.mrb[0].mxu0
        %3310 = vmatprep.mubr.f32.mxu0 0.0
        %3311 = vmatmul.mubr.f32.gmra.mrb[0].mxu0 %v3108
        %v3312 = vpop.f32.mrb[0].mxu0
        %v3313 = vadd.f32 0.0, %v3312
        %v3314 = vpop.f32.mrb[0].mxu0
        %3315 = vmatprep.mubr.f32.mxu0 0.0
        %3316 = vmatmul.mubr.f32.gmra.mrb[0].mxu0 %v3111
        %v3317 = vpop.f32.mrb[0].mxu0
        %v3318 = vadd.f32 0.0, %v3317
        %v3319 = vpop.f32.mrb[0].mxu0
        %3320 = vmatprep.mubr.f32.mxu0 0.0
        %3321 = vmatmul.mubr.f32.gmra.mrb[0].mxu0 %v3114
        %v3322 = vpop.f32.mrb[0].mxu0
        %v3323 = vadd.f32 0.0, %v3322
        %v3324 = vpop.f32.mrb[0].mxu0
        %3325 = vmatprep.mubr.f32.mxu0 0.0
        %3326 = vmatmul.mubr.f32.gmra.mrb[0].mxu0 %v3117
        %v3327 = vpop.f32.mrb[0].mxu0
        %v3328 = vadd.f32 0.0, %v3327
        %v3329 = vpop.f32.mrb[0].mxu0
        %3330 = vmatprep.mubr.f32.mxu0 0.0
        %3331 = vmatmul.mubr.f32.gmra.mrb[0].mxu0 %v3120
        %v3332 = vpop.f32.mrb[0].mxu0
        %v3333 = vadd.f32 0.0, %v3332
        %v3334 = vpop.f32.mrb[0].mxu0
        %3335 = vmatprep.mubr.f32.mxu0 0.0
        %3336 = vmatmul.mubr.f32.gmra.mrb[0].mxu0 %v3123
        %v3337 = vpop.f32.mrb[0].mxu0
        %v3338 = vadd.f32 0.0, %v3337
        %v3339 = vpop.f32.mrb[0].mxu0
        %3340 = vmatprep.mubr.f32.mxu0 0.0
        %3341 = vmatmul.mubr.f32.gmra.mrb[0].mxu0 %v3126
        %v3342 = vpop.f32.mrb[0].mxu0
        %v3343 = vadd.f32 0.0, %v3342
        %v3344 = vpop.f32.mrb[0].mxu0
        %3345 = vmatprep.mubr.f32.mxu0 0.0
        %3346 = vmatmul.mubr.f32.gmra.mrb[0].mxu0 %v3129
        %v3347 = vpop.f32.mrb[0].mxu0
        %v3348 = vadd.f32 0.0, %v3347
        %v3349 = vpop.f32.mrb[0].mxu0
        %3350 = vmatprep.mubr.f32.mxu0 0.0
        %3351 = vmatmul.mubr.f32.gmra.mrb[0].mxu0 %v3132
        %v3352 = vpop.f32.mrb[0].mxu0
        %v3353 = vadd.f32 0.0, %v3352
        %v3354 = vpop.f32.mrb[0].mxu0
        %3355 = vmatprep.mubr.f32.mxu0 0.0
        %3356 = vmatmul.mubr.f32.gmra.mrb[0].mxu0 %v3135
        %v3357 = vpop.f32.mrb[0].mxu0
        %v3358 = vadd.f32 0.0, %v3357
        %v3359 = vpop.f32.mrb[0].mxu0
        %3360 = vmatprep.mubr.f32.mxu0 0.0
        %3361 = vmatmul.mubr.f32.gmra.mrb[0].mxu0 %v3138
        %v3362 = vpop.f32.mrb[0].mxu0
        %v3363 = vadd.f32 0.0, %v3362
        %v3364 = vpop.f32.mrb[0].mxu0
        %3365 = vmatprep.mubr.f32.mxu0 0.0
        %3366 = vmatmul.mubr.f32.gmra.mrb[0].mxu0 %v3141
        %v3367 = vpop.f32.mrb[0].mxu0
        %v3368 = vadd.f32 0.0, %v3367
        %v3369 = vpop.f32.mrb[0].mxu0
        %3370 = vdwg.mxu0
        %v3371 = vadd.f32 %v3013, %v3213
        %v3372 = vadd.f32 %v3014, %v3218
        %v3373 = vadd.f32 %v3015, %v3223
        %v3374 = vadd.f32 %v3016, %v3228
        %v3375 = vadd.f32 %v3017, %v3233
        %v3376 = vadd.f32 %v3018, %v3238
        %v3377 = vadd.f32 %v3019, %v3243
        %v3378 = vadd.f32 %v3020, %v3248
        %v3379 = vadd.f32 %v3021, %v3253
        %v3380 = vadd.f32 %v3022, %v3258
        %v3381 = vadd.f32 %v3023, %v3263
        %v3382 = vadd.f32 %v3024, %v3268
        %v3383 = vadd.f32 %v3025, %v3273
        %v3384 = vadd.f32 %v3026, %v3278
        %v3385 = vadd.f32 %v3027, %v3283
        %v3386 = vadd.f32 %v3028, %v3288
        %v3387 = vadd.f32 %v3029, %v3293
        %v3388 = vadd.f32 %v3030, %v3298
        %v3389 = vadd.f32 %v3031, %v3303
        %v3390 = vadd.f32 %v3032, %v3308
        %v3391 = vadd.f32 %v3033, %v3313
        %v3392 = vadd.f32 %v3034, %v3318
        %v3393 = vadd.f32 %v3035, %v3323
        %v3394 = vadd.f32 %v3036, %v3328
        %v3395 = vadd.f32 %v3037, %v3333
        %v3396 = vadd.f32 %v3038, %v3338
        %v3397 = vadd.f32 %v3039, %v3343
        %v3398 = vadd.f32 %v3040, %v3348
        %v3399 = vadd.f32 %v3041, %v3353
        %v3400 = vadd.f32 %v3042, %v3358
        %v3401 = vadd.f32 %v3043, %v3363
        %v3402 = vadd.f32 %v3044, %v3368
        %3403 = vst [vmem:[#allocation2] sm:$0xff] %v3371
        %3404 = vst [vmem:[#allocation2 + $0x8] sm:$0xff] %v3372
        %3405 = vst [vmem:[#allocation2 + $0x10] sm:$0xff] %v3373
        %3406 = vst [vmem:[#allocation2 + $0x18] sm:$0xff] %v3374
        %3407 = vst [vmem:[#allocation2 + $0x20] sm:$0xff] %v3375
        %3408 = vst [vmem:[#allocation2 + $0x28] sm:$0xff] %v3376
        %3409 = vst [vmem:[#allocation2 + $0x30] sm:$0xff] %v3377
        %3410 = vst [vmem:[#allocation2 + $0x38] sm:$0xff] %v3378
        %3411 = vst [vmem:[#allocation2 + $0x40] sm:$0xff] %v3379
        %3412 = vst [vmem:[#allocation2 + $0x48] sm:$0xff] %v3380
        %3413 = vst [vmem:[#allocation2 + $0x50] sm:$0xff] %v3381
        %3414 = vst [vmem:[#allocation2 + $0x58] sm:$0xff] %v3382
        %3415 = vst [vmem:[#allocation2 + $0x60] sm:$0xff] %v3383
        %3416 = vst [vmem:[#allocation2 + $0x68] sm:$0xff] %v3384
        %3417 = vst [vmem:[#allocation2 + $0x70] sm:$0xff] %v3385
        %3418 = vst [vmem:[#allocation2 + $0x78] sm:$0xff] %v3386
        %3419 = vst [vmem:[#allocation2 + $0x80] sm:$0xff] %v3387
        %3420 = vst [vmem:[#allocation2 + $0x88] sm:$0xff] %v3388
        %3421 = vst [vmem:[#allocation2 + $0x90] sm:$0xff] %v3389
        %3422 = vst [vmem:[#allocation2 + $0x98] sm:$0xff] %v3390
        %3423 = vst [vmem:[#allocation2 + $0xa0] sm:$0xff] %v3391
        %3424 = vst [vmem:[#allocation2 + $0xa8] sm:$0xff] %v3392
        %3425 = vst [vmem:[#allocation2 + $0xb0] sm:$0xff] %v3393
        %3426 = vst [vmem:[#allocation2 + $0xb8] sm:$0xff] %v3394
        %3427 = vst [vmem:[#allocation2 + $0xc0] sm:$0xff] %v3395
        %3428 = vst [vmem:[#allocation2 + $0xc8] sm:$0xff] %v3396
        %3429 = vst [vmem:[#allocation2 + $0xd0] sm:$0xff] %v3397
        %3430 = vst [vmem:[#allocation2 + $0xd8] sm:$0xff] %v3398
        %3431 = vst [vmem:[#allocation2 + $0xe0] sm:$0xff] %v3399
        %3432 = vst [vmem:[#allocation2 + $0xe8] sm:$0xff] %v3400
        %3433 = vst [vmem:[#allocation2 + $0xf0] sm:$0xff] %v3401
        %3434 = vst [vmem:[#allocation2 + $0xf8] sm:$0xff] %v3402
        %v3435 = vld [vmem:[%s2526 + $0x2] sm:$0xff]
        %v3436 = vld [vmem:[%s2526 + $0x12] sm:$0xff]
        %v3437 = vld [vmem:[%s2526 + $0x22] sm:$0xff]
        %v3438 = vld [vmem:[%s2526 + $0x32] sm:$0xff]
        %v3439 = vld [vmem:[%s2526 + $0x42] sm:$0xff]
        %v3440 = vld [vmem:[%s2526 + $0x52] sm:$0xff]
        %v3441 = vld [vmem:[%s2526 + $0x62] sm:$0xff]
        %v3442 = vld [vmem:[%s2526 + $0x72] sm:$0xff]
        %v3443 = vld [vmem:[%s2526 + $0xa2] sm:$0xff]
        %v3444 = vld [vmem:[%s2526 + $0xb2] sm:$0xff]
        %v3445 = vld [vmem:[%s2526 + $0xc2] sm:$0xff]
        %v3446 = vld [vmem:[%s2526 + $0xd2] sm:$0xff]
        %v3447 = vld [vmem:[%s2526 + $0xe2] sm:$0xff]
        %v3448 = vld [vmem:[%s2526 + $0xf2] sm:$0xff]
        %v3449 = vld [vmem:[%s2526 + $0x102] sm:$0xff]
        %v3450 = vld [vmem:[%s2526 + $0x112] sm:$0xff]
        %v3451 = vld [vmem:[%s2526 + $0x142] sm:$0xff]
        %v3452 = vld [vmem:[%s2526 + $0x152] sm:$0xff]
        %v3453 = vld [vmem:[%s2526 + $0x162] sm:$0xff]
        %v3454 = vld [vmem:[%s2526 + $0x172] sm:$0xff]
        %v3455 = vld [vmem:[%s2526 + $0x182] sm:$0xff]
        %v3456 = vld [vmem:[%s2526 + $0x192] sm:$0xff]
        %v3457 = vld [vmem:[%s2526 + $0x1a2] sm:$0xff]
        %v3458 = vld [vmem:[%s2526 + $0x1b2] sm:$0xff]
        %v3459 = vld [vmem:[%s2526 + $0x1e2] sm:$0xff]
        %v3460 = vld [vmem:[%s2526 + $0x1f2] sm:$0xff]
        %v3461 = vld [vmem:[%s2526 + $0x202] sm:$0xff]
        %v3462 = vld [vmem:[%s2526 + $0x212] sm:$0xff]
        %v3463 = vld [vmem:[%s2526 + $0x222] sm:$0xff]
        %v3464 = vld [vmem:[%s2526 + $0x232] sm:$0xff]
        %v3465 = vld [vmem:[%s2526 + $0x242] sm:$0xff]
        %v3466 = vld [vmem:[%s2526 + $0x252] sm:$0xff]
        %v3467 = vld [vmem:[#allocation2] sm:$0xff]
        %v3468 = vld [vmem:[#allocation2 + $0x8] sm:$0xff]
        %v3469 = vld [vmem:[#allocation2 + $0x10] sm:$0xff]
        %v3470 = vld [vmem:[#allocation2 + $0x18] sm:$0xff]
        %v3471 = vld [vmem:[#allocation2 + $0x20] sm:$0xff]
        %v3472 = vld [vmem:[#allocation2 + $0x28] sm:$0xff]
        %v3473 = vld [vmem:[#allocation2 + $0x30] sm:$0xff]
        %v3474 = vld [vmem:[#allocation2 + $0x38] sm:$0xff]
        %v3475 = vld [vmem:[#allocation2 + $0x40] sm:$0xff]
        %v3476 = vld [vmem:[#allocation2 + $0x48] sm:$0xff]
        %v3477 = vld [vmem:[#allocation2 + $0x50] sm:$0xff]
        %v3478 = vld [vmem:[#allocation2 + $0x58] sm:$0xff]
        %v3479 = vld [vmem:[#allocation2 + $0x60] sm:$0xff]
        %v3480 = vld [vmem:[#allocation2 + $0x68] sm:$0xff]
        %v3481 = vld [vmem:[#allocation2 + $0x70] sm:$0xff]
        %v3482 = vld [vmem:[#allocation2 + $0x78] sm:$0xff]
        %v3483 = vld [vmem:[#allocation2 + $0x80] sm:$0xff]
        %v3484 = vld [vmem:[#allocation2 + $0x88] sm:$0xff]
        %v3485 = vld [vmem:[#allocation2 + $0x90] sm:$0xff]
        %v3486 = vld [vmem:[#allocation2 + $0x98] sm:$0xff]
        %v3487 = vld [vmem:[#allocation2 + $0xa0] sm:$0xff]
        %v3488 = vld [vmem:[#allocation2 + $0xa8] sm:$0xff]
        %v3489 = vld [vmem:[#allocation2 + $0xb0] sm:$0xff]
        %v3490 = vld [vmem:[#allocation2 + $0xb8] sm:$0xff]
        %v3491 = vld [vmem:[#allocation2 + $0xc0] sm:$0xff]
        %v3492 = vld [vmem:[#allocation2 + $0xc8] sm:$0xff]
        %v3493 = vld [vmem:[#allocation2 + $0xd0] sm:$0xff]
        %v3494 = vld [vmem:[#allocation2 + $0xd8] sm:$0xff]
        %v3495 = vld [vmem:[#allocation2 + $0xe0] sm:$0xff]
        %v3496 = vld [vmem:[#allocation2 + $0xe8] sm:$0xff]
        %v3497 = vld [vmem:[#allocation2 + $0xf0] sm:$0xff]
        %v3498 = vld [vmem:[#allocation2 + $0xf8] sm:$0xff]
        %s3499 = scalar_lea.vmem %s210, 28
        %v3500 = vld [vmem:[%s3499] sm:$0xf]
        %v3502 = vsel %vm318, %v3435, 0
        %v3505 = vsel %vm318, %v3436, 0
        %v3508 = vsel %vm318, %v3437, 0
        %v3511 = vsel %vm318, %v3438, 0
        %v3514 = vsel %vm318, %v3439, 0
        %v3517 = vsel %vm318, %v3440, 0
        %v3520 = vsel %vm318, %v3441, 0
        %v3523 = vsel %vm318, %v3442, 0
        %v3526 = vsel %vm318, %v3443, 0
        %v3529 = vsel %vm318, %v3444, 0
        %v3532 = vsel %vm318, %v3445, 0
        %v3535 = vsel %vm318, %v3446, 0
        %v3538 = vsel %vm318, %v3447, 0
        %v3541 = vsel %vm318, %v3448, 0
        %v3544 = vsel %vm318, %v3449, 0
        %v3547 = vsel %vm318, %v3450, 0
        %v3550 = vsel %vm318, %v3451, 0
        %v3553 = vsel %vm318, %v3452, 0
        %v3556 = vsel %vm318, %v3453, 0
        %v3559 = vsel %vm318, %v3454, 0
        %v3562 = vsel %vm318, %v3455, 0
        %v3565 = vsel %vm318, %v3456, 0
        %v3568 = vsel %vm318, %v3457, 0
        %v3571 = vsel %vm318, %v3458, 0
        %v3574 = vsel %vm318, %v3459, 0
        %v3577 = vsel %vm318, %v3460, 0
        %v3580 = vsel %vm318, %v3461, 0
        %v3583 = vsel %vm318, %v3462, 0
        %v3586 = vsel %vm318, %v3463, 0
        %v3589 = vsel %vm318, %v3464, 0
        %v3592 = vsel %vm318, %v3465, 0
        %v3595 = vsel %vm318, %v3466, 0
        %v3598 = vsel %vm415, %v3500, 0
        %3600 = vmatprep.subr.mxu0 0.0
        %3601 = vmatpush1.msra.mxu0 %v3598
        %3602 = vmatprep.subr.mxu0 0.0
        %3603 = vmatpush1.msra.mxu0 0.0
        %3604 = vmatprep.subr.mxu0 0.0
        %3605 = vmatpush1.msra.mxu0 0.0
        %3606 = vmatprep.subr.mxu0 0.0
        %3607 = vmatpush1.msra.mxu0 0.0
        %3608 = vmatprep.subr.mxu0 0.0
        %3609 = vmatpush1.msra.mxu0 0.0
        %3610 = vmatprep.subr.mxu0 0.0
        %3611 = vmatpush1.msra.mxu0 0.0
        %3612 = vmatprep.subr.mxu0 0.0
        %3613 = vmatpush1.msra.mxu0 0.0
        %3614 = vmatprep.subr.mxu0 0.0
        %3615 = vmatpush1.msra.mxu0 0.0
        %3616 = vmatprep.subr.mxu0 0.0
        %3617 = vmatpush1.msra.mxu0 0.0
        %3618 = vmatprep.subr.mxu0 0.0
        %3619 = vmatpush1.msra.mxu0 0.0
        %3620 = vmatprep.subr.mxu0 0.0
        %3621 = vmatpush1.msra.mxu0 0.0
        %3622 = vmatprep.subr.mxu0 0.0
        %3623 = vmatpush1.msra.mxu0 0.0
        %3624 = vmatprep.subr.mxu0 0.0
        %3625 = vmatpush1.msra.mxu0 0.0
        %3626 = vmatprep.subr.mxu0 0.0
        %3627 = vmatpush1.msra.mxu0 0.0
        %3628 = vmatprep.subr.mxu0 0.0
        %3629 = vmatpush1.msra.mxu0 0.0
        %3630 = vmatprep.subr.mxu0 0.0
        %3631 = vmatpush1.msra.mxu0 0.0
        %3632 = vmatprep.subr.mxu0 0.0
        %3633 = vmatpush1.msra.mxu0 0.0
        %3634 = vmatprep.subr.mxu0 0.0
        %3635 = vmatpush1.msra.mxu0 0.0
        %3636 = vmatprep.subr.mxu0 0.0
        %3637 = vmatpush1.msra.mxu0 0.0
        %3638 = vmatprep.subr.mxu0 0.0
        %3639 = vmatpush1.msra.mxu0 0.0
        %3640 = vmatprep.subr.mxu0 0.0
        %3641 = vmatpush1.msra.mxu0 0.0
        %3642 = vmatprep.subr.mxu0 0.0
        %3643 = vmatpush1.msra.mxu0 0.0
        %3644 = vmatprep.subr.mxu0 0.0
        %3645 = vmatpush1.msra.mxu0 0.0
        %3646 = vmatprep.subr.mxu0 0.0
        %3647 = vmatpush1.msra.mxu0 0.0
        %3648 = vmatprep.subr.mxu0 0.0
        %3649 = vmatpush1.msra.mxu0 0.0
        %3650 = vmatprep.subr.mxu0 0.0
        %3651 = vmatpush1.msra.mxu0 0.0
        %3652 = vmatprep.subr.mxu0 0.0
        %3653 = vmatpush1.msra.mxu0 0.0
        %3654 = vmatprep.subr.mxu0 0.0
        %3655 = vmatpush1.msra.mxu0 0.0
        %3656 = vmatprep.subr.mxu0 0.0
        %3657 = vmatpush1.msra.mxu0 0.0
        %3658 = vmatprep.subr.mxu0 0.0
        %3659 = vmatpush1.msra.mxu0 0.0
        %3660 = vmatprep.subr.mxu0 0.0
        %3661 = vmatpush1.msra.mxu0 0.0
        %3662 = vmatprep.subr.mxu0 0.0
        %3663 = vmatpush1.msra.mxu0 0.0
        %3664 = vmatprep.mubr.f32.mxu0 0.0
        %3665 = vmatmul.mubr.f32.gmra.mrb[0].mxu0 %v3502
        %v3666 = vpop.f32.mrb[0].mxu0
        %v3667 = vadd.f32 0.0, %v3666
        %v3668 = vpop.f32.mrb[0].mxu0
        %3669 = vmatprep.mubr.f32.mxu0 0.0
        %3670 = vmatmul.mubr.f32.gmra.mrb[0].mxu0 %v3505
        %v3671 = vpop.f32.mrb[0].mxu0
        %v3672 = vadd.f32 0.0, %v3671
        %v3673 = vpop.f32.mrb[0].mxu0
        %3674 = vmatprep.mubr.f32.mxu0 0.0
        %3675 = vmatmul.mubr.f32.gmra.mrb[0].mxu0 %v3508
        %v3676 = vpop.f32.mrb[0].mxu0
        %v3677 = vadd.f32 0.0, %v3676
        %v3678 = vpop.f32.mrb[0].mxu0
        %3679 = vmatprep.mubr.f32.mxu0 0.0
        %3680 = vmatmul.mubr.f32.gmra.mrb[0].mxu0 %v3511
        %v3681 = vpop.f32.mrb[0].mxu0
        %v3682 = vadd.f32 0.0, %v3681
        %v3683 = vpop.f32.mrb[0].mxu0
        %3684 = vmatprep.mubr.f32.mxu0 0.0
        %3685 = vmatmul.mubr.f32.gmra.mrb[0].mxu0 %v3514
        %v3686 = vpop.f32.mrb[0].mxu0
        %v3687 = vadd.f32 0.0, %v3686
        %v3688 = vpop.f32.mrb[0].mxu0
        %3689 = vmatprep.mubr.f32.mxu0 0.0
        %3690 = vmatmul.mubr.f32.gmra.mrb[0].mxu0 %v3517
        %v3691 = vpop.f32.mrb[0].mxu0
        %v3692 = vadd.f32 0.0, %v3691
        %v3693 = vpop.f32.mrb[0].mxu0
        %3694 = vmatprep.mubr.f32.mxu0 0.0
        %3695 = vmatmul.mubr.f32.gmra.mrb[0].mxu0 %v3520
        %v3696 = vpop.f32.mrb[0].mxu0
        %v3697 = vadd.f32 0.0, %v3696
        %v3698 = vpop.f32.mrb[0].mxu0
        %3699 = vmatprep.mubr.f32.mxu0 0.0
        %3700 = vmatmul.mubr.f32.gmra.mrb[0].mxu0 %v3523
        %v3701 = vpop.f32.mrb[0].mxu0
        %v3702 = vadd.f32 0.0, %v3701
        %v3703 = vpop.f32.mrb[0].mxu0
        %3704 = vmatprep.mubr.f32.mxu0 0.0
        %3705 = vmatmul.mubr.f32.gmra.mrb[0].mxu0 %v3526
        %v3706 = vpop.f32.mrb[0].mxu0
        %v3707 = vadd.f32 0.0, %v3706
        %v3708 = vpop.f32.mrb[0].mxu0
        %3709 = vmatprep.mubr.f32.mxu0 0.0
        %3710 = vmatmul.mubr.f32.gmra.mrb[0].mxu0 %v3529
        %v3711 = vpop.f32.mrb[0].mxu0
        %v3712 = vadd.f32 0.0, %v3711
        %v3713 = vpop.f32.mrb[0].mxu0
        %3714 = vmatprep.mubr.f32.mxu0 0.0
        %3715 = vmatmul.mubr.f32.gmra.mrb[0].mxu0 %v3532
        %v3716 = vpop.f32.mrb[0].mxu0
        %v3717 = vadd.f32 0.0, %v3716
        %v3718 = vpop.f32.mrb[0].mxu0
        %3719 = vmatprep.mubr.f32.mxu0 0.0
        %3720 = vmatmul.mubr.f32.gmra.mrb[0].mxu0 %v3535
        %v3721 = vpop.f32.mrb[0].mxu0
        %v3722 = vadd.f32 0.0, %v3721
        %v3723 = vpop.f32.mrb[0].mxu0
        %3724 = vmatprep.mubr.f32.mxu0 0.0
        %3725 = vmatmul.mubr.f32.gmra.mrb[0].mxu0 %v3538
        %v3726 = vpop.f32.mrb[0].mxu0
        %v3727 = vadd.f32 0.0, %v3726
        %v3728 = vpop.f32.mrb[0].mxu0
        %3729 = vmatprep.mubr.f32.mxu0 0.0
        %3730 = vmatmul.mubr.f32.gmra.mrb[0].mxu0 %v3541
        %v3731 = vpop.f32.mrb[0].mxu0
        %v3732 = vadd.f32 0.0, %v3731
        %v3733 = vpop.f32.mrb[0].mxu0
        %3734 = vmatprep.mubr.f32.mxu0 0.0
        %3735 = vmatmul.mubr.f32.gmra.mrb[0].mxu0 %v3544
        %v3736 = vpop.f32.mrb[0].mxu0
        %v3737 = vadd.f32 0.0, %v3736
        %v3738 = vpop.f32.mrb[0].mxu0
        %3739 = vmatprep.mubr.f32.mxu0 0.0
        %3740 = vmatmul.mubr.f32.gmra.mrb[0].mxu0 %v3547
        %v3741 = vpop.f32.mrb[0].mxu0
        %v3742 = vadd.f32 0.0, %v3741
        %v3743 = vpop.f32.mrb[0].mxu0
        %3744 = vmatprep.mubr.f32.mxu0 0.0
        %3745 = vmatmul.mubr.f32.gmra.mrb[0].mxu0 %v3550
        %v3746 = vpop.f32.mrb[0].mxu0
        %v3747 = vadd.f32 0.0, %v3746
        %v3748 = vpop.f32.mrb[0].mxu0
        %3749 = vmatprep.mubr.f32.mxu0 0.0
        %3750 = vmatmul.mubr.f32.gmra.mrb[0].mxu0 %v3553
        %v3751 = vpop.f32.mrb[0].mxu0
        %v3752 = vadd.f32 0.0, %v3751
        %v3753 = vpop.f32.mrb[0].mxu0
        %3754 = vmatprep.mubr.f32.mxu0 0.0
        %3755 = vmatmul.mubr.f32.gmra.mrb[0].mxu0 %v3556
        %v3756 = vpop.f32.mrb[0].mxu0
        %v3757 = vadd.f32 0.0, %v3756
        %v3758 = vpop.f32.mrb[0].mxu0
        %3759 = vmatprep.mubr.f32.mxu0 0.0
        %3760 = vmatmul.mubr.f32.gmra.mrb[0].mxu0 %v3559
        %v3761 = vpop.f32.mrb[0].mxu0
        %v3762 = vadd.f32 0.0, %v3761
        %v3763 = vpop.f32.mrb[0].mxu0
        %3764 = vmatprep.mubr.f32.mxu0 0.0
        %3765 = vmatmul.mubr.f32.gmra.mrb[0].mxu0 %v3562
        %v3766 = vpop.f32.mrb[0].mxu0
        %v3767 = vadd.f32 0.0, %v3766
        %v3768 = vpop.f32.mrb[0].mxu0
        %3769 = vmatprep.mubr.f32.mxu0 0.0
        %3770 = vmatmul.mubr.f32.gmra.mrb[0].mxu0 %v3565
        %v3771 = vpop.f32.mrb[0].mxu0
        %v3772 = vadd.f32 0.0, %v3771
        %v3773 = vpop.f32.mrb[0].mxu0
        %3774 = vmatprep.mubr.f32.mxu0 0.0
        %3775 = vmatmul.mubr.f32.gmra.mrb[0].mxu0 %v3568
        %v3776 = vpop.f32.mrb[0].mxu0
        %v3777 = vadd.f32 0.0, %v3776
        %v3778 = vpop.f32.mrb[0].mxu0
        %3779 = vmatprep.mubr.f32.mxu0 0.0
        %3780 = vmatmul.mubr.f32.gmra.mrb[0].mxu0 %v3571
        %v3781 = vpop.f32.mrb[0].mxu0
        %v3782 = vadd.f32 0.0, %v3781
        %v3783 = vpop.f32.mrb[0].mxu0
        %3784 = vmatprep.mubr.f32.mxu0 0.0
        %3785 = vmatmul.mubr.f32.gmra.mrb[0].mxu0 %v3574
        %v3786 = vpop.f32.mrb[0].mxu0
        %v3787 = vadd.f32 0.0, %v3786
        %v3788 = vpop.f32.mrb[0].mxu0
        %3789 = vmatprep.mubr.f32.mxu0 0.0
        %3790 = vmatmul.mubr.f32.gmra.mrb[0].mxu0 %v3577
        %v3791 = vpop.f32.mrb[0].mxu0
        %v3792 = vadd.f32 0.0, %v3791
        %v3793 = vpop.f32.mrb[0].mxu0
        %3794 = vmatprep.mubr.f32.mxu0 0.0
        %3795 = vmatmul.mubr.f32.gmra.mrb[0].mxu0 %v3580
        %v3796 = vpop.f32.mrb[0].mxu0
        %v3797 = vadd.f32 0.0, %v3796
        %v3798 = vpop.f32.mrb[0].mxu0
        %3799 = vmatprep.mubr.f32.mxu0 0.0
        %3800 = vmatmul.mubr.f32.gmra.mrb[0].mxu0 %v3583
        %v3801 = vpop.f32.mrb[0].mxu0
        %v3802 = vadd.f32 0.0, %v3801
        %v3803 = vpop.f32.mrb[0].mxu0
        %3804 = vmatprep.mubr.f32.mxu0 0.0
        %3805 = vmatmul.mubr.f32.gmra.mrb[0].mxu0 %v3586
        %v3806 = vpop.f32.mrb[0].mxu0
        %v3807 = vadd.f32 0.0, %v3806
        %v3808 = vpop.f32.mrb[0].mxu0
        %3809 = vmatprep.mubr.f32.mxu0 0.0
        %3810 = vmatmul.mubr.f32.gmra.mrb[0].mxu0 %v3589
        %v3811 = vpop.f32.mrb[0].mxu0
        %v3812 = vadd.f32 0.0, %v3811
        %v3813 = vpop.f32.mrb[0].mxu0
        %3814 = vmatprep.mubr.f32.mxu0 0.0
        %3815 = vmatmul.mubr.f32.gmra.mrb[0].mxu0 %v3592
        %v3816 = vpop.f32.mrb[0].mxu0
        %v3817 = vadd.f32 0.0, %v3816
        %v3818 = vpop.f32.mrb[0].mxu0
        %3819 = vmatprep.mubr.f32.mxu0 0.0
        %3820 = vmatmul.mubr.f32.gmra.mrb[0].mxu0 %v3595
        %v3821 = vpop.f32.mrb[0].mxu0
        %v3822 = vadd.f32 0.0, %v3821
        %v3823 = vpop.f32.mrb[0].mxu0
        %3824 = vdwg.mxu0
        %v3825 = vadd.f32 %v3467, %v3667
        %v3826 = vadd.f32 %v3468, %v3672
        %v3827 = vadd.f32 %v3469, %v3677
        %v3828 = vadd.f32 %v3470, %v3682
        %v3829 = vadd.f32 %v3471, %v3687
        %v3830 = vadd.f32 %v3472, %v3692
        %v3831 = vadd.f32 %v3473, %v3697
        %v3832 = vadd.f32 %v3474, %v3702
        %v3833 = vadd.f32 %v3475, %v3707
        %v3834 = vadd.f32 %v3476, %v3712
        %v3835 = vadd.f32 %v3477, %v3717
        %v3836 = vadd.f32 %v3478, %v3722
        %v3837 = vadd.f32 %v3479, %v3727
        %v3838 = vadd.f32 %v3480, %v3732
        %v3839 = vadd.f32 %v3481, %v3737
        %v3840 = vadd.f32 %v3482, %v3742
        %v3841 = vadd.f32 %v3483, %v3747
        %v3842 = vadd.f32 %v3484, %v3752
        %v3843 = vadd.f32 %v3485, %v3757
        %v3844 = vadd.f32 %v3486, %v3762
        %v3845 = vadd.f32 %v3487, %v3767
        %v3846 = vadd.f32 %v3488, %v3772
        %v3847 = vadd.f32 %v3489, %v3777
        %v3848 = vadd.f32 %v3490, %v3782
        %v3849 = vadd.f32 %v3491, %v3787
        %v3850 = vadd.f32 %v3492, %v3792
        %v3851 = vadd.f32 %v3493, %v3797
        %v3852 = vadd.f32 %v3494, %v3802
        %v3853 = vadd.f32 %v3495, %v3807
        %v3854 = vadd.f32 %v3496, %v3812
        %v3855 = vadd.f32 %v3497, %v3817
        %v3856 = vadd.f32 %v3498, %v3822
        %3857 = vst [vmem:[#allocation2] sm:$0xff] %v3825
        %3858 = vst [vmem:[#allocation2 + $0x8] sm:$0xff] %v3826
        %3859 = vst [vmem:[#allocation2 + $0x10] sm:$0xff] %v3827
        %3860 = vst [vmem:[#allocation2 + $0x18] sm:$0xff] %v3828
        %3861 = vst [vmem:[#allocation2 + $0x20] sm:$0xff] %v3829
        %3862 = vst [vmem:[#allocation2 + $0x28] sm:$0xff] %v3830
        %3863 = vst [vmem:[#allocation2 + $0x30] sm:$0xff] %v3831
        %3864 = vst [vmem:[#allocation2 + $0x38] sm:$0xff] %v3832
        %3865 = vst [vmem:[#allocation2 + $0x40] sm:$0xff] %v3833
        %3866 = vst [vmem:[#allocation2 + $0x48] sm:$0xff] %v3834
        %3867 = vst [vmem:[#allocation2 + $0x50] sm:$0xff] %v3835
        %3868 = vst [vmem:[#allocation2 + $0x58] sm:$0xff] %v3836
        %3869 = vst [vmem:[#allocation2 + $0x60] sm:$0xff] %v3837
        %3870 = vst [vmem:[#allocation2 + $0x68] sm:$0xff] %v3838
        %3871 = vst [vmem:[#allocation2 + $0x70] sm:$0xff] %v3839
        %3872 = vst [vmem:[#allocation2 + $0x78] sm:$0xff] %v3840
        %3873 = vst [vmem:[#allocation2 + $0x80] sm:$0xff] %v3841
        %3874 = vst [vmem:[#allocation2 + $0x88] sm:$0xff] %v3842
        %3875 = vst [vmem:[#allocation2 + $0x90] sm:$0xff] %v3843
        %3876 = vst [vmem:[#allocation2 + $0x98] sm:$0xff] %v3844
        %3877 = vst [vmem:[#allocation2 + $0xa0] sm:$0xff] %v3845
        %3878 = vst [vmem:[#allocation2 + $0xa8] sm:$0xff] %v3846
        %3879 = vst [vmem:[#allocation2 + $0xb0] sm:$0xff] %v3847
        %3880 = vst [vmem:[#allocation2 + $0xb8] sm:$0xff] %v3848
        %3881 = vst [vmem:[#allocation2 + $0xc0] sm:$0xff] %v3849
        %3882 = vst [vmem:[#allocation2 + $0xc8] sm:$0xff] %v3850
        %3883 = vst [vmem:[#allocation2 + $0xd0] sm:$0xff] %v3851
        %3884 = vst [vmem:[#allocation2 + $0xd8] sm:$0xff] %v3852
        %3885 = vst [vmem:[#allocation2 + $0xe0] sm:$0xff] %v3853
        %3886 = vst [vmem:[#allocation2 + $0xe8] sm:$0xff] %v3854
        %3887 = vst [vmem:[#allocation2 + $0xf0] sm:$0xff] %v3855
        %3888 = vst [vmem:[#allocation2 + $0xf8] sm:$0xff] %v3856
        %s3889 = scalar_lea.vmem %s206, 176
        %v3890 = vld [vmem:[%s3889] sm:$0xff]
        %v3891 = vld [vmem:[%s3889 + $0x10] sm:$0xff]
        %v3892 = vld [vmem:[%s3889 + $0x20] sm:$0xff]
        %v3893 = vld [vmem:[%s3889 + $0x30] sm:$0xff]
        %v3894 = vld [vmem:[%s3889 + $0x40] sm:$0xff]
        %v3895 = vld [vmem:[%s3889 + $0x50] sm:$0xff]
        %v3896 = vld [vmem:[%s3889 + $0x60] sm:$0xff]
        %v3897 = vld [vmem:[%s3889 + $0x70] sm:$0xff]
        %v3898 = vld [vmem:[%s3889 + $0xa0] sm:$0xff]
        %v3899 = vld [vmem:[%s3889 + $0xb0] sm:$0xff]
        %v3900 = vld [vmem:[%s3889 + $0xc0] sm:$0xff]
        %v3901 = vld [vmem:[%s3889 + $0xd0] sm:$0xff]
        %v3902 = vld [vmem:[%s3889 + $0xe0] sm:$0xff]
        %v3903 = vld [vmem:[%s3889 + $0xf0] sm:$0xff]
        %v3904 = vld [vmem:[%s3889 + $0x100] sm:$0xff]
        %v3905 = vld [vmem:[%s3889 + $0x110] sm:$0xff]
        %v3906 = vld [vmem:[%s3889 + $0x140] sm:$0xff]
        %v3907 = vld [vmem:[%s3889 + $0x150] sm:$0xff]
        %v3908 = vld [vmem:[%s3889 + $0x160] sm:$0xff]
        %v3909 = vld [vmem:[%s3889 + $0x170] sm:$0xff]
        %v3910 = vld [vmem:[%s3889 + $0x180] sm:$0xff]
        %v3911 = vld [vmem:[%s3889 + $0x190] sm:$0xff]
        %v3912 = vld [vmem:[%s3889 + $0x1a0] sm:$0xff]
        %v3913 = vld [vmem:[%s3889 + $0x1b0] sm:$0xff]
        %v3914 = vld [vmem:[%s3889 + $0x1e0] sm:$0xff]
        %v3915 = vld [vmem:[%s3889 + $0x1f0] sm:$0xff]
        %v3916 = vld [vmem:[%s3889 + $0x200] sm:$0xff]
        %v3917 = vld [vmem:[%s3889 + $0x210] sm:$0xff]
        %v3918 = vld [vmem:[%s3889 + $0x220] sm:$0xff]
        %v3919 = vld [vmem:[%s3889 + $0x230] sm:$0xff]
        %v3920 = vld [vmem:[%s3889 + $0x240] sm:$0xff]
        %v3921 = vld [vmem:[%s3889 + $0x250] sm:$0xff]
        %v3922 = vld [vmem:[#allocation2] sm:$0xff]
        %v3923 = vld [vmem:[#allocation2 + $0x8] sm:$0xff]
        %v3924 = vld [vmem:[#allocation2 + $0x10] sm:$0xff]
        %v3925 = vld [vmem:[#allocation2 + $0x18] sm:$0xff]
        %v3926 = vld [vmem:[#allocation2 + $0x20] sm:$0xff]
        %v3927 = vld [vmem:[#allocation2 + $0x28] sm:$0xff]
        %v3928 = vld [vmem:[#allocation2 + $0x30] sm:$0xff]
        %v3929 = vld [vmem:[#allocation2 + $0x38] sm:$0xff]
        %v3930 = vld [vmem:[#allocation2 + $0x40] sm:$0xff]
        %v3931 = vld [vmem:[#allocation2 + $0x48] sm:$0xff]
        %v3932 = vld [vmem:[#allocation2 + $0x50] sm:$0xff]
        %v3933 = vld [vmem:[#allocation2 + $0x58] sm:$0xff]
        %v3934 = vld [vmem:[#allocation2 + $0x60] sm:$0xff]
        %v3935 = vld [vmem:[#allocation2 + $0x68] sm:$0xff]
        %v3936 = vld [vmem:[#allocation2 + $0x70] sm:$0xff]
        %v3937 = vld [vmem:[#allocation2 + $0x78] sm:$0xff]
        %v3938 = vld [vmem:[#allocation2 + $0x80] sm:$0xff]
        %v3939 = vld [vmem:[#allocation2 + $0x88] sm:$0xff]
        %v3940 = vld [vmem:[#allocation2 + $0x90] sm:$0xff]
        %v3941 = vld [vmem:[#allocation2 + $0x98] sm:$0xff]
        %v3942 = vld [vmem:[#allocation2 + $0xa0] sm:$0xff]
        %v3943 = vld [vmem:[#allocation2 + $0xa8] sm:$0xff]
        %v3944 = vld [vmem:[#allocation2 + $0xb0] sm:$0xff]
        %v3945 = vld [vmem:[#allocation2 + $0xb8] sm:$0xff]
        %v3946 = vld [vmem:[#allocation2 + $0xc0] sm:$0xff]
        %v3947 = vld [vmem:[#allocation2 + $0xc8] sm:$0xff]
        %v3948 = vld [vmem:[#allocation2 + $0xd0] sm:$0xff]
        %v3949 = vld [vmem:[#allocation2 + $0xd8] sm:$0xff]
        %v3950 = vld [vmem:[#allocation2 + $0xe0] sm:$0xff]
        %v3951 = vld [vmem:[#allocation2 + $0xe8] sm:$0xff]
        %v3952 = vld [vmem:[#allocation2 + $0xf0] sm:$0xff]
        %v3953 = vld [vmem:[#allocation2 + $0xf8] sm:$0xff]
        %s3954 = scalar_lea.vmem %s210, 32
        %v3955 = vld [vmem:[%s3954] sm:$0xf]
        %v3957 = vsel %vm318, %v3890, 0
        %v3960 = vsel %vm318, %v3891, 0
        %v3963 = vsel %vm318, %v3892, 0
        %v3966 = vsel %vm318, %v3893, 0
        %v3969 = vsel %vm318, %v3894, 0
        %v3972 = vsel %vm318, %v3895, 0
        %v3975 = vsel %vm318, %v3896, 0
        %v3978 = vsel %vm318, %v3897, 0
        %v3981 = vsel %vm318, %v3898, 0
        %v3984 = vsel %vm318, %v3899, 0
        %v3987 = vsel %vm318, %v3900, 0
        %v3990 = vsel %vm318, %v3901, 0
        %v3993 = vsel %vm318, %v3902, 0
        %v3996 = vsel %vm318, %v3903, 0
        %v3999 = vsel %vm318, %v3904, 0
        %v4002 = vsel %vm318, %v3905, 0
        %v4005 = vsel %vm318, %v3906, 0
        %v4008 = vsel %vm318, %v3907, 0
        %v4011 = vsel %vm318, %v3908, 0
        %v4014 = vsel %vm318, %v3909, 0
        %v4017 = vsel %vm318, %v3910, 0
        %v4020 = vsel %vm318, %v3911, 0
        %v4023 = vsel %vm318, %v3912, 0
        %v4026 = vsel %vm318, %v3913, 0
        %v4029 = vsel %vm318, %v3914, 0
        %v4032 = vsel %vm318, %v3915, 0
        %v4035 = vsel %vm318, %v3916, 0
        %v4038 = vsel %vm318, %v3917, 0
        %v4041 = vsel %vm318, %v3918, 0
        %v4044 = vsel %vm318, %v3919, 0
        %v4047 = vsel %vm318, %v3920, 0
        %v4050 = vsel %vm318, %v3921, 0
        %v4053 = vsel %vm415, %v3955, 0
        %4055 = vmatprep.subr.mxu0 0.0
        %4056 = vmatpush1.msra.mxu0 %v4053
        %4057 = vmatprep.subr.mxu0 0.0
        %4058 = vmatpush1.msra.mxu0 0.0
        %4059 = vmatprep.subr.mxu0 0.0
        %4060 = vmatpush1.msra.mxu0 0.0
        %4061 = vmatprep.subr.mxu0 0.0
        %4062 = vmatpush1.msra.mxu0 0.0
        %4063 = vmatprep.subr.mxu0 0.0
        %4064 = vmatpush1.msra.mxu0 0.0
        %4065 = vmatprep.subr.mxu0 0.0
        %4066 = vmatpush1.msra.mxu0 0.0
        %4067 = vmatprep.subr.mxu0 0.0
        %4068 = vmatpush1.msra.mxu0 0.0
        %4069 = vmatprep.subr.mxu0 0.0
        %4070 = vmatpush1.msra.mxu0 0.0
        %4071 = vmatprep.subr.mxu0 0.0
        %4072 = vmatpush1.msra.mxu0 0.0
        %4073 = vmatprep.subr.mxu0 0.0
        %4074 = vmatpush1.msra.mxu0 0.0
        %4075 = vmatprep.subr.mxu0 0.0
        %4076 = vmatpush1.msra.mxu0 0.0
        %4077 = vmatprep.subr.mxu0 0.0
        %4078 = vmatpush1.msra.mxu0 0.0
        %4079 = vmatprep.subr.mxu0 0.0
        %4080 = vmatpush1.msra.mxu0 0.0
        %4081 = vmatprep.subr.mxu0 0.0
        %4082 = vmatpush1.msra.mxu0 0.0
        %4083 = vmatprep.subr.mxu0 0.0
        %4084 = vmatpush1.msra.mxu0 0.0
        %4085 = vmatprep.subr.mxu0 0.0
        %4086 = vmatpush1.msra.mxu0 0.0
        %4087 = vmatprep.subr.mxu0 0.0
        %4088 = vmatpush1.msra.mxu0 0.0
        %4089 = vmatprep.subr.mxu0 0.0
        %4090 = vmatpush1.msra.mxu0 0.0
        %4091 = vmatprep.subr.mxu0 0.0
        %4092 = vmatpush1.msra.mxu0 0.0
        %4093 = vmatprep.subr.mxu0 0.0
        %4094 = vmatpush1.msra.mxu0 0.0
        %4095 = vmatprep.subr.mxu0 0.0
        %4096 = vmatpush1.msra.mxu0 0.0
        %4097 = vmatprep.subr.mxu0 0.0
        %4098 = vmatpush1.msra.mxu0 0.0
        %4099 = vmatprep.subr.mxu0 0.0
        %4100 = vmatpush1.msra.mxu0 0.0
        %4101 = vmatprep.subr.mxu0 0.0
        %4102 = vmatpush1.msra.mxu0 0.0
        %4103 = vmatprep.subr.mxu0 0.0
        %4104 = vmatpush1.msra.mxu0 0.0
        %4105 = vmatprep.subr.mxu0 0.0
        %4106 = vmatpush1.msra.mxu0 0.0
        %4107 = vmatprep.subr.mxu0 0.0
        %4108 = vmatpush1.msra.mxu0 0.0
        %4109 = vmatprep.subr.mxu0 0.0
        %4110 = vmatpush1.msra.mxu0 0.0
        %4111 = vmatprep.subr.mxu0 0.0
        %4112 = vmatpush1.msra.mxu0 0.0
        %4113 = vmatprep.subr.mxu0 0.0
        %4114 = vmatpush1.msra.mxu0 0.0
        %4115 = vmatprep.subr.mxu0 0.0
        %4116 = vmatpush1.msra.mxu0 0.0
        %4117 = vmatprep.subr.mxu0 0.0
        %4118 = vmatpush1.msra.mxu0 0.0
        %4119 = vmatprep.mubr.f32.mxu0 0.0
        %4120 = vmatmul.mubr.f32.gmra.mrb[0].mxu0 %v3957
        %v4121 = vpop.f32.mrb[0].mxu0
        %v4122 = vadd.f32 0.0, %v4121
        %v4123 = vpop.f32.mrb[0].mxu0
        %4124 = vmatprep.mubr.f32.mxu0 0.0
        %4125 = vmatmul.mubr.f32.gmra.mrb[0].mxu0 %v3960
        %v4126 = vpop.f32.mrb[0].mxu0
        %v4127 = vadd.f32 0.0, %v4126
        %v4128 = vpop.f32.mrb[0].mxu0
        %4129 = vmatprep.mubr.f32.mxu0 0.0
        %4130 = vmatmul.mubr.f32.gmra.mrb[0].mxu0 %v3963
        %v4131 = vpop.f32.mrb[0].mxu0
        %v4132 = vadd.f32 0.0, %v4131
        %v4133 = vpop.f32.mrb[0].mxu0
        %4134 = vmatprep.mubr.f32.mxu0 0.0
        %4135 = vmatmul.mubr.f32.gmra.mrb[0].mxu0 %v3966
        %v4136 = vpop.f32.mrb[0].mxu0
        %v4137 = vadd.f32 0.0, %v4136
        %v4138 = vpop.f32.mrb[0].mxu0
        %4139 = vmatprep.mubr.f32.mxu0 0.0
        %4140 = vmatmul.mubr.f32.gmra.mrb[0].mxu0 %v3969
        %v4141 = vpop.f32.mrb[0].mxu0
        %v4142 = vadd.f32 0.0, %v4141
        %v4143 = vpop.f32.mrb[0].mxu0
        %4144 = vmatprep.mubr.f32.mxu0 0.0
        %4145 = vmatmul.mubr.f32.gmra.mrb[0].mxu0 %v3972
        %v4146 = vpop.f32.mrb[0].mxu0
        %v4147 = vadd.f32 0.0, %v4146
        %v4148 = vpop.f32.mrb[0].mxu0
        %4149 = vmatprep.mubr.f32.mxu0 0.0
        %4150 = vmatmul.mubr.f32.gmra.mrb[0].mxu0 %v3975
        %v4151 = vpop.f32.mrb[0].mxu0
        %v4152 = vadd.f32 0.0, %v4151
        %v4153 = vpop.f32.mrb[0].mxu0
        %4154 = vmatprep.mubr.f32.mxu0 0.0
        %4155 = vmatmul.mubr.f32.gmra.mrb[0].mxu0 %v3978
        %v4156 = vpop.f32.mrb[0].mxu0
        %v4157 = vadd.f32 0.0, %v4156
        %v4158 = vpop.f32.mrb[0].mxu0
        %4159 = vmatprep.mubr.f32.mxu0 0.0
        %4160 = vmatmul.mubr.f32.gmra.mrb[0].mxu0 %v3981
        %v4161 = vpop.f32.mrb[0].mxu0
        %v4162 = vadd.f32 0.0, %v4161
        %v4163 = vpop.f32.mrb[0].mxu0
        %4164 = vmatprep.mubr.f32.mxu0 0.0
        %4165 = vmatmul.mubr.f32.gmra.mrb[0].mxu0 %v3984
        %v4166 = vpop.f32.mrb[0].mxu0
        %v4167 = vadd.f32 0.0, %v4166
        %v4168 = vpop.f32.mrb[0].mxu0
        %4169 = vmatprep.mubr.f32.mxu0 0.0
        %4170 = vmatmul.mubr.f32.gmra.mrb[0].mxu0 %v3987
        %v4171 = vpop.f32.mrb[0].mxu0
        %v4172 = vadd.f32 0.0, %v4171
        %v4173 = vpop.f32.mrb[0].mxu0
        %4174 = vmatprep.mubr.f32.mxu0 0.0
        %4175 = vmatmul.mubr.f32.gmra.mrb[0].mxu0 %v3990
        %v4176 = vpop.f32.mrb[0].mxu0
        %v4177 = vadd.f32 0.0, %v4176
        %v4178 = vpop.f32.mrb[0].mxu0
        %4179 = vmatprep.mubr.f32.mxu0 0.0
        %4180 = vmatmul.mubr.f32.gmra.mrb[0].mxu0 %v3993
        %v4181 = vpop.f32.mrb[0].mxu0
        %v4182 = vadd.f32 0.0, %v4181
        %v4183 = vpop.f32.mrb[0].mxu0
        %4184 = vmatprep.mubr.f32.mxu0 0.0
        %4185 = vmatmul.mubr.f32.gmra.mrb[0].mxu0 %v3996
        %v4186 = vpop.f32.mrb[0].mxu0
        %v4187 = vadd.f32 0.0, %v4186
        %v4188 = vpop.f32.mrb[0].mxu0
        %4189 = vmatprep.mubr.f32.mxu0 0.0
        %4190 = vmatmul.mubr.f32.gmra.mrb[0].mxu0 %v3999
        %v4191 = vpop.f32.mrb[0].mxu0
        %v4192 = vadd.f32 0.0, %v4191
        %v4193 = vpop.f32.mrb[0].mxu0
        %4194 = vmatprep.mubr.f32.mxu0 0.0
        %4195 = vmatmul.mubr.f32.gmra.mrb[0].mxu0 %v4002
        %v4196 = vpop.f32.mrb[0].mxu0
        %v4197 = vadd.f32 0.0, %v4196
        %v4198 = vpop.f32.mrb[0].mxu0
        %4199 = vmatprep.mubr.f32.mxu0 0.0
        %4200 = vmatmul.mubr.f32.gmra.mrb[0].mxu0 %v4005
        %v4201 = vpop.f32.mrb[0].mxu0
        %v4202 = vadd.f32 0.0, %v4201
        %v4203 = vpop.f32.mrb[0].mxu0
        %4204 = vmatprep.mubr.f32.mxu0 0.0
        %4205 = vmatmul.mubr.f32.gmra.mrb[0].mxu0 %v4008
        %v4206 = vpop.f32.mrb[0].mxu0
        %v4207 = vadd.f32 0.0, %v4206
        %v4208 = vpop.f32.mrb[0].mxu0
        %4209 = vmatprep.mubr.f32.mxu0 0.0
        %4210 = vmatmul.mubr.f32.gmra.mrb[0].mxu0 %v4011
        %v4211 = vpop.f32.mrb[0].mxu0
        %v4212 = vadd.f32 0.0, %v4211
        %v4213 = vpop.f32.mrb[0].mxu0
        %4214 = vmatprep.mubr.f32.mxu0 0.0
        %4215 = vmatmul.mubr.f32.gmra.mrb[0].mxu0 %v4014
        %v4216 = vpop.f32.mrb[0].mxu0
        %v4217 = vadd.f32 0.0, %v4216
        %v4218 = vpop.f32.mrb[0].mxu0
        %4219 = vmatprep.mubr.f32.mxu0 0.0
        %4220 = vmatmul.mubr.f32.gmra.mrb[0].mxu0 %v4017
        %v4221 = vpop.f32.mrb[0].mxu0
        %v4222 = vadd.f32 0.0, %v4221
        %v4223 = vpop.f32.mrb[0].mxu0
        %4224 = vmatprep.mubr.f32.mxu0 0.0
        %4225 = vmatmul.mubr.f32.gmra.mrb[0].mxu0 %v4020
        %v4226 = vpop.f32.mrb[0].mxu0
        %v4227 = vadd.f32 0.0, %v4226
        %v4228 = vpop.f32.mrb[0].mxu0
        %4229 = vmatprep.mubr.f32.mxu0 0.0
        %4230 = vmatmul.mubr.f32.gmra.mrb[0].mxu0 %v4023
        %v4231 = vpop.f32.mrb[0].mxu0
        %v4232 = vadd.f32 0.0, %v4231
        %v4233 = vpop.f32.mrb[0].mxu0
        %4234 = vmatprep.mubr.f32.mxu0 0.0
        %4235 = vmatmul.mubr.f32.gmra.mrb[0].mxu0 %v4026
        %v4236 = vpop.f32.mrb[0].mxu0
        %v4237 = vadd.f32 0.0, %v4236
        %v4238 = vpop.f32.mrb[0].mxu0
        %4239 = vmatprep.mubr.f32.mxu0 0.0
        %4240 = vmatmul.mubr.f32.gmra.mrb[0].mxu0 %v4029
        %v4241 = vpop.f32.mrb[0].mxu0
        %v4242 = vadd.f32 0.0, %v4241
        %v4243 = vpop.f32.mrb[0].mxu0
        %4244 = vmatprep.mubr.f32.mxu0 0.0
        %4245 = vmatmul.mubr.f32.gmra.mrb[0].mxu0 %v4032
        %v4246 = vpop.f32.mrb[0].mxu0
        %v4247 = vadd.f32 0.0, %v4246
        %v4248 = vpop.f32.mrb[0].mxu0
        %4249 = vmatprep.mubr.f32.mxu0 0.0
        %4250 = vmatmul.mubr.f32.gmra.mrb[0].mxu0 %v4035
        %v4251 = vpop.f32.mrb[0].mxu0
        %v4252 = vadd.f32 0.0, %v4251
        %v4253 = vpop.f32.mrb[0].mxu0
        %4254 = vmatprep.mubr.f32.mxu0 0.0
        %4255 = vmatmul.mubr.f32.gmra.mrb[0].mxu0 %v4038
        %v4256 = vpop.f32.mrb[0].mxu0
        %v4257 = vadd.f32 0.0, %v4256
        %v4258 = vpop.f32.mrb[0].mxu0
        %4259 = vmatprep.mubr.f32.mxu0 0.0
        %4260 = vmatmul.mubr.f32.gmra.mrb[0].mxu0 %v4041
        %v4261 = vpop.f32.mrb[0].mxu0
        %v4262 = vadd.f32 0.0, %v4261
        %v4263 = vpop.f32.mrb[0].mxu0
        %4264 = vmatprep.mubr.f32.mxu0 0.0
        %4265 = vmatmul.mubr.f32.gmra.mrb[0].mxu0 %v4044
        %v4266 = vpop.f32.mrb[0].mxu0
        %v4267 = vadd.f32 0.0, %v4266
        %v4268 = vpop.f32.mrb[0].mxu0
        %4269 = vmatprep.mubr.f32.mxu0 0.0
        %4270 = vmatmul.mubr.f32.gmra.mrb[0].mxu0 %v4047
        %v4271 = vpop.f32.mrb[0].mxu0
        %v4272 = vadd.f32 0.0, %v4271
        %v4273 = vpop.f32.mrb[0].mxu0
        %4274 = vmatprep.mubr.f32.mxu0 0.0
        %4275 = vmatmul.mubr.f32.gmra.mrb[0].mxu0 %v4050
        %v4276 = vpop.f32.mrb[0].mxu0
        %v4277 = vadd.f32 0.0, %v4276
        %v4278 = vpop.f32.mrb[0].mxu0
        %4279 = vdwg.mxu0
        %v4280 = vadd.f32 %v3922, %v4122
        %v4281 = vadd.f32 %v3923, %v4127
        %v4282 = vadd.f32 %v3924, %v4132
        %v4283 = vadd.f32 %v3925, %v4137
        %v4284 = vadd.f32 %v3926, %v4142
        %v4285 = vadd.f32 %v3927, %v4147
        %v4286 = vadd.f32 %v3928, %v4152
        %v4287 = vadd.f32 %v3929, %v4157
        %v4288 = vadd.f32 %v3930, %v4162
        %v4289 = vadd.f32 %v3931, %v4167
        %v4290 = vadd.f32 %v3932, %v4172
        %v4291 = vadd.f32 %v3933, %v4177
        %v4292 = vadd.f32 %v3934, %v4182
        %v4293 = vadd.f32 %v3935, %v4187
        %v4294 = vadd.f32 %v3936, %v4192
        %v4295 = vadd.f32 %v3937, %v4197
        %v4296 = vadd.f32 %v3938, %v4202
        %v4297 = vadd.f32 %v3939, %v4207
        %v4298 = vadd.f32 %v3940, %v4212
        %v4299 = vadd.f32 %v3941, %v4217
        %v4300 = vadd.f32 %v3942, %v4222
        %v4301 = vadd.f32 %v3943, %v4227
        %v4302 = vadd.f32 %v3944, %v4232
        %v4303 = vadd.f32 %v3945, %v4237
        %v4304 = vadd.f32 %v3946, %v4242
        %v4305 = vadd.f32 %v3947, %v4247
        %v4306 = vadd.f32 %v3948, %v4252
        %v4307 = vadd.f32 %v3949, %v4257
        %v4308 = vadd.f32 %v3950, %v4262
        %v4309 = vadd.f32 %v3951, %v4267
        %v4310 = vadd.f32 %v3952, %v4272
        %v4311 = vadd.f32 %v3953, %v4277
        %4312 = vst [vmem:[#allocation2] sm:$0xff] %v4280
        %4313 = vst [vmem:[#allocation2 + $0x8] sm:$0xff] %v4281
        %4314 = vst [vmem:[#allocation2 + $0x10] sm:$0xff] %v4282
        %4315 = vst [vmem:[#allocation2 + $0x18] sm:$0xff] %v4283
        %4316 = vst [vmem:[#allocation2 + $0x20] sm:$0xff] %v4284
        %4317 = vst [vmem:[#allocation2 + $0x28] sm:$0xff] %v4285
        %4318 = vst [vmem:[#allocation2 + $0x30] sm:$0xff] %v4286
        %4319 = vst [vmem:[#allocation2 + $0x38] sm:$0xff] %v4287
        %4320 = vst [vmem:[#allocation2 + $0x40] sm:$0xff] %v4288
        %4321 = vst [vmem:[#allocation2 + $0x48] sm:$0xff] %v4289
        %4322 = vst [vmem:[#allocation2 + $0x50] sm:$0xff] %v4290
        %4323 = vst [vmem:[#allocation2 + $0x58] sm:$0xff] %v4291
        %4324 = vst [vmem:[#allocation2 + $0x60] sm:$0xff] %v4292
        %4325 = vst [vmem:[#allocation2 + $0x68] sm:$0xff] %v4293
        %4326 = vst [vmem:[#allocation2 + $0x70] sm:$0xff] %v4294
        %4327 = vst [vmem:[#allocation2 + $0x78] sm:$0xff] %v4295
        %4328 = vst [vmem:[#allocation2 + $0x80] sm:$0xff] %v4296
        %4329 = vst [vmem:[#allocation2 + $0x88] sm:$0xff] %v4297
        %4330 = vst [vmem:[#allocation2 + $0x90] sm:$0xff] %v4298
        %4331 = vst [vmem:[#allocation2 + $0x98] sm:$0xff] %v4299
        %4332 = vst [vmem:[#allocation2 + $0xa0] sm:$0xff] %v4300
        %4333 = vst [vmem:[#allocation2 + $0xa8] sm:$0xff] %v4301
        %4334 = vst [vmem:[#allocation2 + $0xb0] sm:$0xff] %v4302
        %4335 = vst [vmem:[#allocation2 + $0xb8] sm:$0xff] %v4303
        %4336 = vst [vmem:[#allocation2 + $0xc0] sm:$0xff] %v4304
        %4337 = vst [vmem:[#allocation2 + $0xc8] sm:$0xff] %v4305
        %4338 = vst [vmem:[#allocation2 + $0xd0] sm:$0xff] %v4306
        %4339 = vst [vmem:[#allocation2 + $0xd8] sm:$0xff] %v4307
        %4340 = vst [vmem:[#allocation2 + $0xe0] sm:$0xff] %v4308
        %4341 = vst [vmem:[#allocation2 + $0xe8] sm:$0xff] %v4309
        %4342 = vst [vmem:[#allocation2 + $0xf0] sm:$0xff] %v4310
        %4343 = vst [vmem:[#allocation2 + $0xf8] sm:$0xff] %v4311
        %v4344 = vld [vmem:[%s3889 + $0x1] sm:$0xff]
        %v4345 = vld [vmem:[%s3889 + $0x11] sm:$0xff]
        %v4346 = vld [vmem:[%s3889 + $0x21] sm:$0xff]
        %v4347 = vld [vmem:[%s3889 + $0x31] sm:$0xff]
        %v4348 = vld [vmem:[%s3889 + $0x41] sm:$0xff]
        %v4349 = vld [vmem:[%s3889 + $0x51] sm:$0xff]
        %v4350 = vld [vmem:[%s3889 + $0x61] sm:$0xff]
        %v4351 = vld [vmem:[%s3889 + $0x71] sm:$0xff]
        %v4352 = vld [vmem:[%s3889 + $0xa1] sm:$0xff]
        %v4353 = vld [vmem:[%s3889 + $0xb1] sm:$0xff]
        %v4354 = vld [vmem:[%s3889 + $0xc1] sm:$0xff]
        %v4355 = vld [vmem:[%s3889 + $0xd1] sm:$0xff]
        %v4356 = vld [vmem:[%s3889 + $0xe1] sm:$0xff]
        %v4357 = vld [vmem:[%s3889 + $0xf1] sm:$0xff]
        %v4358 = vld [vmem:[%s3889 + $0x101] sm:$0xff]
        %v4359 = vld [vmem:[%s3889 + $0x111] sm:$0xff]
        %v4360 = vld [vmem:[%s3889 + $0x141] sm:$0xff]
        %v4361 = vld [vmem:[%s3889 + $0x151] sm:$0xff]
        %v4362 = vld [vmem:[%s3889 + $0x161] sm:$0xff]
        %v4363 = vld [vmem:[%s3889 + $0x171] sm:$0xff]
        %v4364 = vld [vmem:[%s3889 + $0x181] sm:$0xff]
        %v4365 = vld [vmem:[%s3889 + $0x191] sm:$0xff]
        %v4366 = vld [vmem:[%s3889 + $0x1a1] sm:$0xff]
        %v4367 = vld [vmem:[%s3889 + $0x1b1] sm:$0xff]
        %v4368 = vld [vmem:[%s3889 + $0x1e1] sm:$0xff]
        %v4369 = vld [vmem:[%s3889 + $0x1f1] sm:$0xff]
        %v4370 = vld [vmem:[%s3889 + $0x201] sm:$0xff]
        %v4371 = vld [vmem:[%s3889 + $0x211] sm:$0xff]
        %v4372 = vld [vmem:[%s3889 + $0x221] sm:$0xff]
        %v4373 = vld [vmem:[%s3889 + $0x231] sm:$0xff]
        %v4374 = vld [vmem:[%s3889 + $0x241] sm:$0xff]
        %v4375 = vld [vmem:[%s3889 + $0x251] sm:$0xff]
        %v4376 = vld [vmem:[#allocation2] sm:$0xff]
        %v4377 = vld [vmem:[#allocation2 + $0x8] sm:$0xff]
        %v4378 = vld [vmem:[#allocation2 + $0x10] sm:$0xff]
        %v4379 = vld [vmem:[#allocation2 + $0x18] sm:$0xff]
        %v4380 = vld [vmem:[#allocation2 + $0x20] sm:$0xff]
        %v4381 = vld [vmem:[#allocation2 + $0x28] sm:$0xff]
        %v4382 = vld [vmem:[#allocation2 + $0x30] sm:$0xff]
        %v4383 = vld [vmem:[#allocation2 + $0x38] sm:$0xff]
        %v4384 = vld [vmem:[#allocation2 + $0x40] sm:$0xff]
        %v4385 = vld [vmem:[#allocation2 + $0x48] sm:$0xff]
        %v4386 = vld [vmem:[#allocation2 + $0x50] sm:$0xff]
        %v4387 = vld [vmem:[#allocation2 + $0x58] sm:$0xff]
        %v4388 = vld [vmem:[#allocation2 + $0x60] sm:$0xff]
        %v4389 = vld [vmem:[#allocation2 + $0x68] sm:$0xff]
        %v4390 = vld [vmem:[#allocation2 + $0x70] sm:$0xff]
        %v4391 = vld [vmem:[#allocation2 + $0x78] sm:$0xff]
        %v4392 = vld [vmem:[#allocation2 + $0x80] sm:$0xff]
        %v4393 = vld [vmem:[#allocation2 + $0x88] sm:$0xff]
        %v4394 = vld [vmem:[#allocation2 + $0x90] sm:$0xff]
        %v4395 = vld [vmem:[#allocation2 + $0x98] sm:$0xff]
        %v4396 = vld [vmem:[#allocation2 + $0xa0] sm:$0xff]
        %v4397 = vld [vmem:[#allocation2 + $0xa8] sm:$0xff]
        %v4398 = vld [vmem:[#allocation2 + $0xb0] sm:$0xff]
        %v4399 = vld [vmem:[#allocation2 + $0xb8] sm:$0xff]
        %v4400 = vld [vmem:[#allocation2 + $0xc0] sm:$0xff]
        %v4401 = vld [vmem:[#allocation2 + $0xc8] sm:$0xff]
        %v4402 = vld [vmem:[#allocation2 + $0xd0] sm:$0xff]
        %v4403 = vld [vmem:[#allocation2 + $0xd8] sm:$0xff]
        %v4404 = vld [vmem:[#allocation2 + $0xe0] sm:$0xff]
        %v4405 = vld [vmem:[#allocation2 + $0xe8] sm:$0xff]
        %v4406 = vld [vmem:[#allocation2 + $0xf0] sm:$0xff]
        %v4407 = vld [vmem:[#allocation2 + $0xf8] sm:$0xff]
        %s4408 = scalar_lea.vmem %s210, 36
        %v4409 = vld [vmem:[%s4408] sm:$0xf]
        %v4411 = vsel %vm318, %v4344, 0
        %v4414 = vsel %vm318, %v4345, 0
        %v4417 = vsel %vm318, %v4346, 0
        %v4420 = vsel %vm318, %v4347, 0
        %v4423 = vsel %vm318, %v4348, 0
        %v4426 = vsel %vm318, %v4349, 0
        %v4429 = vsel %vm318, %v4350, 0
        %v4432 = vsel %vm318, %v4351, 0
        %v4435 = vsel %vm318, %v4352, 0
        %v4438 = vsel %vm318, %v4353, 0
        %v4441 = vsel %vm318, %v4354, 0
        %v4444 = vsel %vm318, %v4355, 0
        %v4447 = vsel %vm318, %v4356, 0
        %v4450 = vsel %vm318, %v4357, 0
        %v4453 = vsel %vm318, %v4358, 0
        %v4456 = vsel %vm318, %v4359, 0
        %v4459 = vsel %vm318, %v4360, 0
        %v4462 = vsel %vm318, %v4361, 0
        %v4465 = vsel %vm318, %v4362, 0
        %v4468 = vsel %vm318, %v4363, 0
        %v4471 = vsel %vm318, %v4364, 0
        %v4474 = vsel %vm318, %v4365, 0
        %v4477 = vsel %vm318, %v4366, 0
        %v4480 = vsel %vm318, %v4367, 0
        %v4483 = vsel %vm318, %v4368, 0
        %v4486 = vsel %vm318, %v4369, 0
        %v4489 = vsel %vm318, %v4370, 0
        %v4492 = vsel %vm318, %v4371, 0
        %v4495 = vsel %vm318, %v4372, 0
        %v4498 = vsel %vm318, %v4373, 0
        %v4501 = vsel %vm318, %v4374, 0
        %v4504 = vsel %vm318, %v4375, 0
        %v4507 = vsel %vm415, %v4409, 0
        %4509 = vmatprep.subr.mxu0 0.0
        %4510 = vmatpush1.msra.mxu0 %v4507
        %4511 = vmatprep.subr.mxu0 0.0
        %4512 = vmatpush1.msra.mxu0 0.0
        %4513 = vmatprep.subr.mxu0 0.0
        %4514 = vmatpush1.msra.mxu0 0.0
        %4515 = vmatprep.subr.mxu0 0.0
        %4516 = vmatpush1.msra.mxu0 0.0
        %4517 = vmatprep.subr.mxu0 0.0
        %4518 = vmatpush1.msra.mxu0 0.0
        %4519 = vmatprep.subr.mxu0 0.0
        %4520 = vmatpush1.msra.mxu0 0.0
        %4521 = vmatprep.subr.mxu0 0.0
        %4522 = vmatpush1.msra.mxu0 0.0
        %4523 = vmatprep.subr.mxu0 0.0
        %4524 = vmatpush1.msra.mxu0 0.0
        %4525 = vmatprep.subr.mxu0 0.0
        %4526 = vmatpush1.msra.mxu0 0.0
        %4527 = vmatprep.subr.mxu0 0.0
        %4528 = vmatpush1.msra.mxu0 0.0
        %4529 = vmatprep.subr.mxu0 0.0
        %4530 = vmatpush1.msra.mxu0 0.0
        %4531 = vmatprep.subr.mxu0 0.0
        %4532 = vmatpush1.msra.mxu0 0.0
        %4533 = vmatprep.subr.mxu0 0.0
        %4534 = vmatpush1.msra.mxu0 0.0
        %4535 = vmatprep.subr.mxu0 0.0
        %4536 = vmatpush1.msra.mxu0 0.0
        %4537 = vmatprep.subr.mxu0 0.0
        %4538 = vmatpush1.msra.mxu0 0.0
        %4539 = vmatprep.subr.mxu0 0.0
        %4540 = vmatpush1.msra.mxu0 0.0
        %4541 = vmatprep.subr.mxu0 0.0
        %4542 = vmatpush1.msra.mxu0 0.0
        %4543 = vmatprep.subr.mxu0 0.0
        %4544 = vmatpush1.msra.mxu0 0.0
        %4545 = vmatprep.subr.mxu0 0.0
        %4546 = vmatpush1.msra.mxu0 0.0
        %4547 = vmatprep.subr.mxu0 0.0
        %4548 = vmatpush1.msra.mxu0 0.0
        %4549 = vmatprep.subr.mxu0 0.0
        %4550 = vmatpush1.msra.mxu0 0.0
        %4551 = vmatprep.subr.mxu0 0.0
        %4552 = vmatpush1.msra.mxu0 0.0
        %4553 = vmatprep.subr.mxu0 0.0
        %4554 = vmatpush1.msra.mxu0 0.0
        %4555 = vmatprep.subr.mxu0 0.0
        %4556 = vmatpush1.msra.mxu0 0.0
        %4557 = vmatprep.subr.mxu0 0.0
        %4558 = vmatpush1.msra.mxu0 0.0
        %4559 = vmatprep.subr.mxu0 0.0
        %4560 = vmatpush1.msra.mxu0 0.0
        %4561 = vmatprep.subr.mxu0 0.0
        %4562 = vmatpush1.msra.mxu0 0.0
        %4563 = vmatprep.subr.mxu0 0.0
        %4564 = vmatpush1.msra.mxu0 0.0
        %4565 = vmatprep.subr.mxu0 0.0
        %4566 = vmatpush1.msra.mxu0 0.0
        %4567 = vmatprep.subr.mxu0 0.0
        %4568 = vmatpush1.msra.mxu0 0.0
        %4569 = vmatprep.subr.mxu0 0.0
        %4570 = vmatpush1.msra.mxu0 0.0
        %4571 = vmatprep.subr.mxu0 0.0
        %4572 = vmatpush1.msra.mxu0 0.0
        %4573 = vmatprep.mubr.f32.mxu0 0.0
        %4574 = vmatmul.mubr.f32.gmra.mrb[0].mxu0 %v4411
        %v4575 = vpop.f32.mrb[0].mxu0
        %v4576 = vadd.f32 0.0, %v4575
        %v4577 = vpop.f32.mrb[0].mxu0
        %4578 = vmatprep.mubr.f32.mxu0 0.0
        %4579 = vmatmul.mubr.f32.gmra.mrb[0].mxu0 %v4414
        %v4580 = vpop.f32.mrb[0].mxu0
        %v4581 = vadd.f32 0.0, %v4580
        %v4582 = vpop.f32.mrb[0].mxu0
        %4583 = vmatprep.mubr.f32.mxu0 0.0
        %4584 = vmatmul.mubr.f32.gmra.mrb[0].mxu0 %v4417
        %v4585 = vpop.f32.mrb[0].mxu0
        %v4586 = vadd.f32 0.0, %v4585
        %v4587 = vpop.f32.mrb[0].mxu0
        %4588 = vmatprep.mubr.f32.mxu0 0.0
        %4589 = vmatmul.mubr.f32.gmra.mrb[0].mxu0 %v4420
        %v4590 = vpop.f32.mrb[0].mxu0
        %v4591 = vadd.f32 0.0, %v4590
        %v4592 = vpop.f32.mrb[0].mxu0
        %4593 = vmatprep.mubr.f32.mxu0 0.0
        %4594 = vmatmul.mubr.f32.gmra.mrb[0].mxu0 %v4423
        %v4595 = vpop.f32.mrb[0].mxu0
        %v4596 = vadd.f32 0.0, %v4595
        %v4597 = vpop.f32.mrb[0].mxu0
        %4598 = vmatprep.mubr.f32.mxu0 0.0
        %4599 = vmatmul.mubr.f32.gmra.mrb[0].mxu0 %v4426
        %v4600 = vpop.f32.mrb[0].mxu0
        %v4601 = vadd.f32 0.0, %v4600
        %v4602 = vpop.f32.mrb[0].mxu0
        %4603 = vmatprep.mubr.f32.mxu0 0.0
        %4604 = vmatmul.mubr.f32.gmra.mrb[0].mxu0 %v4429
        %v4605 = vpop.f32.mrb[0].mxu0
        %v4606 = vadd.f32 0.0, %v4605
        %v4607 = vpop.f32.mrb[0].mxu0
        %4608 = vmatprep.mubr.f32.mxu0 0.0
        %4609 = vmatmul.mubr.f32.gmra.mrb[0].mxu0 %v4432
        %v4610 = vpop.f32.mrb[0].mxu0
        %v4611 = vadd.f32 0.0, %v4610
        %v4612 = vpop.f32.mrb[0].mxu0
        %4613 = vmatprep.mubr.f32.mxu0 0.0
        %4614 = vmatmul.mubr.f32.gmra.mrb[0].mxu0 %v4435
        %v4615 = vpop.f32.mrb[0].mxu0
        %v4616 = vadd.f32 0.0, %v4615
        %v4617 = vpop.f32.mrb[0].mxu0
        %4618 = vmatprep.mubr.f32.mxu0 0.0
        %4619 = vmatmul.mubr.f32.gmra.mrb[0].mxu0 %v4438
        %v4620 = vpop.f32.mrb[0].mxu0
        %v4621 = vadd.f32 0.0, %v4620
        %v4622 = vpop.f32.mrb[0].mxu0
        %4623 = vmatprep.mubr.f32.mxu0 0.0
        %4624 = vmatmul.mubr.f32.gmra.mrb[0].mxu0 %v4441
        %v4625 = vpop.f32.mrb[0].mxu0
        %v4626 = vadd.f32 0.0, %v4625
        %v4627 = vpop.f32.mrb[0].mxu0
        %4628 = vmatprep.mubr.f32.mxu0 0.0
        %4629 = vmatmul.mubr.f32.gmra.mrb[0].mxu0 %v4444
        %v4630 = vpop.f32.mrb[0].mxu0
        %v4631 = vadd.f32 0.0, %v4630
        %v4632 = vpop.f32.mrb[0].mxu0
        %4633 = vmatprep.mubr.f32.mxu0 0.0
        %4634 = vmatmul.mubr.f32.gmra.mrb[0].mxu0 %v4447
        %v4635 = vpop.f32.mrb[0].mxu0
        %v4636 = vadd.f32 0.0, %v4635
        %v4637 = vpop.f32.mrb[0].mxu0
        %4638 = vmatprep.mubr.f32.mxu0 0.0
        %4639 = vmatmul.mubr.f32.gmra.mrb[0].mxu0 %v4450
        %v4640 = vpop.f32.mrb[0].mxu0
        %v4641 = vadd.f32 0.0, %v4640
        %v4642 = vpop.f32.mrb[0].mxu0
        %4643 = vmatprep.mubr.f32.mxu0 0.0
        %4644 = vmatmul.mubr.f32.gmra.mrb[0].mxu0 %v4453
        %v4645 = vpop.f32.mrb[0].mxu0
        %v4646 = vadd.f32 0.0, %v4645
        %v4647 = vpop.f32.mrb[0].mxu0
        %4648 = vmatprep.mubr.f32.mxu0 0.0
        %4649 = vmatmul.mubr.f32.gmra.mrb[0].mxu0 %v4456
        %v4650 = vpop.f32.mrb[0].mxu0
        %v4651 = vadd.f32 0.0, %v4650
        %v4652 = vpop.f32.mrb[0].mxu0
        %4653 = vmatprep.mubr.f32.mxu0 0.0
        %4654 = vmatmul.mubr.f32.gmra.mrb[0].mxu0 %v4459
        %v4655 = vpop.f32.mrb[0].mxu0
        %v4656 = vadd.f32 0.0, %v4655
        %v4657 = vpop.f32.mrb[0].mxu0
        %4658 = vmatprep.mubr.f32.mxu0 0.0
        %4659 = vmatmul.mubr.f32.gmra.mrb[0].mxu0 %v4462
        %v4660 = vpop.f32.mrb[0].mxu0
        %v4661 = vadd.f32 0.0, %v4660
        %v4662 = vpop.f32.mrb[0].mxu0
        %4663 = vmatprep.mubr.f32.mxu0 0.0
        %4664 = vmatmul.mubr.f32.gmra.mrb[0].mxu0 %v4465
        %v4665 = vpop.f32.mrb[0].mxu0
        %v4666 = vadd.f32 0.0, %v4665
        %v4667 = vpop.f32.mrb[0].mxu0
        %4668 = vmatprep.mubr.f32.mxu0 0.0
        %4669 = vmatmul.mubr.f32.gmra.mrb[0].mxu0 %v4468
        %v4670 = vpop.f32.mrb[0].mxu0
        %v4671 = vadd.f32 0.0, %v4670
        %v4672 = vpop.f32.mrb[0].mxu0
        %4673 = vmatprep.mubr.f32.mxu0 0.0
        %4674 = vmatmul.mubr.f32.gmra.mrb[0].mxu0 %v4471
        %v4675 = vpop.f32.mrb[0].mxu0
        %v4676 = vadd.f32 0.0, %v4675
        %v4677 = vpop.f32.mrb[0].mxu0
        %4678 = vmatprep.mubr.f32.mxu0 0.0
        %4679 = vmatmul.mubr.f32.gmra.mrb[0].mxu0 %v4474
        %v4680 = vpop.f32.mrb[0].mxu0
        %v4681 = vadd.f32 0.0, %v4680
        %v4682 = vpop.f32.mrb[0].mxu0
        %4683 = vmatprep.mubr.f32.mxu0 0.0
        %4684 = vmatmul.mubr.f32.gmra.mrb[0].mxu0 %v4477
        %v4685 = vpop.f32.mrb[0].mxu0
        %v4686 = vadd.f32 0.0, %v4685
        %v4687 = vpop.f32.mrb[0].mxu0
        %4688 = vmatprep.mubr.f32.mxu0 0.0
        %4689 = vmatmul.mubr.f32.gmra.mrb[0].mxu0 %v4480
        %v4690 = vpop.f32.mrb[0].mxu0
        %v4691 = vadd.f32 0.0, %v4690
        %v4692 = vpop.f32.mrb[0].mxu0
        %4693 = vmatprep.mubr.f32.mxu0 0.0
        %4694 = vmatmul.mubr.f32.gmra.mrb[0].mxu0 %v4483
        %v4695 = vpop.f32.mrb[0].mxu0
        %v4696 = vadd.f32 0.0, %v4695
        %v4697 = vpop.f32.mrb[0].mxu0
        %4698 = vmatprep.mubr.f32.mxu0 0.0
        %4699 = vmatmul.mubr.f32.gmra.mrb[0].mxu0 %v4486
        %v4700 = vpop.f32.mrb[0].mxu0
        %v4701 = vadd.f32 0.0, %v4700
        %v4702 = vpop.f32.mrb[0].mxu0
        %4703 = vmatprep.mubr.f32.mxu0 0.0
        %4704 = vmatmul.mubr.f32.gmra.mrb[0].mxu0 %v4489
        %v4705 = vpop.f32.mrb[0].mxu0
        %v4706 = vadd.f32 0.0, %v4705
        %v4707 = vpop.f32.mrb[0].mxu0
        %4708 = vmatprep.mubr.f32.mxu0 0.0
        %4709 = vmatmul.mubr.f32.gmra.mrb[0].mxu0 %v4492
        %v4710 = vpop.f32.mrb[0].mxu0
        %v4711 = vadd.f32 0.0, %v4710
        %v4712 = vpop.f32.mrb[0].mxu0
        %4713 = vmatprep.mubr.f32.mxu0 0.0
        %4714 = vmatmul.mubr.f32.gmra.mrb[0].mxu0 %v4495
        %v4715 = vpop.f32.mrb[0].mxu0
        %v4716 = vadd.f32 0.0, %v4715
        %v4717 = vpop.f32.mrb[0].mxu0
        %4718 = vmatprep.mubr.f32.mxu0 0.0
        %4719 = vmatmul.mubr.f32.gmra.mrb[0].mxu0 %v4498
        %v4720 = vpop.f32.mrb[0].mxu0
        %v4721 = vadd.f32 0.0, %v4720
        %v4722 = vpop.f32.mrb[0].mxu0
        %4723 = vmatprep.mubr.f32.mxu0 0.0
        %4724 = vmatmul.mubr.f32.gmra.mrb[0].mxu0 %v4501
        %v4725 = vpop.f32.mrb[0].mxu0
        %v4726 = vadd.f32 0.0, %v4725
        %v4727 = vpop.f32.mrb[0].mxu0
        %4728 = vmatprep.mubr.f32.mxu0 0.0
        %4729 = vmatmul.mubr.f32.gmra.mrb[0].mxu0 %v4504
        %v4730 = vpop.f32.mrb[0].mxu0
        %v4731 = vadd.f32 0.0, %v4730
        %v4732 = vpop.f32.mrb[0].mxu0
        %4733 = vdwg.mxu0
        %v4734 = vadd.f32 %v4376, %v4576
        %v4735 = vadd.f32 %v4377, %v4581
        %v4736 = vadd.f32 %v4378, %v4586
        %v4737 = vadd.f32 %v4379, %v4591
        %v4738 = vadd.f32 %v4380, %v4596
        %v4739 = vadd.f32 %v4381, %v4601
        %v4740 = vadd.f32 %v4382, %v4606
        %v4741 = vadd.f32 %v4383, %v4611
        %v4742 = vadd.f32 %v4384, %v4616
        %v4743 = vadd.f32 %v4385, %v4621
        %v4744 = vadd.f32 %v4386, %v4626
        %v4745 = vadd.f32 %v4387, %v4631
        %v4746 = vadd.f32 %v4388, %v4636
        %v4747 = vadd.f32 %v4389, %v4641
        %v4748 = vadd.f32 %v4390, %v4646
        %v4749 = vadd.f32 %v4391, %v4651
        %v4750 = vadd.f32 %v4392, %v4656
        %v4751 = vadd.f32 %v4393, %v4661
        %v4752 = vadd.f32 %v4394, %v4666
        %v4753 = vadd.f32 %v4395, %v4671
        %v4754 = vadd.f32 %v4396, %v4676
        %v4755 = vadd.f32 %v4397, %v4681
        %v4756 = vadd.f32 %v4398, %v4686
        %v4757 = vadd.f32 %v4399, %v4691
        %v4758 = vadd.f32 %v4400, %v4696
        %v4759 = vadd.f32 %v4401, %v4701
        %v4760 = vadd.f32 %v4402, %v4706
        %v4761 = vadd.f32 %v4403, %v4711
        %v4762 = vadd.f32 %v4404, %v4716
        %v4763 = vadd.f32 %v4405, %v4721
        %v4764 = vadd.f32 %v4406, %v4726
        %v4765 = vadd.f32 %v4407, %v4731
        %4766 = vst [vmem:[#allocation2] sm:$0xff] %v4734
        %4767 = vst [vmem:[#allocation2 + $0x8] sm:$0xff] %v4735
        %4768 = vst [vmem:[#allocation2 + $0x10] sm:$0xff] %v4736
        %4769 = vst [vmem:[#allocation2 + $0x18] sm:$0xff] %v4737
        %4770 = vst [vmem:[#allocation2 + $0x20] sm:$0xff] %v4738
        %4771 = vst [vmem:[#allocation2 + $0x28] sm:$0xff] %v4739
        %4772 = vst [vmem:[#allocation2 + $0x30] sm:$0xff] %v4740
        %4773 = vst [vmem:[#allocation2 + $0x38] sm:$0xff] %v4741
        %4774 = vst [vmem:[#allocation2 + $0x40] sm:$0xff] %v4742
        %4775 = vst [vmem:[#allocation2 + $0x48] sm:$0xff] %v4743
        %4776 = vst [vmem:[#allocation2 + $0x50] sm:$0xff] %v4744
        %4777 = vst [vmem:[#allocation2 + $0x58] sm:$0xff] %v4745
        %4778 = vst [vmem:[#allocation2 + $0x60] sm:$0xff] %v4746
        %4779 = vst [vmem:[#allocation2 + $0x68] sm:$0xff] %v4747
        %4780 = vst [vmem:[#allocation2 + $0x70] sm:$0xff] %v4748
        %4781 = vst [vmem:[#allocation2 + $0x78] sm:$0xff] %v4749
        %4782 = vst [vmem:[#allocation2 + $0x80] sm:$0xff] %v4750
        %4783 = vst [vmem:[#allocation2 + $0x88] sm:$0xff] %v4751
        %4784 = vst [vmem:[#allocation2 + $0x90] sm:$0xff] %v4752
        %4785 = vst [vmem:[#allocation2 + $0x98] sm:$0xff] %v4753
        %4786 = vst [vmem:[#allocation2 + $0xa0] sm:$0xff] %v4754
        %4787 = vst [vmem:[#allocation2 + $0xa8] sm:$0xff] %v4755
        %4788 = vst [vmem:[#allocation2 + $0xb0] sm:$0xff] %v4756
        %4789 = vst [vmem:[#allocation2 + $0xb8] sm:$0xff] %v4757
        %4790 = vst [vmem:[#allocation2 + $0xc0] sm:$0xff] %v4758
        %4791 = vst [vmem:[#allocation2 + $0xc8] sm:$0xff] %v4759
        %4792 = vst [vmem:[#allocation2 + $0xd0] sm:$0xff] %v4760
        %4793 = vst [vmem:[#allocation2 + $0xd8] sm:$0xff] %v4761
        %4794 = vst [vmem:[#allocation2 + $0xe0] sm:$0xff] %v4762
        %4795 = vst [vmem:[#allocation2 + $0xe8] sm:$0xff] %v4763
        %4796 = vst [vmem:[#allocation2 + $0xf0] sm:$0xff] %v4764
        %4797 = vst [vmem:[#allocation2 + $0xf8] sm:$0xff] %v4765
        %v4798 = vld [vmem:[%s3889 + $0x2] sm:$0xff]
        %v4799 = vld [vmem:[%s3889 + $0x12] sm:$0xff]
        %v4800 = vld [vmem:[%s3889 + $0x22] sm:$0xff]
        %v4801 = vld [vmem:[%s3889 + $0x32] sm:$0xff]
        %v4802 = vld [vmem:[%s3889 + $0x42] sm:$0xff]
        %v4803 = vld [vmem:[%s3889 + $0x52] sm:$0xff]
        %v4804 = vld [vmem:[%s3889 + $0x62] sm:$0xff]
        %v4805 = vld [vmem:[%s3889 + $0x72] sm:$0xff]
        %v4806 = vld [vmem:[%s3889 + $0xa2] sm:$0xff]
        %v4807 = vld [vmem:[%s3889 + $0xb2] sm:$0xff]
        %v4808 = vld [vmem:[%s3889 + $0xc2] sm:$0xff]
        %v4809 = vld [vmem:[%s3889 + $0xd2] sm:$0xff]
        %v4810 = vld [vmem:[%s3889 + $0xe2] sm:$0xff]
        %v4811 = vld [vmem:[%s3889 + $0xf2] sm:$0xff]
        %v4812 = vld [vmem:[%s3889 + $0x102] sm:$0xff]
        %v4813 = vld [vmem:[%s3889 + $0x112] sm:$0xff]
        %v4814 = vld [vmem:[%s3889 + $0x142] sm:$0xff]
        %v4815 = vld [vmem:[%s3889 + $0x152] sm:$0xff]
        %v4816 = vld [vmem:[%s3889 + $0x162] sm:$0xff]
        %v4817 = vld [vmem:[%s3889 + $0x172] sm:$0xff]
        %v4818 = vld [vmem:[%s3889 + $0x182] sm:$0xff]
        %v4819 = vld [vmem:[%s3889 + $0x192] sm:$0xff]
        %v4820 = vld [vmem:[%s3889 + $0x1a2] sm:$0xff]
        %v4821 = vld [vmem:[%s3889 + $0x1b2] sm:$0xff]
        %v4822 = vld [vmem:[%s3889 + $0x1e2] sm:$0xff]
        %v4823 = vld [vmem:[%s3889 + $0x1f2] sm:$0xff]
        %v4824 = vld [vmem:[%s3889 + $0x202] sm:$0xff]
        %v4825 = vld [vmem:[%s3889 + $0x212] sm:$0xff]
        %v4826 = vld [vmem:[%s3889 + $0x222] sm:$0xff]
        %v4827 = vld [vmem:[%s3889 + $0x232] sm:$0xff]
        %v4828 = vld [vmem:[%s3889 + $0x242] sm:$0xff]
        %v4829 = vld [vmem:[%s3889 + $0x252] sm:$0xff]
        %v4830 = vld [vmem:[#allocation2] sm:$0xff]
        %v4831 = vld [vmem:[#allocation2 + $0x8] sm:$0xff]
        %v4832 = vld [vmem:[#allocation2 + $0x10] sm:$0xff]
        %v4833 = vld [vmem:[#allocation2 + $0x18] sm:$0xff]
        %v4834 = vld [vmem:[#allocation2 + $0x20] sm:$0xff]
        %v4835 = vld [vmem:[#allocation2 + $0x28] sm:$0xff]
        %v4836 = vld [vmem:[#allocation2 + $0x30] sm:$0xff]
        %v4837 = vld [vmem:[#allocation2 + $0x38] sm:$0xff]
        %v4838 = vld [vmem:[#allocation2 + $0x40] sm:$0xff]
        %v4839 = vld [vmem:[#allocation2 + $0x48] sm:$0xff]
        %v4840 = vld [vmem:[#allocation2 + $0x50] sm:$0xff]
        %v4841 = vld [vmem:[#allocation2 + $0x58] sm:$0xff]
        %v4842 = vld [vmem:[#allocation2 + $0x60] sm:$0xff]
        %v4843 = vld [vmem:[#allocation2 + $0x68] sm:$0xff]
        %v4844 = vld [vmem:[#allocation2 + $0x70] sm:$0xff]
        %v4845 = vld [vmem:[#allocation2 + $0x78] sm:$0xff]
        %v4846 = vld [vmem:[#allocation2 + $0x80] sm:$0xff]
        %v4847 = vld [vmem:[#allocation2 + $0x88] sm:$0xff]
        %v4848 = vld [vmem:[#allocation2 + $0x90] sm:$0xff]
        %v4849 = vld [vmem:[#allocation2 + $0x98] sm:$0xff]
        %v4850 = vld [vmem:[#allocation2 + $0xa0] sm:$0xff]
        %v4851 = vld [vmem:[#allocation2 + $0xa8] sm:$0xff]
        %v4852 = vld [vmem:[#allocation2 + $0xb0] sm:$0xff]
        %v4853 = vld [vmem:[#allocation2 + $0xb8] sm:$0xff]
        %v4854 = vld [vmem:[#allocation2 + $0xc0] sm:$0xff]
        %v4855 = vld [vmem:[#allocation2 + $0xc8] sm:$0xff]
        %v4856 = vld [vmem:[#allocation2 + $0xd0] sm:$0xff]
        %v4857 = vld [vmem:[#allocation2 + $0xd8] sm:$0xff]
        %v4858 = vld [vmem:[#allocation2 + $0xe0] sm:$0xff]
        %v4859 = vld [vmem:[#allocation2 + $0xe8] sm:$0xff]
        %v4860 = vld [vmem:[#allocation2 + $0xf0] sm:$0xff]
        %v4861 = vld [vmem:[#allocation2 + $0xf8] sm:$0xff]
        %s4862 = scalar_lea.vmem %s210, 40
        %v4863 = vld [vmem:[%s4862] sm:$0xf]
        %v4865 = vsel %vm318, %v4798, 0
        %v4868 = vsel %vm318, %v4799, 0
        %v4871 = vsel %vm318, %v4800, 0
        %v4874 = vsel %vm318, %v4801, 0
        %v4877 = vsel %vm318, %v4802, 0
        %v4880 = vsel %vm318, %v4803, 0
        %v4883 = vsel %vm318, %v4804, 0
        %v4886 = vsel %vm318, %v4805, 0
        %v4889 = vsel %vm318, %v4806, 0
        %v4892 = vsel %vm318, %v4807, 0
        %v4895 = vsel %vm318, %v4808, 0
        %v4898 = vsel %vm318, %v4809, 0
        %v4901 = vsel %vm318, %v4810, 0
        %v4904 = vsel %vm318, %v4811, 0
        %v4907 = vsel %vm318, %v4812, 0
        %v4910 = vsel %vm318, %v4813, 0
        %v4913 = vsel %vm318, %v4814, 0
        %v4916 = vsel %vm318, %v4815, 0
        %v4919 = vsel %vm318, %v4816, 0
        %v4922 = vsel %vm318, %v4817, 0
        %v4925 = vsel %vm318, %v4818, 0
        %v4928 = vsel %vm318, %v4819, 0
        %v4931 = vsel %vm318, %v4820, 0
        %v4934 = vsel %vm318, %v4821, 0
        %v4937 = vsel %vm318, %v4822, 0
        %v4940 = vsel %vm318, %v4823, 0
        %v4943 = vsel %vm318, %v4824, 0
        %v4946 = vsel %vm318, %v4825, 0
        %v4949 = vsel %vm318, %v4826, 0
        %v4952 = vsel %vm318, %v4827, 0
        %v4955 = vsel %vm318, %v4828, 0
        %v4958 = vsel %vm318, %v4829, 0
        %v4961 = vsel %vm415, %v4863, 0
        %4963 = vmatprep.subr.mxu0 0.0
        %4964 = vmatpush1.msra.mxu0 %v4961
        %4965 = vmatprep.subr.mxu0 0.0
        %4966 = vmatpush1.msra.mxu0 0.0
        %4967 = vmatprep.subr.mxu0 0.0
        %4968 = vmatpush1.msra.mxu0 0.0
        %4969 = vmatprep.subr.mxu0 0.0
        %4970 = vmatpush1.msra.mxu0 0.0
        %4971 = vmatprep.subr.mxu0 0.0
        %4972 = vmatpush1.msra.mxu0 0.0
        %4973 = vmatprep.subr.mxu0 0.0
        %4974 = vmatpush1.msra.mxu0 0.0
        %4975 = vmatprep.subr.mxu0 0.0
        %4976 = vmatpush1.msra.mxu0 0.0
        %4977 = vmatprep.subr.mxu0 0.0
        %4978 = vmatpush1.msra.mxu0 0.0
        %4979 = vmatprep.subr.mxu0 0.0
        %4980 = vmatpush1.msra.mxu0 0.0
        %4981 = vmatprep.subr.mxu0 0.0
        %4982 = vmatpush1.msra.mxu0 0.0
        %4983 = vmatprep.subr.mxu0 0.0
        %4984 = vmatpush1.msra.mxu0 0.0
        %4985 = vmatprep.subr.mxu0 0.0
        %4986 = vmatpush1.msra.mxu0 0.0
        %4987 = vmatprep.subr.mxu0 0.0
        %4988 = vmatpush1.msra.mxu0 0.0
        %4989 = vmatprep.subr.mxu0 0.0
        %4990 = vmatpush1.msra.mxu0 0.0
        %4991 = vmatprep.subr.mxu0 0.0
        %4992 = vmatpush1.msra.mxu0 0.0
        %4993 = vmatprep.subr.mxu0 0.0
        %4994 = vmatpush1.msra.mxu0 0.0
        %4995 = vmatprep.subr.mxu0 0.0
        %4996 = vmatpush1.msra.mxu0 0.0
        %4997 = vmatprep.subr.mxu0 0.0
        %4998 = vmatpush1.msra.mxu0 0.0
        %4999 = vmatprep.subr.mxu0 0.0
        %5000 = vmatpush1.msra.mxu0 0.0
        %5001 = vmatprep.subr.mxu0 0.0
        %5002 = vmatpush1.msra.mxu0 0.0
        %5003 = vmatprep.subr.mxu0 0.0
        %5004 = vmatpush1.msra.mxu0 0.0
        %5005 = vmatprep.subr.mxu0 0.0
        %5006 = vmatpush1.msra.mxu0 0.0
        %5007 = vmatprep.subr.mxu0 0.0
        %5008 = vmatpush1.msra.mxu0 0.0
        %5009 = vmatprep.subr.mxu0 0.0
        %5010 = vmatpush1.msra.mxu0 0.0
        %5011 = vmatprep.subr.mxu0 0.0
        %5012 = vmatpush1.msra.mxu0 0.0
        %5013 = vmatprep.subr.mxu0 0.0
        %5014 = vmatpush1.msra.mxu0 0.0
        %5015 = vmatprep.subr.mxu0 0.0
        %5016 = vmatpush1.msra.mxu0 0.0
        %5017 = vmatprep.subr.mxu0 0.0
        %5018 = vmatpush1.msra.mxu0 0.0
        %5019 = vmatprep.subr.mxu0 0.0
        %5020 = vmatpush1.msra.mxu0 0.0
        %5021 = vmatprep.subr.mxu0 0.0
        %5022 = vmatpush1.msra.mxu0 0.0
        %5023 = vmatprep.subr.mxu0 0.0
        %5024 = vmatpush1.msra.mxu0 0.0
        %5025 = vmatprep.subr.mxu0 0.0
        %5026 = vmatpush1.msra.mxu0 0.0
        %5027 = vmatprep.mubr.f32.mxu0 0.0
        %5028 = vmatmul.mubr.f32.gmra.mrb[0].mxu0 %v4865
        %v5029 = vpop.f32.mrb[0].mxu0
        %v5030 = vadd.f32 0.0, %v5029
        %v5031 = vpop.f32.mrb[0].mxu0
        %5032 = vmatprep.mubr.f32.mxu0 0.0
        %5033 = vmatmul.mubr.f32.gmra.mrb[0].mxu0 %v4868
        %v5034 = vpop.f32.mrb[0].mxu0
        %v5035 = vadd.f32 0.0, %v5034
        %v5036 = vpop.f32.mrb[0].mxu0
        %5037 = vmatprep.mubr.f32.mxu0 0.0
        %5038 = vmatmul.mubr.f32.gmra.mrb[0].mxu0 %v4871
        %v5039 = vpop.f32.mrb[0].mxu0
        %v5040 = vadd.f32 0.0, %v5039
        %v5041 = vpop.f32.mrb[0].mxu0
        %5042 = vmatprep.mubr.f32.mxu0 0.0
        %5043 = vmatmul.mubr.f32.gmra.mrb[0].mxu0 %v4874
        %v5044 = vpop.f32.mrb[0].mxu0
        %v5045 = vadd.f32 0.0, %v5044
        %v5046 = vpop.f32.mrb[0].mxu0
        %5047 = vmatprep.mubr.f32.mxu0 0.0
        %5048 = vmatmul.mubr.f32.gmra.mrb[0].mxu0 %v4877
        %v5049 = vpop.f32.mrb[0].mxu0
        %v5050 = vadd.f32 0.0, %v5049
        %v5051 = vpop.f32.mrb[0].mxu0
        %5052 = vmatprep.mubr.f32.mxu0 0.0
        %5053 = vmatmul.mubr.f32.gmra.mrb[0].mxu0 %v4880
        %v5054 = vpop.f32.mrb[0].mxu0
        %v5055 = vadd.f32 0.0, %v5054
        %v5056 = vpop.f32.mrb[0].mxu0
        %5057 = vmatprep.mubr.f32.mxu0 0.0
        %5058 = vmatmul.mubr.f32.gmra.mrb[0].mxu0 %v4883
        %v5059 = vpop.f32.mrb[0].mxu0
        %v5060 = vadd.f32 0.0, %v5059
        %v5061 = vpop.f32.mrb[0].mxu0
        %5062 = vmatprep.mubr.f32.mxu0 0.0
        %5063 = vmatmul.mubr.f32.gmra.mrb[0].mxu0 %v4886
        %v5064 = vpop.f32.mrb[0].mxu0
        %v5065 = vadd.f32 0.0, %v5064
        %v5066 = vpop.f32.mrb[0].mxu0
        %5067 = vmatprep.mubr.f32.mxu0 0.0
        %5068 = vmatmul.mubr.f32.gmra.mrb[0].mxu0 %v4889
        %v5069 = vpop.f32.mrb[0].mxu0
        %v5070 = vadd.f32 0.0, %v5069
        %v5071 = vpop.f32.mrb[0].mxu0
        %5072 = vmatprep.mubr.f32.mxu0 0.0
        %5073 = vmatmul.mubr.f32.gmra.mrb[0].mxu0 %v4892
        %v5074 = vpop.f32.mrb[0].mxu0
        %v5075 = vadd.f32 0.0, %v5074
        %v5076 = vpop.f32.mrb[0].mxu0
        %5077 = vmatprep.mubr.f32.mxu0 0.0
        %5078 = vmatmul.mubr.f32.gmra.mrb[0].mxu0 %v4895
        %v5079 = vpop.f32.mrb[0].mxu0
        %v5080 = vadd.f32 0.0, %v5079
        %v5081 = vpop.f32.mrb[0].mxu0
        %5082 = vmatprep.mubr.f32.mxu0 0.0
        %5083 = vmatmul.mubr.f32.gmra.mrb[0].mxu0 %v4898
        %v5084 = vpop.f32.mrb[0].mxu0
        %v5085 = vadd.f32 0.0, %v5084
        %v5086 = vpop.f32.mrb[0].mxu0
        %5087 = vmatprep.mubr.f32.mxu0 0.0
        %5088 = vmatmul.mubr.f32.gmra.mrb[0].mxu0 %v4901
        %v5089 = vpop.f32.mrb[0].mxu0
        %v5090 = vadd.f32 0.0, %v5089
        %v5091 = vpop.f32.mrb[0].mxu0
        %5092 = vmatprep.mubr.f32.mxu0 0.0
        %5093 = vmatmul.mubr.f32.gmra.mrb[0].mxu0 %v4904
        %v5094 = vpop.f32.mrb[0].mxu0
        %v5095 = vadd.f32 0.0, %v5094
        %v5096 = vpop.f32.mrb[0].mxu0
        %5097 = vmatprep.mubr.f32.mxu0 0.0
        %5098 = vmatmul.mubr.f32.gmra.mrb[0].mxu0 %v4907
        %v5099 = vpop.f32.mrb[0].mxu0
        %v5100 = vadd.f32 0.0, %v5099
        %v5101 = vpop.f32.mrb[0].mxu0
        %5102 = vmatprep.mubr.f32.mxu0 0.0
        %5103 = vmatmul.mubr.f32.gmra.mrb[0].mxu0 %v4910
        %v5104 = vpop.f32.mrb[0].mxu0
        %v5105 = vadd.f32 0.0, %v5104
        %v5106 = vpop.f32.mrb[0].mxu0
        %5107 = vmatprep.mubr.f32.mxu0 0.0
        %5108 = vmatmul.mubr.f32.gmra.mrb[0].mxu0 %v4913
        %v5109 = vpop.f32.mrb[0].mxu0
        %v5110 = vadd.f32 0.0, %v5109
        %v5111 = vpop.f32.mrb[0].mxu0
        %5112 = vmatprep.mubr.f32.mxu0 0.0
        %5113 = vmatmul.mubr.f32.gmra.mrb[0].mxu0 %v4916
        %v5114 = vpop.f32.mrb[0].mxu0
        %v5115 = vadd.f32 0.0, %v5114
        %v5116 = vpop.f32.mrb[0].mxu0
        %5117 = vmatprep.mubr.f32.mxu0 0.0
        %5118 = vmatmul.mubr.f32.gmra.mrb[0].mxu0 %v4919
        %v5119 = vpop.f32.mrb[0].mxu0
        %v5120 = vadd.f32 0.0, %v5119
        %v5121 = vpop.f32.mrb[0].mxu0
        %5122 = vmatprep.mubr.f32.mxu0 0.0
        %5123 = vmatmul.mubr.f32.gmra.mrb[0].mxu0 %v4922
        %v5124 = vpop.f32.mrb[0].mxu0
        %v5125 = vadd.f32 0.0, %v5124
        %v5126 = vpop.f32.mrb[0].mxu0
        %5127 = vmatprep.mubr.f32.mxu0 0.0
        %5128 = vmatmul.mubr.f32.gmra.mrb[0].mxu0 %v4925
        %v5129 = vpop.f32.mrb[0].mxu0
        %v5130 = vadd.f32 0.0, %v5129
        %v5131 = vpop.f32.mrb[0].mxu0
        %5132 = vmatprep.mubr.f32.mxu0 0.0
        %5133 = vmatmul.mubr.f32.gmra.mrb[0].mxu0 %v4928
        %v5134 = vpop.f32.mrb[0].mxu0
        %v5135 = vadd.f32 0.0, %v5134
        %v5136 = vpop.f32.mrb[0].mxu0
        %5137 = vmatprep.mubr.f32.mxu0 0.0
        %5138 = vmatmul.mubr.f32.gmra.mrb[0].mxu0 %v4931
        %v5139 = vpop.f32.mrb[0].mxu0
        %v5140 = vadd.f32 0.0, %v5139
        %v5141 = vpop.f32.mrb[0].mxu0
        %5142 = vmatprep.mubr.f32.mxu0 0.0
        %5143 = vmatmul.mubr.f32.gmra.mrb[0].mxu0 %v4934
        %v5144 = vpop.f32.mrb[0].mxu0
        %v5145 = vadd.f32 0.0, %v5144
        %v5146 = vpop.f32.mrb[0].mxu0
        %5147 = vmatprep.mubr.f32.mxu0 0.0
        %5148 = vmatmul.mubr.f32.gmra.mrb[0].mxu0 %v4937
        %v5149 = vpop.f32.mrb[0].mxu0
        %v5150 = vadd.f32 0.0, %v5149
        %v5151 = vpop.f32.mrb[0].mxu0
        %5152 = vmatprep.mubr.f32.mxu0 0.0
        %5153 = vmatmul.mubr.f32.gmra.mrb[0].mxu0 %v4940
        %v5154 = vpop.f32.mrb[0].mxu0
        %v5155 = vadd.f32 0.0, %v5154
        %v5156 = vpop.f32.mrb[0].mxu0
        %5157 = vmatprep.mubr.f32.mxu0 0.0
        %5158 = vmatmul.mubr.f32.gmra.mrb[0].mxu0 %v4943
        %v5159 = vpop.f32.mrb[0].mxu0
        %v5160 = vadd.f32 0.0, %v5159
        %v5161 = vpop.f32.mrb[0].mxu0
        %5162 = vmatprep.mubr.f32.mxu0 0.0
        %5163 = vmatmul.mubr.f32.gmra.mrb[0].mxu0 %v4946
        %v5164 = vpop.f32.mrb[0].mxu0
        %v5165 = vadd.f32 0.0, %v5164
        %v5166 = vpop.f32.mrb[0].mxu0
        %5167 = vmatprep.mubr.f32.mxu0 0.0
        %5168 = vmatmul.mubr.f32.gmra.mrb[0].mxu0 %v4949
        %v5169 = vpop.f32.mrb[0].mxu0
        %v5170 = vadd.f32 0.0, %v5169
        %v5171 = vpop.f32.mrb[0].mxu0
        %5172 = vmatprep.mubr.f32.mxu0 0.0
        %5173 = vmatmul.mubr.f32.gmra.mrb[0].mxu0 %v4952
        %v5174 = vpop.f32.mrb[0].mxu0
        %v5175 = vadd.f32 0.0, %v5174
        %v5176 = vpop.f32.mrb[0].mxu0
        %5177 = vmatprep.mubr.f32.mxu0 0.0
        %5178 = vmatmul.mubr.f32.gmra.mrb[0].mxu0 %v4955
        %v5179 = vpop.f32.mrb[0].mxu0
        %v5180 = vadd.f32 0.0, %v5179
        %v5181 = vpop.f32.mrb[0].mxu0
        %5182 = vmatprep.mubr.f32.mxu0 0.0
        %5183 = vmatmul.mubr.f32.gmra.mrb[0].mxu0 %v4958
        %v5184 = vpop.f32.mrb[0].mxu0
        %v5185 = vadd.f32 0.0, %v5184
        %v5186 = vpop.f32.mrb[0].mxu0
        %5187 = vdwg.mxu0
        %v5188 = vadd.f32 %v4830, %v5030
        %v5189 = vadd.f32 %v4831, %v5035
        %v5190 = vadd.f32 %v4832, %v5040
        %v5191 = vadd.f32 %v4833, %v5045
        %v5192 = vadd.f32 %v4834, %v5050
        %v5193 = vadd.f32 %v4835, %v5055
        %v5194 = vadd.f32 %v4836, %v5060
        %v5195 = vadd.f32 %v4837, %v5065
        %v5196 = vadd.f32 %v4838, %v5070
        %v5197 = vadd.f32 %v4839, %v5075
        %v5198 = vadd.f32 %v4840, %v5080
        %v5199 = vadd.f32 %v4841, %v5085
        %v5200 = vadd.f32 %v4842, %v5090
        %v5201 = vadd.f32 %v4843, %v5095
        %v5202 = vadd.f32 %v4844, %v5100
        %v5203 = vadd.f32 %v4845, %v5105
        %v5204 = vadd.f32 %v4846, %v5110
        %v5205 = vadd.f32 %v4847, %v5115
        %v5206 = vadd.f32 %v4848, %v5120
        %v5207 = vadd.f32 %v4849, %v5125
        %v5208 = vadd.f32 %v4850, %v5130
        %v5209 = vadd.f32 %v4851, %v5135
        %v5210 = vadd.f32 %v4852, %v5140
        %v5211 = vadd.f32 %v4853, %v5145
        %v5212 = vadd.f32 %v4854, %v5150
        %v5213 = vadd.f32 %v4855, %v5155
        %v5214 = vadd.f32 %v4856, %v5160
        %v5215 = vadd.f32 %v4857, %v5165
        %v5216 = vadd.f32 %v4858, %v5170
        %v5217 = vadd.f32 %v4859, %v5175
        %v5218 = vadd.f32 %v4860, %v5180
        %v5219 = vadd.f32 %v4861, %v5185
        %5220 = vst [vmem:[#allocation2] sm:$0xff] %v5188
        %5221 = vst [vmem:[#allocation2 + $0x8] sm:$0xff] %v5189
        %5222 = vst [vmem:[#allocation2 + $0x10] sm:$0xff] %v5190
        %5223 = vst [vmem:[#allocation2 + $0x18] sm:$0xff] %v5191
        %5224 = vst [vmem:[#allocation2 + $0x20] sm:$0xff] %v5192
        %5225 = vst [vmem:[#allocation2 + $0x28] sm:$0xff] %v5193
        %5226 = vst [vmem:[#allocation2 + $0x30] sm:$0xff] %v5194
        %5227 = vst [vmem:[#allocation2 + $0x38] sm:$0xff] %v5195
        %5228 = vst [vmem:[#allocation2 + $0x40] sm:$0xff] %v5196
        %5229 = vst [vmem:[#allocation2 + $0x48] sm:$0xff] %v5197
        %5230 = vst [vmem:[#allocation2 + $0x50] sm:$0xff] %v5198
        %5231 = vst [vmem:[#allocation2 + $0x58] sm:$0xff] %v5199
        %5232 = vst [vmem:[#allocation2 + $0x60] sm:$0xff] %v5200
        %5233 = vst [vmem:[#allocation2 + $0x68] sm:$0xff] %v5201
        %5234 = vst [vmem:[#allocation2 + $0x70] sm:$0xff] %v5202
        %5235 = vst [vmem:[#allocation2 + $0x78] sm:$0xff] %v5203
        %5236 = vst [vmem:[#allocation2 + $0x80] sm:$0xff] %v5204
        %5237 = vst [vmem:[#allocation2 + $0x88] sm:$0xff] %v5205
        %5238 = vst [vmem:[#allocation2 + $0x90] sm:$0xff] %v5206
        %5239 = vst [vmem:[#allocation2 + $0x98] sm:$0xff] %v5207
        %5240 = vst [vmem:[#allocation2 + $0xa0] sm:$0xff] %v5208
        %5241 = vst [vmem:[#allocation2 + $0xa8] sm:$0xff] %v5209
        %5242 = vst [vmem:[#allocation2 + $0xb0] sm:$0xff] %v5210
        %5243 = vst [vmem:[#allocation2 + $0xb8] sm:$0xff] %v5211
        %5244 = vst [vmem:[#allocation2 + $0xc0] sm:$0xff] %v5212
        %5245 = vst [vmem:[#allocation2 + $0xc8] sm:$0xff] %v5213
        %5246 = vst [vmem:[#allocation2 + $0xd0] sm:$0xff] %v5214
        %5247 = vst [vmem:[#allocation2 + $0xd8] sm:$0xff] %v5215
        %5248 = vst [vmem:[#allocation2 + $0xe0] sm:$0xff] %v5216
        %5249 = vst [vmem:[#allocation2 + $0xe8] sm:$0xff] %v5217
        %5250 = vst [vmem:[#allocation2 + $0xf0] sm:$0xff] %v5218
        %5251 = vst [vmem:[#allocation2 + $0xf8] sm:$0xff] %v5219
        %s5252 = scalar_lea.vmem %s206, 192
        %v5253 = vld [vmem:[%s5252] sm:$0xff]
        %v5254 = vld [vmem:[%s5252 + $0x10] sm:$0xff]
        %v5255 = vld [vmem:[%s5252 + $0x20] sm:$0xff]
        %v5256 = vld [vmem:[%s5252 + $0x30] sm:$0xff]
        %v5257 = vld [vmem:[%s5252 + $0x40] sm:$0xff]
        %v5258 = vld [vmem:[%s5252 + $0x50] sm:$0xff]
        %v5259 = vld [vmem:[%s5252 + $0x60] sm:$0xff]
        %v5260 = vld [vmem:[%s5252 + $0x70] sm:$0xff]
        %v5261 = vld [vmem:[%s5252 + $0xa0] sm:$0xff]
        %v5262 = vld [vmem:[%s5252 + $0xb0] sm:$0xff]
        %v5263 = vld [vmem:[%s5252 + $0xc0] sm:$0xff]
        %v5264 = vld [vmem:[%s5252 + $0xd0] sm:$0xff]
        %v5265 = vld [vmem:[%s5252 + $0xe0] sm:$0xff]
        %v5266 = vld [vmem:[%s5252 + $0xf0] sm:$0xff]
        %v5267 = vld [vmem:[%s5252 + $0x100] sm:$0xff]
        %v5268 = vld [vmem:[%s5252 + $0x110] sm:$0xff]
        %v5269 = vld [vmem:[%s5252 + $0x140] sm:$0xff]
        %v5270 = vld [vmem:[%s5252 + $0x150] sm:$0xff]
        %v5271 = vld [vmem:[%s5252 + $0x160] sm:$0xff]
        %v5272 = vld [vmem:[%s5252 + $0x170] sm:$0xff]
        %v5273 = vld [vmem:[%s5252 + $0x180] sm:$0xff]
        %v5274 = vld [vmem:[%s5252 + $0x190] sm:$0xff]
        %v5275 = vld [vmem:[%s5252 + $0x1a0] sm:$0xff]
        %v5276 = vld [vmem:[%s5252 + $0x1b0] sm:$0xff]
        %v5277 = vld [vmem:[%s5252 + $0x1e0] sm:$0xff]
        %v5278 = vld [vmem:[%s5252 + $0x1f0] sm:$0xff]
        %v5279 = vld [vmem:[%s5252 + $0x200] sm:$0xff]
        %v5280 = vld [vmem:[%s5252 + $0x210] sm:$0xff]
        %v5281 = vld [vmem:[%s5252 + $0x220] sm:$0xff]
        %v5282 = vld [vmem:[%s5252 + $0x230] sm:$0xff]
        %v5283 = vld [vmem:[%s5252 + $0x240] sm:$0xff]
        %v5284 = vld [vmem:[%s5252 + $0x250] sm:$0xff]
        %v5285 = vld [vmem:[#allocation2] sm:$0xff]
        %v5286 = vld [vmem:[#allocation2 + $0x8] sm:$0xff]
        %v5287 = vld [vmem:[#allocation2 + $0x10] sm:$0xff]
        %v5288 = vld [vmem:[#allocation2 + $0x18] sm:$0xff]
        %v5289 = vld [vmem:[#allocation2 + $0x20] sm:$0xff]
        %v5290 = vld [vmem:[#allocation2 + $0x28] sm:$0xff]
        %v5291 = vld [vmem:[#allocation2 + $0x30] sm:$0xff]
        %v5292 = vld [vmem:[#allocation2 + $0x38] sm:$0xff]
        %v5293 = vld [vmem:[#allocation2 + $0x40] sm:$0xff]
        %v5294 = vld [vmem:[#allocation2 + $0x48] sm:$0xff]
        %v5295 = vld [vmem:[#allocation2 + $0x50] sm:$0xff]
        %v5296 = vld [vmem:[#allocation2 + $0x58] sm:$0xff]
        %v5297 = vld [vmem:[#allocation2 + $0x60] sm:$0xff]
        %v5298 = vld [vmem:[#allocation2 + $0x68] sm:$0xff]
        %v5299 = vld [vmem:[#allocation2 + $0x70] sm:$0xff]
        %v5300 = vld [vmem:[#allocation2 + $0x78] sm:$0xff]
        %v5301 = vld [vmem:[#allocation2 + $0x80] sm:$0xff]
        %v5302 = vld [vmem:[#allocation2 + $0x88] sm:$0xff]
        %v5303 = vld [vmem:[#allocation2 + $0x90] sm:$0xff]
        %v5304 = vld [vmem:[#allocation2 + $0x98] sm:$0xff]
        %v5305 = vld [vmem:[#allocation2 + $0xa0] sm:$0xff]
        %v5306 = vld [vmem:[#allocation2 + $0xa8] sm:$0xff]
        %v5307 = vld [vmem:[#allocation2 + $0xb0] sm:$0xff]
        %v5308 = vld [vmem:[#allocation2 + $0xb8] sm:$0xff]
        %v5309 = vld [vmem:[#allocation2 + $0xc0] sm:$0xff]
        %v5310 = vld [vmem:[#allocation2 + $0xc8] sm:$0xff]
        %v5311 = vld [vmem:[#allocation2 + $0xd0] sm:$0xff]
        %v5312 = vld [vmem:[#allocation2 + $0xd8] sm:$0xff]
        %v5313 = vld [vmem:[#allocation2 + $0xe0] sm:$0xff]
        %v5314 = vld [vmem:[#allocation2 + $0xe8] sm:$0xff]
        %v5315 = vld [vmem:[#allocation2 + $0xf0] sm:$0xff]
        %v5316 = vld [vmem:[#allocation2 + $0xf8] sm:$0xff]
        %s5317 = scalar_lea.vmem %s210, 44
        %v5318 = vld [vmem:[%s5317] sm:$0xf]
        %v5320 = vsel %vm318, %v5253, 0
        %v5323 = vsel %vm318, %v5254, 0
        %v5326 = vsel %vm318, %v5255, 0
        %v5329 = vsel %vm318, %v5256, 0
        %v5332 = vsel %vm318, %v5257, 0
        %v5335 = vsel %vm318, %v5258, 0
        %v5338 = vsel %vm318, %v5259, 0
        %v5341 = vsel %vm318, %v5260, 0
        %v5344 = vsel %vm318, %v5261, 0
        %v5347 = vsel %vm318, %v5262, 0
        %v5350 = vsel %vm318, %v5263, 0
        %v5353 = vsel %vm318, %v5264, 0
        %v5356 = vsel %vm318, %v5265, 0
        %v5359 = vsel %vm318, %v5266, 0
        %v5362 = vsel %vm318, %v5267, 0
        %v5365 = vsel %vm318, %v5268, 0
        %v5368 = vsel %vm318, %v5269, 0
        %v5371 = vsel %vm318, %v5270, 0
        %v5374 = vsel %vm318, %v5271, 0
        %v5377 = vsel %vm318, %v5272, 0
        %v5380 = vsel %vm318, %v5273, 0
        %v5383 = vsel %vm318, %v5274, 0
        %v5386 = vsel %vm318, %v5275, 0
        %v5389 = vsel %vm318, %v5276, 0
        %v5392 = vsel %vm318, %v5277, 0
        %v5395 = vsel %vm318, %v5278, 0
        %v5398 = vsel %vm318, %v5279, 0
        %v5401 = vsel %vm318, %v5280, 0
        %v5404 = vsel %vm318, %v5281, 0
        %v5407 = vsel %vm318, %v5282, 0
        %v5410 = vsel %vm318, %v5283, 0
        %v5413 = vsel %vm318, %v5284, 0
        %v5416 = vsel %vm415, %v5318, 0
        %5418 = vmatprep.subr.mxu0 0.0
        %5419 = vmatpush1.msra.mxu0 %v5416
        %5420 = vmatprep.subr.mxu0 0.0
        %5421 = vmatpush1.msra.mxu0 0.0
        %5422 = vmatprep.subr.mxu0 0.0
        %5423 = vmatpush1.msra.mxu0 0.0
        %5424 = vmatprep.subr.mxu0 0.0
        %5425 = vmatpush1.msra.mxu0 0.0
        %5426 = vmatprep.subr.mxu0 0.0
        %5427 = vmatpush1.msra.mxu0 0.0
        %5428 = vmatprep.subr.mxu0 0.0
        %5429 = vmatpush1.msra.mxu0 0.0
        %5430 = vmatprep.subr.mxu0 0.0
        %5431 = vmatpush1.msra.mxu0 0.0
        %5432 = vmatprep.subr.mxu0 0.0
        %5433 = vmatpush1.msra.mxu0 0.0
        %5434 = vmatprep.subr.mxu0 0.0
        %5435 = vmatpush1.msra.mxu0 0.0
        %5436 = vmatprep.subr.mxu0 0.0
        %5437 = vmatpush1.msra.mxu0 0.0
        %5438 = vmatprep.subr.mxu0 0.0
        %5439 = vmatpush1.msra.mxu0 0.0
        %5440 = vmatprep.subr.mxu0 0.0
        %5441 = vmatpush1.msra.mxu0 0.0
        %5442 = vmatprep.subr.mxu0 0.0
        %5443 = vmatpush1.msra.mxu0 0.0
        %5444 = vmatprep.subr.mxu0 0.0
        %5445 = vmatpush1.msra.mxu0 0.0
        %5446 = vmatprep.subr.mxu0 0.0
        %5447 = vmatpush1.msra.mxu0 0.0
        %5448 = vmatprep.subr.mxu0 0.0
        %5449 = vmatpush1.msra.mxu0 0.0
        %5450 = vmatprep.subr.mxu0 0.0
        %5451 = vmatpush1.msra.mxu0 0.0
        %5452 = vmatprep.subr.mxu0 0.0
        %5453 = vmatpush1.msra.mxu0 0.0
        %5454 = vmatprep.subr.mxu0 0.0
        %5455 = vmatpush1.msra.mxu0 0.0
        %5456 = vmatprep.subr.mxu0 0.0
        %5457 = vmatpush1.msra.mxu0 0.0
        %5458 = vmatprep.subr.mxu0 0.0
        %5459 = vmatpush1.msra.mxu0 0.0
        %5460 = vmatprep.subr.mxu0 0.0
        %5461 = vmatpush1.msra.mxu0 0.0
        %5462 = vmatprep.subr.mxu0 0.0
        %5463 = vmatpush1.msra.mxu0 0.0
        %5464 = vmatprep.subr.mxu0 0.0
        %5465 = vmatpush1.msra.mxu0 0.0
        %5466 = vmatprep.subr.mxu0 0.0
        %5467 = vmatpush1.msra.mxu0 0.0
        %5468 = vmatprep.subr.mxu0 0.0
        %5469 = vmatpush1.msra.mxu0 0.0
        %5470 = vmatprep.subr.mxu0 0.0
        %5471 = vmatpush1.msra.mxu0 0.0
        %5472 = vmatprep.subr.mxu0 0.0
        %5473 = vmatpush1.msra.mxu0 0.0
        %5474 = vmatprep.subr.mxu0 0.0
        %5475 = vmatpush1.msra.mxu0 0.0
        %5476 = vmatprep.subr.mxu0 0.0
        %5477 = vmatpush1.msra.mxu0 0.0
        %5478 = vmatprep.subr.mxu0 0.0
        %5479 = vmatpush1.msra.mxu0 0.0
        %5480 = vmatprep.subr.mxu0 0.0
        %5481 = vmatpush1.msra.mxu0 0.0
        %5482 = vmatprep.mubr.f32.mxu0 0.0
        %5483 = vmatmul.mubr.f32.gmra.mrb[0].mxu0 %v5320
        %v5484 = vpop.f32.mrb[0].mxu0
        %v5485 = vadd.f32 0.0, %v5484
        %v5486 = vpop.f32.mrb[0].mxu0
        %5487 = vmatprep.mubr.f32.mxu0 0.0
        %5488 = vmatmul.mubr.f32.gmra.mrb[0].mxu0 %v5323
        %v5489 = vpop.f32.mrb[0].mxu0
        %v5490 = vadd.f32 0.0, %v5489
        %v5491 = vpop.f32.mrb[0].mxu0
        %5492 = vmatprep.mubr.f32.mxu0 0.0
        %5493 = vmatmul.mubr.f32.gmra.mrb[0].mxu0 %v5326
        %v5494 = vpop.f32.mrb[0].mxu0
        %v5495 = vadd.f32 0.0, %v5494
        %v5496 = vpop.f32.mrb[0].mxu0
        %5497 = vmatprep.mubr.f32.mxu0 0.0
        %5498 = vmatmul.mubr.f32.gmra.mrb[0].mxu0 %v5329
        %v5499 = vpop.f32.mrb[0].mxu0
        %v5500 = vadd.f32 0.0, %v5499
        %v5501 = vpop.f32.mrb[0].mxu0
        %5502 = vmatprep.mubr.f32.mxu0 0.0
        %5503 = vmatmul.mubr.f32.gmra.mrb[0].mxu0 %v5332
        %v5504 = vpop.f32.mrb[0].mxu0
        %v5505 = vadd.f32 0.0, %v5504
        %v5506 = vpop.f32.mrb[0].mxu0
        %5507 = vmatprep.mubr.f32.mxu0 0.0
        %5508 = vmatmul.mubr.f32.gmra.mrb[0].mxu0 %v5335
        %v5509 = vpop.f32.mrb[0].mxu0
        %v5510 = vadd.f32 0.0, %v5509
        %v5511 = vpop.f32.mrb[0].mxu0
        %5512 = vmatprep.mubr.f32.mxu0 0.0
        %5513 = vmatmul.mubr.f32.gmra.mrb[0].mxu0 %v5338
        %v5514 = vpop.f32.mrb[0].mxu0
        %v5515 = vadd.f32 0.0, %v5514
        %v5516 = vpop.f32.mrb[0].mxu0
        %5517 = vmatprep.mubr.f32.mxu0 0.0
        %5518 = vmatmul.mubr.f32.gmra.mrb[0].mxu0 %v5341
        %v5519 = vpop.f32.mrb[0].mxu0
        %v5520 = vadd.f32 0.0, %v5519
        %v5521 = vpop.f32.mrb[0].mxu0
        %5522 = vmatprep.mubr.f32.mxu0 0.0
        %5523 = vmatmul.mubr.f32.gmra.mrb[0].mxu0 %v5344
        %v5524 = vpop.f32.mrb[0].mxu0
        %v5525 = vadd.f32 0.0, %v5524
        %v5526 = vpop.f32.mrb[0].mxu0
        %5527 = vmatprep.mubr.f32.mxu0 0.0
        %5528 = vmatmul.mubr.f32.gmra.mrb[0].mxu0 %v5347
        %v5529 = vpop.f32.mrb[0].mxu0
        %v5530 = vadd.f32 0.0, %v5529
        %v5531 = vpop.f32.mrb[0].mxu0
        %5532 = vmatprep.mubr.f32.mxu0 0.0
        %5533 = vmatmul.mubr.f32.gmra.mrb[0].mxu0 %v5350
        %v5534 = vpop.f32.mrb[0].mxu0
        %v5535 = vadd.f32 0.0, %v5534
        %v5536 = vpop.f32.mrb[0].mxu0
        %5537 = vmatprep.mubr.f32.mxu0 0.0
        %5538 = vmatmul.mubr.f32.gmra.mrb[0].mxu0 %v5353
        %v5539 = vpop.f32.mrb[0].mxu0
        %v5540 = vadd.f32 0.0, %v5539
        %v5541 = vpop.f32.mrb[0].mxu0
        %5542 = vmatprep.mubr.f32.mxu0 0.0
        %5543 = vmatmul.mubr.f32.gmra.mrb[0].mxu0 %v5356
        %v5544 = vpop.f32.mrb[0].mxu0
        %v5545 = vadd.f32 0.0, %v5544
        %v5546 = vpop.f32.mrb[0].mxu0
        %5547 = vmatprep.mubr.f32.mxu0 0.0
        %5548 = vmatmul.mubr.f32.gmra.mrb[0].mxu0 %v5359
        %v5549 = vpop.f32.mrb[0].mxu0
        %v5550 = vadd.f32 0.0, %v5549
        %v5551 = vpop.f32.mrb[0].mxu0
        %5552 = vmatprep.mubr.f32.mxu0 0.0
        %5553 = vmatmul.mubr.f32.gmra.mrb[0].mxu0 %v5362
        %v5554 = vpop.f32.mrb[0].mxu0
        %v5555 = vadd.f32 0.0, %v5554
        %v5556 = vpop.f32.mrb[0].mxu0
        %5557 = vmatprep.mubr.f32.mxu0 0.0
        %5558 = vmatmul.mubr.f32.gmra.mrb[0].mxu0 %v5365
        %v5559 = vpop.f32.mrb[0].mxu0
        %v5560 = vadd.f32 0.0, %v5559
        %v5561 = vpop.f32.mrb[0].mxu0
        %5562 = vmatprep.mubr.f32.mxu0 0.0
        %5563 = vmatmul.mubr.f32.gmra.mrb[0].mxu0 %v5368
        %v5564 = vpop.f32.mrb[0].mxu0
        %v5565 = vadd.f32 0.0, %v5564
        %v5566 = vpop.f32.mrb[0].mxu0
        %5567 = vmatprep.mubr.f32.mxu0 0.0
        %5568 = vmatmul.mubr.f32.gmra.mrb[0].mxu0 %v5371
        %v5569 = vpop.f32.mrb[0].mxu0
        %v5570 = vadd.f32 0.0, %v5569
        %v5571 = vpop.f32.mrb[0].mxu0
        %5572 = vmatprep.mubr.f32.mxu0 0.0
        %5573 = vmatmul.mubr.f32.gmra.mrb[0].mxu0 %v5374
        %v5574 = vpop.f32.mrb[0].mxu0
        %v5575 = vadd.f32 0.0, %v5574
        %v5576 = vpop.f32.mrb[0].mxu0
        %5577 = vmatprep.mubr.f32.mxu0 0.0
        %5578 = vmatmul.mubr.f32.gmra.mrb[0].mxu0 %v5377
        %v5579 = vpop.f32.mrb[0].mxu0
        %v5580 = vadd.f32 0.0, %v5579
        %v5581 = vpop.f32.mrb[0].mxu0
        %5582 = vmatprep.mubr.f32.mxu0 0.0
        %5583 = vmatmul.mubr.f32.gmra.mrb[0].mxu0 %v5380
        %v5584 = vpop.f32.mrb[0].mxu0
        %v5585 = vadd.f32 0.0, %v5584
        %v5586 = vpop.f32.mrb[0].mxu0
        %5587 = vmatprep.mubr.f32.mxu0 0.0
        %5588 = vmatmul.mubr.f32.gmra.mrb[0].mxu0 %v5383
        %v5589 = vpop.f32.mrb[0].mxu0
        %v5590 = vadd.f32 0.0, %v5589
        %v5591 = vpop.f32.mrb[0].mxu0
        %5592 = vmatprep.mubr.f32.mxu0 0.0
        %5593 = vmatmul.mubr.f32.gmra.mrb[0].mxu0 %v5386
        %v5594 = vpop.f32.mrb[0].mxu0
        %v5595 = vadd.f32 0.0, %v5594
        %v5596 = vpop.f32.mrb[0].mxu0
        %5597 = vmatprep.mubr.f32.mxu0 0.0
        %5598 = vmatmul.mubr.f32.gmra.mrb[0].mxu0 %v5389
        %v5599 = vpop.f32.mrb[0].mxu0
        %v5600 = vadd.f32 0.0, %v5599
        %v5601 = vpop.f32.mrb[0].mxu0
        %5602 = vmatprep.mubr.f32.mxu0 0.0
        %5603 = vmatmul.mubr.f32.gmra.mrb[0].mxu0 %v5392
        %v5604 = vpop.f32.mrb[0].mxu0
        %v5605 = vadd.f32 0.0, %v5604
        %v5606 = vpop.f32.mrb[0].mxu0
        %5607 = vmatprep.mubr.f32.mxu0 0.0
        %5608 = vmatmul.mubr.f32.gmra.mrb[0].mxu0 %v5395
        %v5609 = vpop.f32.mrb[0].mxu0
        %v5610 = vadd.f32 0.0, %v5609
        %v5611 = vpop.f32.mrb[0].mxu0
        %5612 = vmatprep.mubr.f32.mxu0 0.0
        %5613 = vmatmul.mubr.f32.gmra.mrb[0].mxu0 %v5398
        %v5614 = vpop.f32.mrb[0].mxu0
        %v5615 = vadd.f32 0.0, %v5614
        %v5616 = vpop.f32.mrb[0].mxu0
        %5617 = vmatprep.mubr.f32.mxu0 0.0
        %5618 = vmatmul.mubr.f32.gmra.mrb[0].mxu0 %v5401
        %v5619 = vpop.f32.mrb[0].mxu0
        %v5620 = vadd.f32 0.0, %v5619
        %v5621 = vpop.f32.mrb[0].mxu0
        %5622 = vmatprep.mubr.f32.mxu0 0.0
        %5623 = vmatmul.mubr.f32.gmra.mrb[0].mxu0 %v5404
        %v5624 = vpop.f32.mrb[0].mxu0
        %v5625 = vadd.f32 0.0, %v5624
        %v5626 = vpop.f32.mrb[0].mxu0
        %5627 = vmatprep.mubr.f32.mxu0 0.0
        %5628 = vmatmul.mubr.f32.gmra.mrb[0].mxu0 %v5407
        %v5629 = vpop.f32.mrb[0].mxu0
        %v5630 = vadd.f32 0.0, %v5629
        %v5631 = vpop.f32.mrb[0].mxu0
        %5632 = vmatprep.mubr.f32.mxu0 0.0
        %5633 = vmatmul.mubr.f32.gmra.mrb[0].mxu0 %v5410
        %v5634 = vpop.f32.mrb[0].mxu0
        %v5635 = vadd.f32 0.0, %v5634
        %v5636 = vpop.f32.mrb[0].mxu0
        %5637 = vmatprep.mubr.f32.mxu0 0.0
        %5638 = vmatmul.mubr.f32.gmra.mrb[0].mxu0 %v5413
        %v5639 = vpop.f32.mrb[0].mxu0
        %v5640 = vadd.f32 0.0, %v5639
        %v5641 = vpop.f32.mrb[0].mxu0
        %5642 = vdwg.mxu0
        %v5643 = vadd.f32 %v5285, %v5485
        %v5644 = vadd.f32 %v5286, %v5490
        %v5645 = vadd.f32 %v5287, %v5495
        %v5646 = vadd.f32 %v5288, %v5500
        %v5647 = vadd.f32 %v5289, %v5505
        %v5648 = vadd.f32 %v5290, %v5510
        %v5649 = vadd.f32 %v5291, %v5515
        %v5650 = vadd.f32 %v5292, %v5520
        %v5651 = vadd.f32 %v5293, %v5525
        %v5652 = vadd.f32 %v5294, %v5530
        %v5653 = vadd.f32 %v5295, %v5535
        %v5654 = vadd.f32 %v5296, %v5540
        %v5655 = vadd.f32 %v5297, %v5545
        %v5656 = vadd.f32 %v5298, %v5550
        %v5657 = vadd.f32 %v5299, %v5555
        %v5658 = vadd.f32 %v5300, %v5560
        %v5659 = vadd.f32 %v5301, %v5565
        %v5660 = vadd.f32 %v5302, %v5570
        %v5661 = vadd.f32 %v5303, %v5575
        %v5662 = vadd.f32 %v5304, %v5580
        %v5663 = vadd.f32 %v5305, %v5585
        %v5664 = vadd.f32 %v5306, %v5590
        %v5665 = vadd.f32 %v5307, %v5595
        %v5666 = vadd.f32 %v5308, %v5600
        %v5667 = vadd.f32 %v5309, %v5605
        %v5668 = vadd.f32 %v5310, %v5610
        %v5669 = vadd.f32 %v5311, %v5615
        %v5670 = vadd.f32 %v5312, %v5620
        %v5671 = vadd.f32 %v5313, %v5625
        %v5672 = vadd.f32 %v5314, %v5630
        %v5673 = vadd.f32 %v5315, %v5635
        %v5674 = vadd.f32 %v5316, %v5640
        %5675 = vst [vmem:[#allocation2] sm:$0xff] %v5643
        %5676 = vst [vmem:[#allocation2 + $0x8] sm:$0xff] %v5644
        %5677 = vst [vmem:[#allocation2 + $0x10] sm:$0xff] %v5645
        %5678 = vst [vmem:[#allocation2 + $0x18] sm:$0xff] %v5646
        %5679 = vst [vmem:[#allocation2 + $0x20] sm:$0xff] %v5647
        %5680 = vst [vmem:[#allocation2 + $0x28] sm:$0xff] %v5648
        %5681 = vst [vmem:[#allocation2 + $0x30] sm:$0xff] %v5649
        %5682 = vst [vmem:[#allocation2 + $0x38] sm:$0xff] %v5650
        %5683 = vst [vmem:[#allocation2 + $0x40] sm:$0xff] %v5651
        %5684 = vst [vmem:[#allocation2 + $0x48] sm:$0xff] %v5652
        %5685 = vst [vmem:[#allocation2 + $0x50] sm:$0xff] %v5653
        %5686 = vst [vmem:[#allocation2 + $0x58] sm:$0xff] %v5654
        %5687 = vst [vmem:[#allocation2 + $0x60] sm:$0xff] %v5655
        %5688 = vst [vmem:[#allocation2 + $0x68] sm:$0xff] %v5656
        %5689 = vst [vmem:[#allocation2 + $0x70] sm:$0xff] %v5657
        %5690 = vst [vmem:[#allocation2 + $0x78] sm:$0xff] %v5658
        %5691 = vst [vmem:[#allocation2 + $0x80] sm:$0xff] %v5659
        %5692 = vst [vmem:[#allocation2 + $0x88] sm:$0xff] %v5660
        %5693 = vst [vmem:[#allocation2 + $0x90] sm:$0xff] %v5661
        %5694 = vst [vmem:[#allocation2 + $0x98] sm:$0xff] %v5662
        %5695 = vst [vmem:[#allocation2 + $0xa0] sm:$0xff] %v5663
        %5696 = vst [vmem:[#allocation2 + $0xa8] sm:$0xff] %v5664
        %5697 = vst [vmem:[#allocation2 + $0xb0] sm:$0xff] %v5665
        %5698 = vst [vmem:[#allocation2 + $0xb8] sm:$0xff] %v5666
        %5699 = vst [vmem:[#allocation2 + $0xc0] sm:$0xff] %v5667
        %5700 = vst [vmem:[#allocation2 + $0xc8] sm:$0xff] %v5668
        %5701 = vst [vmem:[#allocation2 + $0xd0] sm:$0xff] %v5669
        %5702 = vst [vmem:[#allocation2 + $0xd8] sm:$0xff] %v5670
        %5703 = vst [vmem:[#allocation2 + $0xe0] sm:$0xff] %v5671
        %5704 = vst [vmem:[#allocation2 + $0xe8] sm:$0xff] %v5672
        %5705 = vst [vmem:[#allocation2 + $0xf0] sm:$0xff] %v5673
        %5706 = vst [vmem:[#allocation2 + $0xf8] sm:$0xff] %v5674
        %v5707 = vld [vmem:[%s5252 + $0x1] sm:$0xff]
        %v5708 = vld [vmem:[%s5252 + $0x11] sm:$0xff]
        %v5709 = vld [vmem:[%s5252 + $0x21] sm:$0xff]
        %v5710 = vld [vmem:[%s5252 + $0x31] sm:$0xff]
        %v5711 = vld [vmem:[%s5252 + $0x41] sm:$0xff]
        %v5712 = vld [vmem:[%s5252 + $0x51] sm:$0xff]
        %v5713 = vld [vmem:[%s5252 + $0x61] sm:$0xff]
        %v5714 = vld [vmem:[%s5252 + $0x71] sm:$0xff]
        %v5715 = vld [vmem:[%s5252 + $0xa1] sm:$0xff]
        %v5716 = vld [vmem:[%s5252 + $0xb1] sm:$0xff]
        %v5717 = vld [vmem:[%s5252 + $0xc1] sm:$0xff]
        %v5718 = vld [vmem:[%s5252 + $0xd1] sm:$0xff]
        %v5719 = vld [vmem:[%s5252 + $0xe1] sm:$0xff]
        %v5720 = vld [vmem:[%s5252 + $0xf1] sm:$0xff]
        %v5721 = vld [vmem:[%s5252 + $0x101] sm:$0xff]
        %v5722 = vld [vmem:[%s5252 + $0x111] sm:$0xff]
        %v5723 = vld [vmem:[%s5252 + $0x141] sm:$0xff]
        %v5724 = vld [vmem:[%s5252 + $0x151] sm:$0xff]
        %v5725 = vld [vmem:[%s5252 + $0x161] sm:$0xff]
        %v5726 = vld [vmem:[%s5252 + $0x171] sm:$0xff]
        %v5727 = vld [vmem:[%s5252 + $0x181] sm:$0xff]
        %v5728 = vld [vmem:[%s5252 + $0x191] sm:$0xff]
        %v5729 = vld [vmem:[%s5252 + $0x1a1] sm:$0xff]
        %v5730 = vld [vmem:[%s5252 + $0x1b1] sm:$0xff]
        %v5731 = vld [vmem:[%s5252 + $0x1e1] sm:$0xff]
        %v5732 = vld [vmem:[%s5252 + $0x1f1] sm:$0xff]
        %v5733 = vld [vmem:[%s5252 + $0x201] sm:$0xff]
        %v5734 = vld [vmem:[%s5252 + $0x211] sm:$0xff]
        %v5735 = vld [vmem:[%s5252 + $0x221] sm:$0xff]
        %v5736 = vld [vmem:[%s5252 + $0x231] sm:$0xff]
        %v5737 = vld [vmem:[%s5252 + $0x241] sm:$0xff]
        %v5738 = vld [vmem:[%s5252 + $0x251] sm:$0xff]
        %v5739 = vld [vmem:[#allocation2] sm:$0xff]
        %v5740 = vld [vmem:[#allocation2 + $0x8] sm:$0xff]
        %v5741 = vld [vmem:[#allocation2 + $0x10] sm:$0xff]
        %v5742 = vld [vmem:[#allocation2 + $0x18] sm:$0xff]
        %v5743 = vld [vmem:[#allocation2 + $0x20] sm:$0xff]
        %v5744 = vld [vmem:[#allocation2 + $0x28] sm:$0xff]
        %v5745 = vld [vmem:[#allocation2 + $0x30] sm:$0xff]
        %v5746 = vld [vmem:[#allocation2 + $0x38] sm:$0xff]
        %v5747 = vld [vmem:[#allocation2 + $0x40] sm:$0xff]
        %v5748 = vld [vmem:[#allocation2 + $0x48] sm:$0xff]
        %v5749 = vld [vmem:[#allocation2 + $0x50] sm:$0xff]
        %v5750 = vld [vmem:[#allocation2 + $0x58] sm:$0xff]
        %v5751 = vld [vmem:[#allocation2 + $0x60] sm:$0xff]
        %v5752 = vld [vmem:[#allocation2 + $0x68] sm:$0xff]
        %v5753 = vld [vmem:[#allocation2 + $0x70] sm:$0xff]
        %v5754 = vld [vmem:[#allocation2 + $0x78] sm:$0xff]
        %v5755 = vld [vmem:[#allocation2 + $0x80] sm:$0xff]
        %v5756 = vld [vmem:[#allocation2 + $0x88] sm:$0xff]
        %v5757 = vld [vmem:[#allocation2 + $0x90] sm:$0xff]
        %v5758 = vld [vmem:[#allocation2 + $0x98] sm:$0xff]
        %v5759 = vld [vmem:[#allocation2 + $0xa0] sm:$0xff]
        %v5760 = vld [vmem:[#allocation2 + $0xa8] sm:$0xff]
        %v5761 = vld [vmem:[#allocation2 + $0xb0] sm:$0xff]
        %v5762 = vld [vmem:[#allocation2 + $0xb8] sm:$0xff]
        %v5763 = vld [vmem:[#allocation2 + $0xc0] sm:$0xff]
        %v5764 = vld [vmem:[#allocation2 + $0xc8] sm:$0xff]
        %v5765 = vld [vmem:[#allocation2 + $0xd0] sm:$0xff]
        %v5766 = vld [vmem:[#allocation2 + $0xd8] sm:$0xff]
        %v5767 = vld [vmem:[#allocation2 + $0xe0] sm:$0xff]
        %v5768 = vld [vmem:[#allocation2 + $0xe8] sm:$0xff]
        %v5769 = vld [vmem:[#allocation2 + $0xf0] sm:$0xff]
        %v5770 = vld [vmem:[#allocation2 + $0xf8] sm:$0xff]
        %s5771 = scalar_lea.vmem %s210, 48
        %v5772 = vld [vmem:[%s5771] sm:$0xf]
        %v5774 = vsel %vm318, %v5707, 0
        %v5777 = vsel %vm318, %v5708, 0
        %v5780 = vsel %vm318, %v5709, 0
        %v5783 = vsel %vm318, %v5710, 0
        %v5786 = vsel %vm318, %v5711, 0
        %v5789 = vsel %vm318, %v5712, 0
        %v5792 = vsel %vm318, %v5713, 0
        %v5795 = vsel %vm318, %v5714, 0
        %v5798 = vsel %vm318, %v5715, 0
        %v5801 = vsel %vm318, %v5716, 0
        %v5804 = vsel %vm318, %v5717, 0
        %v5807 = vsel %vm318, %v5718, 0
        %v5810 = vsel %vm318, %v5719, 0
        %v5813 = vsel %vm318, %v5720, 0
        %v5816 = vsel %vm318, %v5721, 0
        %v5819 = vsel %vm318, %v5722, 0
        %v5822 = vsel %vm318, %v5723, 0
        %v5825 = vsel %vm318, %v5724, 0
        %v5828 = vsel %vm318, %v5725, 0
        %v5831 = vsel %vm318, %v5726, 0
        %v5834 = vsel %vm318, %v5727, 0
        %v5837 = vsel %vm318, %v5728, 0
        %v5840 = vsel %vm318, %v5729, 0
        %v5843 = vsel %vm318, %v5730, 0
        %v5846 = vsel %vm318, %v5731, 0
        %v5849 = vsel %vm318, %v5732, 0
        %v5852 = vsel %vm318, %v5733, 0
        %v5855 = vsel %vm318, %v5734, 0
        %v5858 = vsel %vm318, %v5735, 0
        %v5861 = vsel %vm318, %v5736, 0
        %v5864 = vsel %vm318, %v5737, 0
        %v5867 = vsel %vm318, %v5738, 0
        %v5870 = vsel %vm415, %v5772, 0
        %5872 = vmatprep.subr.mxu0 0.0
        %5873 = vmatpush1.msra.mxu0 %v5870
        %5874 = vmatprep.subr.mxu0 0.0
        %5875 = vmatpush1.msra.mxu0 0.0
        %5876 = vmatprep.subr.mxu0 0.0
        %5877 = vmatpush1.msra.mxu0 0.0
        %5878 = vmatprep.subr.mxu0 0.0
        %5879 = vmatpush1.msra.mxu0 0.0
        %5880 = vmatprep.subr.mxu0 0.0
        %5881 = vmatpush1.msra.mxu0 0.0
        %5882 = vmatprep.subr.mxu0 0.0
        %5883 = vmatpush1.msra.mxu0 0.0
        %5884 = vmatprep.subr.mxu0 0.0
        %5885 = vmatpush1.msra.mxu0 0.0
        %5886 = vmatprep.subr.mxu0 0.0
        %5887 = vmatpush1.msra.mxu0 0.0
        %5888 = vmatprep.subr.mxu0 0.0
        %5889 = vmatpush1.msra.mxu0 0.0
        %5890 = vmatprep.subr.mxu0 0.0
        %5891 = vmatpush1.msra.mxu0 0.0
        %5892 = vmatprep.subr.mxu0 0.0
        %5893 = vmatpush1.msra.mxu0 0.0
        %5894 = vmatprep.subr.mxu0 0.0
        %5895 = vmatpush1.msra.mxu0 0.0
        %5896 = vmatprep.subr.mxu0 0.0
        %5897 = vmatpush1.msra.mxu0 0.0
        %5898 = vmatprep.subr.mxu0 0.0
        %5899 = vmatpush1.msra.mxu0 0.0
        %5900 = vmatprep.subr.mxu0 0.0
        %5901 = vmatpush1.msra.mxu0 0.0
        %5902 = vmatprep.subr.mxu0 0.0
        %5903 = vmatpush1.msra.mxu0 0.0
        %5904 = vmatprep.subr.mxu0 0.0
        %5905 = vmatpush1.msra.mxu0 0.0
        %5906 = vmatprep.subr.mxu0 0.0
        %5907 = vmatpush1.msra.mxu0 0.0
        %5908 = vmatprep.subr.mxu0 0.0
        %5909 = vmatpush1.msra.mxu0 0.0
        %5910 = vmatprep.subr.mxu0 0.0
        %5911 = vmatpush1.msra.mxu0 0.0
        %5912 = vmatprep.subr.mxu0 0.0
        %5913 = vmatpush1.msra.mxu0 0.0
        %5914 = vmatprep.subr.mxu0 0.0
        %5915 = vmatpush1.msra.mxu0 0.0
        %5916 = vmatprep.subr.mxu0 0.0
        %5917 = vmatpush1.msra.mxu0 0.0
        %5918 = vmatprep.subr.mxu0 0.0
        %5919 = vmatpush1.msra.mxu0 0.0
        %5920 = vmatprep.subr.mxu0 0.0
        %5921 = vmatpush1.msra.mxu0 0.0
        %5922 = vmatprep.subr.mxu0 0.0
        %5923 = vmatpush1.msra.mxu0 0.0
        %5924 = vmatprep.subr.mxu0 0.0
        %5925 = vmatpush1.msra.mxu0 0.0
        %5926 = vmatprep.subr.mxu0 0.0
        %5927 = vmatpush1.msra.mxu0 0.0
        %5928 = vmatprep.subr.mxu0 0.0
        %5929 = vmatpush1.msra.mxu0 0.0
        %5930 = vmatprep.subr.mxu0 0.0
        %5931 = vmatpush1.msra.mxu0 0.0
        %5932 = vmatprep.subr.mxu0 0.0
        %5933 = vmatpush1.msra.mxu0 0.0
        %5934 = vmatprep.subr.mxu0 0.0
        %5935 = vmatpush1.msra.mxu0 0.0
        %5936 = vmatprep.mubr.f32.mxu0 0.0
        %5937 = vmatmul.mubr.f32.gmra.mrb[0].mxu0 %v5774
        %v5938 = vpop.f32.mrb[0].mxu0
        %v5939 = vadd.f32 0.0, %v5938
        %v5940 = vpop.f32.mrb[0].mxu0
        %5941 = vmatprep.mubr.f32.mxu0 0.0
        %5942 = vmatmul.mubr.f32.gmra.mrb[0].mxu0 %v5777
        %v5943 = vpop.f32.mrb[0].mxu0
        %v5944 = vadd.f32 0.0, %v5943
        %v5945 = vpop.f32.mrb[0].mxu0
        %5946 = vmatprep.mubr.f32.mxu0 0.0
        %5947 = vmatmul.mubr.f32.gmra.mrb[0].mxu0 %v5780
        %v5948 = vpop.f32.mrb[0].mxu0
        %v5949 = vadd.f32 0.0, %v5948
        %v5950 = vpop.f32.mrb[0].mxu0
        %5951 = vmatprep.mubr.f32.mxu0 0.0
        %5952 = vmatmul.mubr.f32.gmra.mrb[0].mxu0 %v5783
        %v5953 = vpop.f32.mrb[0].mxu0
        %v5954 = vadd.f32 0.0, %v5953
        %v5955 = vpop.f32.mrb[0].mxu0
        %5956 = vmatprep.mubr.f32.mxu0 0.0
        %5957 = vmatmul.mubr.f32.gmra.mrb[0].mxu0 %v5786
        %v5958 = vpop.f32.mrb[0].mxu0
        %v5959 = vadd.f32 0.0, %v5958
        %v5960 = vpop.f32.mrb[0].mxu0
        %5961 = vmatprep.mubr.f32.mxu0 0.0
        %5962 = vmatmul.mubr.f32.gmra.mrb[0].mxu0 %v5789
        %v5963 = vpop.f32.mrb[0].mxu0
        %v5964 = vadd.f32 0.0, %v5963
        %v5965 = vpop.f32.mrb[0].mxu0
        %5966 = vmatprep.mubr.f32.mxu0 0.0
        %5967 = vmatmul.mubr.f32.gmra.mrb[0].mxu0 %v5792
        %v5968 = vpop.f32.mrb[0].mxu0
        %v5969 = vadd.f32 0.0, %v5968
        %v5970 = vpop.f32.mrb[0].mxu0
        %5971 = vmatprep.mubr.f32.mxu0 0.0
        %5972 = vmatmul.mubr.f32.gmra.mrb[0].mxu0 %v5795
        %v5973 = vpop.f32.mrb[0].mxu0
        %v5974 = vadd.f32 0.0, %v5973
        %v5975 = vpop.f32.mrb[0].mxu0
        %5976 = vmatprep.mubr.f32.mxu0 0.0
        %5977 = vmatmul.mubr.f32.gmra.mrb[0].mxu0 %v5798
        %v5978 = vpop.f32.mrb[0].mxu0
        %v5979 = vadd.f32 0.0, %v5978
        %v5980 = vpop.f32.mrb[0].mxu0
        %5981 = vmatprep.mubr.f32.mxu0 0.0
        %5982 = vmatmul.mubr.f32.gmra.mrb[0].mxu0 %v5801
        %v5983 = vpop.f32.mrb[0].mxu0
        %v5984 = vadd.f32 0.0, %v5983
        %v5985 = vpop.f32.mrb[0].mxu0
        %5986 = vmatprep.mubr.f32.mxu0 0.0
        %5987 = vmatmul.mubr.f32.gmra.mrb[0].mxu0 %v5804
        %v5988 = vpop.f32.mrb[0].mxu0
        %v5989 = vadd.f32 0.0, %v5988
        %v5990 = vpop.f32.mrb[0].mxu0
        %5991 = vmatprep.mubr.f32.mxu0 0.0
        %5992 = vmatmul.mubr.f32.gmra.mrb[0].mxu0 %v5807
        %v5993 = vpop.f32.mrb[0].mxu0
        %v5994 = vadd.f32 0.0, %v5993
        %v5995 = vpop.f32.mrb[0].mxu0
        %5996 = vmatprep.mubr.f32.mxu0 0.0
        %5997 = vmatmul.mubr.f32.gmra.mrb[0].mxu0 %v5810
        %v5998 = vpop.f32.mrb[0].mxu0
        %v5999 = vadd.f32 0.0, %v5998
        %v6000 = vpop.f32.mrb[0].mxu0
        %6001 = vmatprep.mubr.f32.mxu0 0.0
        %6002 = vmatmul.mubr.f32.gmra.mrb[0].mxu0 %v5813
        %v6003 = vpop.f32.mrb[0].mxu0
        %v6004 = vadd.f32 0.0, %v6003
        %v6005 = vpop.f32.mrb[0].mxu0
        %6006 = vmatprep.mubr.f32.mxu0 0.0
        %6007 = vmatmul.mubr.f32.gmra.mrb[0].mxu0 %v5816
        %v6008 = vpop.f32.mrb[0].mxu0
        %v6009 = vadd.f32 0.0, %v6008
        %v6010 = vpop.f32.mrb[0].mxu0
        %6011 = vmatprep.mubr.f32.mxu0 0.0
        %6012 = vmatmul.mubr.f32.gmra.mrb[0].mxu0 %v5819
        %v6013 = vpop.f32.mrb[0].mxu0
        %v6014 = vadd.f32 0.0, %v6013
        %v6015 = vpop.f32.mrb[0].mxu0
        %6016 = vmatprep.mubr.f32.mxu0 0.0
        %6017 = vmatmul.mubr.f32.gmra.mrb[0].mxu0 %v5822
        %v6018 = vpop.f32.mrb[0].mxu0
        %v6019 = vadd.f32 0.0, %v6018
        %v6020 = vpop.f32.mrb[0].mxu0
        %6021 = vmatprep.mubr.f32.mxu0 0.0
        %6022 = vmatmul.mubr.f32.gmra.mrb[0].mxu0 %v5825
        %v6023 = vpop.f32.mrb[0].mxu0
        %v6024 = vadd.f32 0.0, %v6023
        %v6025 = vpop.f32.mrb[0].mxu0
        %6026 = vmatprep.mubr.f32.mxu0 0.0
        %6027 = vmatmul.mubr.f32.gmra.mrb[0].mxu0 %v5828
        %v6028 = vpop.f32.mrb[0].mxu0
        %v6029 = vadd.f32 0.0, %v6028
        %v6030 = vpop.f32.mrb[0].mxu0
        %6031 = vmatprep.mubr.f32.mxu0 0.0
        %6032 = vmatmul.mubr.f32.gmra.mrb[0].mxu0 %v5831
        %v6033 = vpop.f32.mrb[0].mxu0
        %v6034 = vadd.f32 0.0, %v6033
        %v6035 = vpop.f32.mrb[0].mxu0
        %6036 = vmatprep.mubr.f32.mxu0 0.0
        %6037 = vmatmul.mubr.f32.gmra.mrb[0].mxu0 %v5834
        %v6038 = vpop.f32.mrb[0].mxu0
        %v6039 = vadd.f32 0.0, %v6038
        %v6040 = vpop.f32.mrb[0].mxu0
        %6041 = vmatprep.mubr.f32.mxu0 0.0
        %6042 = vmatmul.mubr.f32.gmra.mrb[0].mxu0 %v5837
        %v6043 = vpop.f32.mrb[0].mxu0
        %v6044 = vadd.f32 0.0, %v6043
        %v6045 = vpop.f32.mrb[0].mxu0
        %6046 = vmatprep.mubr.f32.mxu0 0.0
        %6047 = vmatmul.mubr.f32.gmra.mrb[0].mxu0 %v5840
        %v6048 = vpop.f32.mrb[0].mxu0
        %v6049 = vadd.f32 0.0, %v6048
        %v6050 = vpop.f32.mrb[0].mxu0
        %6051 = vmatprep.mubr.f32.mxu0 0.0
        %6052 = vmatmul.mubr.f32.gmra.mrb[0].mxu0 %v5843
        %v6053 = vpop.f32.mrb[0].mxu0
        %v6054 = vadd.f32 0.0, %v6053
        %v6055 = vpop.f32.mrb[0].mxu0
        %6056 = vmatprep.mubr.f32.mxu0 0.0
        %6057 = vmatmul.mubr.f32.gmra.mrb[0].mxu0 %v5846
        %v6058 = vpop.f32.mrb[0].mxu0
        %v6059 = vadd.f32 0.0, %v6058
        %v6060 = vpop.f32.mrb[0].mxu0
        %6061 = vmatprep.mubr.f32.mxu0 0.0
        %6062 = vmatmul.mubr.f32.gmra.mrb[0].mxu0 %v5849
        %v6063 = vpop.f32.mrb[0].mxu0
        %v6064 = vadd.f32 0.0, %v6063
        %v6065 = vpop.f32.mrb[0].mxu0
        %6066 = vmatprep.mubr.f32.mxu0 0.0
        %6067 = vmatmul.mubr.f32.gmra.mrb[0].mxu0 %v5852
        %v6068 = vpop.f32.mrb[0].mxu0
        %v6069 = vadd.f32 0.0, %v6068
        %v6070 = vpop.f32.mrb[0].mxu0
        %6071 = vmatprep.mubr.f32.mxu0 0.0
        %6072 = vmatmul.mubr.f32.gmra.mrb[0].mxu0 %v5855
        %v6073 = vpop.f32.mrb[0].mxu0
        %v6074 = vadd.f32 0.0, %v6073
        %v6075 = vpop.f32.mrb[0].mxu0
        %6076 = vmatprep.mubr.f32.mxu0 0.0
        %6077 = vmatmul.mubr.f32.gmra.mrb[0].mxu0 %v5858
        %v6078 = vpop.f32.mrb[0].mxu0
        %v6079 = vadd.f32 0.0, %v6078
        %v6080 = vpop.f32.mrb[0].mxu0
        %6081 = vmatprep.mubr.f32.mxu0 0.0
        %6082 = vmatmul.mubr.f32.gmra.mrb[0].mxu0 %v5861
        %v6083 = vpop.f32.mrb[0].mxu0
        %v6084 = vadd.f32 0.0, %v6083
        %v6085 = vpop.f32.mrb[0].mxu0
        %6086 = vmatprep.mubr.f32.mxu0 0.0
        %6087 = vmatmul.mubr.f32.gmra.mrb[0].mxu0 %v5864
        %v6088 = vpop.f32.mrb[0].mxu0
        %v6089 = vadd.f32 0.0, %v6088
        %v6090 = vpop.f32.mrb[0].mxu0
        %6091 = vmatprep.mubr.f32.mxu0 0.0
        %6092 = vmatmul.mubr.f32.gmra.mrb[0].mxu0 %v5867
        %v6093 = vpop.f32.mrb[0].mxu0
        %v6094 = vadd.f32 0.0, %v6093
        %v6095 = vpop.f32.mrb[0].mxu0
        %6096 = vdwg.mxu0
        %v6097 = vadd.f32 %v5739, %v5939
        %v6098 = vadd.f32 %v5740, %v5944
        %v6099 = vadd.f32 %v5741, %v5949
        %v6100 = vadd.f32 %v5742, %v5954
        %v6101 = vadd.f32 %v5743, %v5959
        %v6102 = vadd.f32 %v5744, %v5964
        %v6103 = vadd.f32 %v5745, %v5969
        %v6104 = vadd.f32 %v5746, %v5974
        %v6105 = vadd.f32 %v5747, %v5979
        %v6106 = vadd.f32 %v5748, %v5984
        %v6107 = vadd.f32 %v5749, %v5989
        %v6108 = vadd.f32 %v5750, %v5994
        %v6109 = vadd.f32 %v5751, %v5999
        %v6110 = vadd.f32 %v5752, %v6004
        %v6111 = vadd.f32 %v5753, %v6009
        %v6112 = vadd.f32 %v5754, %v6014
        %v6113 = vadd.f32 %v5755, %v6019
        %v6114 = vadd.f32 %v5756, %v6024
        %v6115 = vadd.f32 %v5757, %v6029
        %v6116 = vadd.f32 %v5758, %v6034
        %v6117 = vadd.f32 %v5759, %v6039
        %v6118 = vadd.f32 %v5760, %v6044
        %v6119 = vadd.f32 %v5761, %v6049
        %v6120 = vadd.f32 %v5762, %v6054
        %v6121 = vadd.f32 %v5763, %v6059
        %v6122 = vadd.f32 %v5764, %v6064
        %v6123 = vadd.f32 %v5765, %v6069
        %v6124 = vadd.f32 %v5766, %v6074
        %v6125 = vadd.f32 %v5767, %v6079
        %v6126 = vadd.f32 %v5768, %v6084
        %v6127 = vadd.f32 %v5769, %v6089
        %v6128 = vadd.f32 %v5770, %v6094
        %6129 = vst [vmem:[#allocation2] sm:$0xff] %v6097
        %6130 = vst [vmem:[#allocation2 + $0x8] sm:$0xff] %v6098
        %6131 = vst [vmem:[#allocation2 + $0x10] sm:$0xff] %v6099
        %6132 = vst [vmem:[#allocation2 + $0x18] sm:$0xff] %v6100
        %6133 = vst [vmem:[#allocation2 + $0x20] sm:$0xff] %v6101
        %6134 = vst [vmem:[#allocation2 + $0x28] sm:$0xff] %v6102
        %6135 = vst [vmem:[#allocation2 + $0x30] sm:$0xff] %v6103
        %6136 = vst [vmem:[#allocation2 + $0x38] sm:$0xff] %v6104
        %6137 = vst [vmem:[#allocation2 + $0x40] sm:$0xff] %v6105
        %6138 = vst [vmem:[#allocation2 + $0x48] sm:$0xff] %v6106
        %6139 = vst [vmem:[#allocation2 + $0x50] sm:$0xff] %v6107
        %6140 = vst [vmem:[#allocation2 + $0x58] sm:$0xff] %v6108
        %6141 = vst [vmem:[#allocation2 + $0x60] sm:$0xff] %v6109
        %6142 = vst [vmem:[#allocation2 + $0x68] sm:$0xff] %v6110
        %6143 = vst [vmem:[#allocation2 + $0x70] sm:$0xff] %v6111
        %6144 = vst [vmem:[#allocation2 + $0x78] sm:$0xff] %v6112
        %6145 = vst [vmem:[#allocation2 + $0x80] sm:$0xff] %v6113
        %6146 = vst [vmem:[#allocation2 + $0x88] sm:$0xff] %v6114
        %6147 = vst [vmem:[#allocation2 + $0x90] sm:$0xff] %v6115
        %6148 = vst [vmem:[#allocation2 + $0x98] sm:$0xff] %v6116
        %6149 = vst [vmem:[#allocation2 + $0xa0] sm:$0xff] %v6117
        %6150 = vst [vmem:[#allocation2 + $0xa8] sm:$0xff] %v6118
        %6151 = vst [vmem:[#allocation2 + $0xb0] sm:$0xff] %v6119
        %6152 = vst [vmem:[#allocation2 + $0xb8] sm:$0xff] %v6120
        %6153 = vst [vmem:[#allocation2 + $0xc0] sm:$0xff] %v6121
        %6154 = vst [vmem:[#allocation2 + $0xc8] sm:$0xff] %v6122
        %6155 = vst [vmem:[#allocation2 + $0xd0] sm:$0xff] %v6123
        %6156 = vst [vmem:[#allocation2 + $0xd8] sm:$0xff] %v6124
        %6157 = vst [vmem:[#allocation2 + $0xe0] sm:$0xff] %v6125
        %6158 = vst [vmem:[#allocation2 + $0xe8] sm:$0xff] %v6126
        %6159 = vst [vmem:[#allocation2 + $0xf0] sm:$0xff] %v6127
        %6160 = vst [vmem:[#allocation2 + $0xf8] sm:$0xff] %v6128
        %v6161 = vld [vmem:[%s5252 + $0x2] sm:$0xff]
        %v6162 = vld [vmem:[%s5252 + $0x12] sm:$0xff]
        %v6163 = vld [vmem:[%s5252 + $0x22] sm:$0xff]
        %v6164 = vld [vmem:[%s5252 + $0x32] sm:$0xff]
        %v6165 = vld [vmem:[%s5252 + $0x42] sm:$0xff]
        %v6166 = vld [vmem:[%s5252 + $0x52] sm:$0xff]
        %v6167 = vld [vmem:[%s5252 + $0x62] sm:$0xff]
        %v6168 = vld [vmem:[%s5252 + $0x72] sm:$0xff]
        %v6169 = vld [vmem:[%s5252 + $0xa2] sm:$0xff]
        %v6170 = vld [vmem:[%s5252 + $0xb2] sm:$0xff]
        %v6171 = vld [vmem:[%s5252 + $0xc2] sm:$0xff]
        %v6172 = vld [vmem:[%s5252 + $0xd2] sm:$0xff]
        %v6173 = vld [vmem:[%s5252 + $0xe2] sm:$0xff]
        %v6174 = vld [vmem:[%s5252 + $0xf2] sm:$0xff]
        %v6175 = vld [vmem:[%s5252 + $0x102] sm:$0xff]
        %v6176 = vld [vmem:[%s5252 + $0x112] sm:$0xff]
        %v6177 = vld [vmem:[%s5252 + $0x142] sm:$0xff]
        %v6178 = vld [vmem:[%s5252 + $0x152] sm:$0xff]
        %v6179 = vld [vmem:[%s5252 + $0x162] sm:$0xff]
        %v6180 = vld [vmem:[%s5252 + $0x172] sm:$0xff]
        %v6181 = vld [vmem:[%s5252 + $0x182] sm:$0xff]
        %v6182 = vld [vmem:[%s5252 + $0x192] sm:$0xff]
        %v6183 = vld [vmem:[%s5252 + $0x1a2] sm:$0xff]
        %v6184 = vld [vmem:[%s5252 + $0x1b2] sm:$0xff]
        %v6185 = vld [vmem:[%s5252 + $0x1e2] sm:$0xff]
        %v6186 = vld [vmem:[%s5252 + $0x1f2] sm:$0xff]
        %v6187 = vld [vmem:[%s5252 + $0x202] sm:$0xff]
        %v6188 = vld [vmem:[%s5252 + $0x212] sm:$0xff]
        %v6189 = vld [vmem:[%s5252 + $0x222] sm:$0xff]
        %v6190 = vld [vmem:[%s5252 + $0x232] sm:$0xff]
        %v6191 = vld [vmem:[%s5252 + $0x242] sm:$0xff]
        %v6192 = vld [vmem:[%s5252 + $0x252] sm:$0xff]
        %v6193 = vld [vmem:[#allocation2] sm:$0xff]
        %v6194 = vld [vmem:[#allocation2 + $0x8] sm:$0xff]
        %v6195 = vld [vmem:[#allocation2 + $0x10] sm:$0xff]
        %v6196 = vld [vmem:[#allocation2 + $0x18] sm:$0xff]
        %v6197 = vld [vmem:[#allocation2 + $0x20] sm:$0xff]
        %v6198 = vld [vmem:[#allocation2 + $0x28] sm:$0xff]
        %v6199 = vld [vmem:[#allocation2 + $0x30] sm:$0xff]
        %v6200 = vld [vmem:[#allocation2 + $0x38] sm:$0xff]
        %v6201 = vld [vmem:[#allocation2 + $0x40] sm:$0xff]
        %v6202 = vld [vmem:[#allocation2 + $0x48] sm:$0xff]
        %v6203 = vld [vmem:[#allocation2 + $0x50] sm:$0xff]
        %v6204 = vld [vmem:[#allocation2 + $0x58] sm:$0xff]
        %v6205 = vld [vmem:[#allocation2 + $0x60] sm:$0xff]
        %v6206 = vld [vmem:[#allocation2 + $0x68] sm:$0xff]
        %v6207 = vld [vmem:[#allocation2 + $0x70] sm:$0xff]
        %v6208 = vld [vmem:[#allocation2 + $0x78] sm:$0xff]
        %v6209 = vld [vmem:[#allocation2 + $0x80] sm:$0xff]
        %v6210 = vld [vmem:[#allocation2 + $0x88] sm:$0xff]
        %v6211 = vld [vmem:[#allocation2 + $0x90] sm:$0xff]
        %v6212 = vld [vmem:[#allocation2 + $0x98] sm:$0xff]
        %v6213 = vld [vmem:[#allocation2 + $0xa0] sm:$0xff]
        %v6214 = vld [vmem:[#allocation2 + $0xa8] sm:$0xff]
        %v6215 = vld [vmem:[#allocation2 + $0xb0] sm:$0xff]
        %v6216 = vld [vmem:[#allocation2 + $0xb8] sm:$0xff]
        %v6217 = vld [vmem:[#allocation2 + $0xc0] sm:$0xff]
        %v6218 = vld [vmem:[#allocation2 + $0xc8] sm:$0xff]
        %v6219 = vld [vmem:[#allocation2 + $0xd0] sm:$0xff]
        %v6220 = vld [vmem:[#allocation2 + $0xd8] sm:$0xff]
        %v6221 = vld [vmem:[#allocation2 + $0xe0] sm:$0xff]
        %v6222 = vld [vmem:[#allocation2 + $0xe8] sm:$0xff]
        %v6223 = vld [vmem:[#allocation2 + $0xf0] sm:$0xff]
        %v6224 = vld [vmem:[#allocation2 + $0xf8] sm:$0xff]
        %s6225 = scalar_lea.vmem %s210, 52
        %v6226 = vld [vmem:[%s6225] sm:$0xf]
        %v6228 = vsel %vm318, %v6161, 0
        %v6231 = vsel %vm318, %v6162, 0
        %v6234 = vsel %vm318, %v6163, 0
        %v6237 = vsel %vm318, %v6164, 0
        %v6240 = vsel %vm318, %v6165, 0
        %v6243 = vsel %vm318, %v6166, 0
        %v6246 = vsel %vm318, %v6167, 0
        %v6249 = vsel %vm318, %v6168, 0
        %v6252 = vsel %vm318, %v6169, 0
        %v6255 = vsel %vm318, %v6170, 0
        %v6258 = vsel %vm318, %v6171, 0
        %v6261 = vsel %vm318, %v6172, 0
        %v6264 = vsel %vm318, %v6173, 0
        %v6267 = vsel %vm318, %v6174, 0
        %v6270 = vsel %vm318, %v6175, 0
        %v6273 = vsel %vm318, %v6176, 0
        %v6276 = vsel %vm318, %v6177, 0
        %v6279 = vsel %vm318, %v6178, 0
        %v6282 = vsel %vm318, %v6179, 0
        %v6285 = vsel %vm318, %v6180, 0
        %v6288 = vsel %vm318, %v6181, 0
        %v6291 = vsel %vm318, %v6182, 0
        %v6294 = vsel %vm318, %v6183, 0
        %v6297 = vsel %vm318, %v6184, 0
        %v6300 = vsel %vm318, %v6185, 0
        %v6303 = vsel %vm318, %v6186, 0
        %v6306 = vsel %vm318, %v6187, 0
        %v6309 = vsel %vm318, %v6188, 0
        %v6312 = vsel %vm318, %v6189, 0
        %v6315 = vsel %vm318, %v6190, 0
        %v6318 = vsel %vm318, %v6191, 0
        %v6321 = vsel %vm318, %v6192, 0
        %v6324 = vsel %vm415, %v6226, 0
        %6326 = vmatprep.subr.mxu0 0.0
        %6327 = vmatpush1.msra.mxu0 %v6324
        %6328 = vmatprep.subr.mxu0 0.0
        %6329 = vmatpush1.msra.mxu0 0.0
        %6330 = vmatprep.subr.mxu0 0.0
        %6331 = vmatpush1.msra.mxu0 0.0
        %6332 = vmatprep.subr.mxu0 0.0
        %6333 = vmatpush1.msra.mxu0 0.0
        %6334 = vmatprep.subr.mxu0 0.0
        %6335 = vmatpush1.msra.mxu0 0.0
        %6336 = vmatprep.subr.mxu0 0.0
        %6337 = vmatpush1.msra.mxu0 0.0
        %6338 = vmatprep.subr.mxu0 0.0
        %6339 = vmatpush1.msra.mxu0 0.0
        %6340 = vmatprep.subr.mxu0 0.0
        %6341 = vmatpush1.msra.mxu0 0.0
        %6342 = vmatprep.subr.mxu0 0.0
        %6343 = vmatpush1.msra.mxu0 0.0
        %6344 = vmatprep.subr.mxu0 0.0
        %6345 = vmatpush1.msra.mxu0 0.0
        %6346 = vmatprep.subr.mxu0 0.0
        %6347 = vmatpush1.msra.mxu0 0.0
        %6348 = vmatprep.subr.mxu0 0.0
        %6349 = vmatpush1.msra.mxu0 0.0
        %6350 = vmatprep.subr.mxu0 0.0
        %6351 = vmatpush1.msra.mxu0 0.0
        %6352 = vmatprep.subr.mxu0 0.0
        %6353 = vmatpush1.msra.mxu0 0.0
        %6354 = vmatprep.subr.mxu0 0.0
        %6355 = vmatpush1.msra.mxu0 0.0
        %6356 = vmatprep.subr.mxu0 0.0
        %6357 = vmatpush1.msra.mxu0 0.0
        %6358 = vmatprep.subr.mxu0 0.0
        %6359 = vmatpush1.msra.mxu0 0.0
        %6360 = vmatprep.subr.mxu0 0.0
        %6361 = vmatpush1.msra.mxu0 0.0
        %6362 = vmatprep.subr.mxu0 0.0
        %6363 = vmatpush1.msra.mxu0 0.0
        %6364 = vmatprep.subr.mxu0 0.0
        %6365 = vmatpush1.msra.mxu0 0.0
        %6366 = vmatprep.subr.mxu0 0.0
        %6367 = vmatpush1.msra.mxu0 0.0
        %6368 = vmatprep.subr.mxu0 0.0
        %6369 = vmatpush1.msra.mxu0 0.0
        %6370 = vmatprep.subr.mxu0 0.0
        %6371 = vmatpush1.msra.mxu0 0.0
        %6372 = vmatprep.subr.mxu0 0.0
        %6373 = vmatpush1.msra.mxu0 0.0
        %6374 = vmatprep.subr.mxu0 0.0
        %6375 = vmatpush1.msra.mxu0 0.0
        %6376 = vmatprep.subr.mxu0 0.0
        %6377 = vmatpush1.msra.mxu0 0.0
        %6378 = vmatprep.subr.mxu0 0.0
        %6379 = vmatpush1.msra.mxu0 0.0
        %6380 = vmatprep.subr.mxu0 0.0
        %6381 = vmatpush1.msra.mxu0 0.0
        %6382 = vmatprep.subr.mxu0 0.0
        %6383 = vmatpush1.msra.mxu0 0.0
        %6384 = vmatprep.subr.mxu0 0.0
        %6385 = vmatpush1.msra.mxu0 0.0
        %6386 = vmatprep.subr.mxu0 0.0
        %6387 = vmatpush1.msra.mxu0 0.0
        %6388 = vmatprep.subr.mxu0 0.0
        %6389 = vmatpush1.msra.mxu0 0.0
        %6390 = vmatprep.mubr.f32.mxu0 0.0
        %6391 = vmatmul.mubr.f32.gmra.mrb[0].mxu0 %v6228
        %v6392 = vpop.f32.mrb[0].mxu0
        %v6393 = vadd.f32 0.0, %v6392
        %v6394 = vpop.f32.mrb[0].mxu0
        %6395 = vmatprep.mubr.f32.mxu0 0.0
        %6396 = vmatmul.mubr.f32.gmra.mrb[0].mxu0 %v6231
        %v6397 = vpop.f32.mrb[0].mxu0
        %v6398 = vadd.f32 0.0, %v6397
        %v6399 = vpop.f32.mrb[0].mxu0
        %6400 = vmatprep.mubr.f32.mxu0 0.0
        %6401 = vmatmul.mubr.f32.gmra.mrb[0].mxu0 %v6234
        %v6402 = vpop.f32.mrb[0].mxu0
        %v6403 = vadd.f32 0.0, %v6402
        %v6404 = vpop.f32.mrb[0].mxu0
        %6405 = vmatprep.mubr.f32.mxu0 0.0
        %6406 = vmatmul.mubr.f32.gmra.mrb[0].mxu0 %v6237
        %v6407 = vpop.f32.mrb[0].mxu0
        %v6408 = vadd.f32 0.0, %v6407
        %v6409 = vpop.f32.mrb[0].mxu0
        %6410 = vmatprep.mubr.f32.mxu0 0.0
        %6411 = vmatmul.mubr.f32.gmra.mrb[0].mxu0 %v6240
        %v6412 = vpop.f32.mrb[0].mxu0
        %v6413 = vadd.f32 0.0, %v6412
        %v6414 = vpop.f32.mrb[0].mxu0
        %6415 = vmatprep.mubr.f32.mxu0 0.0
        %6416 = vmatmul.mubr.f32.gmra.mrb[0].mxu0 %v6243
        %v6417 = vpop.f32.mrb[0].mxu0
        %v6418 = vadd.f32 0.0, %v6417
        %v6419 = vpop.f32.mrb[0].mxu0
        %6420 = vmatprep.mubr.f32.mxu0 0.0
        %6421 = vmatmul.mubr.f32.gmra.mrb[0].mxu0 %v6246
        %v6422 = vpop.f32.mrb[0].mxu0
        %v6423 = vadd.f32 0.0, %v6422
        %v6424 = vpop.f32.mrb[0].mxu0
        %6425 = vmatprep.mubr.f32.mxu0 0.0
        %6426 = vmatmul.mubr.f32.gmra.mrb[0].mxu0 %v6249
        %v6427 = vpop.f32.mrb[0].mxu0
        %v6428 = vadd.f32 0.0, %v6427
        %v6429 = vpop.f32.mrb[0].mxu0
        %6430 = vmatprep.mubr.f32.mxu0 0.0
        %6431 = vmatmul.mubr.f32.gmra.mrb[0].mxu0 %v6252
        %v6432 = vpop.f32.mrb[0].mxu0
        %v6433 = vadd.f32 0.0, %v6432
        %v6434 = vpop.f32.mrb[0].mxu0
        %6435 = vmatprep.mubr.f32.mxu0 0.0
        %6436 = vmatmul.mubr.f32.gmra.mrb[0].mxu0 %v6255
        %v6437 = vpop.f32.mrb[0].mxu0
        %v6438 = vadd.f32 0.0, %v6437
        %v6439 = vpop.f32.mrb[0].mxu0
        %6440 = vmatprep.mubr.f32.mxu0 0.0
        %6441 = vmatmul.mubr.f32.gmra.mrb[0].mxu0 %v6258
        %v6442 = vpop.f32.mrb[0].mxu0
        %v6443 = vadd.f32 0.0, %v6442
        %v6444 = vpop.f32.mrb[0].mxu0
        %6445 = vmatprep.mubr.f32.mxu0 0.0
        %6446 = vmatmul.mubr.f32.gmra.mrb[0].mxu0 %v6261
        %v6447 = vpop.f32.mrb[0].mxu0
        %v6448 = vadd.f32 0.0, %v6447
        %v6449 = vpop.f32.mrb[0].mxu0
        %6450 = vmatprep.mubr.f32.mxu0 0.0
        %6451 = vmatmul.mubr.f32.gmra.mrb[0].mxu0 %v6264
        %v6452 = vpop.f32.mrb[0].mxu0
        %v6453 = vadd.f32 0.0, %v6452
        %v6454 = vpop.f32.mrb[0].mxu0
        %6455 = vmatprep.mubr.f32.mxu0 0.0
        %6456 = vmatmul.mubr.f32.gmra.mrb[0].mxu0 %v6267
        %v6457 = vpop.f32.mrb[0].mxu0
        %v6458 = vadd.f32 0.0, %v6457
        %v6459 = vpop.f32.mrb[0].mxu0
        %6460 = vmatprep.mubr.f32.mxu0 0.0
        %6461 = vmatmul.mubr.f32.gmra.mrb[0].mxu0 %v6270
        %v6462 = vpop.f32.mrb[0].mxu0
        %v6463 = vadd.f32 0.0, %v6462
        %v6464 = vpop.f32.mrb[0].mxu0
        %6465 = vmatprep.mubr.f32.mxu0 0.0
        %6466 = vmatmul.mubr.f32.gmra.mrb[0].mxu0 %v6273
        %v6467 = vpop.f32.mrb[0].mxu0
        %v6468 = vadd.f32 0.0, %v6467
        %v6469 = vpop.f32.mrb[0].mxu0
        %6470 = vmatprep.mubr.f32.mxu0 0.0
        %6471 = vmatmul.mubr.f32.gmra.mrb[0].mxu0 %v6276
        %v6472 = vpop.f32.mrb[0].mxu0
        %v6473 = vadd.f32 0.0, %v6472
        %v6474 = vpop.f32.mrb[0].mxu0
        %6475 = vmatprep.mubr.f32.mxu0 0.0
        %6476 = vmatmul.mubr.f32.gmra.mrb[0].mxu0 %v6279
        %v6477 = vpop.f32.mrb[0].mxu0
        %v6478 = vadd.f32 0.0, %v6477
        %v6479 = vpop.f32.mrb[0].mxu0
        %6480 = vmatprep.mubr.f32.mxu0 0.0
        %6481 = vmatmul.mubr.f32.gmra.mrb[0].mxu0 %v6282
        %v6482 = vpop.f32.mrb[0].mxu0
        %v6483 = vadd.f32 0.0, %v6482
        %v6484 = vpop.f32.mrb[0].mxu0
        %6485 = vmatprep.mubr.f32.mxu0 0.0
        %6486 = vmatmul.mubr.f32.gmra.mrb[0].mxu0 %v6285
        %v6487 = vpop.f32.mrb[0].mxu0
        %v6488 = vadd.f32 0.0, %v6487
        %v6489 = vpop.f32.mrb[0].mxu0
        %6490 = vmatprep.mubr.f32.mxu0 0.0
        %6491 = vmatmul.mubr.f32.gmra.mrb[0].mxu0 %v6288
        %v6492 = vpop.f32.mrb[0].mxu0
        %v6493 = vadd.f32 0.0, %v6492
        %v6494 = vpop.f32.mrb[0].mxu0
        %6495 = vmatprep.mubr.f32.mxu0 0.0
        %6496 = vmatmul.mubr.f32.gmra.mrb[0].mxu0 %v6291
        %v6497 = vpop.f32.mrb[0].mxu0
        %v6498 = vadd.f32 0.0, %v6497
        %v6499 = vpop.f32.mrb[0].mxu0
        %6500 = vmatprep.mubr.f32.mxu0 0.0
        %6501 = vmatmul.mubr.f32.gmra.mrb[0].mxu0 %v6294
        %v6502 = vpop.f32.mrb[0].mxu0
        %v6503 = vadd.f32 0.0, %v6502
        %v6504 = vpop.f32.mrb[0].mxu0
        %6505 = vmatprep.mubr.f32.mxu0 0.0
        %6506 = vmatmul.mubr.f32.gmra.mrb[0].mxu0 %v6297
        %v6507 = vpop.f32.mrb[0].mxu0
        %v6508 = vadd.f32 0.0, %v6507
        %v6509 = vpop.f32.mrb[0].mxu0
        %6510 = vmatprep.mubr.f32.mxu0 0.0
        %6511 = vmatmul.mubr.f32.gmra.mrb[0].mxu0 %v6300
        %v6512 = vpop.f32.mrb[0].mxu0
        %v6513 = vadd.f32 0.0, %v6512
        %v6514 = vpop.f32.mrb[0].mxu0
        %6515 = vmatprep.mubr.f32.mxu0 0.0
        %6516 = vmatmul.mubr.f32.gmra.mrb[0].mxu0 %v6303
        %v6517 = vpop.f32.mrb[0].mxu0
        %v6518 = vadd.f32 0.0, %v6517
        %v6519 = vpop.f32.mrb[0].mxu0
        %6520 = vmatprep.mubr.f32.mxu0 0.0
        %6521 = vmatmul.mubr.f32.gmra.mrb[0].mxu0 %v6306
        %v6522 = vpop.f32.mrb[0].mxu0
        %v6523 = vadd.f32 0.0, %v6522
        %v6524 = vpop.f32.mrb[0].mxu0
        %6525 = vmatprep.mubr.f32.mxu0 0.0
        %6526 = vmatmul.mubr.f32.gmra.mrb[0].mxu0 %v6309
        %v6527 = vpop.f32.mrb[0].mxu0
        %v6528 = vadd.f32 0.0, %v6527
        %v6529 = vpop.f32.mrb[0].mxu0
        %6530 = vmatprep.mubr.f32.mxu0 0.0
        %6531 = vmatmul.mubr.f32.gmra.mrb[0].mxu0 %v6312
        %v6532 = vpop.f32.mrb[0].mxu0
        %v6533 = vadd.f32 0.0, %v6532
        %v6534 = vpop.f32.mrb[0].mxu0
        %6535 = vmatprep.mubr.f32.mxu0 0.0
        %6536 = vmatmul.mubr.f32.gmra.mrb[0].mxu0 %v6315
        %v6537 = vpop.f32.mrb[0].mxu0
        %v6538 = vadd.f32 0.0, %v6537
        %v6539 = vpop.f32.mrb[0].mxu0
        %6540 = vmatprep.mubr.f32.mxu0 0.0
        %6541 = vmatmul.mubr.f32.gmra.mrb[0].mxu0 %v6318
        %v6542 = vpop.f32.mrb[0].mxu0
        %v6543 = vadd.f32 0.0, %v6542
        %v6544 = vpop.f32.mrb[0].mxu0
        %6545 = vmatprep.mubr.f32.mxu0 0.0
        %6546 = vmatmul.mubr.f32.gmra.mrb[0].mxu0 %v6321
        %v6547 = vpop.f32.mrb[0].mxu0
        %v6548 = vadd.f32 0.0, %v6547
        %v6549 = vpop.f32.mrb[0].mxu0
        %6550 = vdwg.mxu0
        %v6551 = vadd.f32 %v6193, %v6393
        %v6552 = vadd.f32 %v6194, %v6398
        %v6553 = vadd.f32 %v6195, %v6403
        %v6554 = vadd.f32 %v6196, %v6408
        %v6555 = vadd.f32 %v6197, %v6413
        %v6556 = vadd.f32 %v6198, %v6418
        %v6557 = vadd.f32 %v6199, %v6423
        %v6558 = vadd.f32 %v6200, %v6428
        %v6559 = vadd.f32 %v6201, %v6433
        %v6560 = vadd.f32 %v6202, %v6438
        %v6561 = vadd.f32 %v6203, %v6443
        %v6562 = vadd.f32 %v6204, %v6448
        %v6563 = vadd.f32 %v6205, %v6453
        %v6564 = vadd.f32 %v6206, %v6458
        %v6565 = vadd.f32 %v6207, %v6463
        %v6566 = vadd.f32 %v6208, %v6468
        %v6567 = vadd.f32 %v6209, %v6473
        %v6568 = vadd.f32 %v6210, %v6478
        %v6569 = vadd.f32 %v6211, %v6483
        %v6570 = vadd.f32 %v6212, %v6488
        %v6571 = vadd.f32 %v6213, %v6493
        %v6572 = vadd.f32 %v6214, %v6498
        %v6573 = vadd.f32 %v6215, %v6503
        %v6574 = vadd.f32 %v6216, %v6508
        %v6575 = vadd.f32 %v6217, %v6513
        %v6576 = vadd.f32 %v6218, %v6518
        %v6577 = vadd.f32 %v6219, %v6523
        %v6578 = vadd.f32 %v6220, %v6528
        %v6579 = vadd.f32 %v6221, %v6533
        %v6580 = vadd.f32 %v6222, %v6538
        %v6581 = vadd.f32 %v6223, %v6543
        %v6582 = vadd.f32 %v6224, %v6548
        %6583 = vst [vmem:[#allocation2] sm:$0xff] %v6551
        %6584 = vst [vmem:[#allocation2 + $0x8] sm:$0xff] %v6552
        %6585 = vst [vmem:[#allocation2 + $0x10] sm:$0xff] %v6553
        %6586 = vst [vmem:[#allocation2 + $0x18] sm:$0xff] %v6554
        %6587 = vst [vmem:[#allocation2 + $0x20] sm:$0xff] %v6555
        %6588 = vst [vmem:[#allocation2 + $0x28] sm:$0xff] %v6556
        %6589 = vst [vmem:[#allocation2 + $0x30] sm:$0xff] %v6557
        %6590 = vst [vmem:[#allocation2 + $0x38] sm:$0xff] %v6558
        %6591 = vst [vmem:[#allocation2 + $0x40] sm:$0xff] %v6559
        %6592 = vst [vmem:[#allocation2 + $0x48] sm:$0xff] %v6560
        %6593 = vst [vmem:[#allocation2 + $0x50] sm:$0xff] %v6561
        %6594 = vst [vmem:[#allocation2 + $0x58] sm:$0xff] %v6562
        %6595 = vst [vmem:[#allocation2 + $0x60] sm:$0xff] %v6563
        %6596 = vst [vmem:[#allocation2 + $0x68] sm:$0xff] %v6564
        %6597 = vst [vmem:[#allocation2 + $0x70] sm:$0xff] %v6565
        %6598 = vst [vmem:[#allocation2 + $0x78] sm:$0xff] %v6566
        %6599 = vst [vmem:[#allocation2 + $0x80] sm:$0xff] %v6567
        %6600 = vst [vmem:[#allocation2 + $0x88] sm:$0xff] %v6568
        %6601 = vst [vmem:[#allocation2 + $0x90] sm:$0xff] %v6569
        %6602 = vst [vmem:[#allocation2 + $0x98] sm:$0xff] %v6570
        %6603 = vst [vmem:[#allocation2 + $0xa0] sm:$0xff] %v6571
        %6604 = vst [vmem:[#allocation2 + $0xa8] sm:$0xff] %v6572
        %6605 = vst [vmem:[#allocation2 + $0xb0] sm:$0xff] %v6573
        %6606 = vst [vmem:[#allocation2 + $0xb8] sm:$0xff] %v6574
        %6607 = vst [vmem:[#allocation2 + $0xc0] sm:$0xff] %v6575
        %6608 = vst [vmem:[#allocation2 + $0xc8] sm:$0xff] %v6576
        %6609 = vst [vmem:[#allocation2 + $0xd0] sm:$0xff] %v6577
        %6610 = vst [vmem:[#allocation2 + $0xd8] sm:$0xff] %v6578
        %6611 = vst [vmem:[#allocation2 + $0xe0] sm:$0xff] %v6579
        %6612 = vst [vmem:[#allocation2 + $0xe8] sm:$0xff] %v6580
        %6613 = vst [vmem:[#allocation2 + $0xf0] sm:$0xff] %v6581
        %6614 = vst [vmem:[#allocation2 + $0xf8] sm:$0xff] %v6582
        %s6615 = scalar_lea.vmem %s206, 320
        %v6616 = vld [vmem:[%s6615 + $0x1] sm:$0xff]
        %v6617 = vld [vmem:[%s6615 + $0x11] sm:$0xff]
        %v6618 = vld [vmem:[%s6615 + $0x21] sm:$0xff]
        %v6619 = vld [vmem:[%s6615 + $0x31] sm:$0xff]
        %v6620 = vld [vmem:[%s6615 + $0x41] sm:$0xff]
        %v6621 = vld [vmem:[%s6615 + $0x51] sm:$0xff]
        %v6622 = vld [vmem:[%s6615 + $0x61] sm:$0xff]
        %v6623 = vld [vmem:[%s6615 + $0x71] sm:$0xff]
        %v6624 = vld [vmem:[%s6615 + $0xa1] sm:$0xff]
        %v6625 = vld [vmem:[%s6615 + $0xb1] sm:$0xff]
        %v6626 = vld [vmem:[%s6615 + $0xc1] sm:$0xff]
        %v6627 = vld [vmem:[%s6615 + $0xd1] sm:$0xff]
        %v6628 = vld [vmem:[%s6615 + $0xe1] sm:$0xff]
        %v6629 = vld [vmem:[%s6615 + $0xf1] sm:$0xff]
        %v6630 = vld [vmem:[%s6615 + $0x101] sm:$0xff]
        %v6631 = vld [vmem:[%s6615 + $0x111] sm:$0xff]
        %v6632 = vld [vmem:[%s6615 + $0x141] sm:$0xff]
        %v6633 = vld [vmem:[%s6615 + $0x151] sm:$0xff]
        %v6634 = vld [vmem:[%s6615 + $0x161] sm:$0xff]
        %v6635 = vld [vmem:[%s6615 + $0x171] sm:$0xff]
        %v6636 = vld [vmem:[%s6615 + $0x181] sm:$0xff]
        %v6637 = vld [vmem:[%s6615 + $0x191] sm:$0xff]
        %v6638 = vld [vmem:[%s6615 + $0x1a1] sm:$0xff]
        %v6639 = vld [vmem:[%s6615 + $0x1b1] sm:$0xff]
        %v6640 = vld [vmem:[%s6615 + $0x1e1] sm:$0xff]
        %v6641 = vld [vmem:[%s6615 + $0x1f1] sm:$0xff]
        %v6642 = vld [vmem:[%s6615 + $0x201] sm:$0xff]
        %v6643 = vld [vmem:[%s6615 + $0x211] sm:$0xff]
        %v6644 = vld [vmem:[%s6615 + $0x221] sm:$0xff]
        %v6645 = vld [vmem:[%s6615 + $0x231] sm:$0xff]
        %v6646 = vld [vmem:[%s6615 + $0x241] sm:$0xff]
        %v6647 = vld [vmem:[%s6615 + $0x251] sm:$0xff]
        %v6648 = vld [vmem:[#allocation2] sm:$0xff]
        %v6649 = vld [vmem:[#allocation2 + $0x8] sm:$0xff]
        %v6650 = vld [vmem:[#allocation2 + $0x10] sm:$0xff]
        %v6651 = vld [vmem:[#allocation2 + $0x18] sm:$0xff]
        %v6652 = vld [vmem:[#allocation2 + $0x20] sm:$0xff]
        %v6653 = vld [vmem:[#allocation2 + $0x28] sm:$0xff]
        %v6654 = vld [vmem:[#allocation2 + $0x30] sm:$0xff]
        %v6655 = vld [vmem:[#allocation2 + $0x38] sm:$0xff]
        %v6656 = vld [vmem:[#allocation2 + $0x40] sm:$0xff]
        %v6657 = vld [vmem:[#allocation2 + $0x48] sm:$0xff]
        %v6658 = vld [vmem:[#allocation2 + $0x50] sm:$0xff]
        %v6659 = vld [vmem:[#allocation2 + $0x58] sm:$0xff]
        %v6660 = vld [vmem:[#allocation2 + $0x60] sm:$0xff]
        %v6661 = vld [vmem:[#allocation2 + $0x68] sm:$0xff]
        %v6662 = vld [vmem:[#allocation2 + $0x70] sm:$0xff]
        %v6663 = vld [vmem:[#allocation2 + $0x78] sm:$0xff]
        %v6664 = vld [vmem:[#allocation2 + $0x80] sm:$0xff]
        %v6665 = vld [vmem:[#allocation2 + $0x88] sm:$0xff]
        %v6666 = vld [vmem:[#allocation2 + $0x90] sm:$0xff]
        %v6667 = vld [vmem:[#allocation2 + $0x98] sm:$0xff]
        %v6668 = vld [vmem:[#allocation2 + $0xa0] sm:$0xff]
        %v6669 = vld [vmem:[#allocation2 + $0xa8] sm:$0xff]
        %v6670 = vld [vmem:[#allocation2 + $0xb0] sm:$0xff]
        %v6671 = vld [vmem:[#allocation2 + $0xb8] sm:$0xff]
        %v6672 = vld [vmem:[#allocation2 + $0xc0] sm:$0xff]
        %v6673 = vld [vmem:[#allocation2 + $0xc8] sm:$0xff]
        %v6674 = vld [vmem:[#allocation2 + $0xd0] sm:$0xff]
        %v6675 = vld [vmem:[#allocation2 + $0xd8] sm:$0xff]
        %v6676 = vld [vmem:[#allocation2 + $0xe0] sm:$0xff]
        %v6677 = vld [vmem:[#allocation2 + $0xe8] sm:$0xff]
        %v6678 = vld [vmem:[#allocation2 + $0xf0] sm:$0xff]
        %v6679 = vld [vmem:[#allocation2 + $0xf8] sm:$0xff]
        %s6680 = scalar_lea.vmem %s210, 56
        %v6681 = vld [vmem:[%s6680] sm:$0xf]
        %v6683 = vsel %vm318, %v6616, 0
        %v6686 = vsel %vm318, %v6617, 0
        %v6689 = vsel %vm318, %v6618, 0
        %v6692 = vsel %vm318, %v6619, 0
        %v6695 = vsel %vm318, %v6620, 0
        %v6698 = vsel %vm318, %v6621, 0
        %v6701 = vsel %vm318, %v6622, 0
        %v6704 = vsel %vm318, %v6623, 0
        %v6707 = vsel %vm318, %v6624, 0
        %v6710 = vsel %vm318, %v6625, 0
        %v6713 = vsel %vm318, %v6626, 0
        %v6716 = vsel %vm318, %v6627, 0
        %v6719 = vsel %vm318, %v6628, 0
        %v6722 = vsel %vm318, %v6629, 0
        %v6725 = vsel %vm318, %v6630, 0
        %v6728 = vsel %vm318, %v6631, 0
        %v6731 = vsel %vm318, %v6632, 0
        %v6734 = vsel %vm318, %v6633, 0
        %v6737 = vsel %vm318, %v6634, 0
        %v6740 = vsel %vm318, %v6635, 0
        %v6743 = vsel %vm318, %v6636, 0
        %v6746 = vsel %vm318, %v6637, 0
        %v6749 = vsel %vm318, %v6638, 0
        %v6752 = vsel %vm318, %v6639, 0
        %v6755 = vsel %vm318, %v6640, 0
        %v6758 = vsel %vm318, %v6641, 0
        %v6761 = vsel %vm318, %v6642, 0
        %v6764 = vsel %vm318, %v6643, 0
        %v6767 = vsel %vm318, %v6644, 0
        %v6770 = vsel %vm318, %v6645, 0
        %v6773 = vsel %vm318, %v6646, 0
        %v6776 = vsel %vm318, %v6647, 0
        %v6779 = vsel %vm415, %v6681, 0
        %6781 = vmatprep.subr.mxu0 0.0
        %6782 = vmatpush1.msra.mxu0 %v6779
        %6783 = vmatprep.subr.mxu0 0.0
        %6784 = vmatpush1.msra.mxu0 0.0
        %6785 = vmatprep.subr.mxu0 0.0
        %6786 = vmatpush1.msra.mxu0 0.0
        %6787 = vmatprep.subr.mxu0 0.0
        %6788 = vmatpush1.msra.mxu0 0.0
        %6789 = vmatprep.subr.mxu0 0.0
        %6790 = vmatpush1.msra.mxu0 0.0
        %6791 = vmatprep.subr.mxu0 0.0
        %6792 = vmatpush1.msra.mxu0 0.0
        %6793 = vmatprep.subr.mxu0 0.0
        %6794 = vmatpush1.msra.mxu0 0.0
        %6795 = vmatprep.subr.mxu0 0.0
        %6796 = vmatpush1.msra.mxu0 0.0
        %6797 = vmatprep.subr.mxu0 0.0
        %6798 = vmatpush1.msra.mxu0 0.0
        %6799 = vmatprep.subr.mxu0 0.0
        %6800 = vmatpush1.msra.mxu0 0.0
        %6801 = vmatprep.subr.mxu0 0.0
        %6802 = vmatpush1.msra.mxu0 0.0
        %6803 = vmatprep.subr.mxu0 0.0
        %6804 = vmatpush1.msra.mxu0 0.0
        %6805 = vmatprep.subr.mxu0 0.0
        %6806 = vmatpush1.msra.mxu0 0.0
        %6807 = vmatprep.subr.mxu0 0.0
        %6808 = vmatpush1.msra.mxu0 0.0
        %6809 = vmatprep.subr.mxu0 0.0
        %6810 = vmatpush1.msra.mxu0 0.0
        %6811 = vmatprep.subr.mxu0 0.0
        %6812 = vmatpush1.msra.mxu0 0.0
        %6813 = vmatprep.subr.mxu0 0.0
        %6814 = vmatpush1.msra.mxu0 0.0
        %6815 = vmatprep.subr.mxu0 0.0
        %6816 = vmatpush1.msra.mxu0 0.0
        %6817 = vmatprep.subr.mxu0 0.0
        %6818 = vmatpush1.msra.mxu0 0.0
        %6819 = vmatprep.subr.mxu0 0.0
        %6820 = vmatpush1.msra.mxu0 0.0
        %6821 = vmatprep.subr.mxu0 0.0
        %6822 = vmatpush1.msra.mxu0 0.0
        %6823 = vmatprep.subr.mxu0 0.0
        %6824 = vmatpush1.msra.mxu0 0.0
        %6825 = vmatprep.subr.mxu0 0.0
        %6826 = vmatpush1.msra.mxu0 0.0
        %6827 = vmatprep.subr.mxu0 0.0
        %6828 = vmatpush1.msra.mxu0 0.0
        %6829 = vmatprep.subr.mxu0 0.0
        %6830 = vmatpush1.msra.mxu0 0.0
        %6831 = vmatprep.subr.mxu0 0.0
        %6832 = vmatpush1.msra.mxu0 0.0
        %6833 = vmatprep.subr.mxu0 0.0
        %6834 = vmatpush1.msra.mxu0 0.0
        %6835 = vmatprep.subr.mxu0 0.0
        %6836 = vmatpush1.msra.mxu0 0.0
        %6837 = vmatprep.subr.mxu0 0.0
        %6838 = vmatpush1.msra.mxu0 0.0
        %6839 = vmatprep.subr.mxu0 0.0
        %6840 = vmatpush1.msra.mxu0 0.0
        %6841 = vmatprep.subr.mxu0 0.0
        %6842 = vmatpush1.msra.mxu0 0.0
        %6843 = vmatprep.subr.mxu0 0.0
        %6844 = vmatpush1.msra.mxu0 0.0
        %6845 = vmatprep.mubr.f32.mxu0 0.0
        %6846 = vmatmul.mubr.f32.gmra.mrb[0].mxu0 %v6683
        %v6847 = vpop.f32.mrb[0].mxu0
        %v6848 = vadd.f32 0.0, %v6847
        %v6849 = vpop.f32.mrb[0].mxu0
        %6850 = vmatprep.mubr.f32.mxu0 0.0
        %6851 = vmatmul.mubr.f32.gmra.mrb[0].mxu0 %v6686
        %v6852 = vpop.f32.mrb[0].mxu0
        %v6853 = vadd.f32 0.0, %v6852
        %v6854 = vpop.f32.mrb[0].mxu0
        %6855 = vmatprep.mubr.f32.mxu0 0.0
        %6856 = vmatmul.mubr.f32.gmra.mrb[0].mxu0 %v6689
        %v6857 = vpop.f32.mrb[0].mxu0
        %v6858 = vadd.f32 0.0, %v6857
        %v6859 = vpop.f32.mrb[0].mxu0
        %6860 = vmatprep.mubr.f32.mxu0 0.0
        %6861 = vmatmul.mubr.f32.gmra.mrb[0].mxu0 %v6692
        %v6862 = vpop.f32.mrb[0].mxu0
        %v6863 = vadd.f32 0.0, %v6862
        %v6864 = vpop.f32.mrb[0].mxu0
        %6865 = vmatprep.mubr.f32.mxu0 0.0
        %6866 = vmatmul.mubr.f32.gmra.mrb[0].mxu0 %v6695
        %v6867 = vpop.f32.mrb[0].mxu0
        %v6868 = vadd.f32 0.0, %v6867
        %v6869 = vpop.f32.mrb[0].mxu0
        %6870 = vmatprep.mubr.f32.mxu0 0.0
        %6871 = vmatmul.mubr.f32.gmra.mrb[0].mxu0 %v6698
        %v6872 = vpop.f32.mrb[0].mxu0
        %v6873 = vadd.f32 0.0, %v6872
        %v6874 = vpop.f32.mrb[0].mxu0
        %6875 = vmatprep.mubr.f32.mxu0 0.0
        %6876 = vmatmul.mubr.f32.gmra.mrb[0].mxu0 %v6701
        %v6877 = vpop.f32.mrb[0].mxu0
        %v6878 = vadd.f32 0.0, %v6877
        %v6879 = vpop.f32.mrb[0].mxu0
        %6880 = vmatprep.mubr.f32.mxu0 0.0
        %6881 = vmatmul.mubr.f32.gmra.mrb[0].mxu0 %v6704
        %v6882 = vpop.f32.mrb[0].mxu0
        %v6883 = vadd.f32 0.0, %v6882
        %v6884 = vpop.f32.mrb[0].mxu0
        %6885 = vmatprep.mubr.f32.mxu0 0.0
        %6886 = vmatmul.mubr.f32.gmra.mrb[0].mxu0 %v6707
        %v6887 = vpop.f32.mrb[0].mxu0
        %v6888 = vadd.f32 0.0, %v6887
        %v6889 = vpop.f32.mrb[0].mxu0
        %6890 = vmatprep.mubr.f32.mxu0 0.0
        %6891 = vmatmul.mubr.f32.gmra.mrb[0].mxu0 %v6710
        %v6892 = vpop.f32.mrb[0].mxu0
        %v6893 = vadd.f32 0.0, %v6892
        %v6894 = vpop.f32.mrb[0].mxu0
        %6895 = vmatprep.mubr.f32.mxu0 0.0
        %6896 = vmatmul.mubr.f32.gmra.mrb[0].mxu0 %v6713
        %v6897 = vpop.f32.mrb[0].mxu0
        %v6898 = vadd.f32 0.0, %v6897
        %v6899 = vpop.f32.mrb[0].mxu0
        %6900 = vmatprep.mubr.f32.mxu0 0.0
        %6901 = vmatmul.mubr.f32.gmra.mrb[0].mxu0 %v6716
        %v6902 = vpop.f32.mrb[0].mxu0
        %v6903 = vadd.f32 0.0, %v6902
        %v6904 = vpop.f32.mrb[0].mxu0
        %6905 = vmatprep.mubr.f32.mxu0 0.0
        %6906 = vmatmul.mubr.f32.gmra.mrb[0].mxu0 %v6719
        %v6907 = vpop.f32.mrb[0].mxu0
        %v6908 = vadd.f32 0.0, %v6907
        %v6909 = vpop.f32.mrb[0].mxu0
        %6910 = vmatprep.mubr.f32.mxu0 0.0
        %6911 = vmatmul.mubr.f32.gmra.mrb[0].mxu0 %v6722
        %v6912 = vpop.f32.mrb[0].mxu0
        %v6913 = vadd.f32 0.0, %v6912
        %v6914 = vpop.f32.mrb[0].mxu0
        %6915 = vmatprep.mubr.f32.mxu0 0.0
        %6916 = vmatmul.mubr.f32.gmra.mrb[0].mxu0 %v6725
        %v6917 = vpop.f32.mrb[0].mxu0
        %v6918 = vadd.f32 0.0, %v6917
        %v6919 = vpop.f32.mrb[0].mxu0
        %6920 = vmatprep.mubr.f32.mxu0 0.0
        %6921 = vmatmul.mubr.f32.gmra.mrb[0].mxu0 %v6728
        %v6922 = vpop.f32.mrb[0].mxu0
        %v6923 = vadd.f32 0.0, %v6922
        %v6924 = vpop.f32.mrb[0].mxu0
        %6925 = vmatprep.mubr.f32.mxu0 0.0
        %6926 = vmatmul.mubr.f32.gmra.mrb[0].mxu0 %v6731
        %v6927 = vpop.f32.mrb[0].mxu0
        %v6928 = vadd.f32 0.0, %v6927
        %v6929 = vpop.f32.mrb[0].mxu0
        %6930 = vmatprep.mubr.f32.mxu0 0.0
        %6931 = vmatmul.mubr.f32.gmra.mrb[0].mxu0 %v6734
        %v6932 = vpop.f32.mrb[0].mxu0
        %v6933 = vadd.f32 0.0, %v6932
        %v6934 = vpop.f32.mrb[0].mxu0
        %6935 = vmatprep.mubr.f32.mxu0 0.0
        %6936 = vmatmul.mubr.f32.gmra.mrb[0].mxu0 %v6737
        %v6937 = vpop.f32.mrb[0].mxu0
        %v6938 = vadd.f32 0.0, %v6937
        %v6939 = vpop.f32.mrb[0].mxu0
        %6940 = vmatprep.mubr.f32.mxu0 0.0
        %6941 = vmatmul.mubr.f32.gmra.mrb[0].mxu0 %v6740
        %v6942 = vpop.f32.mrb[0].mxu0
        %v6943 = vadd.f32 0.0, %v6942
        %v6944 = vpop.f32.mrb[0].mxu0
        %6945 = vmatprep.mubr.f32.mxu0 0.0
        %6946 = vmatmul.mubr.f32.gmra.mrb[0].mxu0 %v6743
        %v6947 = vpop.f32.mrb[0].mxu0
        %v6948 = vadd.f32 0.0, %v6947
        %v6949 = vpop.f32.mrb[0].mxu0
        %6950 = vmatprep.mubr.f32.mxu0 0.0
        %6951 = vmatmul.mubr.f32.gmra.mrb[0].mxu0 %v6746
        %v6952 = vpop.f32.mrb[0].mxu0
        %v6953 = vadd.f32 0.0, %v6952
        %v6954 = vpop.f32.mrb[0].mxu0
        %6955 = vmatprep.mubr.f32.mxu0 0.0
        %6956 = vmatmul.mubr.f32.gmra.mrb[0].mxu0 %v6749
        %v6957 = vpop.f32.mrb[0].mxu0
        %v6958 = vadd.f32 0.0, %v6957
        %v6959 = vpop.f32.mrb[0].mxu0
        %6960 = vmatprep.mubr.f32.mxu0 0.0
        %6961 = vmatmul.mubr.f32.gmra.mrb[0].mxu0 %v6752
        %v6962 = vpop.f32.mrb[0].mxu0
        %v6963 = vadd.f32 0.0, %v6962
        %v6964 = vpop.f32.mrb[0].mxu0
        %6965 = vmatprep.mubr.f32.mxu0 0.0
        %6966 = vmatmul.mubr.f32.gmra.mrb[0].mxu0 %v6755
        %v6967 = vpop.f32.mrb[0].mxu0
        %v6968 = vadd.f32 0.0, %v6967
        %v6969 = vpop.f32.mrb[0].mxu0
        %6970 = vmatprep.mubr.f32.mxu0 0.0
        %6971 = vmatmul.mubr.f32.gmra.mrb[0].mxu0 %v6758
        %v6972 = vpop.f32.mrb[0].mxu0
        %v6973 = vadd.f32 0.0, %v6972
        %v6974 = vpop.f32.mrb[0].mxu0
        %6975 = vmatprep.mubr.f32.mxu0 0.0
        %6976 = vmatmul.mubr.f32.gmra.mrb[0].mxu0 %v6761
        %v6977 = vpop.f32.mrb[0].mxu0
        %v6978 = vadd.f32 0.0, %v6977
        %v6979 = vpop.f32.mrb[0].mxu0
        %6980 = vmatprep.mubr.f32.mxu0 0.0
        %6981 = vmatmul.mubr.f32.gmra.mrb[0].mxu0 %v6764
        %v6982 = vpop.f32.mrb[0].mxu0
        %v6983 = vadd.f32 0.0, %v6982
        %v6984 = vpop.f32.mrb[0].mxu0
        %6985 = vmatprep.mubr.f32.mxu0 0.0
        %6986 = vmatmul.mubr.f32.gmra.mrb[0].mxu0 %v6767
        %v6987 = vpop.f32.mrb[0].mxu0
        %v6988 = vadd.f32 0.0, %v6987
        %v6989 = vpop.f32.mrb[0].mxu0
        %6990 = vmatprep.mubr.f32.mxu0 0.0
        %6991 = vmatmul.mubr.f32.gmra.mrb[0].mxu0 %v6770
        %v6992 = vpop.f32.mrb[0].mxu0
        %v6993 = vadd.f32 0.0, %v6992
        %v6994 = vpop.f32.mrb[0].mxu0
        %6995 = vmatprep.mubr.f32.mxu0 0.0
        %6996 = vmatmul.mubr.f32.gmra.mrb[0].mxu0 %v6773
        %v6997 = vpop.f32.mrb[0].mxu0
        %v6998 = vadd.f32 0.0, %v6997
        %v6999 = vpop.f32.mrb[0].mxu0
        %7000 = vmatprep.mubr.f32.mxu0 0.0
        %7001 = vmatmul.mubr.f32.gmra.mrb[0].mxu0 %v6776
        %v7002 = vpop.f32.mrb[0].mxu0
        %v7003 = vadd.f32 0.0, %v7002
        %v7004 = vpop.f32.mrb[0].mxu0
        %7005 = vdwg.mxu0
        %v7006 = vadd.f32 %v6648, %v6848
        %v7007 = vadd.f32 %v6649, %v6853
        %v7008 = vadd.f32 %v6650, %v6858
        %v7009 = vadd.f32 %v6651, %v6863
        %v7010 = vadd.f32 %v6652, %v6868
        %v7011 = vadd.f32 %v6653, %v6873
        %v7012 = vadd.f32 %v6654, %v6878
        %v7013 = vadd.f32 %v6655, %v6883
        %v7014 = vadd.f32 %v6656, %v6888
        %v7015 = vadd.f32 %v6657, %v6893
        %v7016 = vadd.f32 %v6658, %v6898
        %v7017 = vadd.f32 %v6659, %v6903
        %v7018 = vadd.f32 %v6660, %v6908
        %v7019 = vadd.f32 %v6661, %v6913
        %v7020 = vadd.f32 %v6662, %v6918
        %v7021 = vadd.f32 %v6663, %v6923
        %v7022 = vadd.f32 %v6664, %v6928
        %v7023 = vadd.f32 %v6665, %v6933
        %v7024 = vadd.f32 %v6666, %v6938
        %v7025 = vadd.f32 %v6667, %v6943
        %v7026 = vadd.f32 %v6668, %v6948
        %v7027 = vadd.f32 %v6669, %v6953
        %v7028 = vadd.f32 %v6670, %v6958
        %v7029 = vadd.f32 %v6671, %v6963
        %v7030 = vadd.f32 %v6672, %v6968
        %v7031 = vadd.f32 %v6673, %v6973
        %v7032 = vadd.f32 %v6674, %v6978
        %v7033 = vadd.f32 %v6675, %v6983
        %v7034 = vadd.f32 %v6676, %v6988
        %v7035 = vadd.f32 %v6677, %v6993
        %v7036 = vadd.f32 %v6678, %v6998
        %v7037 = vadd.f32 %v6679, %v7003
        %7038 = vst [vmem:[#allocation2] sm:$0xff] %v7006
        %7039 = vst [vmem:[#allocation2 + $0x8] sm:$0xff] %v7007
        %7040 = vst [vmem:[#allocation2 + $0x10] sm:$0xff] %v7008
        %7041 = vst [vmem:[#allocation2 + $0x18] sm:$0xff] %v7009
        %7042 = vst [vmem:[#allocation2 + $0x20] sm:$0xff] %v7010
        %7043 = vst [vmem:[#allocation2 + $0x28] sm:$0xff] %v7011
        %7044 = vst [vmem:[#allocation2 + $0x30] sm:$0xff] %v7012
        %7045 = vst [vmem:[#allocation2 + $0x38] sm:$0xff] %v7013
        %7046 = vst [vmem:[#allocation2 + $0x40] sm:$0xff] %v7014
        %7047 = vst [vmem:[#allocation2 + $0x48] sm:$0xff] %v7015
        %7048 = vst [vmem:[#allocation2 + $0x50] sm:$0xff] %v7016
        %7049 = vst [vmem:[#allocation2 + $0x58] sm:$0xff] %v7017
        %7050 = vst [vmem:[#allocation2 + $0x60] sm:$0xff] %v7018
        %7051 = vst [vmem:[#allocation2 + $0x68] sm:$0xff] %v7019
        %7052 = vst [vmem:[#allocation2 + $0x70] sm:$0xff] %v7020
        %7053 = vst [vmem:[#allocation2 + $0x78] sm:$0xff] %v7021
        %7054 = vst [vmem:[#allocation2 + $0x80] sm:$0xff] %v7022
        %7055 = vst [vmem:[#allocation2 + $0x88] sm:$0xff] %v7023
        %7056 = vst [vmem:[#allocation2 + $0x90] sm:$0xff] %v7024
        %7057 = vst [vmem:[#allocation2 + $0x98] sm:$0xff] %v7025
        %7058 = vst [vmem:[#allocation2 + $0xa0] sm:$0xff] %v7026
        %7059 = vst [vmem:[#allocation2 + $0xa8] sm:$0xff] %v7027
        %7060 = vst [vmem:[#allocation2 + $0xb0] sm:$0xff] %v7028
        %7061 = vst [vmem:[#allocation2 + $0xb8] sm:$0xff] %v7029
        %7062 = vst [vmem:[#allocation2 + $0xc0] sm:$0xff] %v7030
        %7063 = vst [vmem:[#allocation2 + $0xc8] sm:$0xff] %v7031
        %7064 = vst [vmem:[#allocation2 + $0xd0] sm:$0xff] %v7032
        %7065 = vst [vmem:[#allocation2 + $0xd8] sm:$0xff] %v7033
        %7066 = vst [vmem:[#allocation2 + $0xe0] sm:$0xff] %v7034
        %7067 = vst [vmem:[#allocation2 + $0xe8] sm:$0xff] %v7035
        %7068 = vst [vmem:[#allocation2 + $0xf0] sm:$0xff] %v7036
        %7069 = vst [vmem:[#allocation2 + $0xf8] sm:$0xff] %v7037
        %s7070 = scalar_lea.vmem %s206, 336
        %v7071 = vld [vmem:[%s7070] sm:$0xff]
        %v7072 = vld [vmem:[%s7070 + $0x10] sm:$0xff]
        %v7073 = vld [vmem:[%s7070 + $0x20] sm:$0xff]
        %v7074 = vld [vmem:[%s7070 + $0x30] sm:$0xff]
        %v7075 = vld [vmem:[%s7070 + $0x40] sm:$0xff]
        %v7076 = vld [vmem:[%s7070 + $0x50] sm:$0xff]
        %v7077 = vld [vmem:[%s7070 + $0x60] sm:$0xff]
        %v7078 = vld [vmem:[%s7070 + $0x70] sm:$0xff]
        %v7079 = vld [vmem:[%s7070 + $0xa0] sm:$0xff]
        %v7080 = vld [vmem:[%s7070 + $0xb0] sm:$0xff]
        %v7081 = vld [vmem:[%s7070 + $0xc0] sm:$0xff]
        %v7082 = vld [vmem:[%s7070 + $0xd0] sm:$0xff]
        %v7083 = vld [vmem:[%s7070 + $0xe0] sm:$0xff]
        %v7084 = vld [vmem:[%s7070 + $0xf0] sm:$0xff]
        %v7085 = vld [vmem:[%s7070 + $0x100] sm:$0xff]
        %v7086 = vld [vmem:[%s7070 + $0x110] sm:$0xff]
        %v7087 = vld [vmem:[%s7070 + $0x140] sm:$0xff]
        %v7088 = vld [vmem:[%s7070 + $0x150] sm:$0xff]
        %v7089 = vld [vmem:[%s7070 + $0x160] sm:$0xff]
        %v7090 = vld [vmem:[%s7070 + $0x170] sm:$0xff]
        %v7091 = vld [vmem:[%s7070 + $0x180] sm:$0xff]
        %v7092 = vld [vmem:[%s7070 + $0x190] sm:$0xff]
        %v7093 = vld [vmem:[%s7070 + $0x1a0] sm:$0xff]
        %v7094 = vld [vmem:[%s7070 + $0x1b0] sm:$0xff]
        %v7095 = vld [vmem:[%s7070 + $0x1e0] sm:$0xff]
        %v7096 = vld [vmem:[%s7070 + $0x1f0] sm:$0xff]
        %v7097 = vld [vmem:[%s7070 + $0x200] sm:$0xff]
        %v7098 = vld [vmem:[%s7070 + $0x210] sm:$0xff]
        %v7099 = vld [vmem:[%s7070 + $0x220] sm:$0xff]
        %v7100 = vld [vmem:[%s7070 + $0x230] sm:$0xff]
        %v7101 = vld [vmem:[%s7070 + $0x240] sm:$0xff]
        %v7102 = vld [vmem:[%s7070 + $0x250] sm:$0xff]
        %v7103 = vld [vmem:[#allocation2] sm:$0xff]
        %v7104 = vld [vmem:[#allocation2 + $0x8] sm:$0xff]
        %v7105 = vld [vmem:[#allocation2 + $0x10] sm:$0xff]
        %v7106 = vld [vmem:[#allocation2 + $0x18] sm:$0xff]
        %v7107 = vld [vmem:[#allocation2 + $0x20] sm:$0xff]
        %v7108 = vld [vmem:[#allocation2 + $0x28] sm:$0xff]
        %v7109 = vld [vmem:[#allocation2 + $0x30] sm:$0xff]
        %v7110 = vld [vmem:[#allocation2 + $0x38] sm:$0xff]
        %v7111 = vld [vmem:[#allocation2 + $0x40] sm:$0xff]
        %v7112 = vld [vmem:[#allocation2 + $0x48] sm:$0xff]
        %v7113 = vld [vmem:[#allocation2 + $0x50] sm:$0xff]
        %v7114 = vld [vmem:[#allocation2 + $0x58] sm:$0xff]
        %v7115 = vld [vmem:[#allocation2 + $0x60] sm:$0xff]
        %v7116 = vld [vmem:[#allocation2 + $0x68] sm:$0xff]
        %v7117 = vld [vmem:[#allocation2 + $0x70] sm:$0xff]
        %v7118 = vld [vmem:[#allocation2 + $0x78] sm:$0xff]
        %v7119 = vld [vmem:[#allocation2 + $0x80] sm:$0xff]
        %v7120 = vld [vmem:[#allocation2 + $0x88] sm:$0xff]
        %v7121 = vld [vmem:[#allocation2 + $0x90] sm:$0xff]
        %v7122 = vld [vmem:[#allocation2 + $0x98] sm:$0xff]
        %v7123 = vld [vmem:[#allocation2 + $0xa0] sm:$0xff]
        %v7124 = vld [vmem:[#allocation2 + $0xa8] sm:$0xff]
        %v7125 = vld [vmem:[#allocation2 + $0xb0] sm:$0xff]
        %v7126 = vld [vmem:[#allocation2 + $0xb8] sm:$0xff]
        %v7127 = vld [vmem:[#allocation2 + $0xc0] sm:$0xff]
        %v7128 = vld [vmem:[#allocation2 + $0xc8] sm:$0xff]
        %v7129 = vld [vmem:[#allocation2 + $0xd0] sm:$0xff]
        %v7130 = vld [vmem:[#allocation2 + $0xd8] sm:$0xff]
        %v7131 = vld [vmem:[#allocation2 + $0xe0] sm:$0xff]
        %v7132 = vld [vmem:[#allocation2 + $0xe8] sm:$0xff]
        %v7133 = vld [vmem:[#allocation2 + $0xf0] sm:$0xff]
        %v7134 = vld [vmem:[#allocation2 + $0xf8] sm:$0xff]
        %s7135 = scalar_lea.vmem %s210, 60
        %v7136 = vld [vmem:[%s7135] sm:$0xf]
        %v7138 = vsel %vm318, %v7071, 0
        %v7141 = vsel %vm318, %v7072, 0
        %v7144 = vsel %vm318, %v7073, 0
        %v7147 = vsel %vm318, %v7074, 0
        %v7150 = vsel %vm318, %v7075, 0
        %v7153 = vsel %vm318, %v7076, 0
        %v7156 = vsel %vm318, %v7077, 0
        %v7159 = vsel %vm318, %v7078, 0
        %v7162 = vsel %vm318, %v7079, 0
        %v7165 = vsel %vm318, %v7080, 0
        %v7168 = vsel %vm318, %v7081, 0
        %v7171 = vsel %vm318, %v7082, 0
        %v7174 = vsel %vm318, %v7083, 0
        %v7177 = vsel %vm318, %v7084, 0
        %v7180 = vsel %vm318, %v7085, 0
        %v7183 = vsel %vm318, %v7086, 0
        %v7186 = vsel %vm318, %v7087, 0
        %v7189 = vsel %vm318, %v7088, 0
        %v7192 = vsel %vm318, %v7089, 0
        %v7195 = vsel %vm318, %v7090, 0
        %v7198 = vsel %vm318, %v7091, 0
        %v7201 = vsel %vm318, %v7092, 0
        %v7204 = vsel %vm318, %v7093, 0
        %v7207 = vsel %vm318, %v7094, 0
        %v7210 = vsel %vm318, %v7095, 0
        %v7213 = vsel %vm318, %v7096, 0
        %v7216 = vsel %vm318, %v7097, 0
        %v7219 = vsel %vm318, %v7098, 0
        %v7222 = vsel %vm318, %v7099, 0
        %v7225 = vsel %vm318, %v7100, 0
        %v7228 = vsel %vm318, %v7101, 0
        %v7231 = vsel %vm318, %v7102, 0
        %v7234 = vsel %vm415, %v7136, 0
        %7236 = vmatprep.subr.mxu0 0.0
        %7237 = vmatpush1.msra.mxu0 %v7234
        %7238 = vmatprep.subr.mxu0 0.0
        %7239 = vmatpush1.msra.mxu0 0.0
        %7240 = vmatprep.subr.mxu0 0.0
        %7241 = vmatpush1.msra.mxu0 0.0
        %7242 = vmatprep.subr.mxu0 0.0
        %7243 = vmatpush1.msra.mxu0 0.0
        %7244 = vmatprep.subr.mxu0 0.0
        %7245 = vmatpush1.msra.mxu0 0.0
        %7246 = vmatprep.subr.mxu0 0.0
        %7247 = vmatpush1.msra.mxu0 0.0
        %7248 = vmatprep.subr.mxu0 0.0
        %7249 = vmatpush1.msra.mxu0 0.0
        %7250 = vmatprep.subr.mxu0 0.0
        %7251 = vmatpush1.msra.mxu0 0.0
        %7252 = vmatprep.subr.mxu0 0.0
        %7253 = vmatpush1.msra.mxu0 0.0
        %7254 = vmatprep.subr.mxu0 0.0
        %7255 = vmatpush1.msra.mxu0 0.0
        %7256 = vmatprep.subr.mxu0 0.0
        %7257 = vmatpush1.msra.mxu0 0.0
        %7258 = vmatprep.subr.mxu0 0.0
        %7259 = vmatpush1.msra.mxu0 0.0
        %7260 = vmatprep.subr.mxu0 0.0
        %7261 = vmatpush1.msra.mxu0 0.0
        %7262 = vmatprep.subr.mxu0 0.0
        %7263 = vmatpush1.msra.mxu0 0.0
        %7264 = vmatprep.subr.mxu0 0.0
        %7265 = vmatpush1.msra.mxu0 0.0
        %7266 = vmatprep.subr.mxu0 0.0
        %7267 = vmatpush1.msra.mxu0 0.0
        %7268 = vmatprep.subr.mxu0 0.0
        %7269 = vmatpush1.msra.mxu0 0.0
        %7270 = vmatprep.subr.mxu0 0.0
        %7271 = vmatpush1.msra.mxu0 0.0
        %7272 = vmatprep.subr.mxu0 0.0
        %7273 = vmatpush1.msra.mxu0 0.0
        %7274 = vmatprep.subr.mxu0 0.0
        %7275 = vmatpush1.msra.mxu0 0.0
        %7276 = vmatprep.subr.mxu0 0.0
        %7277 = vmatpush1.msra.mxu0 0.0
        %7278 = vmatprep.subr.mxu0 0.0
        %7279 = vmatpush1.msra.mxu0 0.0
        %7280 = vmatprep.subr.mxu0 0.0
        %7281 = vmatpush1.msra.mxu0 0.0
        %7282 = vmatprep.subr.mxu0 0.0
        %7283 = vmatpush1.msra.mxu0 0.0
        %7284 = vmatprep.subr.mxu0 0.0
        %7285 = vmatpush1.msra.mxu0 0.0
        %7286 = vmatprep.subr.mxu0 0.0
        %7287 = vmatpush1.msra.mxu0 0.0
        %7288 = vmatprep.subr.mxu0 0.0
        %7289 = vmatpush1.msra.mxu0 0.0
        %7290 = vmatprep.subr.mxu0 0.0
        %7291 = vmatpush1.msra.mxu0 0.0
        %7292 = vmatprep.subr.mxu0 0.0
        %7293 = vmatpush1.msra.mxu0 0.0
        %7294 = vmatprep.subr.mxu0 0.0
        %7295 = vmatpush1.msra.mxu0 0.0
        %7296 = vmatprep.subr.mxu0 0.0
        %7297 = vmatpush1.msra.mxu0 0.0
        %7298 = vmatprep.subr.mxu0 0.0
        %7299 = vmatpush1.msra.mxu0 0.0
        %7300 = vmatprep.mubr.f32.mxu0 0.0
        %7301 = vmatmul.mubr.f32.gmra.mrb[0].mxu0 %v7138
        %v7302 = vpop.f32.mrb[0].mxu0
        %v7303 = vadd.f32 0.0, %v7302
        %v7304 = vpop.f32.mrb[0].mxu0
        %7305 = vmatprep.mubr.f32.mxu0 0.0
        %7306 = vmatmul.mubr.f32.gmra.mrb[0].mxu0 %v7141
        %v7307 = vpop.f32.mrb[0].mxu0
        %v7308 = vadd.f32 0.0, %v7307
        %v7309 = vpop.f32.mrb[0].mxu0
        %7310 = vmatprep.mubr.f32.mxu0 0.0
        %7311 = vmatmul.mubr.f32.gmra.mrb[0].mxu0 %v7144
        %v7312 = vpop.f32.mrb[0].mxu0
        %v7313 = vadd.f32 0.0, %v7312
        %v7314 = vpop.f32.mrb[0].mxu0
        %7315 = vmatprep.mubr.f32.mxu0 0.0
        %7316 = vmatmul.mubr.f32.gmra.mrb[0].mxu0 %v7147
        %v7317 = vpop.f32.mrb[0].mxu0
        %v7318 = vadd.f32 0.0, %v7317
        %v7319 = vpop.f32.mrb[0].mxu0
        %7320 = vmatprep.mubr.f32.mxu0 0.0
        %7321 = vmatmul.mubr.f32.gmra.mrb[0].mxu0 %v7150
        %v7322 = vpop.f32.mrb[0].mxu0
        %v7323 = vadd.f32 0.0, %v7322
        %v7324 = vpop.f32.mrb[0].mxu0
        %7325 = vmatprep.mubr.f32.mxu0 0.0
        %7326 = vmatmul.mubr.f32.gmra.mrb[0].mxu0 %v7153
        %v7327 = vpop.f32.mrb[0].mxu0
        %v7328 = vadd.f32 0.0, %v7327
        %v7329 = vpop.f32.mrb[0].mxu0
        %7330 = vmatprep.mubr.f32.mxu0 0.0
        %7331 = vmatmul.mubr.f32.gmra.mrb[0].mxu0 %v7156
        %v7332 = vpop.f32.mrb[0].mxu0
        %v7333 = vadd.f32 0.0, %v7332
        %v7334 = vpop.f32.mrb[0].mxu0
        %7335 = vmatprep.mubr.f32.mxu0 0.0
        %7336 = vmatmul.mubr.f32.gmra.mrb[0].mxu0 %v7159
        %v7337 = vpop.f32.mrb[0].mxu0
        %v7338 = vadd.f32 0.0, %v7337
        %v7339 = vpop.f32.mrb[0].mxu0
        %7340 = vmatprep.mubr.f32.mxu0 0.0
        %7341 = vmatmul.mubr.f32.gmra.mrb[0].mxu0 %v7162
        %v7342 = vpop.f32.mrb[0].mxu0
        %v7343 = vadd.f32 0.0, %v7342
        %v7344 = vpop.f32.mrb[0].mxu0
        %7345 = vmatprep.mubr.f32.mxu0 0.0
        %7346 = vmatmul.mubr.f32.gmra.mrb[0].mxu0 %v7165
        %v7347 = vpop.f32.mrb[0].mxu0
        %v7348 = vadd.f32 0.0, %v7347
        %v7349 = vpop.f32.mrb[0].mxu0
        %7350 = vmatprep.mubr.f32.mxu0 0.0
        %7351 = vmatmul.mubr.f32.gmra.mrb[0].mxu0 %v7168
        %v7352 = vpop.f32.mrb[0].mxu0
        %v7353 = vadd.f32 0.0, %v7352
        %v7354 = vpop.f32.mrb[0].mxu0
        %7355 = vmatprep.mubr.f32.mxu0 0.0
        %7356 = vmatmul.mubr.f32.gmra.mrb[0].mxu0 %v7171
        %v7357 = vpop.f32.mrb[0].mxu0
        %v7358 = vadd.f32 0.0, %v7357
        %v7359 = vpop.f32.mrb[0].mxu0
        %7360 = vmatprep.mubr.f32.mxu0 0.0
        %7361 = vmatmul.mubr.f32.gmra.mrb[0].mxu0 %v7174
        %v7362 = vpop.f32.mrb[0].mxu0
        %v7363 = vadd.f32 0.0, %v7362
        %v7364 = vpop.f32.mrb[0].mxu0
        %7365 = vmatprep.mubr.f32.mxu0 0.0
        %7366 = vmatmul.mubr.f32.gmra.mrb[0].mxu0 %v7177
        %v7367 = vpop.f32.mrb[0].mxu0
        %v7368 = vadd.f32 0.0, %v7367
        %v7369 = vpop.f32.mrb[0].mxu0
        %7370 = vmatprep.mubr.f32.mxu0 0.0
        %7371 = vmatmul.mubr.f32.gmra.mrb[0].mxu0 %v7180
        %v7372 = vpop.f32.mrb[0].mxu0
        %v7373 = vadd.f32 0.0, %v7372
        %v7374 = vpop.f32.mrb[0].mxu0
        %7375 = vmatprep.mubr.f32.mxu0 0.0
        %7376 = vmatmul.mubr.f32.gmra.mrb[0].mxu0 %v7183
        %v7377 = vpop.f32.mrb[0].mxu0
        %v7378 = vadd.f32 0.0, %v7377
        %v7379 = vpop.f32.mrb[0].mxu0
        %7380 = vmatprep.mubr.f32.mxu0 0.0
        %7381 = vmatmul.mubr.f32.gmra.mrb[0].mxu0 %v7186
        %v7382 = vpop.f32.mrb[0].mxu0
        %v7383 = vadd.f32 0.0, %v7382
        %v7384 = vpop.f32.mrb[0].mxu0
        %7385 = vmatprep.mubr.f32.mxu0 0.0
        %7386 = vmatmul.mubr.f32.gmra.mrb[0].mxu0 %v7189
        %v7387 = vpop.f32.mrb[0].mxu0
        %v7388 = vadd.f32 0.0, %v7387
        %v7389 = vpop.f32.mrb[0].mxu0
        %7390 = vmatprep.mubr.f32.mxu0 0.0
        %7391 = vmatmul.mubr.f32.gmra.mrb[0].mxu0 %v7192
        %v7392 = vpop.f32.mrb[0].mxu0
        %v7393 = vadd.f32 0.0, %v7392
        %v7394 = vpop.f32.mrb[0].mxu0
        %7395 = vmatprep.mubr.f32.mxu0 0.0
        %7396 = vmatmul.mubr.f32.gmra.mrb[0].mxu0 %v7195
        %v7397 = vpop.f32.mrb[0].mxu0
        %v7398 = vadd.f32 0.0, %v7397
        %v7399 = vpop.f32.mrb[0].mxu0
        %7400 = vmatprep.mubr.f32.mxu0 0.0
        %7401 = vmatmul.mubr.f32.gmra.mrb[0].mxu0 %v7198
        %v7402 = vpop.f32.mrb[0].mxu0
        %v7403 = vadd.f32 0.0, %v7402
        %v7404 = vpop.f32.mrb[0].mxu0
        %7405 = vmatprep.mubr.f32.mxu0 0.0
        %7406 = vmatmul.mubr.f32.gmra.mrb[0].mxu0 %v7201
        %v7407 = vpop.f32.mrb[0].mxu0
        %v7408 = vadd.f32 0.0, %v7407
        %v7409 = vpop.f32.mrb[0].mxu0
        %7410 = vmatprep.mubr.f32.mxu0 0.0
        %7411 = vmatmul.mubr.f32.gmra.mrb[0].mxu0 %v7204
        %v7412 = vpop.f32.mrb[0].mxu0
        %v7413 = vadd.f32 0.0, %v7412
        %v7414 = vpop.f32.mrb[0].mxu0
        %7415 = vmatprep.mubr.f32.mxu0 0.0
        %7416 = vmatmul.mubr.f32.gmra.mrb[0].mxu0 %v7207
        %v7417 = vpop.f32.mrb[0].mxu0
        %v7418 = vadd.f32 0.0, %v7417
        %v7419 = vpop.f32.mrb[0].mxu0
        %7420 = vmatprep.mubr.f32.mxu0 0.0
        %7421 = vmatmul.mubr.f32.gmra.mrb[0].mxu0 %v7210
        %v7422 = vpop.f32.mrb[0].mxu0
        %v7423 = vadd.f32 0.0, %v7422
        %v7424 = vpop.f32.mrb[0].mxu0
        %7425 = vmatprep.mubr.f32.mxu0 0.0
        %7426 = vmatmul.mubr.f32.gmra.mrb[0].mxu0 %v7213
        %v7427 = vpop.f32.mrb[0].mxu0
        %v7428 = vadd.f32 0.0, %v7427
        %v7429 = vpop.f32.mrb[0].mxu0
        %7430 = vmatprep.mubr.f32.mxu0 0.0
        %7431 = vmatmul.mubr.f32.gmra.mrb[0].mxu0 %v7216
        %v7432 = vpop.f32.mrb[0].mxu0
        %v7433 = vadd.f32 0.0, %v7432
        %v7434 = vpop.f32.mrb[0].mxu0
        %7435 = vmatprep.mubr.f32.mxu0 0.0
        %7436 = vmatmul.mubr.f32.gmra.mrb[0].mxu0 %v7219
        %v7437 = vpop.f32.mrb[0].mxu0
        %v7438 = vadd.f32 0.0, %v7437
        %v7439 = vpop.f32.mrb[0].mxu0
        %7440 = vmatprep.mubr.f32.mxu0 0.0
        %7441 = vmatmul.mubr.f32.gmra.mrb[0].mxu0 %v7222
        %v7442 = vpop.f32.mrb[0].mxu0
        %v7443 = vadd.f32 0.0, %v7442
        %v7444 = vpop.f32.mrb[0].mxu0
        %7445 = vmatprep.mubr.f32.mxu0 0.0
        %7446 = vmatmul.mubr.f32.gmra.mrb[0].mxu0 %v7225
        %v7447 = vpop.f32.mrb[0].mxu0
        %v7448 = vadd.f32 0.0, %v7447
        %v7449 = vpop.f32.mrb[0].mxu0
        %7450 = vmatprep.mubr.f32.mxu0 0.0
        %7451 = vmatmul.mubr.f32.gmra.mrb[0].mxu0 %v7228
        %v7452 = vpop.f32.mrb[0].mxu0
        %v7453 = vadd.f32 0.0, %v7452
        %v7454 = vpop.f32.mrb[0].mxu0
        %7455 = vmatprep.mubr.f32.mxu0 0.0
        %7456 = vmatmul.mubr.f32.gmra.mrb[0].mxu0 %v7231
        %v7457 = vpop.f32.mrb[0].mxu0
        %v7458 = vadd.f32 0.0, %v7457
        %v7459 = vpop.f32.mrb[0].mxu0
        %7460 = vdwg.mxu0
        %v7461 = vadd.f32 %v7103, %v7303
        %v7462 = vadd.f32 %v7104, %v7308
        %v7463 = vadd.f32 %v7105, %v7313
        %v7464 = vadd.f32 %v7106, %v7318
        %v7465 = vadd.f32 %v7107, %v7323
        %v7466 = vadd.f32 %v7108, %v7328
        %v7467 = vadd.f32 %v7109, %v7333
        %v7468 = vadd.f32 %v7110, %v7338
        %v7469 = vadd.f32 %v7111, %v7343
        %v7470 = vadd.f32 %v7112, %v7348
        %v7471 = vadd.f32 %v7113, %v7353
        %v7472 = vadd.f32 %v7114, %v7358
        %v7473 = vadd.f32 %v7115, %v7363
        %v7474 = vadd.f32 %v7116, %v7368
        %v7475 = vadd.f32 %v7117, %v7373
        %v7476 = vadd.f32 %v7118, %v7378
        %v7477 = vadd.f32 %v7119, %v7383
        %v7478 = vadd.f32 %v7120, %v7388
        %v7479 = vadd.f32 %v7121, %v7393
        %v7480 = vadd.f32 %v7122, %v7398
        %v7481 = vadd.f32 %v7123, %v7403
        %v7482 = vadd.f32 %v7124, %v7408
        %v7483 = vadd.f32 %v7125, %v7413
        %v7484 = vadd.f32 %v7126, %v7418
        %v7485 = vadd.f32 %v7127, %v7423
        %v7486 = vadd.f32 %v7128, %v7428
        %v7487 = vadd.f32 %v7129, %v7433
        %v7488 = vadd.f32 %v7130, %v7438
        %v7489 = vadd.f32 %v7131, %v7443
        %v7490 = vadd.f32 %v7132, %v7448
        %v7491 = vadd.f32 %v7133, %v7453
        %v7492 = vadd.f32 %v7134, %v7458
        %7493 = vst [vmem:[#allocation2] sm:$0xff] %v7461
        %7494 = vst [vmem:[#allocation2 + $0x8] sm:$0xff] %v7462
        %7495 = vst [vmem:[#allocation2 + $0x10] sm:$0xff] %v7463
        %7496 = vst [vmem:[#allocation2 + $0x18] sm:$0xff] %v7464
        %7497 = vst [vmem:[#allocation2 + $0x20] sm:$0xff] %v7465
        %7498 = vst [vmem:[#allocation2 + $0x28] sm:$0xff] %v7466
        %7499 = vst [vmem:[#allocation2 + $0x30] sm:$0xff] %v7467
        %7500 = vst [vmem:[#allocation2 + $0x38] sm:$0xff] %v7468
        %7501 = vst [vmem:[#allocation2 + $0x40] sm:$0xff] %v7469
        %7502 = vst [vmem:[#allocation2 + $0x48] sm:$0xff] %v7470
        %7503 = vst [vmem:[#allocation2 + $0x50] sm:$0xff] %v7471
        %7504 = vst [vmem:[#allocation2 + $0x58] sm:$0xff] %v7472
        %7505 = vst [vmem:[#allocation2 + $0x60] sm:$0xff] %v7473
        %7506 = vst [vmem:[#allocation2 + $0x68] sm:$0xff] %v7474
        %7507 = vst [vmem:[#allocation2 + $0x70] sm:$0xff] %v7475
        %7508 = vst [vmem:[#allocation2 + $0x78] sm:$0xff] %v7476
        %7509 = vst [vmem:[#allocation2 + $0x80] sm:$0xff] %v7477
        %7510 = vst [vmem:[#allocation2 + $0x88] sm:$0xff] %v7478
        %7511 = vst [vmem:[#allocation2 + $0x90] sm:$0xff] %v7479
        %7512 = vst [vmem:[#allocation2 + $0x98] sm:$0xff] %v7480
        %7513 = vst [vmem:[#allocation2 + $0xa0] sm:$0xff] %v7481
        %7514 = vst [vmem:[#allocation2 + $0xa8] sm:$0xff] %v7482
        %7515 = vst [vmem:[#allocation2 + $0xb0] sm:$0xff] %v7483
        %7516 = vst [vmem:[#allocation2 + $0xb8] sm:$0xff] %v7484
        %7517 = vst [vmem:[#allocation2 + $0xc0] sm:$0xff] %v7485
        %7518 = vst [vmem:[#allocation2 + $0xc8] sm:$0xff] %v7486
        %7519 = vst [vmem:[#allocation2 + $0xd0] sm:$0xff] %v7487
        %7520 = vst [vmem:[#allocation2 + $0xd8] sm:$0xff] %v7488
        %7521 = vst [vmem:[#allocation2 + $0xe0] sm:$0xff] %v7489
        %7522 = vst [vmem:[#allocation2 + $0xe8] sm:$0xff] %v7490
        %7523 = vst [vmem:[#allocation2 + $0xf0] sm:$0xff] %v7491
        %7524 = vst [vmem:[#allocation2 + $0xf8] sm:$0xff] %v7492
        %v7525 = vld [vmem:[%s7070 + $0x1] sm:$0xff]
        %v7526 = vld [vmem:[%s7070 + $0x11] sm:$0xff]
        %v7527 = vld [vmem:[%s7070 + $0x21] sm:$0xff]
        %v7528 = vld [vmem:[%s7070 + $0x31] sm:$0xff]
        %v7529 = vld [vmem:[%s7070 + $0x41] sm:$0xff]
        %v7530 = vld [vmem:[%s7070 + $0x51] sm:$0xff]
        %v7531 = vld [vmem:[%s7070 + $0x61] sm:$0xff]
        %v7532 = vld [vmem:[%s7070 + $0x71] sm:$0xff]
        %v7533 = vld [vmem:[%s7070 + $0xa1] sm:$0xff]
        %v7534 = vld [vmem:[%s7070 + $0xb1] sm:$0xff]
        %v7535 = vld [vmem:[%s7070 + $0xc1] sm:$0xff]
        %v7536 = vld [vmem:[%s7070 + $0xd1] sm:$0xff]
        %v7537 = vld [vmem:[%s7070 + $0xe1] sm:$0xff]
        %v7538 = vld [vmem:[%s7070 + $0xf1] sm:$0xff]
        %v7539 = vld [vmem:[%s7070 + $0x101] sm:$0xff]
        %v7540 = vld [vmem:[%s7070 + $0x111] sm:$0xff]
        %v7541 = vld [vmem:[%s7070 + $0x141] sm:$0xff]
        %v7542 = vld [vmem:[%s7070 + $0x151] sm:$0xff]
        %v7543 = vld [vmem:[%s7070 + $0x161] sm:$0xff]
        %v7544 = vld [vmem:[%s7070 + $0x171] sm:$0xff]
        %v7545 = vld [vmem:[%s7070 + $0x181] sm:$0xff]
        %v7546 = vld [vmem:[%s7070 + $0x191] sm:$0xff]
        %v7547 = vld [vmem:[%s7070 + $0x1a1] sm:$0xff]
        %v7548 = vld [vmem:[%s7070 + $0x1b1] sm:$0xff]
        %v7549 = vld [vmem:[%s7070 + $0x1e1] sm:$0xff]
        %v7550 = vld [vmem:[%s7070 + $0x1f1] sm:$0xff]
        %v7551 = vld [vmem:[%s7070 + $0x201] sm:$0xff]
        %v7552 = vld [vmem:[%s7070 + $0x211] sm:$0xff]
        %v7553 = vld [vmem:[%s7070 + $0x221] sm:$0xff]
        %v7554 = vld [vmem:[%s7070 + $0x231] sm:$0xff]
        %v7555 = vld [vmem:[%s7070 + $0x241] sm:$0xff]
        %v7556 = vld [vmem:[%s7070 + $0x251] sm:$0xff]
        %v7557 = vld [vmem:[#allocation2] sm:$0xff]
        %v7558 = vld [vmem:[#allocation2 + $0x8] sm:$0xff]
        %v7559 = vld [vmem:[#allocation2 + $0x10] sm:$0xff]
        %v7560 = vld [vmem:[#allocation2 + $0x18] sm:$0xff]
        %v7561 = vld [vmem:[#allocation2 + $0x20] sm:$0xff]
        %v7562 = vld [vmem:[#allocation2 + $0x28] sm:$0xff]
        %v7563 = vld [vmem:[#allocation2 + $0x30] sm:$0xff]
        %v7564 = vld [vmem:[#allocation2 + $0x38] sm:$0xff]
        %v7565 = vld [vmem:[#allocation2 + $0x40] sm:$0xff]
        %v7566 = vld [vmem:[#allocation2 + $0x48] sm:$0xff]
        %v7567 = vld [vmem:[#allocation2 + $0x50] sm:$0xff]
        %v7568 = vld [vmem:[#allocation2 + $0x58] sm:$0xff]
        %v7569 = vld [vmem:[#allocation2 + $0x60] sm:$0xff]
        %v7570 = vld [vmem:[#allocation2 + $0x68] sm:$0xff]
        %v7571 = vld [vmem:[#allocation2 + $0x70] sm:$0xff]
        %v7572 = vld [vmem:[#allocation2 + $0x78] sm:$0xff]
        %v7573 = vld [vmem:[#allocation2 + $0x80] sm:$0xff]
        %v7574 = vld [vmem:[#allocation2 + $0x88] sm:$0xff]
        %v7575 = vld [vmem:[#allocation2 + $0x90] sm:$0xff]
        %v7576 = vld [vmem:[#allocation2 + $0x98] sm:$0xff]
        %v7577 = vld [vmem:[#allocation2 + $0xa0] sm:$0xff]
        %v7578 = vld [vmem:[#allocation2 + $0xa8] sm:$0xff]
        %v7579 = vld [vmem:[#allocation2 + $0xb0] sm:$0xff]
        %v7580 = vld [vmem:[#allocation2 + $0xb8] sm:$0xff]
        %v7581 = vld [vmem:[#allocation2 + $0xc0] sm:$0xff]
        %v7582 = vld [vmem:[#allocation2 + $0xc8] sm:$0xff]
        %v7583 = vld [vmem:[#allocation2 + $0xd0] sm:$0xff]
        %v7584 = vld [vmem:[#allocation2 + $0xd8] sm:$0xff]
        %v7585 = vld [vmem:[#allocation2 + $0xe0] sm:$0xff]
        %v7586 = vld [vmem:[#allocation2 + $0xe8] sm:$0xff]
        %v7587 = vld [vmem:[#allocation2 + $0xf0] sm:$0xff]
        %v7588 = vld [vmem:[#allocation2 + $0xf8] sm:$0xff]
        %s7589 = scalar_lea.vmem %s210, 64
        %v7590 = vld [vmem:[%s7589] sm:$0xf]
        %v7592 = vsel %vm318, %v7525, 0
        %v7595 = vsel %vm318, %v7526, 0
        %v7598 = vsel %vm318, %v7527, 0
        %v7601 = vsel %vm318, %v7528, 0
        %v7604 = vsel %vm318, %v7529, 0
        %v7607 = vsel %vm318, %v7530, 0
        %v7610 = vsel %vm318, %v7531, 0
        %v7613 = vsel %vm318, %v7532, 0
        %v7616 = vsel %vm318, %v7533, 0
        %v7619 = vsel %vm318, %v7534, 0
        %v7622 = vsel %vm318, %v7535, 0
        %v7625 = vsel %vm318, %v7536, 0
        %v7628 = vsel %vm318, %v7537, 0
        %v7631 = vsel %vm318, %v7538, 0
        %v7634 = vsel %vm318, %v7539, 0
        %v7637 = vsel %vm318, %v7540, 0
        %v7640 = vsel %vm318, %v7541, 0
        %v7643 = vsel %vm318, %v7542, 0
        %v7646 = vsel %vm318, %v7543, 0
        %v7649 = vsel %vm318, %v7544, 0
        %v7652 = vsel %vm318, %v7545, 0
        %v7655 = vsel %vm318, %v7546, 0
        %v7658 = vsel %vm318, %v7547, 0
        %v7661 = vsel %vm318, %v7548, 0
        %v7664 = vsel %vm318, %v7549, 0
        %v7667 = vsel %vm318, %v7550, 0
        %v7670 = vsel %vm318, %v7551, 0
        %v7673 = vsel %vm318, %v7552, 0
        %v7676 = vsel %vm318, %v7553, 0
        %v7679 = vsel %vm318, %v7554, 0
        %v7682 = vsel %vm318, %v7555, 0
        %v7685 = vsel %vm318, %v7556, 0
        %v7688 = vsel %vm415, %v7590, 0
        %7690 = vmatprep.subr.mxu0 0.0
        %7691 = vmatpush1.msra.mxu0 %v7688
        %7692 = vmatprep.subr.mxu0 0.0
        %7693 = vmatpush1.msra.mxu0 0.0
        %7694 = vmatprep.subr.mxu0 0.0
        %7695 = vmatpush1.msra.mxu0 0.0
        %7696 = vmatprep.subr.mxu0 0.0
        %7697 = vmatpush1.msra.mxu0 0.0
        %7698 = vmatprep.subr.mxu0 0.0
        %7699 = vmatpush1.msra.mxu0 0.0
        %7700 = vmatprep.subr.mxu0 0.0
        %7701 = vmatpush1.msra.mxu0 0.0
        %7702 = vmatprep.subr.mxu0 0.0
        %7703 = vmatpush1.msra.mxu0 0.0
        %7704 = vmatprep.subr.mxu0 0.0
        %7705 = vmatpush1.msra.mxu0 0.0
        %7706 = vmatprep.subr.mxu0 0.0
        %7707 = vmatpush1.msra.mxu0 0.0
        %7708 = vmatprep.subr.mxu0 0.0
        %7709 = vmatpush1.msra.mxu0 0.0
        %7710 = vmatprep.subr.mxu0 0.0
        %7711 = vmatpush1.msra.mxu0 0.0
        %7712 = vmatprep.subr.mxu0 0.0
        %7713 = vmatpush1.msra.mxu0 0.0
        %7714 = vmatprep.subr.mxu0 0.0
        %7715 = vmatpush1.msra.mxu0 0.0
        %7716 = vmatprep.subr.mxu0 0.0
        %7717 = vmatpush1.msra.mxu0 0.0
        %7718 = vmatprep.subr.mxu0 0.0
        %7719 = vmatpush1.msra.mxu0 0.0
        %7720 = vmatprep.subr.mxu0 0.0
        %7721 = vmatpush1.msra.mxu0 0.0
        %7722 = vmatprep.subr.mxu0 0.0
        %7723 = vmatpush1.msra.mxu0 0.0
        %7724 = vmatprep.subr.mxu0 0.0
        %7725 = vmatpush1.msra.mxu0 0.0
        %7726 = vmatprep.subr.mxu0 0.0
        %7727 = vmatpush1.msra.mxu0 0.0
        %7728 = vmatprep.subr.mxu0 0.0
        %7729 = vmatpush1.msra.mxu0 0.0
        %7730 = vmatprep.subr.mxu0 0.0
        %7731 = vmatpush1.msra.mxu0 0.0
        %7732 = vmatprep.subr.mxu0 0.0
        %7733 = vmatpush1.msra.mxu0 0.0
        %7734 = vmatprep.subr.mxu0 0.0
        %7735 = vmatpush1.msra.mxu0 0.0
        %7736 = vmatprep.subr.mxu0 0.0
        %7737 = vmatpush1.msra.mxu0 0.0
        %7738 = vmatprep.subr.mxu0 0.0
        %7739 = vmatpush1.msra.mxu0 0.0
        %7740 = vmatprep.subr.mxu0 0.0
        %7741 = vmatpush1.msra.mxu0 0.0
        %7742 = vmatprep.subr.mxu0 0.0
        %7743 = vmatpush1.msra.mxu0 0.0
        %7744 = vmatprep.subr.mxu0 0.0
        %7745 = vmatpush1.msra.mxu0 0.0
        %7746 = vmatprep.subr.mxu0 0.0
        %7747 = vmatpush1.msra.mxu0 0.0
        %7748 = vmatprep.subr.mxu0 0.0
        %7749 = vmatpush1.msra.mxu0 0.0
        %7750 = vmatprep.subr.mxu0 0.0
        %7751 = vmatpush1.msra.mxu0 0.0
        %7752 = vmatprep.subr.mxu0 0.0
        %7753 = vmatpush1.msra.mxu0 0.0
        %7754 = vmatprep.mubr.f32.mxu0 0.0
        %7755 = vmatmul.mubr.f32.gmra.mrb[0].mxu0 %v7592
        %v7756 = vpop.f32.mrb[0].mxu0
        %v7757 = vadd.f32 0.0, %v7756
        %v7758 = vpop.f32.mrb[0].mxu0
        %7759 = vmatprep.mubr.f32.mxu0 0.0
        %7760 = vmatmul.mubr.f32.gmra.mrb[0].mxu0 %v7595
        %v7761 = vpop.f32.mrb[0].mxu0
        %v7762 = vadd.f32 0.0, %v7761
        %v7763 = vpop.f32.mrb[0].mxu0
        %7764 = vmatprep.mubr.f32.mxu0 0.0
        %7765 = vmatmul.mubr.f32.gmra.mrb[0].mxu0 %v7598
        %v7766 = vpop.f32.mrb[0].mxu0
        %v7767 = vadd.f32 0.0, %v7766
        %v7768 = vpop.f32.mrb[0].mxu0
        %7769 = vmatprep.mubr.f32.mxu0 0.0
        %7770 = vmatmul.mubr.f32.gmra.mrb[0].mxu0 %v7601
        %v7771 = vpop.f32.mrb[0].mxu0
        %v7772 = vadd.f32 0.0, %v7771
        %v7773 = vpop.f32.mrb[0].mxu0
        %7774 = vmatprep.mubr.f32.mxu0 0.0
        %7775 = vmatmul.mubr.f32.gmra.mrb[0].mxu0 %v7604
        %v7776 = vpop.f32.mrb[0].mxu0
        %v7777 = vadd.f32 0.0, %v7776
        %v7778 = vpop.f32.mrb[0].mxu0
        %7779 = vmatprep.mubr.f32.mxu0 0.0
        %7780 = vmatmul.mubr.f32.gmra.mrb[0].mxu0 %v7607
        %v7781 = vpop.f32.mrb[0].mxu0
        %v7782 = vadd.f32 0.0, %v7781
        %v7783 = vpop.f32.mrb[0].mxu0
        %7784 = vmatprep.mubr.f32.mxu0 0.0
        %7785 = vmatmul.mubr.f32.gmra.mrb[0].mxu0 %v7610
        %v7786 = vpop.f32.mrb[0].mxu0
        %v7787 = vadd.f32 0.0, %v7786
        %v7788 = vpop.f32.mrb[0].mxu0
        %7789 = vmatprep.mubr.f32.mxu0 0.0
        %7790 = vmatmul.mubr.f32.gmra.mrb[0].mxu0 %v7613
        %v7791 = vpop.f32.mrb[0].mxu0
        %v7792 = vadd.f32 0.0, %v7791
        %v7793 = vpop.f32.mrb[0].mxu0
        %7794 = vmatprep.mubr.f32.mxu0 0.0
        %7795 = vmatmul.mubr.f32.gmra.mrb[0].mxu0 %v7616
        %v7796 = vpop.f32.mrb[0].mxu0
        %v7797 = vadd.f32 0.0, %v7796
        %v7798 = vpop.f32.mrb[0].mxu0
        %7799 = vmatprep.mubr.f32.mxu0 0.0
        %7800 = vmatmul.mubr.f32.gmra.mrb[0].mxu0 %v7619
        %v7801 = vpop.f32.mrb[0].mxu0
        %v7802 = vadd.f32 0.0, %v7801
        %v7803 = vpop.f32.mrb[0].mxu0
        %7804 = vmatprep.mubr.f32.mxu0 0.0
        %7805 = vmatmul.mubr.f32.gmra.mrb[0].mxu0 %v7622
        %v7806 = vpop.f32.mrb[0].mxu0
        %v7807 = vadd.f32 0.0, %v7806
        %v7808 = vpop.f32.mrb[0].mxu0
        %7809 = vmatprep.mubr.f32.mxu0 0.0
        %7810 = vmatmul.mubr.f32.gmra.mrb[0].mxu0 %v7625
        %v7811 = vpop.f32.mrb[0].mxu0
        %v7812 = vadd.f32 0.0, %v7811
        %v7813 = vpop.f32.mrb[0].mxu0
        %7814 = vmatprep.mubr.f32.mxu0 0.0
        %7815 = vmatmul.mubr.f32.gmra.mrb[0].mxu0 %v7628
        %v7816 = vpop.f32.mrb[0].mxu0
        %v7817 = vadd.f32 0.0, %v7816
        %v7818 = vpop.f32.mrb[0].mxu0
        %7819 = vmatprep.mubr.f32.mxu0 0.0
        %7820 = vmatmul.mubr.f32.gmra.mrb[0].mxu0 %v7631
        %v7821 = vpop.f32.mrb[0].mxu0
        %v7822 = vadd.f32 0.0, %v7821
        %v7823 = vpop.f32.mrb[0].mxu0
        %7824 = vmatprep.mubr.f32.mxu0 0.0
        %7825 = vmatmul.mubr.f32.gmra.mrb[0].mxu0 %v7634
        %v7826 = vpop.f32.mrb[0].mxu0
        %v7827 = vadd.f32 0.0, %v7826
        %v7828 = vpop.f32.mrb[0].mxu0
        %7829 = vmatprep.mubr.f32.mxu0 0.0
        %7830 = vmatmul.mubr.f32.gmra.mrb[0].mxu0 %v7637
        %v7831 = vpop.f32.mrb[0].mxu0
        %v7832 = vadd.f32 0.0, %v7831
        %v7833 = vpop.f32.mrb[0].mxu0
        %7834 = vmatprep.mubr.f32.mxu0 0.0
        %7835 = vmatmul.mubr.f32.gmra.mrb[0].mxu0 %v7640
        %v7836 = vpop.f32.mrb[0].mxu0
        %v7837 = vadd.f32 0.0, %v7836
        %v7838 = vpop.f32.mrb[0].mxu0
        %7839 = vmatprep.mubr.f32.mxu0 0.0
        %7840 = vmatmul.mubr.f32.gmra.mrb[0].mxu0 %v7643
        %v7841 = vpop.f32.mrb[0].mxu0
        %v7842 = vadd.f32 0.0, %v7841
        %v7843 = vpop.f32.mrb[0].mxu0
        %7844 = vmatprep.mubr.f32.mxu0 0.0
        %7845 = vmatmul.mubr.f32.gmra.mrb[0].mxu0 %v7646
        %v7846 = vpop.f32.mrb[0].mxu0
        %v7847 = vadd.f32 0.0, %v7846
        %v7848 = vpop.f32.mrb[0].mxu0
        %7849 = vmatprep.mubr.f32.mxu0 0.0
        %7850 = vmatmul.mubr.f32.gmra.mrb[0].mxu0 %v7649
        %v7851 = vpop.f32.mrb[0].mxu0
        %v7852 = vadd.f32 0.0, %v7851
        %v7853 = vpop.f32.mrb[0].mxu0
        %7854 = vmatprep.mubr.f32.mxu0 0.0
        %7855 = vmatmul.mubr.f32.gmra.mrb[0].mxu0 %v7652
        %v7856 = vpop.f32.mrb[0].mxu0
        %v7857 = vadd.f32 0.0, %v7856
        %v7858 = vpop.f32.mrb[0].mxu0
        %7859 = vmatprep.mubr.f32.mxu0 0.0
        %7860 = vmatmul.mubr.f32.gmra.mrb[0].mxu0 %v7655
        %v7861 = vpop.f32.mrb[0].mxu0
        %v7862 = vadd.f32 0.0, %v7861
        %v7863 = vpop.f32.mrb[0].mxu0
        %7864 = vmatprep.mubr.f32.mxu0 0.0
        %7865 = vmatmul.mubr.f32.gmra.mrb[0].mxu0 %v7658
        %v7866 = vpop.f32.mrb[0].mxu0
        %v7867 = vadd.f32 0.0, %v7866
        %v7868 = vpop.f32.mrb[0].mxu0
        %7869 = vmatprep.mubr.f32.mxu0 0.0
        %7870 = vmatmul.mubr.f32.gmra.mrb[0].mxu0 %v7661
        %v7871 = vpop.f32.mrb[0].mxu0
        %v7872 = vadd.f32 0.0, %v7871
        %v7873 = vpop.f32.mrb[0].mxu0
        %7874 = vmatprep.mubr.f32.mxu0 0.0
        %7875 = vmatmul.mubr.f32.gmra.mrb[0].mxu0 %v7664
        %v7876 = vpop.f32.mrb[0].mxu0
        %v7877 = vadd.f32 0.0, %v7876
        %v7878 = vpop.f32.mrb[0].mxu0
        %7879 = vmatprep.mubr.f32.mxu0 0.0
        %7880 = vmatmul.mubr.f32.gmra.mrb[0].mxu0 %v7667
        %v7881 = vpop.f32.mrb[0].mxu0
        %v7882 = vadd.f32 0.0, %v7881
        %v7883 = vpop.f32.mrb[0].mxu0
        %7884 = vmatprep.mubr.f32.mxu0 0.0
        %7885 = vmatmul.mubr.f32.gmra.mrb[0].mxu0 %v7670
        %v7886 = vpop.f32.mrb[0].mxu0
        %v7887 = vadd.f32 0.0, %v7886
        %v7888 = vpop.f32.mrb[0].mxu0
        %7889 = vmatprep.mubr.f32.mxu0 0.0
        %7890 = vmatmul.mubr.f32.gmra.mrb[0].mxu0 %v7673
        %v7891 = vpop.f32.mrb[0].mxu0
        %v7892 = vadd.f32 0.0, %v7891
        %v7893 = vpop.f32.mrb[0].mxu0
        %7894 = vmatprep.mubr.f32.mxu0 0.0
        %7895 = vmatmul.mubr.f32.gmra.mrb[0].mxu0 %v7676
        %v7896 = vpop.f32.mrb[0].mxu0
        %v7897 = vadd.f32 0.0, %v7896
        %v7898 = vpop.f32.mrb[0].mxu0
        %7899 = vmatprep.mubr.f32.mxu0 0.0
        %7900 = vmatmul.mubr.f32.gmra.mrb[0].mxu0 %v7679
        %v7901 = vpop.f32.mrb[0].mxu0
        %v7902 = vadd.f32 0.0, %v7901
        %v7903 = vpop.f32.mrb[0].mxu0
        %7904 = vmatprep.mubr.f32.mxu0 0.0
        %7905 = vmatmul.mubr.f32.gmra.mrb[0].mxu0 %v7682
        %v7906 = vpop.f32.mrb[0].mxu0
        %v7907 = vadd.f32 0.0, %v7906
        %v7908 = vpop.f32.mrb[0].mxu0
        %7909 = vmatprep.mubr.f32.mxu0 0.0
        %7910 = vmatmul.mubr.f32.gmra.mrb[0].mxu0 %v7685
        %v7911 = vpop.f32.mrb[0].mxu0
        %v7912 = vadd.f32 0.0, %v7911
        %v7913 = vpop.f32.mrb[0].mxu0
        %7914 = vdwg.mxu0
        %v7915 = vadd.f32 %v7557, %v7757
        %v7916 = vadd.f32 %v7558, %v7762
        %v7917 = vadd.f32 %v7559, %v7767
        %v7918 = vadd.f32 %v7560, %v7772
        %v7919 = vadd.f32 %v7561, %v7777
        %v7920 = vadd.f32 %v7562, %v7782
        %v7921 = vadd.f32 %v7563, %v7787
        %v7922 = vadd.f32 %v7564, %v7792
        %v7923 = vadd.f32 %v7565, %v7797
        %v7924 = vadd.f32 %v7566, %v7802
        %v7925 = vadd.f32 %v7567, %v7807
        %v7926 = vadd.f32 %v7568, %v7812
        %v7927 = vadd.f32 %v7569, %v7817
        %v7928 = vadd.f32 %v7570, %v7822
        %v7929 = vadd.f32 %v7571, %v7827
        %v7930 = vadd.f32 %v7572, %v7832
        %v7931 = vadd.f32 %v7573, %v7837
        %v7932 = vadd.f32 %v7574, %v7842
        %v7933 = vadd.f32 %v7575, %v7847
        %v7934 = vadd.f32 %v7576, %v7852
        %v7935 = vadd.f32 %v7577, %v7857
        %v7936 = vadd.f32 %v7578, %v7862
        %v7937 = vadd.f32 %v7579, %v7867
        %v7938 = vadd.f32 %v7580, %v7872
        %v7939 = vadd.f32 %v7581, %v7877
        %v7940 = vadd.f32 %v7582, %v7882
        %v7941 = vadd.f32 %v7583, %v7887
        %v7942 = vadd.f32 %v7584, %v7892
        %v7943 = vadd.f32 %v7585, %v7897
        %v7944 = vadd.f32 %v7586, %v7902
        %v7945 = vadd.f32 %v7587, %v7907
        %v7946 = vadd.f32 %v7588, %v7912
        %7947 = vst [vmem:[#allocation2] sm:$0xff] %v7915
        %7948 = vst [vmem:[#allocation2 + $0x8] sm:$0xff] %v7916
        %7949 = vst [vmem:[#allocation2 + $0x10] sm:$0xff] %v7917
        %7950 = vst [vmem:[#allocation2 + $0x18] sm:$0xff] %v7918
        %7951 = vst [vmem:[#allocation2 + $0x20] sm:$0xff] %v7919
        %7952 = vst [vmem:[#allocation2 + $0x28] sm:$0xff] %v7920
        %7953 = vst [vmem:[#allocation2 + $0x30] sm:$0xff] %v7921
        %7954 = vst [vmem:[#allocation2 + $0x38] sm:$0xff] %v7922
        %7955 = vst [vmem:[#allocation2 + $0x40] sm:$0xff] %v7923
        %7956 = vst [vmem:[#allocation2 + $0x48] sm:$0xff] %v7924
        %7957 = vst [vmem:[#allocation2 + $0x50] sm:$0xff] %v7925
        %7958 = vst [vmem:[#allocation2 + $0x58] sm:$0xff] %v7926
        %7959 = vst [vmem:[#allocation2 + $0x60] sm:$0xff] %v7927
        %7960 = vst [vmem:[#allocation2 + $0x68] sm:$0xff] %v7928
        %7961 = vst [vmem:[#allocation2 + $0x70] sm:$0xff] %v7929
        %7962 = vst [vmem:[#allocation2 + $0x78] sm:$0xff] %v7930
        %7963 = vst [vmem:[#allocation2 + $0x80] sm:$0xff] %v7931
        %7964 = vst [vmem:[#allocation2 + $0x88] sm:$0xff] %v7932
        %7965 = vst [vmem:[#allocation2 + $0x90] sm:$0xff] %v7933
        %7966 = vst [vmem:[#allocation2 + $0x98] sm:$0xff] %v7934
        %7967 = vst [vmem:[#allocation2 + $0xa0] sm:$0xff] %v7935
        %7968 = vst [vmem:[#allocation2 + $0xa8] sm:$0xff] %v7936
        %7969 = vst [vmem:[#allocation2 + $0xb0] sm:$0xff] %v7937
        %7970 = vst [vmem:[#allocation2 + $0xb8] sm:$0xff] %v7938
        %7971 = vst [vmem:[#allocation2 + $0xc0] sm:$0xff] %v7939
        %7972 = vst [vmem:[#allocation2 + $0xc8] sm:$0xff] %v7940
        %7973 = vst [vmem:[#allocation2 + $0xd0] sm:$0xff] %v7941
        %7974 = vst [vmem:[#allocation2 + $0xd8] sm:$0xff] %v7942
        %7975 = vst [vmem:[#allocation2 + $0xe0] sm:$0xff] %v7943
        %7976 = vst [vmem:[#allocation2 + $0xe8] sm:$0xff] %v7944
        %7977 = vst [vmem:[#allocation2 + $0xf0] sm:$0xff] %v7945
        %7978 = vst [vmem:[#allocation2 + $0xf8] sm:$0xff] %v7946
        %v7979 = vld [vmem:[%s7070 + $0x2] sm:$0xff]
        %v7980 = vld [vmem:[%s7070 + $0x12] sm:$0xff]
        %v7981 = vld [vmem:[%s7070 + $0x22] sm:$0xff]
        %v7982 = vld [vmem:[%s7070 + $0x32] sm:$0xff]
        %v7983 = vld [vmem:[%s7070 + $0x42] sm:$0xff]
        %v7984 = vld [vmem:[%s7070 + $0x52] sm:$0xff]
        %v7985 = vld [vmem:[%s7070 + $0x62] sm:$0xff]
        %v7986 = vld [vmem:[%s7070 + $0x72] sm:$0xff]
        %v7987 = vld [vmem:[%s7070 + $0xa2] sm:$0xff]
        %v7988 = vld [vmem:[%s7070 + $0xb2] sm:$0xff]
        %v7989 = vld [vmem:[%s7070 + $0xc2] sm:$0xff]
        %v7990 = vld [vmem:[%s7070 + $0xd2] sm:$0xff]
        %v7991 = vld [vmem:[%s7070 + $0xe2] sm:$0xff]
        %v7992 = vld [vmem:[%s7070 + $0xf2] sm:$0xff]
        %v7993 = vld [vmem:[%s7070 + $0x102] sm:$0xff]
        %v7994 = vld [vmem:[%s7070 + $0x112] sm:$0xff]
        %v7995 = vld [vmem:[%s7070 + $0x142] sm:$0xff]
        %v7996 = vld [vmem:[%s7070 + $0x152] sm:$0xff]
        %v7997 = vld [vmem:[%s7070 + $0x162] sm:$0xff]
        %v7998 = vld [vmem:[%s7070 + $0x172] sm:$0xff]
        %v7999 = vld [vmem:[%s7070 + $0x182] sm:$0xff]
        %v8000 = vld [vmem:[%s7070 + $0x192] sm:$0xff]
        %v8001 = vld [vmem:[%s7070 + $0x1a2] sm:$0xff]
        %v8002 = vld [vmem:[%s7070 + $0x1b2] sm:$0xff]
        %v8003 = vld [vmem:[%s7070 + $0x1e2] sm:$0xff]
        %v8004 = vld [vmem:[%s7070 + $0x1f2] sm:$0xff]
        %v8005 = vld [vmem:[%s7070 + $0x202] sm:$0xff]
        %v8006 = vld [vmem:[%s7070 + $0x212] sm:$0xff]
        %v8007 = vld [vmem:[%s7070 + $0x222] sm:$0xff]
        %v8008 = vld [vmem:[%s7070 + $0x232] sm:$0xff]
        %v8009 = vld [vmem:[%s7070 + $0x242] sm:$0xff]
        %v8010 = vld [vmem:[%s7070 + $0x252] sm:$0xff]
        %v8011 = vld [vmem:[#allocation2] sm:$0xff]
        %v8012 = vld [vmem:[#allocation2 + $0x8] sm:$0xff]
        %v8013 = vld [vmem:[#allocation2 + $0x10] sm:$0xff]
        %v8014 = vld [vmem:[#allocation2 + $0x18] sm:$0xff]
        %v8015 = vld [vmem:[#allocation2 + $0x20] sm:$0xff]
        %v8016 = vld [vmem:[#allocation2 + $0x28] sm:$0xff]
        %v8017 = vld [vmem:[#allocation2 + $0x30] sm:$0xff]
        %v8018 = vld [vmem:[#allocation2 + $0x38] sm:$0xff]
        %v8019 = vld [vmem:[#allocation2 + $0x40] sm:$0xff]
        %v8020 = vld [vmem:[#allocation2 + $0x48] sm:$0xff]
        %v8021 = vld [vmem:[#allocation2 + $0x50] sm:$0xff]
        %v8022 = vld [vmem:[#allocation2 + $0x58] sm:$0xff]
        %v8023 = vld [vmem:[#allocation2 + $0x60] sm:$0xff]
        %v8024 = vld [vmem:[#allocation2 + $0x68] sm:$0xff]
        %v8025 = vld [vmem:[#allocation2 + $0x70] sm:$0xff]
        %v8026 = vld [vmem:[#allocation2 + $0x78] sm:$0xff]
        %v8027 = vld [vmem:[#allocation2 + $0x80] sm:$0xff]
        %v8028 = vld [vmem:[#allocation2 + $0x88] sm:$0xff]
        %v8029 = vld [vmem:[#allocation2 + $0x90] sm:$0xff]
        %v8030 = vld [vmem:[#allocation2 + $0x98] sm:$0xff]
        %v8031 = vld [vmem:[#allocation2 + $0xa0] sm:$0xff]
        %v8032 = vld [vmem:[#allocation2 + $0xa8] sm:$0xff]
        %v8033 = vld [vmem:[#allocation2 + $0xb0] sm:$0xff]
        %v8034 = vld [vmem:[#allocation2 + $0xb8] sm:$0xff]
        %v8035 = vld [vmem:[#allocation2 + $0xc0] sm:$0xff]
        %v8036 = vld [vmem:[#allocation2 + $0xc8] sm:$0xff]
        %v8037 = vld [vmem:[#allocation2 + $0xd0] sm:$0xff]
        %v8038 = vld [vmem:[#allocation2 + $0xd8] sm:$0xff]
        %v8039 = vld [vmem:[#allocation2 + $0xe0] sm:$0xff]
        %v8040 = vld [vmem:[#allocation2 + $0xe8] sm:$0xff]
        %v8041 = vld [vmem:[#allocation2 + $0xf0] sm:$0xff]
        %v8042 = vld [vmem:[#allocation2 + $0xf8] sm:$0xff]
        %s8043 = scalar_lea.vmem %s210, 68
        %v8044 = vld [vmem:[%s8043] sm:$0xf]
        %v8046 = vsel %vm318, %v7979, 0
        %v8049 = vsel %vm318, %v7980, 0
        %v8052 = vsel %vm318, %v7981, 0
        %v8055 = vsel %vm318, %v7982, 0
        %v8058 = vsel %vm318, %v7983, 0
        %v8061 = vsel %vm318, %v7984, 0
        %v8064 = vsel %vm318, %v7985, 0
        %v8067 = vsel %vm318, %v7986, 0
        %v8070 = vsel %vm318, %v7987, 0
        %v8073 = vsel %vm318, %v7988, 0
        %v8076 = vsel %vm318, %v7989, 0
        %v8079 = vsel %vm318, %v7990, 0
        %v8082 = vsel %vm318, %v7991, 0
        %v8085 = vsel %vm318, %v7992, 0
        %v8088 = vsel %vm318, %v7993, 0
        %v8091 = vsel %vm318, %v7994, 0
        %v8094 = vsel %vm318, %v7995, 0
        %v8097 = vsel %vm318, %v7996, 0
        %v8100 = vsel %vm318, %v7997, 0
        %v8103 = vsel %vm318, %v7998, 0
        %v8106 = vsel %vm318, %v7999, 0
        %v8109 = vsel %vm318, %v8000, 0
        %v8112 = vsel %vm318, %v8001, 0
        %v8115 = vsel %vm318, %v8002, 0
        %v8118 = vsel %vm318, %v8003, 0
        %v8121 = vsel %vm318, %v8004, 0
        %v8124 = vsel %vm318, %v8005, 0
        %v8127 = vsel %vm318, %v8006, 0
        %v8130 = vsel %vm318, %v8007, 0
        %v8133 = vsel %vm318, %v8008, 0
        %v8136 = vsel %vm318, %v8009, 0
        %v8139 = vsel %vm318, %v8010, 0
        %v8142 = vsel %vm415, %v8044, 0
        %8144 = vmatprep.subr.mxu0 0.0
        %8145 = vmatpush1.msra.mxu0 %v8142
        %8146 = vmatprep.subr.mxu0 0.0
        %8147 = vmatpush1.msra.mxu0 0.0
        %8148 = vmatprep.subr.mxu0 0.0
        %8149 = vmatpush1.msra.mxu0 0.0
        %8150 = vmatprep.subr.mxu0 0.0
        %8151 = vmatpush1.msra.mxu0 0.0
        %8152 = vmatprep.subr.mxu0 0.0
        %8153 = vmatpush1.msra.mxu0 0.0
        %8154 = vmatprep.subr.mxu0 0.0
        %8155 = vmatpush1.msra.mxu0 0.0
        %8156 = vmatprep.subr.mxu0 0.0
        %8157 = vmatpush1.msra.mxu0 0.0
        %8158 = vmatprep.subr.mxu0 0.0
        %8159 = vmatpush1.msra.mxu0 0.0
        %8160 = vmatprep.subr.mxu0 0.0
        %8161 = vmatpush1.msra.mxu0 0.0
        %8162 = vmatprep.subr.mxu0 0.0
        %8163 = vmatpush1.msra.mxu0 0.0
        %8164 = vmatprep.subr.mxu0 0.0
        %8165 = vmatpush1.msra.mxu0 0.0
        %8166 = vmatprep.subr.mxu0 0.0
        %8167 = vmatpush1.msra.mxu0 0.0
        %8168 = vmatprep.subr.mxu0 0.0
        %8169 = vmatpush1.msra.mxu0 0.0
        %8170 = vmatprep.subr.mxu0 0.0
        %8171 = vmatpush1.msra.mxu0 0.0
        %8172 = vmatprep.subr.mxu0 0.0
        %8173 = vmatpush1.msra.mxu0 0.0
        %8174 = vmatprep.subr.mxu0 0.0
        %8175 = vmatpush1.msra.mxu0 0.0
        %8176 = vmatprep.subr.mxu0 0.0
        %8177 = vmatpush1.msra.mxu0 0.0
        %8178 = vmatprep.subr.mxu0 0.0
        %8179 = vmatpush1.msra.mxu0 0.0
        %8180 = vmatprep.subr.mxu0 0.0
        %8181 = vmatpush1.msra.mxu0 0.0
        %8182 = vmatprep.subr.mxu0 0.0
        %8183 = vmatpush1.msra.mxu0 0.0
        %8184 = vmatprep.subr.mxu0 0.0
        %8185 = vmatpush1.msra.mxu0 0.0
        %8186 = vmatprep.subr.mxu0 0.0
        %8187 = vmatpush1.msra.mxu0 0.0
        %8188 = vmatprep.subr.mxu0 0.0
        %8189 = vmatpush1.msra.mxu0 0.0
        %8190 = vmatprep.subr.mxu0 0.0
        %8191 = vmatpush1.msra.mxu0 0.0
        %8192 = vmatprep.subr.mxu0 0.0
        %8193 = vmatpush1.msra.mxu0 0.0
        %8194 = vmatprep.subr.mxu0 0.0
        %8195 = vmatpush1.msra.mxu0 0.0
        %8196 = vmatprep.subr.mxu0 0.0
        %8197 = vmatpush1.msra.mxu0 0.0
        %8198 = vmatprep.subr.mxu0 0.0
        %8199 = vmatpush1.msra.mxu0 0.0
        %8200 = vmatprep.subr.mxu0 0.0
        %8201 = vmatpush1.msra.mxu0 0.0
        %8202 = vmatprep.subr.mxu0 0.0
        %8203 = vmatpush1.msra.mxu0 0.0
        %8204 = vmatprep.subr.mxu0 0.0
        %8205 = vmatpush1.msra.mxu0 0.0
        %8206 = vmatprep.subr.mxu0 0.0
        %8207 = vmatpush1.msra.mxu0 0.0
        %8208 = vmatprep.mubr.f32.mxu0 0.0
        %8209 = vmatmul.mubr.f32.gmra.mrb[0].mxu0 %v8046
        %v8210 = vpop.f32.mrb[0].mxu0
        %v8211 = vadd.f32 0.0, %v8210
        %v8212 = vpop.f32.mrb[0].mxu0
        %8213 = vmatprep.mubr.f32.mxu0 0.0
        %8214 = vmatmul.mubr.f32.gmra.mrb[0].mxu0 %v8049
        %v8215 = vpop.f32.mrb[0].mxu0
        %v8216 = vadd.f32 0.0, %v8215
        %v8217 = vpop.f32.mrb[0].mxu0
        %8218 = vmatprep.mubr.f32.mxu0 0.0
        %8219 = vmatmul.mubr.f32.gmra.mrb[0].mxu0 %v8052
        %v8220 = vpop.f32.mrb[0].mxu0
        %v8221 = vadd.f32 0.0, %v8220
        %v8222 = vpop.f32.mrb[0].mxu0
        %8223 = vmatprep.mubr.f32.mxu0 0.0
        %8224 = vmatmul.mubr.f32.gmra.mrb[0].mxu0 %v8055
        %v8225 = vpop.f32.mrb[0].mxu0
        %v8226 = vadd.f32 0.0, %v8225
        %v8227 = vpop.f32.mrb[0].mxu0
        %8228 = vmatprep.mubr.f32.mxu0 0.0
        %8229 = vmatmul.mubr.f32.gmra.mrb[0].mxu0 %v8058
        %v8230 = vpop.f32.mrb[0].mxu0
        %v8231 = vadd.f32 0.0, %v8230
        %v8232 = vpop.f32.mrb[0].mxu0
        %8233 = vmatprep.mubr.f32.mxu0 0.0
        %8234 = vmatmul.mubr.f32.gmra.mrb[0].mxu0 %v8061
        %v8235 = vpop.f32.mrb[0].mxu0
        %v8236 = vadd.f32 0.0, %v8235
        %v8237 = vpop.f32.mrb[0].mxu0
        %8238 = vmatprep.mubr.f32.mxu0 0.0
        %8239 = vmatmul.mubr.f32.gmra.mrb[0].mxu0 %v8064
        %v8240 = vpop.f32.mrb[0].mxu0
        %v8241 = vadd.f32 0.0, %v8240
        %v8242 = vpop.f32.mrb[0].mxu0
        %8243 = vmatprep.mubr.f32.mxu0 0.0
        %8244 = vmatmul.mubr.f32.gmra.mrb[0].mxu0 %v8067
        %v8245 = vpop.f32.mrb[0].mxu0
        %v8246 = vadd.f32 0.0, %v8245
        %v8247 = vpop.f32.mrb[0].mxu0
        %8248 = vmatprep.mubr.f32.mxu0 0.0
        %8249 = vmatmul.mubr.f32.gmra.mrb[0].mxu0 %v8070
        %v8250 = vpop.f32.mrb[0].mxu0
        %v8251 = vadd.f32 0.0, %v8250
        %v8252 = vpop.f32.mrb[0].mxu0
        %8253 = vmatprep.mubr.f32.mxu0 0.0
        %8254 = vmatmul.mubr.f32.gmra.mrb[0].mxu0 %v8073
        %v8255 = vpop.f32.mrb[0].mxu0
        %v8256 = vadd.f32 0.0, %v8255
        %v8257 = vpop.f32.mrb[0].mxu0
        %8258 = vmatprep.mubr.f32.mxu0 0.0
        %8259 = vmatmul.mubr.f32.gmra.mrb[0].mxu0 %v8076
        %v8260 = vpop.f32.mrb[0].mxu0
        %v8261 = vadd.f32 0.0, %v8260
        %v8262 = vpop.f32.mrb[0].mxu0
        %8263 = vmatprep.mubr.f32.mxu0 0.0
        %8264 = vmatmul.mubr.f32.gmra.mrb[0].mxu0 %v8079
        %v8265 = vpop.f32.mrb[0].mxu0
        %v8266 = vadd.f32 0.0, %v8265
        %v8267 = vpop.f32.mrb[0].mxu0
        %8268 = vmatprep.mubr.f32.mxu0 0.0
        %8269 = vmatmul.mubr.f32.gmra.mrb[0].mxu0 %v8082
        %v8270 = vpop.f32.mrb[0].mxu0
        %v8271 = vadd.f32 0.0, %v8270
        %v8272 = vpop.f32.mrb[0].mxu0
        %8273 = vmatprep.mubr.f32.mxu0 0.0
        %8274 = vmatmul.mubr.f32.gmra.mrb[0].mxu0 %v8085
        %v8275 = vpop.f32.mrb[0].mxu0
        %v8276 = vadd.f32 0.0, %v8275
        %v8277 = vpop.f32.mrb[0].mxu0
        %8278 = vmatprep.mubr.f32.mxu0 0.0
        %8279 = vmatmul.mubr.f32.gmra.mrb[0].mxu0 %v8088
        %v8280 = vpop.f32.mrb[0].mxu0
        %v8281 = vadd.f32 0.0, %v8280
        %v8282 = vpop.f32.mrb[0].mxu0
        %8283 = vmatprep.mubr.f32.mxu0 0.0
        %8284 = vmatmul.mubr.f32.gmra.mrb[0].mxu0 %v8091
        %v8285 = vpop.f32.mrb[0].mxu0
        %v8286 = vadd.f32 0.0, %v8285
        %v8287 = vpop.f32.mrb[0].mxu0
        %8288 = vmatprep.mubr.f32.mxu0 0.0
        %8289 = vmatmul.mubr.f32.gmra.mrb[0].mxu0 %v8094
        %v8290 = vpop.f32.mrb[0].mxu0
        %v8291 = vadd.f32 0.0, %v8290
        %v8292 = vpop.f32.mrb[0].mxu0
        %8293 = vmatprep.mubr.f32.mxu0 0.0
        %8294 = vmatmul.mubr.f32.gmra.mrb[0].mxu0 %v8097
        %v8295 = vpop.f32.mrb[0].mxu0
        %v8296 = vadd.f32 0.0, %v8295
        %v8297 = vpop.f32.mrb[0].mxu0
        %8298 = vmatprep.mubr.f32.mxu0 0.0
        %8299 = vmatmul.mubr.f32.gmra.mrb[0].mxu0 %v8100
        %v8300 = vpop.f32.mrb[0].mxu0
        %v8301 = vadd.f32 0.0, %v8300
        %v8302 = vpop.f32.mrb[0].mxu0
        %8303 = vmatprep.mubr.f32.mxu0 0.0
        %8304 = vmatmul.mubr.f32.gmra.mrb[0].mxu0 %v8103
        %v8305 = vpop.f32.mrb[0].mxu0
        %v8306 = vadd.f32 0.0, %v8305
        %v8307 = vpop.f32.mrb[0].mxu0
        %8308 = vmatprep.mubr.f32.mxu0 0.0
        %8309 = vmatmul.mubr.f32.gmra.mrb[0].mxu0 %v8106
        %v8310 = vpop.f32.mrb[0].mxu0
        %v8311 = vadd.f32 0.0, %v8310
        %v8312 = vpop.f32.mrb[0].mxu0
        %8313 = vmatprep.mubr.f32.mxu0 0.0
        %8314 = vmatmul.mubr.f32.gmra.mrb[0].mxu0 %v8109
        %v8315 = vpop.f32.mrb[0].mxu0
        %v8316 = vadd.f32 0.0, %v8315
        %v8317 = vpop.f32.mrb[0].mxu0
        %8318 = vmatprep.mubr.f32.mxu0 0.0
        %8319 = vmatmul.mubr.f32.gmra.mrb[0].mxu0 %v8112
        %v8320 = vpop.f32.mrb[0].mxu0
        %v8321 = vadd.f32 0.0, %v8320
        %v8322 = vpop.f32.mrb[0].mxu0
        %8323 = vmatprep.mubr.f32.mxu0 0.0
        %8324 = vmatmul.mubr.f32.gmra.mrb[0].mxu0 %v8115
        %v8325 = vpop.f32.mrb[0].mxu0
        %v8326 = vadd.f32 0.0, %v8325
        %v8327 = vpop.f32.mrb[0].mxu0
        %8328 = vmatprep.mubr.f32.mxu0 0.0
        %8329 = vmatmul.mubr.f32.gmra.mrb[0].mxu0 %v8118
        %v8330 = vpop.f32.mrb[0].mxu0
        %v8331 = vadd.f32 0.0, %v8330
        %v8332 = vpop.f32.mrb[0].mxu0
        %8333 = vmatprep.mubr.f32.mxu0 0.0
        %8334 = vmatmul.mubr.f32.gmra.mrb[0].mxu0 %v8121
        %v8335 = vpop.f32.mrb[0].mxu0
        %v8336 = vadd.f32 0.0, %v8335
        %v8337 = vpop.f32.mrb[0].mxu0
        %8338 = vmatprep.mubr.f32.mxu0 0.0
        %8339 = vmatmul.mubr.f32.gmra.mrb[0].mxu0 %v8124
        %v8340 = vpop.f32.mrb[0].mxu0
        %v8341 = vadd.f32 0.0, %v8340
        %v8342 = vpop.f32.mrb[0].mxu0
        %8343 = vmatprep.mubr.f32.mxu0 0.0
        %8344 = vmatmul.mubr.f32.gmra.mrb[0].mxu0 %v8127
        %v8345 = vpop.f32.mrb[0].mxu0
        %v8346 = vadd.f32 0.0, %v8345
        %v8347 = vpop.f32.mrb[0].mxu0
        %8348 = vmatprep.mubr.f32.mxu0 0.0
        %8349 = vmatmul.mubr.f32.gmra.mrb[0].mxu0 %v8130
        %v8350 = vpop.f32.mrb[0].mxu0
        %v8351 = vadd.f32 0.0, %v8350
        %v8352 = vpop.f32.mrb[0].mxu0
        %8353 = vmatprep.mubr.f32.mxu0 0.0
        %8354 = vmatmul.mubr.f32.gmra.mrb[0].mxu0 %v8133
        %v8355 = vpop.f32.mrb[0].mxu0
        %v8356 = vadd.f32 0.0, %v8355
        %v8357 = vpop.f32.mrb[0].mxu0
        %8358 = vmatprep.mubr.f32.mxu0 0.0
        %8359 = vmatmul.mubr.f32.gmra.mrb[0].mxu0 %v8136
        %v8360 = vpop.f32.mrb[0].mxu0
        %v8361 = vadd.f32 0.0, %v8360
        %v8362 = vpop.f32.mrb[0].mxu0
        %8363 = vmatprep.mubr.f32.mxu0 0.0
        %8364 = vmatmul.mubr.f32.gmra.mrb[0].mxu0 %v8139
        %v8365 = vpop.f32.mrb[0].mxu0
        %v8366 = vadd.f32 0.0, %v8365
        %v8367 = vpop.f32.mrb[0].mxu0
        %8368 = vdwg.mxu0
        %v8369 = vadd.f32 %v8011, %v8211
        %v8370 = vadd.f32 %v8012, %v8216
        %v8371 = vadd.f32 %v8013, %v8221
        %v8372 = vadd.f32 %v8014, %v8226
        %v8373 = vadd.f32 %v8015, %v8231
        %v8374 = vadd.f32 %v8016, %v8236
        %v8375 = vadd.f32 %v8017, %v8241
        %v8376 = vadd.f32 %v8018, %v8246
        %v8377 = vadd.f32 %v8019, %v8251
        %v8378 = vadd.f32 %v8020, %v8256
        %v8379 = vadd.f32 %v8021, %v8261
        %v8380 = vadd.f32 %v8022, %v8266
        %v8381 = vadd.f32 %v8023, %v8271
        %v8382 = vadd.f32 %v8024, %v8276
        %v8383 = vadd.f32 %v8025, %v8281
        %v8384 = vadd.f32 %v8026, %v8286
        %v8385 = vadd.f32 %v8027, %v8291
        %v8386 = vadd.f32 %v8028, %v8296
        %v8387 = vadd.f32 %v8029, %v8301
        %v8388 = vadd.f32 %v8030, %v8306
        %v8389 = vadd.f32 %v8031, %v8311
        %v8390 = vadd.f32 %v8032, %v8316
        %v8391 = vadd.f32 %v8033, %v8321
        %v8392 = vadd.f32 %v8034, %v8326
        %v8393 = vadd.f32 %v8035, %v8331
        %v8394 = vadd.f32 %v8036, %v8336
        %v8395 = vadd.f32 %v8037, %v8341
        %v8396 = vadd.f32 %v8038, %v8346
        %v8397 = vadd.f32 %v8039, %v8351
        %v8398 = vadd.f32 %v8040, %v8356
        %v8399 = vadd.f32 %v8041, %v8361
        %v8400 = vadd.f32 %v8042, %v8366
        %8401 = vst [vmem:[#allocation2] sm:$0xff] %v8369
        %8402 = vst [vmem:[#allocation2 + $0x8] sm:$0xff] %v8370
        %8403 = vst [vmem:[#allocation2 + $0x10] sm:$0xff] %v8371
        %8404 = vst [vmem:[#allocation2 + $0x18] sm:$0xff] %v8372
        %8405 = vst [vmem:[#allocation2 + $0x20] sm:$0xff] %v8373
        %8406 = vst [vmem:[#allocation2 + $0x28] sm:$0xff] %v8374
        %8407 = vst [vmem:[#allocation2 + $0x30] sm:$0xff] %v8375
        %8408 = vst [vmem:[#allocation2 + $0x38] sm:$0xff] %v8376
        %8409 = vst [vmem:[#allocation2 + $0x40] sm:$0xff] %v8377
        %8410 = vst [vmem:[#allocation2 + $0x48] sm:$0xff] %v8378
        %8411 = vst [vmem:[#allocation2 + $0x50] sm:$0xff] %v8379
        %8412 = vst [vmem:[#allocation2 + $0x58] sm:$0xff] %v8380
        %8413 = vst [vmem:[#allocation2 + $0x60] sm:$0xff] %v8381
        %8414 = vst [vmem:[#allocation2 + $0x68] sm:$0xff] %v8382
        %8415 = vst [vmem:[#allocation2 + $0x70] sm:$0xff] %v8383
        %8416 = vst [vmem:[#allocation2 + $0x78] sm:$0xff] %v8384
        %8417 = vst [vmem:[#allocation2 + $0x80] sm:$0xff] %v8385
        %8418 = vst [vmem:[#allocation2 + $0x88] sm:$0xff] %v8386
        %8419 = vst [vmem:[#allocation2 + $0x90] sm:$0xff] %v8387
        %8420 = vst [vmem:[#allocation2 + $0x98] sm:$0xff] %v8388
        %8421 = vst [vmem:[#allocation2 + $0xa0] sm:$0xff] %v8389
        %8422 = vst [vmem:[#allocation2 + $0xa8] sm:$0xff] %v8390
        %8423 = vst [vmem:[#allocation2 + $0xb0] sm:$0xff] %v8391
        %8424 = vst [vmem:[#allocation2 + $0xb8] sm:$0xff] %v8392
        %8425 = vst [vmem:[#allocation2 + $0xc0] sm:$0xff] %v8393
        %8426 = vst [vmem:[#allocation2 + $0xc8] sm:$0xff] %v8394
        %8427 = vst [vmem:[#allocation2 + $0xd0] sm:$0xff] %v8395
        %8428 = vst [vmem:[#allocation2 + $0xd8] sm:$0xff] %v8396
        %8429 = vst [vmem:[#allocation2 + $0xe0] sm:$0xff] %v8397
        %8430 = vst [vmem:[#allocation2 + $0xe8] sm:$0xff] %v8398
        %8431 = vst [vmem:[#allocation2 + $0xf0] sm:$0xff] %v8399
        %8432 = vst [vmem:[#allocation2 + $0xf8] sm:$0xff] %v8400
        %s8433 = scalar_lea.vmem %s206, 352
        %v8434 = vld [vmem:[%s8433 + $0x1] sm:$0xff]
        %v8435 = vld [vmem:[%s8433 + $0x11] sm:$0xff]
        %v8436 = vld [vmem:[%s8433 + $0x21] sm:$0xff]
        %v8437 = vld [vmem:[%s8433 + $0x31] sm:$0xff]
        %v8438 = vld [vmem:[%s8433 + $0x41] sm:$0xff]
        %v8439 = vld [vmem:[%s8433 + $0x51] sm:$0xff]
        %v8440 = vld [vmem:[%s8433 + $0x61] sm:$0xff]
        %v8441 = vld [vmem:[%s8433 + $0x71] sm:$0xff]
        %v8442 = vld [vmem:[%s8433 + $0xa1] sm:$0xff]
        %v8443 = vld [vmem:[%s8433 + $0xb1] sm:$0xff]
        %v8444 = vld [vmem:[%s8433 + $0xc1] sm:$0xff]
        %v8445 = vld [vmem:[%s8433 + $0xd1] sm:$0xff]
        %v8446 = vld [vmem:[%s8433 + $0xe1] sm:$0xff]
        %v8447 = vld [vmem:[%s8433 + $0xf1] sm:$0xff]
        %v8448 = vld [vmem:[%s8433 + $0x101] sm:$0xff]
        %v8449 = vld [vmem:[%s8433 + $0x111] sm:$0xff]
        %v8450 = vld [vmem:[%s8433 + $0x141] sm:$0xff]
        %v8451 = vld [vmem:[%s8433 + $0x151] sm:$0xff]
        %v8452 = vld [vmem:[%s8433 + $0x161] sm:$0xff]
        %v8453 = vld [vmem:[%s8433 + $0x171] sm:$0xff]
        %v8454 = vld [vmem:[%s8433 + $0x181] sm:$0xff]
        %v8455 = vld [vmem:[%s8433 + $0x191] sm:$0xff]
        %v8456 = vld [vmem:[%s8433 + $0x1a1] sm:$0xff]
        %v8457 = vld [vmem:[%s8433 + $0x1b1] sm:$0xff]
        %v8458 = vld [vmem:[%s8433 + $0x1e1] sm:$0xff]
        %v8459 = vld [vmem:[%s8433 + $0x1f1] sm:$0xff]
        %v8460 = vld [vmem:[%s8433 + $0x201] sm:$0xff]
        %v8461 = vld [vmem:[%s8433 + $0x211] sm:$0xff]
        %v8462 = vld [vmem:[%s8433 + $0x221] sm:$0xff]
        %v8463 = vld [vmem:[%s8433 + $0x231] sm:$0xff]
        %v8464 = vld [vmem:[%s8433 + $0x241] sm:$0xff]
        %v8465 = vld [vmem:[%s8433 + $0x251] sm:$0xff]
        %v8466 = vld [vmem:[#allocation2] sm:$0xff]
        %v8467 = vld [vmem:[#allocation2 + $0x8] sm:$0xff]
        %v8468 = vld [vmem:[#allocation2 + $0x10] sm:$0xff]
        %v8469 = vld [vmem:[#allocation2 + $0x18] sm:$0xff]
        %v8470 = vld [vmem:[#allocation2 + $0x20] sm:$0xff]
        %v8471 = vld [vmem:[#allocation2 + $0x28] sm:$0xff]
        %v8472 = vld [vmem:[#allocation2 + $0x30] sm:$0xff]
        %v8473 = vld [vmem:[#allocation2 + $0x38] sm:$0xff]
        %v8474 = vld [vmem:[#allocation2 + $0x40] sm:$0xff]
        %v8475 = vld [vmem:[#allocation2 + $0x48] sm:$0xff]
        %v8476 = vld [vmem:[#allocation2 + $0x50] sm:$0xff]
        %v8477 = vld [vmem:[#allocation2 + $0x58] sm:$0xff]
        %v8478 = vld [vmem:[#allocation2 + $0x60] sm:$0xff]
        %v8479 = vld [vmem:[#allocation2 + $0x68] sm:$0xff]
        %v8480 = vld [vmem:[#allocation2 + $0x70] sm:$0xff]
        %v8481 = vld [vmem:[#allocation2 + $0x78] sm:$0xff]
        %v8482 = vld [vmem:[#allocation2 + $0x80] sm:$0xff]
        %v8483 = vld [vmem:[#allocation2 + $0x88] sm:$0xff]
        %v8484 = vld [vmem:[#allocation2 + $0x90] sm:$0xff]
        %v8485 = vld [vmem:[#allocation2 + $0x98] sm:$0xff]
        %v8486 = vld [vmem:[#allocation2 + $0xa0] sm:$0xff]
        %v8487 = vld [vmem:[#allocation2 + $0xa8] sm:$0xff]
        %v8488 = vld [vmem:[#allocation2 + $0xb0] sm:$0xff]
        %v8489 = vld [vmem:[#allocation2 + $0xb8] sm:$0xff]
        %v8490 = vld [vmem:[#allocation2 + $0xc0] sm:$0xff]
        %v8491 = vld [vmem:[#allocation2 + $0xc8] sm:$0xff]
        %v8492 = vld [vmem:[#allocation2 + $0xd0] sm:$0xff]
        %v8493 = vld [vmem:[#allocation2 + $0xd8] sm:$0xff]
        %v8494 = vld [vmem:[#allocation2 + $0xe0] sm:$0xff]
        %v8495 = vld [vmem:[#allocation2 + $0xe8] sm:$0xff]
        %v8496 = vld [vmem:[#allocation2 + $0xf0] sm:$0xff]
        %v8497 = vld [vmem:[#allocation2 + $0xf8] sm:$0xff]
        %s8498 = scalar_lea.vmem %s210, 72
        %v8499 = vld [vmem:[%s8498] sm:$0xf]
        %v8501 = vsel %vm318, %v8434, 0
        %v8504 = vsel %vm318, %v8435, 0
        %v8507 = vsel %vm318, %v8436, 0
        %v8510 = vsel %vm318, %v8437, 0
        %v8513 = vsel %vm318, %v8438, 0
        %v8516 = vsel %vm318, %v8439, 0
        %v8519 = vsel %vm318, %v8440, 0
        %v8522 = vsel %vm318, %v8441, 0
        %v8525 = vsel %vm318, %v8442, 0
        %v8528 = vsel %vm318, %v8443, 0
        %v8531 = vsel %vm318, %v8444, 0
        %v8534 = vsel %vm318, %v8445, 0
        %v8537 = vsel %vm318, %v8446, 0
        %v8540 = vsel %vm318, %v8447, 0
        %v8543 = vsel %vm318, %v8448, 0
        %v8546 = vsel %vm318, %v8449, 0
        %v8549 = vsel %vm318, %v8450, 0
        %v8552 = vsel %vm318, %v8451, 0
        %v8555 = vsel %vm318, %v8452, 0
        %v8558 = vsel %vm318, %v8453, 0
        %v8561 = vsel %vm318, %v8454, 0
        %v8564 = vsel %vm318, %v8455, 0
        %v8567 = vsel %vm318, %v8456, 0
        %v8570 = vsel %vm318, %v8457, 0
        %v8573 = vsel %vm318, %v8458, 0
        %v8576 = vsel %vm318, %v8459, 0
        %v8579 = vsel %vm318, %v8460, 0
        %v8582 = vsel %vm318, %v8461, 0
        %v8585 = vsel %vm318, %v8462, 0
        %v8588 = vsel %vm318, %v8463, 0
        %v8591 = vsel %vm318, %v8464, 0
        %v8594 = vsel %vm318, %v8465, 0
        %v8597 = vsel %vm415, %v8499, 0
        %8599 = vmatprep.subr.mxu0 0.0
        %8600 = vmatpush1.msra.mxu0 %v8597
        %8601 = vmatprep.subr.mxu0 0.0
        %8602 = vmatpush1.msra.mxu0 0.0
        %8603 = vmatprep.subr.mxu0 0.0
        %8604 = vmatpush1.msra.mxu0 0.0
        %8605 = vmatprep.subr.mxu0 0.0
        %8606 = vmatpush1.msra.mxu0 0.0
        %8607 = vmatprep.subr.mxu0 0.0
        %8608 = vmatpush1.msra.mxu0 0.0
        %8609 = vmatprep.subr.mxu0 0.0
        %8610 = vmatpush1.msra.mxu0 0.0
        %8611 = vmatprep.subr.mxu0 0.0
        %8612 = vmatpush1.msra.mxu0 0.0
        %8613 = vmatprep.subr.mxu0 0.0
        %8614 = vmatpush1.msra.mxu0 0.0
        %8615 = vmatprep.subr.mxu0 0.0
        %8616 = vmatpush1.msra.mxu0 0.0
        %8617 = vmatprep.subr.mxu0 0.0
        %8618 = vmatpush1.msra.mxu0 0.0
        %8619 = vmatprep.subr.mxu0 0.0
        %8620 = vmatpush1.msra.mxu0 0.0
        %8621 = vmatprep.subr.mxu0 0.0
        %8622 = vmatpush1.msra.mxu0 0.0
        %8623 = vmatprep.subr.mxu0 0.0
        %8624 = vmatpush1.msra.mxu0 0.0
        %8625 = vmatprep.subr.mxu0 0.0
        %8626 = vmatpush1.msra.mxu0 0.0
        %8627 = vmatprep.subr.mxu0 0.0
        %8628 = vmatpush1.msra.mxu0 0.0
        %8629 = vmatprep.subr.mxu0 0.0
        %8630 = vmatpush1.msra.mxu0 0.0
        %8631 = vmatprep.subr.mxu0 0.0
        %8632 = vmatpush1.msra.mxu0 0.0
        %8633 = vmatprep.subr.mxu0 0.0
        %8634 = vmatpush1.msra.mxu0 0.0
        %8635 = vmatprep.subr.mxu0 0.0
        %8636 = vmatpush1.msra.mxu0 0.0
        %8637 = vmatprep.subr.mxu0 0.0
        %8638 = vmatpush1.msra.mxu0 0.0
        %8639 = vmatprep.subr.mxu0 0.0
        %8640 = vmatpush1.msra.mxu0 0.0
        %8641 = vmatprep.subr.mxu0 0.0
        %8642 = vmatpush1.msra.mxu0 0.0
        %8643 = vmatprep.subr.mxu0 0.0
        %8644 = vmatpush1.msra.mxu0 0.0
        %8645 = vmatprep.subr.mxu0 0.0
        %8646 = vmatpush1.msra.mxu0 0.0
        %8647 = vmatprep.subr.mxu0 0.0
        %8648 = vmatpush1.msra.mxu0 0.0
        %8649 = vmatprep.subr.mxu0 0.0
        %8650 = vmatpush1.msra.mxu0 0.0
        %8651 = vmatprep.subr.mxu0 0.0
        %8652 = vmatpush1.msra.mxu0 0.0
        %8653 = vmatprep.subr.mxu0 0.0
        %8654 = vmatpush1.msra.mxu0 0.0
        %8655 = vmatprep.subr.mxu0 0.0
        %8656 = vmatpush1.msra.mxu0 0.0
        %8657 = vmatprep.subr.mxu0 0.0
        %8658 = vmatpush1.msra.mxu0 0.0
        %8659 = vmatprep.subr.mxu0 0.0
        %8660 = vmatpush1.msra.mxu0 0.0
        %8661 = vmatprep.subr.mxu0 0.0
        %8662 = vmatpush1.msra.mxu0 0.0
        %8663 = vmatprep.mubr.f32.mxu0 0.0
        %8664 = vmatmul.mubr.f32.gmra.mrb[0].mxu0 %v8501
        %v8665 = vpop.f32.mrb[0].mxu0
        %v8666 = vadd.f32 0.0, %v8665
        %v8667 = vpop.f32.mrb[0].mxu0
        %8668 = vmatprep.mubr.f32.mxu0 0.0
        %8669 = vmatmul.mubr.f32.gmra.mrb[0].mxu0 %v8504
        %v8670 = vpop.f32.mrb[0].mxu0
        %v8671 = vadd.f32 0.0, %v8670
        %v8672 = vpop.f32.mrb[0].mxu0
        %8673 = vmatprep.mubr.f32.mxu0 0.0
        %8674 = vmatmul.mubr.f32.gmra.mrb[0].mxu0 %v8507
        %v8675 = vpop.f32.mrb[0].mxu0
        %v8676 = vadd.f32 0.0, %v8675
        %v8677 = vpop.f32.mrb[0].mxu0
        %8678 = vmatprep.mubr.f32.mxu0 0.0
        %8679 = vmatmul.mubr.f32.gmra.mrb[0].mxu0 %v8510
        %v8680 = vpop.f32.mrb[0].mxu0
        %v8681 = vadd.f32 0.0, %v8680
        %v8682 = vpop.f32.mrb[0].mxu0
        %8683 = vmatprep.mubr.f32.mxu0 0.0
        %8684 = vmatmul.mubr.f32.gmra.mrb[0].mxu0 %v8513
        %v8685 = vpop.f32.mrb[0].mxu0
        %v8686 = vadd.f32 0.0, %v8685
        %v8687 = vpop.f32.mrb[0].mxu0
        %8688 = vmatprep.mubr.f32.mxu0 0.0
        %8689 = vmatmul.mubr.f32.gmra.mrb[0].mxu0 %v8516
        %v8690 = vpop.f32.mrb[0].mxu0
        %v8691 = vadd.f32 0.0, %v8690
        %v8692 = vpop.f32.mrb[0].mxu0
        %8693 = vmatprep.mubr.f32.mxu0 0.0
        %8694 = vmatmul.mubr.f32.gmra.mrb[0].mxu0 %v8519
        %v8695 = vpop.f32.mrb[0].mxu0
        %v8696 = vadd.f32 0.0, %v8695
        %v8697 = vpop.f32.mrb[0].mxu0
        %8698 = vmatprep.mubr.f32.mxu0 0.0
        %8699 = vmatmul.mubr.f32.gmra.mrb[0].mxu0 %v8522
        %v8700 = vpop.f32.mrb[0].mxu0
        %v8701 = vadd.f32 0.0, %v8700
        %v8702 = vpop.f32.mrb[0].mxu0
        %8703 = vmatprep.mubr.f32.mxu0 0.0
        %8704 = vmatmul.mubr.f32.gmra.mrb[0].mxu0 %v8525
        %v8705 = vpop.f32.mrb[0].mxu0
        %v8706 = vadd.f32 0.0, %v8705
        %v8707 = vpop.f32.mrb[0].mxu0
        %8708 = vmatprep.mubr.f32.mxu0 0.0
        %8709 = vmatmul.mubr.f32.gmra.mrb[0].mxu0 %v8528
        %v8710 = vpop.f32.mrb[0].mxu0
        %v8711 = vadd.f32 0.0, %v8710
        %v8712 = vpop.f32.mrb[0].mxu0
        %8713 = vmatprep.mubr.f32.mxu0 0.0
        %8714 = vmatmul.mubr.f32.gmra.mrb[0].mxu0 %v8531
        %v8715 = vpop.f32.mrb[0].mxu0
        %v8716 = vadd.f32 0.0, %v8715
        %v8717 = vpop.f32.mrb[0].mxu0
        %8718 = vmatprep.mubr.f32.mxu0 0.0
        %8719 = vmatmul.mubr.f32.gmra.mrb[0].mxu0 %v8534
        %v8720 = vpop.f32.mrb[0].mxu0
        %v8721 = vadd.f32 0.0, %v8720
        %v8722 = vpop.f32.mrb[0].mxu0
        %8723 = vmatprep.mubr.f32.mxu0 0.0
        %8724 = vmatmul.mubr.f32.gmra.mrb[0].mxu0 %v8537
        %v8725 = vpop.f32.mrb[0].mxu0
        %v8726 = vadd.f32 0.0, %v8725
        %v8727 = vpop.f32.mrb[0].mxu0
        %8728 = vmatprep.mubr.f32.mxu0 0.0
        %8729 = vmatmul.mubr.f32.gmra.mrb[0].mxu0 %v8540
        %v8730 = vpop.f32.mrb[0].mxu0
        %v8731 = vadd.f32 0.0, %v8730
        %v8732 = vpop.f32.mrb[0].mxu0
        %8733 = vmatprep.mubr.f32.mxu0 0.0
        %8734 = vmatmul.mubr.f32.gmra.mrb[0].mxu0 %v8543
        %v8735 = vpop.f32.mrb[0].mxu0
        %v8736 = vadd.f32 0.0, %v8735
        %v8737 = vpop.f32.mrb[0].mxu0
        %8738 = vmatprep.mubr.f32.mxu0 0.0
        %8739 = vmatmul.mubr.f32.gmra.mrb[0].mxu0 %v8546
        %v8740 = vpop.f32.mrb[0].mxu0
        %v8741 = vadd.f32 0.0, %v8740
        %v8742 = vpop.f32.mrb[0].mxu0
        %8743 = vmatprep.mubr.f32.mxu0 0.0
        %8744 = vmatmul.mubr.f32.gmra.mrb[0].mxu0 %v8549
        %v8745 = vpop.f32.mrb[0].mxu0
        %v8746 = vadd.f32 0.0, %v8745
        %v8747 = vpop.f32.mrb[0].mxu0
        %8748 = vmatprep.mubr.f32.mxu0 0.0
        %8749 = vmatmul.mubr.f32.gmra.mrb[0].mxu0 %v8552
        %v8750 = vpop.f32.mrb[0].mxu0
        %v8751 = vadd.f32 0.0, %v8750
        %v8752 = vpop.f32.mrb[0].mxu0
        %8753 = vmatprep.mubr.f32.mxu0 0.0
        %8754 = vmatmul.mubr.f32.gmra.mrb[0].mxu0 %v8555
        %v8755 = vpop.f32.mrb[0].mxu0
        %v8756 = vadd.f32 0.0, %v8755
        %v8757 = vpop.f32.mrb[0].mxu0
        %8758 = vmatprep.mubr.f32.mxu0 0.0
        %8759 = vmatmul.mubr.f32.gmra.mrb[0].mxu0 %v8558
        %v8760 = vpop.f32.mrb[0].mxu0
        %v8761 = vadd.f32 0.0, %v8760
        %v8762 = vpop.f32.mrb[0].mxu0
        %8763 = vmatprep.mubr.f32.mxu0 0.0
        %8764 = vmatmul.mubr.f32.gmra.mrb[0].mxu0 %v8561
        %v8765 = vpop.f32.mrb[0].mxu0
        %v8766 = vadd.f32 0.0, %v8765
        %v8767 = vpop.f32.mrb[0].mxu0
        %8768 = vmatprep.mubr.f32.mxu0 0.0
        %8769 = vmatmul.mubr.f32.gmra.mrb[0].mxu0 %v8564
        %v8770 = vpop.f32.mrb[0].mxu0
        %v8771 = vadd.f32 0.0, %v8770
        %v8772 = vpop.f32.mrb[0].mxu0
        %8773 = vmatprep.mubr.f32.mxu0 0.0
        %8774 = vmatmul.mubr.f32.gmra.mrb[0].mxu0 %v8567
        %v8775 = vpop.f32.mrb[0].mxu0
        %v8776 = vadd.f32 0.0, %v8775
        %v8777 = vpop.f32.mrb[0].mxu0
        %8778 = vmatprep.mubr.f32.mxu0 0.0
        %8779 = vmatmul.mubr.f32.gmra.mrb[0].mxu0 %v8570
        %v8780 = vpop.f32.mrb[0].mxu0
        %v8781 = vadd.f32 0.0, %v8780
        %v8782 = vpop.f32.mrb[0].mxu0
        %8783 = vmatprep.mubr.f32.mxu0 0.0
        %8784 = vmatmul.mubr.f32.gmra.mrb[0].mxu0 %v8573
        %v8785 = vpop.f32.mrb[0].mxu0
        %v8786 = vadd.f32 0.0, %v8785
        %v8787 = vpop.f32.mrb[0].mxu0
        %8788 = vmatprep.mubr.f32.mxu0 0.0
        %8789 = vmatmul.mubr.f32.gmra.mrb[0].mxu0 %v8576
        %v8790 = vpop.f32.mrb[0].mxu0
        %v8791 = vadd.f32 0.0, %v8790
        %v8792 = vpop.f32.mrb[0].mxu0
        %8793 = vmatprep.mubr.f32.mxu0 0.0
        %8794 = vmatmul.mubr.f32.gmra.mrb[0].mxu0 %v8579
        %v8795 = vpop.f32.mrb[0].mxu0
        %v8796 = vadd.f32 0.0, %v8795
        %v8797 = vpop.f32.mrb[0].mxu0
        %8798 = vmatprep.mubr.f32.mxu0 0.0
        %8799 = vmatmul.mubr.f32.gmra.mrb[0].mxu0 %v8582
        %v8800 = vpop.f32.mrb[0].mxu0
        %v8801 = vadd.f32 0.0, %v8800
        %v8802 = vpop.f32.mrb[0].mxu0
        %8803 = vmatprep.mubr.f32.mxu0 0.0
        %8804 = vmatmul.mubr.f32.gmra.mrb[0].mxu0 %v8585
        %v8805 = vpop.f32.mrb[0].mxu0
        %v8806 = vadd.f32 0.0, %v8805
        %v8807 = vpop.f32.mrb[0].mxu0
        %8808 = vmatprep.mubr.f32.mxu0 0.0
        %8809 = vmatmul.mubr.f32.gmra.mrb[0].mxu0 %v8588
        %v8810 = vpop.f32.mrb[0].mxu0
        %v8811 = vadd.f32 0.0, %v8810
        %v8812 = vpop.f32.mrb[0].mxu0
        %8813 = vmatprep.mubr.f32.mxu0 0.0
        %8814 = vmatmul.mubr.f32.gmra.mrb[0].mxu0 %v8591
        %v8815 = vpop.f32.mrb[0].mxu0
        %v8816 = vadd.f32 0.0, %v8815
        %v8817 = vpop.f32.mrb[0].mxu0
        %8818 = vmatprep.mubr.f32.mxu0 0.0
        %8819 = vmatmul.mubr.f32.gmra.mrb[0].mxu0 %v8594
        %v8820 = vpop.f32.mrb[0].mxu0
        %v8821 = vadd.f32 0.0, %v8820
        %v8822 = vpop.f32.mrb[0].mxu0
        %8823 = vdwg.mxu0
        %v8824 = vadd.f32 %v8466, %v8666
        %v8825 = vadd.f32 %v8467, %v8671
        %v8826 = vadd.f32 %v8468, %v8676
        %v8827 = vadd.f32 %v8469, %v8681
        %v8828 = vadd.f32 %v8470, %v8686
        %v8829 = vadd.f32 %v8471, %v8691
        %v8830 = vadd.f32 %v8472, %v8696
        %v8831 = vadd.f32 %v8473, %v8701
        %v8832 = vadd.f32 %v8474, %v8706
        %v8833 = vadd.f32 %v8475, %v8711
        %v8834 = vadd.f32 %v8476, %v8716
        %v8835 = vadd.f32 %v8477, %v8721
        %v8836 = vadd.f32 %v8478, %v8726
        %v8837 = vadd.f32 %v8479, %v8731
        %v8838 = vadd.f32 %v8480, %v8736
        %v8839 = vadd.f32 %v8481, %v8741
        %v8840 = vadd.f32 %v8482, %v8746
        %v8841 = vadd.f32 %v8483, %v8751
        %v8842 = vadd.f32 %v8484, %v8756
        %v8843 = vadd.f32 %v8485, %v8761
        %v8844 = vadd.f32 %v8486, %v8766
        %v8845 = vadd.f32 %v8487, %v8771
        %v8846 = vadd.f32 %v8488, %v8776
        %v8847 = vadd.f32 %v8489, %v8781
        %v8848 = vadd.f32 %v8490, %v8786
        %v8849 = vadd.f32 %v8491, %v8791
        %v8850 = vadd.f32 %v8492, %v8796
        %v8851 = vadd.f32 %v8493, %v8801
        %v8852 = vadd.f32 %v8494, %v8806
        %v8853 = vadd.f32 %v8495, %v8811
        %v8854 = vadd.f32 %v8496, %v8816
        %v8855 = vadd.f32 %v8497, %v8821
        %8856 = vst [vmem:[#allocation2] sm:$0xff] %v8824
        %8857 = vst [vmem:[#allocation2 + $0x8] sm:$0xff] %v8825
        %8858 = vst [vmem:[#allocation2 + $0x10] sm:$0xff] %v8826
        %8859 = vst [vmem:[#allocation2 + $0x18] sm:$0xff] %v8827
        %8860 = vst [vmem:[#allocation2 + $0x20] sm:$0xff] %v8828
        %8861 = vst [vmem:[#allocation2 + $0x28] sm:$0xff] %v8829
        %8862 = vst [vmem:[#allocation2 + $0x30] sm:$0xff] %v8830
        %8863 = vst [vmem:[#allocation2 + $0x38] sm:$0xff] %v8831
        %8864 = vst [vmem:[#allocation2 + $0x40] sm:$0xff] %v8832
        %8865 = vst [vmem:[#allocation2 + $0x48] sm:$0xff] %v8833
        %8866 = vst [vmem:[#allocation2 + $0x50] sm:$0xff] %v8834
        %8867 = vst [vmem:[#allocation2 + $0x58] sm:$0xff] %v8835
        %8868 = vst [vmem:[#allocation2 + $0x60] sm:$0xff] %v8836
        %8869 = vst [vmem:[#allocation2 + $0x68] sm:$0xff] %v8837
        %8870 = vst [vmem:[#allocation2 + $0x70] sm:$0xff] %v8838
        %8871 = vst [vmem:[#allocation2 + $0x78] sm:$0xff] %v8839
        %8872 = vst [vmem:[#allocation2 + $0x80] sm:$0xff] %v8840
        %8873 = vst [vmem:[#allocation2 + $0x88] sm:$0xff] %v8841
        %8874 = vst [vmem:[#allocation2 + $0x90] sm:$0xff] %v8842
        %8875 = vst [vmem:[#allocation2 + $0x98] sm:$0xff] %v8843
        %8876 = vst [vmem:[#allocation2 + $0xa0] sm:$0xff] %v8844
        %8877 = vst [vmem:[#allocation2 + $0xa8] sm:$0xff] %v8845
        %8878 = vst [vmem:[#allocation2 + $0xb0] sm:$0xff] %v8846
        %8879 = vst [vmem:[#allocation2 + $0xb8] sm:$0xff] %v8847
        %8880 = vst [vmem:[#allocation2 + $0xc0] sm:$0xff] %v8848
        %8881 = vst [vmem:[#allocation2 + $0xc8] sm:$0xff] %v8849
        %8882 = vst [vmem:[#allocation2 + $0xd0] sm:$0xff] %v8850
        %8883 = vst [vmem:[#allocation2 + $0xd8] sm:$0xff] %v8851
        %8884 = vst [vmem:[#allocation2 + $0xe0] sm:$0xff] %v8852
        %8885 = vst [vmem:[#allocation2 + $0xe8] sm:$0xff] %v8853
        %8886 = vst [vmem:[#allocation2 + $0xf0] sm:$0xff] %v8854
        %8887 = vst [vmem:[#allocation2 + $0xf8] sm:$0xff] %v8855
        %v8888 = vld [vmem:[#allocation2] sm:$0xff]
        %v8889 = vld [vmem:[#allocation2 + $0x8] sm:$0xff]
        %v8890 = vld [vmem:[#allocation2 + $0x10] sm:$0xff]
        %v8891 = vld [vmem:[#allocation2 + $0x18] sm:$0xff]
        %v8892 = vld [vmem:[#allocation2 + $0x20] sm:$0xff]
        %v8893 = vld [vmem:[#allocation2 + $0x28] sm:$0xff]
        %v8894 = vld [vmem:[#allocation2 + $0x30] sm:$0xff]
        %v8895 = vld [vmem:[#allocation2 + $0x38] sm:$0xff]
        %v8896 = vld [vmem:[#allocation2 + $0x40] sm:$0xff]
        %v8897 = vld [vmem:[#allocation2 + $0x48] sm:$0xff]
        %v8898 = vld [vmem:[#allocation2 + $0x50] sm:$0xff]
        %v8899 = vld [vmem:[#allocation2 + $0x58] sm:$0xff]
        %v8900 = vld [vmem:[#allocation2 + $0x60] sm:$0xff]
        %v8901 = vld [vmem:[#allocation2 + $0x68] sm:$0xff]
        %v8902 = vld [vmem:[#allocation2 + $0x70] sm:$0xff]
        %v8903 = vld [vmem:[#allocation2 + $0x78] sm:$0xff]
        %v8904 = vld [vmem:[#allocation2 + $0x80] sm:$0xff]
        %v8905 = vld [vmem:[#allocation2 + $0x88] sm:$0xff]
        %v8906 = vld [vmem:[#allocation2 + $0x90] sm:$0xff]
        %v8907 = vld [vmem:[#allocation2 + $0x98] sm:$0xff]
        %v8908 = vld [vmem:[#allocation2 + $0xa0] sm:$0xff]
        %v8909 = vld [vmem:[#allocation2 + $0xa8] sm:$0xff]
        %v8910 = vld [vmem:[#allocation2 + $0xb0] sm:$0xff]
        %v8911 = vld [vmem:[#allocation2 + $0xb8] sm:$0xff]
        %v8912 = vld [vmem:[#allocation2 + $0xc0] sm:$0xff]
        %v8913 = vld [vmem:[#allocation2 + $0xc8] sm:$0xff]
        %v8914 = vld [vmem:[#allocation2 + $0xd0] sm:$0xff]
        %v8915 = vld [vmem:[#allocation2 + $0xd8] sm:$0xff]
        %v8916 = vld [vmem:[#allocation2 + $0xe0] sm:$0xff]
        %v8917 = vld [vmem:[#allocation2 + $0xe8] sm:$0xff]
        %v8918 = vld [vmem:[#allocation2 + $0xf0] sm:$0xff]
        %v8919 = vld [vmem:[#allocation2 + $0xf8] sm:$0xff]
        %8920 = vst [vmem:[%s201] sm:$0xff] %v8888
        %8921 = vst [vmem:[%s201 + $0x8] sm:$0xff] %v8889
        %8922 = vst [vmem:[%s201 + $0x10] sm:$0xff] %v8890
        %8923 = vst [vmem:[%s201 + $0x18] sm:$0xff] %v8891
        %8924 = vst [vmem:[%s201 + $0x20] sm:$0xff] %v8892
        %8925 = vst [vmem:[%s201 + $0x28] sm:$0xff] %v8893
        %8926 = vst [vmem:[%s201 + $0x30] sm:$0xff] %v8894
        %8927 = vst [vmem:[%s201 + $0x38] sm:$0xff] %v8895
        %8928 = vst [vmem:[%s201 + $0x40] sm:$0xff] %v8896
        %8929 = vst [vmem:[%s201 + $0x48] sm:$0xff] %v8897
        %8930 = vst [vmem:[%s201 + $0x50] sm:$0xff] %v8898
        %8931 = vst [vmem:[%s201 + $0x58] sm:$0xff] %v8899
        %8932 = vst [vmem:[%s201 + $0x60] sm:$0xff] %v8900
        %8933 = vst [vmem:[%s201 + $0x68] sm:$0xff] %v8901
        %8934 = vst [vmem:[%s201 + $0x70] sm:$0xff] %v8902
        %8935 = vst [vmem:[%s201 + $0x78] sm:$0xff] %v8903
        %8936 = vst [vmem:[%s201 + $0x80] sm:$0xff] %v8904
        %8937 = vst [vmem:[%s201 + $0x88] sm:$0xff] %v8905
        %8938 = vst [vmem:[%s201 + $0x90] sm:$0xff] %v8906
        %8939 = vst [vmem:[%s201 + $0x98] sm:$0xff] %v8907
        %8940 = vst [vmem:[%s201 + $0xa0] sm:$0xff] %v8908
        %8941 = vst [vmem:[%s201 + $0xa8] sm:$0xff] %v8909
        %8942 = vst [vmem:[%s201 + $0xb0] sm:$0xff] %v8910
        %8943 = vst [vmem:[%s201 + $0xb8] sm:$0xff] %v8911
        %8944 = vst [vmem:[%s201 + $0xc0] sm:$0xff] %v8912
        %8945 = vst [vmem:[%s201 + $0xc8] sm:$0xff] %v8913
        %8946 = vst [vmem:[%s201 + $0xd0] sm:$0xff] %v8914
        %8947 = vst [vmem:[%s201 + $0xd8] sm:$0xff] %v8915
        %8948 = vst [vmem:[%s201 + $0xe0] sm:$0xff] %v8916
        %8949 = vst [vmem:[%s201 + $0xe8] sm:$0xff] %v8917
        %8950 = vst [vmem:[%s201 + $0xf0] sm:$0xff] %v8918
        %8951 = vst [vmem:[%s201 + $0xf8] sm:$0xff] %v8919
        %s8952 = sand.u32 %s117, 1
        %s8953 = scalar_lea.sflag [#allocation4], %s8952
        %s8954 = sand.u32 %s117, 1
        %s8955 = smul.addr %s8954, 256
        %s8956 = scalar_lea.vmem [#allocation3], %s8955
        // Predicated region
        $region33: #{tpu_custom_call.1} parent=31 // pred_check
          %p8957 = pneg %p127
        $region34: #{tpu_custom_call.1} parent=31 // pred_check_branch
          %8959 = sbr.rel (%p8957) target = $region36
        $region35: #{tpu_custom_call.1} parent=31 // pred_region
          %s8961 = ssub.s32 4096, 4096
          %8962 = vsyncadd %s8953, %s8961
          %s8963 = smul.addr %s21, 32
          %s8964 = sadd.s32 %s22, %s8963
          %s8965 = smul.addr %s8964, 128
          %s8966 = scalar_lea.hbm %s3, %s8965
          %s8967 = sshll.u32 %s8956, 4
          %s8968 = int_to_ptr.vmem [resolvable:$true] %s8967
          %8973 = dma.vmem_to_hbm [thread:$0]  %s8968, 4096, %s8966, %s8953, 128, 128, 8
        $region36: #{tpu_custom_call.1} parent=31 // pred_fallthru
          _
      $region32: #{tpu_custom_call.1} parent=5 // pred_fallthru
        _
      %p8974 = scmp.le.s32.totalorder 2, %s12
      // Predicated region
      $region37: #{tpu_custom_call.1} parent=5 // pred_check
        %p8975 = pneg %p8974
      $region38: #{tpu_custom_call.1} parent=5 // pred_check_branch
        %8977 = sbr.rel (%p8975) target = $region40
      $region39: #{tpu_custom_call.1} parent=5 // pred_region
        %s8978 = ssub.s32 %s12, 2
        // Predicated region
        $region41: #{tpu_custom_call.1} parent=39 // pred_check
          %p8979 = pneg %p133
        $region42: #{tpu_custom_call.1} parent=39 // pred_check_branch
          %8981 = sbr.rel (%p8979) target = $region44
        $region43: #{tpu_custom_call.1} parent=39 // pred_region
          %s8982 = sand.u32 %s118, 1
          %s8983 = scalar_lea.sflag [#allocation4], %s8982
          %s8984 = sand.u32 %s118, 1
          %s8985 = smul.addr %s8984, 256
          %s8986 = scalar_lea.vmem [#allocation3], %s8985
          %8987 = dma.done %s8983, 4096
        $region44: #{tpu_custom_call.1} parent=39 // pred_fallthru
          _
      $region40: #{tpu_custom_call.1} parent=5 // pred_fallthru
        _
    $region6: #{tpu_custom_call.1} parent=1 // loop_footer
      %s16 = sadd.s32 1, %s12
    $region7: #{tpu_custom_call.1} parent=1 // loop_footer_branch
      %11 = sbr.rel target = $region3
    $region8: #{tpu_custom_call.1} parent=1 // loop_exit
      _
    %8988 = vsyncpa [#allocation4], 1
    %s8989 = scalar_lea.sflag [#allocation4], 1
    %8990 = vsyncpa %s8989, 1

</llo_original>
